<compile_context>
chip_gen: v6e
topology: v6e:2x2x1
jax: 0.10.0
libtpu: 0.0.40
codegen_flags: <defaults>
</compile_context>

<pallas_src>
import math

import jax
import jax.numpy as jnp
from jax.experimental import pallas as pl
from jax.experimental.pallas import tpu as pltpu

# ----------------------------- model config ---------------------------------
IMG_SIZE = 16
PATCH = 4
IN_CH = 4
EMBED = 32
DEPTH = 2
HEADS = 8
HEAD_DIM = EMBED // HEADS
MLP_HIDDEN = int(EMBED * 4.0)
NUM_CLASSES = 2
NUM_PATCHES = (IMG_SIZE // PATCH) ** 2
SEQ = NUM_PATCHES + 1
PATCH_DIM = PATCH * PATCH * IN_CH
LN_EPS = 1e-5
ATTN_SCALE = HEAD_DIM ** 0.5

_INV_SQRT2 = 1.0 / math.sqrt(2.0)


# ----------------------------- fused Pallas kernel ---------------------------
def _vit_kernel(x_ref, proj_w_ref, embed_bias_ref,
                ln1_g_ref, ln1_b_ref, wqkv_ref, wo_ref,
                ln2_g_ref, ln2_b_ref, fc1_w_ref, fc1_b_ref,
                fc2_w_ref, fc2_b_ref,
                norm_g_ref, norm_b_ref, head_w_ref, head_b_ref,
                o_ref):
    """Single invocation == the full-batch ViT forward, entirely in VMEM."""
    B = o_ref.shape[0]

    def layer_norm(v, g, b):
        mean = jnp.mean(v, axis=-1, keepdims=True)
        var = jnp.mean((v - mean) ** 2, axis=-1, keepdims=True)
        return (v - mean) * jax.lax.rsqrt(var + LN_EPS) * g + b

    # Patch embedding on the flattened (B*SEQ, PATCH_DIM) slab.  Row b*SEQ of
    # x is zero (cls slot); embed_bias row 0 carries cls_token + pos[0],
    # rows 1.. carry proj_b + pos[i].
    x = x_ref[...].astype(jnp.float32)                            # (B*SEQ, PD)
    bias_full = jnp.concatenate([embed_bias_ref[...]] * B, axis=0)  # (B*SEQ, E)
    seq = jnp.dot(x, proj_w_ref[...],
                  preferred_element_type=jnp.float32) + bias_full

    inv_scale = 1.0 / ATTN_SCALE
    for d in range(DEPTH):                                        # static unroll
        # ---- attention branch (LN1 fused into the QKV matmul) ----
        h = layer_norm(seq, ln1_g_ref[d], ln1_b_ref[d])           # (B*SEQ, E)
        qkv = jnp.dot(h, wqkv_ref[d], preferred_element_type=jnp.float32)

        per_batch = []
        for b in range(B):                                        # static unroll
            r0 = b * SEQ
            q_b = qkv[r0:r0 + SEQ, 0 * EMBED:1 * EMBED]
            k_b = qkv[r0:r0 + SEQ, 1 * EMBED:2 * EMBED]
            v_b = qkv[r0:r0 + SEQ, 2 * EMBED:3 * EMBED]
            head_outs = []
            for hd in range(HEADS):                               # static unroll
                lo = hd * HEAD_DIM
                qh = q_b[:, lo:lo + HEAD_DIM]                     # (SEQ, HD)
                kh = k_b[:, lo:lo + HEAD_DIM]
                vh = v_b[:, lo:lo + HEAD_DIM]
                # scores = qh @ kh^T / sqrt(head_dim)
                s = jax.lax.dot_general(qh, kh, (((1,), (1,)), ((), ())),
                                        preferred_element_type=jnp.float32)
                s = s * inv_scale                                 # (SEQ, SEQ)
                m = jnp.max(s, axis=-1, keepdims=True)
                e = jnp.exp(s - m)
                p = e / jnp.sum(e, axis=-1, keepdims=True)
                head_outs.append(
                    jnp.dot(p, vh, preferred_element_type=jnp.float32))
            per_batch.append(jnp.concatenate(head_outs, axis=-1))  # (SEQ, E)
        attn = jnp.concatenate(per_batch, axis=0)                 # (B*SEQ, E)
        attn = jnp.dot(attn, wo_ref[d], preferred_element_type=jnp.float32)
        # TODO(synk): dropout1 omitted (inference / identity).
        seq = seq + attn                                          # fused residual

        # ---- MLP branch (LN2, exact-erf GELU, residual all fused) ----
        h2 = layer_norm(seq, ln2_g_ref[d], ln2_b_ref[d])
        m1 = jnp.dot(h2, fc1_w_ref[d], preferred_element_type=jnp.float32)
        m1 = m1 + fc1_b_ref[d]
        m1 = 0.5 * m1 * (1.0 + jax.lax.erf(m1 * _INV_SQRT2))      # torch GELU default
        m2 = jnp.dot(m1, fc2_w_ref[d], preferred_element_type=jnp.float32)
        m2 = m2 + fc2_b_ref[d]
        # TODO(synk): MLP dropouts omitted (inference / identity).
        seq = seq + m2                                            # fused residual

    # ---- final LayerNorm + classifier head on the B cls rows only ----
    cls = jnp.concatenate([seq[b * SEQ:b * SEQ + 1, :] for b in range(B)],
                          axis=0)                                 # (B, EMBED)
    cls = layer_norm(cls, norm_g_ref[...], norm_b_ref[...])
    logits = jnp.dot(cls, head_w_ref[...],
                     preferred_element_type=jnp.float32) + head_b_ref[...]
    o_ref[...] = logits.astype(o_ref.dtype)


# ----------------------------- parameters -----------------------------------
def init_params(key):
    def normal(k, shape, std=0.02):
        return jax.random.normal(k, shape, dtype=jnp.float32) * std

    keys = iter(jax.random.split(key, 8 + DEPTH * 16))

    proj_w = normal(next(keys), (PATCH_DIM, EMBED))
    proj_b = jnp.zeros((EMBED,), jnp.float32)
    cls_token = jnp.zeros((1, 1, EMBED), jnp.float32)
    pos_embed = normal(next(keys), (1, SEQ, EMBED), std=0.02)

    # Fold cls-token concat + positional embedding + patch-proj bias into a
    # single additive (SEQ, EMBED) table.  Row 0 of the patch input is zero,
    # so row 0 here is exactly cls_token + pos[0] (no proj bias).
    embed_bias = pos_embed[0] + proj_b[None, :]
    embed_bias = embed_bias.at[0].set(pos_embed[0, 0] + cls_token[0, 0])

    ln1_g, ln1_b, wqkv, wo = [], [], [], []
    ln2_g, ln2_b, fc1_w, fc1_b, fc2_w, fc2_b = [], [], [], [], [], []
    for _ in range(DEPTH):
        ln1_g.append(jnp.ones((1, EMBED), jnp.float32))
        ln1_b.append(jnp.zeros((1, EMBED), jnp.float32))
        wq = normal(next(keys), (EMBED, EMBED))
        wk = normal(next(keys), (EMBED, EMBED))
        wv = normal(next(keys), (EMBED, EMBED))
        wqkv.append(jnp.concatenate([wq, wk, wv], axis=1))        # (EMBED, 3*EMBED)
        wo.append(normal(next(keys), (EMBED, EMBED)))
        ln2_g.append(jnp.ones((1, EMBED), jnp.float32))
        ln2_b.append(jnp.zeros((1, EMBED), jnp.float32))
        fc1_w.append(normal(next(keys), (EMBED, MLP_HIDDEN)))
        fc1_b.append(jnp.zeros((1, MLP_HIDDEN), jnp.float32))
        fc2_w.append(normal(next(keys), (MLP_HIDDEN, EMBED)))
        fc2_b.append(jnp.zeros((1, EMBED), jnp.float32))

    return {
        "proj_w": proj_w,
        "embed_bias": embed_bias,
        "ln1_g": jnp.stack(ln1_g), "ln1_b": jnp.stack(ln1_b),
        "wqkv": jnp.stack(wqkv), "wo": jnp.stack(wo),
        "ln2_g": jnp.stack(ln2_g), "ln2_b": jnp.stack(ln2_b),
        "fc1_w": jnp.stack(fc1_w), "fc1_b": jnp.stack(fc1_b),
        "fc2_w": jnp.stack(fc2_w), "fc2_b": jnp.stack(fc2_b),
        "norm_g": jnp.ones((1, EMBED), jnp.float32),
        "norm_b": jnp.zeros((1, EMBED), jnp.float32),
        "head_w": normal(next(keys), (EMBED, NUM_CLASSES)),
        "head_b": jnp.zeros((1, NUM_CLASSES), jnp.float32),
    }


# ----------------------------- forward pass ----------------------------------
_WEIGHT_NAMES = ("proj_w", "embed_bias", "ln1_g", "ln1_b", "wqkv", "wo",
                 "ln2_g", "ln2_b", "fc1_w", "fc1_b", "fc2_w", "fc2_b",
                 "norm_g", "norm_b", "head_w", "head_b")


def vit_forward(params, x):
    """x: (B, C, H, W) NCHW -> logits (B, NUM_CLASSES)."""
    B, C, H, W = x.shape
    p = PATCH
    patch_dim = C * p * p

    # Patchify (pure-JAX layout glue; matches the PyTorch view/permute/view).
    xp = x.reshape(B, C, H // p, p, W // p, p)
    xp = jnp.transpose(xp, (0, 2, 4, 1, 3, 5)).reshape(B, NUM_PATCHES, patch_dim)
    # Zero row per batch reserves the cls-token slot (its embedding lives in
    # embed_bias); flatten batch*seq so the kernel does one tall matmul.
    xin = jnp.concatenate(
        [jnp.zeros((B, 1, patch_dim), xp.dtype), xp], axis=1)     # (B, SEQ, PD)
    xin = xin.reshape(B * SEQ, patch_dim)                         # (B*SEQ, PD)

    weights = [params[n] for n in _WEIGHT_NAMES]
    vmem = pl.BlockSpec(memory_space=pltpu.MemorySpace.VMEM)      # whole array

    logits = pl.pallas_call(
        _vit_kernel,
        out_shape=jax.ShapeDtypeStruct((B, NUM_CLASSES), jnp.float32),
        in_specs=[vmem] * (1 + len(weights)),
        out_specs=vmem,
        compiler_params=pltpu.CompilerParams(
            vmem_limit_bytes=16 * 1024 * 1024),
    )(xin, *weights)
    return logits


# ----------------------------- main ------------------------------------------
if __name__ == "__main__":
    key = jax.random.PRNGKey(0)
    pkey, xkey = jax.random.split(key)
    params = init_params(pkey)
    x = jax.random.normal(xkey, (2, IN_CH, IMG_SIZE, IMG_SIZE), dtype=jnp.float32)

    logits = jax.jit(vit_forward)(params, x)
    jax.block_until_ready(logits)
    assert logits.shape == (2, NUM_CLASSES)
    print("KERNEL_OK")
</pallas_src>

<mosaic_0001>
module attributes {stable_mosaic.version = 11 : i64} {
  func.func @_vit_kernel(%arg0: memref<34x64xf32, #tpu.memory_space<vmem>>, %arg1: memref<64x32xf32, #tpu.memory_space<vmem>>, %arg2: memref<17x32xf32, #tpu.memory_space<vmem>>, %arg3: memref<2x1x32xf32, #tpu.memory_space<vmem>>, %arg4: memref<2x1x32xf32, #tpu.memory_space<vmem>>, %arg5: memref<2x32x96xf32, #tpu.memory_space<vmem>>, %arg6: memref<2x32x32xf32, #tpu.memory_space<vmem>>, %arg7: memref<2x1x32xf32, #tpu.memory_space<vmem>>, %arg8: memref<2x1x32xf32, #tpu.memory_space<vmem>>, %arg9: memref<2x32x128xf32, #tpu.memory_space<vmem>>, %arg10: memref<2x1x128xf32, #tpu.memory_space<vmem>>, %arg11: memref<2x128x32xf32, #tpu.memory_space<vmem>>, %arg12: memref<2x1x32xf32, #tpu.memory_space<vmem>>, %arg13: memref<1x32xf32, #tpu.memory_space<vmem>>, %arg14: memref<1x32xf32, #tpu.memory_space<vmem>>, %arg15: memref<32x2xf32, #tpu.memory_space<vmem>>, %arg16: memref<1x2xf32, #tpu.memory_space<vmem>>, %arg17: memref<2x2xf32, #tpu.memory_space<vmem>>) attributes {dimension_semantics = [], scalar_prefetch = 0 : i64, scratch_operands = 0 : i64, tpu.core_type = #tpu.core_type<tc>} {
    %c0 = arith.constant 0 : index
    %c0_0 = arith.constant 0 : index
    %0 = vector.load %arg0[%c0, %c0_0] : memref<34x64xf32, #tpu.memory_space<vmem>>, vector<34x64xf32>
    %c0_1 = arith.constant 0 : index
    %c0_2 = arith.constant 0 : index
    %1 = vector.load %arg2[%c0_1, %c0_2] : memref<17x32xf32, #tpu.memory_space<vmem>>, vector<17x32xf32>
    %2 = tpu.concatenate %1, %1 in 0 : vector<17x32xf32>, vector<17x32xf32> -> vector<34x32xf32>
    %c0_3 = arith.constant 0 : index
    %c0_4 = arith.constant 0 : index
    %3 = vector.load %arg1[%c0_3, %c0_4] : memref<64x32xf32, #tpu.memory_space<vmem>>, vector<64x32xf32>
    %cst = arith.constant dense<0.000000e+00> : vector<34x32xf32>
    %4 = tpu.matmul %0, %3, %cst {dimension_numbers = #tpu.dot_dimension_numbers<[1], [0], [0], [1], [0, 0, 1, 1], [], []>} : vector<34x64xf32>, vector<64x32xf32>, vector<34x32xf32> -> vector<34x32xf32>
    %5 = arith.addf %4, %2 : vector<34x32xf32>
    %c0_5 = arith.constant 0 : index
    %c0_6 = arith.constant 0 : index
    %c0_7 = arith.constant 0 : index
    %6 = vector.load %arg3[%c0_5, %c0_6, %c0_7] : memref<2x1x32xf32, #tpu.memory_space<vmem>>, vector<1x1x32xf32>
    %7 = vector.shape_cast %6 : vector<1x1x32xf32> to vector<1x32xf32>
    %c0_8 = arith.constant 0 : index
    %c0_9 = arith.constant 0 : index
    %c0_10 = arith.constant 0 : index
    %8 = vector.load %arg4[%c0_8, %c0_9, %c0_10] : memref<2x1x32xf32, #tpu.memory_space<vmem>>, vector<1x1x32xf32>
    %9 = vector.shape_cast %8 : vector<1x1x32xf32> to vector<1x32xf32>
    %cst_11 = arith.constant dense<0.000000e+00> : vector<34xf32>
    %10 = vector.multi_reduction <add>, %5, %cst_11 [1] : vector<34x32xf32> to vector<34xf32>
    %11 = vector.shape_cast %10 : vector<34xf32> to vector<34x1xf32>
    %cst_12 = arith.constant 3.200000e+01 : f32
    %12 = vector.broadcast %cst_12 : f32 to vector<34x1xf32>
    %13 = arith.divf %11, %12 : vector<34x1xf32>
    %14 = vector.broadcast %13 : vector<34x1xf32> to vector<34x32xf32>
    %15 = arith.subf %5, %14 : vector<34x32xf32>
    %16 = arith.mulf %15, %15 : vector<34x32xf32>
    %cst_13 = arith.constant dense<0.000000e+00> : vector<34xf32>
    %17 = vector.multi_reduction <add>, %16, %cst_13 [1] : vector<34x32xf32> to vector<34xf32>
    %18 = vector.shape_cast %17 : vector<34xf32> to vector<34x1xf32>
    %cst_14 = arith.constant 3.200000e+01 : f32
    %19 = vector.broadcast %cst_14 : f32 to vector<34x1xf32>
    %20 = arith.divf %18, %19 : vector<34x1xf32>
    %21 = vector.broadcast %13 : vector<34x1xf32> to vector<34x32xf32>
    %22 = arith.subf %5, %21 : vector<34x32xf32>
    %cst_15 = arith.constant 9.99999974E-6 : f32
    %23 = vector.broadcast %cst_15 : f32 to vector<34x1xf32>
    %24 = arith.addf %20, %23 : vector<34x1xf32>
    %25 = math.rsqrt %24 : vector<34x1xf32>
    %26 = vector.broadcast %25 : vector<34x1xf32> to vector<34x32xf32>
    %27 = arith.mulf %22, %26 : vector<34x32xf32>
    %28 = vector.broadcast %7 : vector<1x32xf32> to vector<34x32xf32>
    %29 = arith.mulf %27, %28 : vector<34x32xf32>
    %30 = vector.broadcast %9 : vector<1x32xf32> to vector<34x32xf32>
    %31 = arith.addf %29, %30 : vector<34x32xf32>
    %c0_16 = arith.constant 0 : index
    %c0_17 = arith.constant 0 : index
    %c0_18 = arith.constant 0 : index
    %32 = vector.load %arg5[%c0_16, %c0_17, %c0_18] : memref<2x32x96xf32, #tpu.memory_space<vmem>>, vector<1x32x96xf32>
    %33 = vector.shape_cast %32 : vector<1x32x96xf32> to vector<32x96xf32>
    %cst_19 = arith.constant dense<0.000000e+00> : vector<34x96xf32>
    %34 = tpu.matmul %31, %33, %cst_19 {dimension_numbers = #tpu.dot_dimension_numbers<[1], [0], [0], [1], [0, 0, 1, 1], [], []>} : vector<34x32xf32>, vector<32x96xf32>, vector<34x96xf32> -> vector<34x96xf32>
    %35 = vector.extract_strided_slice %34 {offsets = [0, 0], sizes = [17, 32], strides = [1, 1]} : vector<34x96xf32> to vector<17x32xf32>
    %36 = vector.extract_strided_slice %34 {offsets = [0, 32], sizes = [17, 32], strides = [1, 1]} : vector<34x96xf32> to vector<17x32xf32>
    %37 = vector.extract_strided_slice %34 {offsets = [0, 64], sizes = [17, 32], strides = [1, 1]} : vector<34x96xf32> to vector<17x32xf32>
    %38 = vector.extract_strided_slice %35 {offsets = [0, 0], sizes = [17, 4], strides = [1, 1]} : vector<17x32xf32> to vector<17x4xf32>
    %39 = vector.extract_strided_slice %36 {offsets = [0, 0], sizes = [17, 4], strides = [1, 1]} : vector<17x32xf32> to vector<17x4xf32>
    %40 = vector.extract_strided_slice %37 {offsets = [0, 0], sizes = [17, 4], strides = [1, 1]} : vector<17x32xf32> to vector<17x4xf32>
    %cst_20 = arith.constant dense<0.000000e+00> : vector<17x17xf32>
    %41 = tpu.matmul %38, %39, %cst_20 {dimension_numbers = #tpu.dot_dimension_numbers<[1], [1], [0], [0], [0, 0, 1, 0], [], []>} : vector<17x4xf32>, vector<17x4xf32>, vector<17x17xf32> -> vector<17x17xf32>
    %cst_21 = arith.constant 5.000000e-01 : f32
    %42 = vector.broadcast %cst_21 : f32 to vector<17x17xf32>
    %43 = arith.mulf %41, %42 : vector<17x17xf32>
    %cst_22 = arith.constant dense<0xFF800000> : vector<17xf32>
    %44 = vector.multi_reduction <maximumf>, %43, %cst_22 [1] : vector<17x17xf32> to vector<17xf32>
    %45 = vector.shape_cast %44 : vector<17xf32> to vector<17x1xf32>
    %46 = vector.broadcast %45 : vector<17x1xf32> to vector<17x17xf32>
    %47 = arith.subf %43, %46 : vector<17x17xf32>
    %48 = math.exp %47 : vector<17x17xf32>
    %cst_23 = arith.constant dense<0.000000e+00> : vector<17xf32>
    %49 = vector.multi_reduction <add>, %48, %cst_23 [1] : vector<17x17xf32> to vector<17xf32>
    %50 = vector.shape_cast %49 : vector<17xf32> to vector<17x1xf32>
    %51 = vector.broadcast %50 : vector<17x1xf32> to vector<17x17xf32>
    %52 = arith.divf %48, %51 : vector<17x17xf32>
    %cst_24 = arith.constant dense<0.000000e+00> : vector<17x4xf32>
    %53 = tpu.matmul %52, %40, %cst_24 {dimension_numbers = #tpu.dot_dimension_numbers<[1], [0], [0], [1], [0, 0, 1, 1], [], []>} : vector<17x17xf32>, vector<17x4xf32>, vector<17x4xf32> -> vector<17x4xf32>
    %54 = vector.extract_strided_slice %35 {offsets = [0, 4], sizes = [17, 4], strides = [1, 1]} : vector<17x32xf32> to vector<17x4xf32>
    %55 = vector.extract_strided_slice %36 {offsets = [0, 4], sizes = [17, 4], strides = [1, 1]} : vector<17x32xf32> to vector<17x4xf32>
    %56 = vector.extract_strided_slice %37 {offsets = [0, 4], sizes = [17, 4], strides = [1, 1]} : vector<17x32xf32> to vector<17x4xf32>
    %cst_25 = arith.constant dense<0.000000e+00> : vector<17x17xf32>
    %57 = tpu.matmul %54, %55, %cst_25 {dimension_numbers = #tpu.dot_dimension_numbers<[1], [1], [0], [0], [0, 0, 1, 0], [], []>} : vector<17x4xf32>, vector<17x4xf32>, vector<17x17xf32> -> vector<17x17xf32>
    %cst_26 = arith.constant 5.000000e-01 : f32
    %58 = vector.broadcast %cst_26 : f32 to vector<17x17xf32>
    %59 = arith.mulf %57, %58 : vector<17x17xf32>
    %cst_27 = arith.constant dense<0xFF800000> : vector<17xf32>
    %60 = vector.multi_reduction <maximumf>, %59, %cst_27 [1] : vector<17x17xf32> to vector<17xf32>
    %61 = vector.shape_cast %60 : vector<17xf32> to vector<17x1xf32>
    %62 = vector.broadcast %61 : vector<17x1xf32> to vector<17x17xf32>
    %63 = arith.subf %59, %62 : vector<17x17xf32>
    %64 = math.exp %63 : vector<17x17xf32>
    %cst_28 = arith.constant dense<0.000000e+00> : vector<17xf32>
    %65 = vector.multi_reduction <add>, %64, %cst_28 [1] : vector<17x17xf32> to vector<17xf32>
    %66 = vector.shape_cast %65 : vector<17xf32> to vector<17x1xf32>
    %67 = vector.broadcast %66 : vector<17x1xf32> to vector<17x17xf32>
    %68 = arith.divf %64, %67 : vector<17x17xf32>
    %cst_29 = arith.constant dense<0.000000e+00> : vector<17x4xf32>
    %69 = tpu.matmul %68, %56, %cst_29 {dimension_numbers = #tpu.dot_dimension_numbers<[1], [0], [0], [1], [0, 0, 1, 1], [], []>} : vector<17x17xf32>, vector<17x4xf32>, vector<17x4xf32> -> vector<17x4xf32>
    %70 = vector.extract_strided_slice %35 {offsets = [0, 8], sizes = [17, 4], strides = [1, 1]} : vector<17x32xf32> to vector<17x4xf32>
    %71 = vector.extract_strided_slice %36 {offsets = [0, 8], sizes = [17, 4], strides = [1, 1]} : vector<17x32xf32> to vector<17x4xf32>
    %72 = vector.extract_strided_slice %37 {offsets = [0, 8], sizes = [17, 4], strides = [1, 1]} : vector<17x32xf32> to vector<17x4xf32>
    %cst_30 = arith.constant dense<0.000000e+00> : vector<17x17xf32>
    %73 = tpu.matmul %70, %71, %cst_30 {dimension_numbers = #tpu.dot_dimension_numbers<[1], [1], [0], [0], [0, 0, 1, 0], [], []>} : vector<17x4xf32>, vector<17x4xf32>, vector<17x17xf32> -> vector<17x17xf32>
    %cst_31 = arith.constant 5.000000e-01 : f32
    %74 = vector.broadcast %cst_31 : f32 to vector<17x17xf32>
    %75 = arith.mulf %73, %74 : vector<17x17xf32>
    %cst_32 = arith.constant dense<0xFF800000> : vector<17xf32>
    %76 = vector.multi_reduction <maximumf>, %75, %cst_32 [1] : vector<17x17xf32> to vector<17xf32>
    %77 = vector.shape_cast %76 : vector<17xf32> to vector<17x1xf32>
    %78 = vector.broadcast %77 : vector<17x1xf32> to vector<17x17xf32>
    %79 = arith.subf %75, %78 : vector<17x17xf32>
    %80 = math.exp %79 : vector<17x17xf32>
    %cst_33 = arith.constant dense<0.000000e+00> : vector<17xf32>
    %81 = vector.multi_reduction <add>, %80, %cst_33 [1] : vector<17x17xf32> to vector<17xf32>
    %82 = vector.shape_cast %81 : vector<17xf32> to vector<17x1xf32>
    %83 = vector.broadcast %82 : vector<17x1xf32> to vector<17x17xf32>
    %84 = arith.divf %80, %83 : vector<17x17xf32>
    %cst_34 = arith.constant dense<0.000000e+00> : vector<17x4xf32>
    %85 = tpu.matmul %84, %72, %cst_34 {dimension_numbers = #tpu.dot_dimension_numbers<[1], [0], [0], [1], [0, 0, 1, 1], [], []>} : vector<17x17xf32>, vector<17x4xf32>, vector<17x4xf32> -> vector<17x4xf32>
    %86 = vector.extract_strided_slice %35 {offsets = [0, 12], sizes = [17, 4], strides = [1, 1]} : vector<17x32xf32> to vector<17x4xf32>
    %87 = vector.extract_strided_slice %36 {offsets = [0, 12], sizes = [17, 4], strides = [1, 1]} : vector<17x32xf32> to vector<17x4xf32>
    %88 = vector.extract_strided_slice %37 {offsets = [0, 12], sizes = [17, 4], strides = [1, 1]} : vector<17x32xf32> to vector<17x4xf32>
    %cst_35 = arith.constant dense<0.000000e+00> : vector<17x17xf32>
    %89 = tpu.matmul %86, %87, %cst_35 {dimension_numbers = #tpu.dot_dimension_numbers<[1], [1], [0], [0], [0, 0, 1, 0], [], []>} : vector<17x4xf32>, vector<17x4xf32>, vector<17x17xf32> -> vector<17x17xf32>
    %cst_36 = arith.constant 5.000000e-01 : f32
    %90 = vector.broadcast %cst_36 : f32 to vector<17x17xf32>
    %91 = arith.mulf %89, %90 : vector<17x17xf32>
    %cst_37 = arith.constant dense<0xFF800000> : vector<17xf32>
    %92 = vector.multi_reduction <maximumf>, %91, %cst_37 [1] : vector<17x17xf32> to vector<17xf32>
    %93 = vector.shape_cast %92 : vector<17xf32> to vector<17x1xf32>
    %94 = vector.broadcast %93 : vector<17x1xf32> to vector<17x17xf32>
    %95 = arith.subf %91, %94 : vector<17x17xf32>
    %96 = math.exp %95 : vector<17x17xf32>
    %cst_38 = arith.constant dense<0.000000e+00> : vector<17xf32>
    %97 = vector.multi_reduction <add>, %96, %cst_38 [1] : vector<17x17xf32> to vector<17xf32>
    %98 = vector.shape_cast %97 : vector<17xf32> to vector<17x1xf32>
    %99 = vector.broadcast %98 : vector<17x1xf32> to vector<17x17xf32>
    %100 = arith.divf %96, %99 : vector<17x17xf32>
    %cst_39 = arith.constant dense<0.000000e+00> : vector<17x4xf32>
    %101 = tpu.matmul %100, %88, %cst_39 {dimension_numbers = #tpu.dot_dimension_numbers<[1], [0], [0], [1], [0, 0, 1, 1], [], []>} : vector<17x17xf32>, vector<17x4xf32>, vector<17x4xf32> -> vector<17x4xf32>
    %102 = vector.extract_strided_slice %35 {offsets = [0, 16], sizes = [17, 4], strides = [1, 1]} : vector<17x32xf32> to vector<17x4xf32>
    %103 = vector.extract_strided_slice %36 {offsets = [0, 16], sizes = [17, 4], strides = [1, 1]} : vector<17x32xf32> to vector<17x4xf32>
    %104 = vector.extract_strided_slice %37 {offsets = [0, 16], sizes = [17, 4], strides = [1, 1]} : vector<17x32xf32> to vector<17x4xf32>
    %cst_40 = arith.constant dense<0.000000e+00> : vector<17x17xf32>
    %105 = tpu.matmul %102, %103, %cst_40 {dimension_numbers = #tpu.dot_dimension_numbers<[1], [1], [0], [0], [0, 0, 1, 0], [], []>} : vector<17x4xf32>, vector<17x4xf32>, vector<17x17xf32> -> vector<17x17xf32>
    %cst_41 = arith.constant 5.000000e-01 : f32
    %106 = vector.broadcast %cst_41 : f32 to vector<17x17xf32>
    %107 = arith.mulf %105, %106 : vector<17x17xf32>
    %cst_42 = arith.constant dense<0xFF800000> : vector<17xf32>
    %108 = vector.multi_reduction <maximumf>, %107, %cst_42 [1] : vector<17x17xf32> to vector<17xf32>
    %109 = vector.shape_cast %108 : vector<17xf32> to vector<17x1xf32>
    %110 = vector.broadcast %109 : vector<17x1xf32> to vector<17x17xf32>
    %111 = arith.subf %107, %110 : vector<17x17xf32>
    %112 = math.exp %111 : vector<17x17xf32>
    %cst_43 = arith.constant dense<0.000000e+00> : vector<17xf32>
    %113 = vector.multi_reduction <add>, %112, %cst_43 [1] : vector<17x17xf32> to vector<17xf32>
    %114 = vector.shape_cast %113 : vector<17xf32> to vector<17x1xf32>
    %115 = vector.broadcast %114 : vector<17x1xf32> to vector<17x17xf32>
    %116 = arith.divf %112, %115 : vector<17x17xf32>
    %cst_44 = arith.constant dense<0.000000e+00> : vector<17x4xf32>
    %117 = tpu.matmul %116, %104, %cst_44 {dimension_numbers = #tpu.dot_dimension_numbers<[1], [0], [0], [1], [0, 0, 1, 1], [], []>} : vector<17x17xf32>, vector<17x4xf32>, vector<17x4xf32> -> vector<17x4xf32>
    %118 = vector.extract_strided_slice %35 {offsets = [0, 20], sizes = [17, 4], strides = [1, 1]} : vector<17x32xf32> to vector<17x4xf32>
    %119 = vector.extract_strided_slice %36 {offsets = [0, 20], sizes = [17, 4], strides = [1, 1]} : vector<17x32xf32> to vector<17x4xf32>
    %120 = vector.extract_strided_slice %37 {offsets = [0, 20], sizes = [17, 4], strides = [1, 1]} : vector<17x32xf32> to vector<17x4xf32>
    %cst_45 = arith.constant dense<0.000000e+00> : vector<17x17xf32>
    %121 = tpu.matmul %118, %119, %cst_45 {dimension_numbers = #tpu.dot_dimension_numbers<[1], [1], [0], [0], [0, 0, 1, 0], [], []>} : vector<17x4xf32>, vector<17x4xf32>, vector<17x17xf32> -> vector<17x17xf32>
    %cst_46 = arith.constant 5.000000e-01 : f32
    %122 = vector.broadcast %cst_46 : f32 to vector<17x17xf32>
    %123 = arith.mulf %121, %122 : vector<17x17xf32>
    %cst_47 = arith.constant dense<0xFF800000> : vector<17xf32>
    %124 = vector.multi_reduction <maximumf>, %123, %cst_47 [1] : vector<17x17xf32> to vector<17xf32>
    %125 = vector.shape_cast %124 : vector<17xf32> to vector<17x1xf32>
    %126 = vector.broadcast %125 : vector<17x1xf32> to vector<17x17xf32>
    %127 = arith.subf %123, %126 : vector<17x17xf32>
    %128 = math.exp %127 : vector<17x17xf32>
    %cst_48 = arith.constant dense<0.000000e+00> : vector<17xf32>
    %129 = vector.multi_reduction <add>, %128, %cst_48 [1] : vector<17x17xf32> to vector<17xf32>
    %130 = vector.shape_cast %129 : vector<17xf32> to vector<17x1xf32>
    %131 = vector.broadcast %130 : vector<17x1xf32> to vector<17x17xf32>
    %132 = arith.divf %128, %131 : vector<17x17xf32>
    %cst_49 = arith.constant dense<0.000000e+00> : vector<17x4xf32>
    %133 = tpu.matmul %132, %120, %cst_49 {dimension_numbers = #tpu.dot_dimension_numbers<[1], [0], [0], [1], [0, 0, 1, 1], [], []>} : vector<17x17xf32>, vector<17x4xf32>, vector<17x4xf32> -> vector<17x4xf32>
    %134 = vector.extract_strided_slice %35 {offsets = [0, 24], sizes = [17, 4], strides = [1, 1]} : vector<17x32xf32> to vector<17x4xf32>
    %135 = vector.extract_strided_slice %36 {offsets = [0, 24], sizes = [17, 4], strides = [1, 1]} : vector<17x32xf32> to vector<17x4xf32>
    %136 = vector.extract_strided_slice %37 {offsets = [0, 24], sizes = [17, 4], strides = [1, 1]} : vector<17x32xf32> to vector<17x4xf32>
    %cst_50 = arith.constant dense<0.000000e+00> : vector<17x17xf32>
    %137 = tpu.matmul %134, %135, %cst_50 {dimension_numbers = #tpu.dot_dimension_numbers<[1], [1], [0], [0], [0, 0, 1, 0], [], []>} : vector<17x4xf32>, vector<17x4xf32>, vector<17x17xf32> -> vector<17x17xf32>
    %cst_51 = arith.constant 5.000000e-01 : f32
    %138 = vector.broadcast %cst_51 : f32 to vector<17x17xf32>
    %139 = arith.mulf %137, %138 : vector<17x17xf32>
    %cst_52 = arith.constant dense<0xFF800000> : vector<17xf32>
    %140 = vector.multi_reduction <maximumf>, %139, %cst_52 [1] : vector<17x17xf32> to vector<17xf32>
    %141 = vector.shape_cast %140 : vector<17xf32> to vector<17x1xf32>
    %142 = vector.broadcast %141 : vector<17x1xf32> to vector<17x17xf32>
    %143 = arith.subf %139, %142 : vector<17x17xf32>
    %144 = math.exp %143 : vector<17x17xf32>
    %cst_53 = arith.constant dense<0.000000e+00> : vector<17xf32>
    %145 = vector.multi_reduction <add>, %144, %cst_53 [1] : vector<17x17xf32> to vector<17xf32>
    %146 = vector.shape_cast %145 : vector<17xf32> to vector<17x1xf32>
    %147 = vector.broadcast %146 : vector<17x1xf32> to vector<17x17xf32>
    %148 = arith.divf %144, %147 : vector<17x17xf32>
    %cst_54 = arith.constant dense<0.000000e+00> : vector<17x4xf32>
    %149 = tpu.matmul %148, %136, %cst_54 {dimension_numbers = #tpu.dot_dimension_numbers<[1], [0], [0], [1], [0, 0, 1, 1], [], []>} : vector<17x17xf32>, vector<17x4xf32>, vector<17x4xf32> -> vector<17x4xf32>
    %150 = vector.extract_strided_slice %35 {offsets = [0, 28], sizes = [17, 4], strides = [1, 1]} : vector<17x32xf32> to vector<17x4xf32>
    %151 = vector.extract_strided_slice %36 {offsets = [0, 28], sizes = [17, 4], strides = [1, 1]} : vector<17x32xf32> to vector<17x4xf32>
    %152 = vector.extract_strided_slice %37 {offsets = [0, 28], sizes = [17, 4], strides = [1, 1]} : vector<17x32xf32> to vector<17x4xf32>
    %cst_55 = arith.constant dense<0.000000e+00> : vector<17x17xf32>
    %153 = tpu.matmul %150, %151, %cst_55 {dimension_numbers = #tpu.dot_dimension_numbers<[1], [1], [0], [0], [0, 0, 1, 0], [], []>} : vector<17x4xf32>, vector<17x4xf32>, vector<17x17xf32> -> vector<17x17xf32>
    %cst_56 = arith.constant 5.000000e-01 : f32
    %154 = vector.broadcast %cst_56 : f32 to vector<17x17xf32>
    %155 = arith.mulf %153, %154 : vector<17x17xf32>
    %cst_57 = arith.constant dense<0xFF800000> : vector<17xf32>
    %156 = vector.multi_reduction <maximumf>, %155, %cst_57 [1] : vector<17x17xf32> to vector<17xf32>
    %157 = vector.shape_cast %156 : vector<17xf32> to vector<17x1xf32>
    %158 = vector.broadcast %157 : vector<17x1xf32> to vector<17x17xf32>
    %159 = arith.subf %155, %158 : vector<17x17xf32>
    %160 = math.exp %159 : vector<17x17xf32>
    %cst_58 = arith.constant dense<0.000000e+00> : vector<17xf32>
    %161 = vector.multi_reduction <add>, %160, %cst_58 [1] : vector<17x17xf32> to vector<17xf32>
    %162 = vector.shape_cast %161 : vector<17xf32> to vector<17x1xf32>
    %163 = vector.broadcast %162 : vector<17x1xf32> to vector<17x17xf32>
    %164 = arith.divf %160, %163 : vector<17x17xf32>
    %cst_59 = arith.constant dense<0.000000e+00> : vector<17x4xf32>
    %165 = tpu.matmul %164, %152, %cst_59 {dimension_numbers = #tpu.dot_dimension_numbers<[1], [0], [0], [1], [0, 0, 1, 1], [], []>} : vector<17x17xf32>, vector<17x4xf32>, vector<17x4xf32> -> vector<17x4xf32>
    %166 = tpu.concatenate %53, %69, %85, %101, %117, %133, %149, %165 in 1 : vector<17x4xf32>, vector<17x4xf32>, vector<17x4xf32>, vector<17x4xf32>, vector<17x4xf32>, vector<17x4xf32>, vector<17x4xf32>, vector<17x4xf32> -> vector<17x32xf32>
    %167 = vector.extract_strided_slice %34 {offsets = [17, 0], sizes = [17, 32], strides = [1, 1]} : vector<34x96xf32> to vector<17x32xf32>
    %168 = vector.extract_strided_slice %34 {offsets = [17, 32], sizes = [17, 32], strides = [1, 1]} : vector<34x96xf32> to vector<17x32xf32>
    %169 = vector.extract_strided_slice %34 {offsets = [17, 64], sizes = [17, 32], strides = [1, 1]} : vector<34x96xf32> to vector<17x32xf32>
    %170 = vector.extract_strided_slice %167 {offsets = [0, 0], sizes = [17, 4], strides = [1, 1]} : vector<17x32xf32> to vector<17x4xf32>
    %171 = vector.extract_strided_slice %168 {offsets = [0, 0], sizes = [17, 4], strides = [1, 1]} : vector<17x32xf32> to vector<17x4xf32>
    %172 = vector.extract_strided_slice %169 {offsets = [0, 0], sizes = [17, 4], strides = [1, 1]} : vector<17x32xf32> to vector<17x4xf32>
    %cst_60 = arith.constant dense<0.000000e+00> : vector<17x17xf32>
    %173 = tpu.matmul %170, %171, %cst_60 {dimension_numbers = #tpu.dot_dimension_numbers<[1], [1], [0], [0], [0, 0, 1, 0], [], []>} : vector<17x4xf32>, vector<17x4xf32>, vector<17x17xf32> -> vector<17x17xf32>
    %cst_61 = arith.constant 5.000000e-01 : f32
    %174 = vector.broadcast %cst_61 : f32 to vector<17x17xf32>
    %175 = arith.mulf %173, %174 : vector<17x17xf32>
    %cst_62 = arith.constant dense<0xFF800000> : vector<17xf32>
    %176 = vector.multi_reduction <maximumf>, %175, %cst_62 [1] : vector<17x17xf32> to vector<17xf32>
    %177 = vector.shape_cast %176 : vector<17xf32> to vector<17x1xf32>
    %178 = vector.broadcast %177 : vector<17x1xf32> to vector<17x17xf32>
    %179 = arith.subf %175, %178 : vector<17x17xf32>
    %180 = math.exp %179 : vector<17x17xf32>
    %cst_63 = arith.constant dense<0.000000e+00> : vector<17xf32>
    %181 = vector.multi_reduction <add>, %180, %cst_63 [1] : vector<17x17xf32> to vector<17xf32>
    %182 = vector.shape_cast %181 : vector<17xf32> to vector<17x1xf32>
    %183 = vector.broadcast %182 : vector<17x1xf32> to vector<17x17xf32>
    %184 = arith.divf %180, %183 : vector<17x17xf32>
    %cst_64 = arith.constant dense<0.000000e+00> : vector<17x4xf32>
    %185 = tpu.matmul %184, %172, %cst_64 {dimension_numbers = #tpu.dot_dimension_numbers<[1], [0], [0], [1], [0, 0, 1, 1], [], []>} : vector<17x17xf32>, vector<17x4xf32>, vector<17x4xf32> -> vector<17x4xf32>
    %186 = vector.extract_strided_slice %167 {offsets = [0, 4], sizes = [17, 4], strides = [1, 1]} : vector<17x32xf32> to vector<17x4xf32>
    %187 = vector.extract_strided_slice %168 {offsets = [0, 4], sizes = [17, 4], strides = [1, 1]} : vector<17x32xf32> to vector<17x4xf32>
    %188 = vector.extract_strided_slice %169 {offsets = [0, 4], sizes = [17, 4], strides = [1, 1]} : vector<17x32xf32> to vector<17x4xf32>
    %cst_65 = arith.constant dense<0.000000e+00> : vector<17x17xf32>
    %189 = tpu.matmul %186, %187, %cst_65 {dimension_numbers = #tpu.dot_dimension_numbers<[1], [1], [0], [0], [0, 0, 1, 0], [], []>} : vector<17x4xf32>, vector<17x4xf32>, vector<17x17xf32> -> vector<17x17xf32>
    %cst_66 = arith.constant 5.000000e-01 : f32
    %190 = vector.broadcast %cst_66 : f32 to vector<17x17xf32>
    %191 = arith.mulf %189, %190 : vector<17x17xf32>
    %cst_67 = arith.constant dense<0xFF800000> : vector<17xf32>
    %192 = vector.multi_reduction <maximumf>, %191, %cst_67 [1] : vector<17x17xf32> to vector<17xf32>
    %193 = vector.shape_cast %192 : vector<17xf32> to vector<17x1xf32>
    %194 = vector.broadcast %193 : vector<17x1xf32> to vector<17x17xf32>
    %195 = arith.subf %191, %194 : vector<17x17xf32>
    %196 = math.exp %195 : vector<17x17xf32>
    %cst_68 = arith.constant dense<0.000000e+00> : vector<17xf32>
    %197 = vector.multi_reduction <add>, %196, %cst_68 [1] : vector<17x17xf32> to vector<17xf32>
    %198 = vector.shape_cast %197 : vector<17xf32> to vector<17x1xf32>
    %199 = vector.broadcast %198 : vector<17x1xf32> to vector<17x17xf32>
    %200 = arith.divf %196, %199 : vector<17x17xf32>
    %cst_69 = arith.constant dense<0.000000e+00> : vector<17x4xf32>
    %201 = tpu.matmul %200, %188, %cst_69 {dimension_numbers = #tpu.dot_dimension_numbers<[1], [0], [0], [1], [0, 0, 1, 1], [], []>} : vector<17x17xf32>, vector<17x4xf32>, vector<17x4xf32> -> vector<17x4xf32>
    %202 = vector.extract_strided_slice %167 {offsets = [0, 8], sizes = [17, 4], strides = [1, 1]} : vector<17x32xf32> to vector<17x4xf32>
    %203 = vector.extract_strided_slice %168 {offsets = [0, 8], sizes = [17, 4], strides = [1, 1]} : vector<17x32xf32> to vector<17x4xf32>
    %204 = vector.extract_strided_slice %169 {offsets = [0, 8], sizes = [17, 4], strides = [1, 1]} : vector<17x32xf32> to vector<17x4xf32>
    %cst_70 = arith.constant dense<0.000000e+00> : vector<17x17xf32>
    %205 = tpu.matmul %202, %203, %cst_70 {dimension_numbers = #tpu.dot_dimension_numbers<[1], [1], [0], [0], [0, 0, 1, 0], [], []>} : vector<17x4xf32>, vector<17x4xf32>, vector<17x17xf32> -> vector<17x17xf32>
    %cst_71 = arith.constant 5.000000e-01 : f32
    %206 = vector.broadcast %cst_71 : f32 to vector<17x17xf32>
    %207 = arith.mulf %205, %206 : vector<17x17xf32>
    %cst_72 = arith.constant dense<0xFF800000> : vector<17xf32>
    %208 = vector.multi_reduction <maximumf>, %207, %cst_72 [1] : vector<17x17xf32> to vector<17xf32>
    %209 = vector.shape_cast %208 : vector<17xf32> to vector<17x1xf32>
    %210 = vector.broadcast %209 : vector<17x1xf32> to vector<17x17xf32>
    %211 = arith.subf %207, %210 : vector<17x17xf32>
    %212 = math.exp %211 : vector<17x17xf32>
    %cst_73 = arith.constant dense<0.000000e+00> : vector<17xf32>
    %213 = vector.multi_reduction <add>, %212, %cst_73 [1] : vector<17x17xf32> to vector<17xf32>
    %214 = vector.shape_cast %213 : vector<17xf32> to vector<17x1xf32>
    %215 = vector.broadcast %214 : vector<17x1xf32> to vector<17x17xf32>
    %216 = arith.divf %212, %215 : vector<17x17xf32>
    %cst_74 = arith.constant dense<0.000000e+00> : vector<17x4xf32>
    %217 = tpu.matmul %216, %204, %cst_74 {dimension_numbers = #tpu.dot_dimension_numbers<[1], [0], [0], [1], [0, 0, 1, 1], [], []>} : vector<17x17xf32>, vector<17x4xf32>, vector<17x4xf32> -> vector<17x4xf32>
    %218 = vector.extract_strided_slice %167 {offsets = [0, 12], sizes = [17, 4], strides = [1, 1]} : vector<17x32xf32> to vector<17x4xf32>
    %219 = vector.extract_strided_slice %168 {offsets = [0, 12], sizes = [17, 4], strides = [1, 1]} : vector<17x32xf32> to vector<17x4xf32>
    %220 = vector.extract_strided_slice %169 {offsets = [0, 12], sizes = [17, 4], strides = [1, 1]} : vector<17x32xf32> to vector<17x4xf32>
    %cst_75 = arith.constant dense<0.000000e+00> : vector<17x17xf32>
    %221 = tpu.matmul %218, %219, %cst_75 {dimension_numbers = #tpu.dot_dimension_numbers<[1], [1], [0], [0], [0, 0, 1, 0], [], []>} : vector<17x4xf32>, vector<17x4xf32>, vector<17x17xf32> -> vector<17x17xf32>
    %cst_76 = arith.constant 5.000000e-01 : f32
    %222 = vector.broadcast %cst_76 : f32 to vector<17x17xf32>
    %223 = arith.mulf %221, %222 : vector<17x17xf32>
    %cst_77 = arith.constant dense<0xFF800000> : vector<17xf32>
    %224 = vector.multi_reduction <maximumf>, %223, %cst_77 [1] : vector<17x17xf32> to vector<17xf32>
    %225 = vector.shape_cast %224 : vector<17xf32> to vector<17x1xf32>
    %226 = vector.broadcast %225 : vector<17x1xf32> to vector<17x17xf32>
    %227 = arith.subf %223, %226 : vector<17x17xf32>
    %228 = math.exp %227 : vector<17x17xf32>
    %cst_78 = arith.constant dense<0.000000e+00> : vector<17xf32>
    %229 = vector.multi_reduction <add>, %228, %cst_78 [1] : vector<17x17xf32> to vector<17xf32>
    %230 = vector.shape_cast %229 : vector<17xf32> to vector<17x1xf32>
    %231 = vector.broadcast %230 : vector<17x1xf32> to vector<17x17xf32>
    %232 = arith.divf %228, %231 : vector<17x17xf32>
    %cst_79 = arith.constant dense<0.000000e+00> : vector<17x4xf32>
    %233 = tpu.matmul %232, %220, %cst_79 {dimension_numbers = #tpu.dot_dimension_numbers<[1], [0], [0], [1], [0, 0, 1, 1], [], []>} : vector<17x17xf32>, vector<17x4xf32>, vector<17x4xf32> -> vector<17x4xf32>
    %234 = vector.extract_strided_slice %167 {offsets = [0, 16], sizes = [17, 4], strides = [1, 1]} : vector<17x32xf32> to vector<17x4xf32>
    %235 = vector.extract_strided_slice %168 {offsets = [0, 16], sizes = [17, 4], strides = [1, 1]} : vector<17x32xf32> to vector<17x4xf32>
    %236 = vector.extract_strided_slice %169 {offsets = [0, 16], sizes = [17, 4], strides = [1, 1]} : vector<17x32xf32> to vector<17x4xf32>
    %cst_80 = arith.constant dense<0.000000e+00> : vector<17x17xf32>
    %237 = tpu.matmul %234, %235, %cst_80 {dimension_numbers = #tpu.dot_dimension_numbers<[1], [1], [0], [0], [0, 0, 1, 0], [], []>} : vector<17x4xf32>, vector<17x4xf32>, vector<17x17xf32> -> vector<17x17xf32>
    %cst_81 = arith.constant 5.000000e-01 : f32
    %238 = vector.broadcast %cst_81 : f32 to vector<17x17xf32>
    %239 = arith.mulf %237, %238 : vector<17x17xf32>
    %cst_82 = arith.constant dense<0xFF800000> : vector<17xf32>
    %240 = vector.multi_reduction <maximumf>, %239, %cst_82 [1] : vector<17x17xf32> to vector<17xf32>
    %241 = vector.shape_cast %240 : vector<17xf32> to vector<17x1xf32>
    %242 = vector.broadcast %241 : vector<17x1xf32> to vector<17x17xf32>
    %243 = arith.subf %239, %242 : vector<17x17xf32>
    %244 = math.exp %243 : vector<17x17xf32>
    %cst_83 = arith.constant dense<0.000000e+00> : vector<17xf32>
    %245 = vector.multi_reduction <add>, %244, %cst_83 [1] : vector<17x17xf32> to vector<17xf32>
    %246 = vector.shape_cast %245 : vector<17xf32> to vector<17x1xf32>
    %247 = vector.broadcast %246 : vector<17x1xf32> to vector<17x17xf32>
    %248 = arith.divf %244, %247 : vector<17x17xf32>
    %cst_84 = arith.constant dense<0.000000e+00> : vector<17x4xf32>
    %249 = tpu.matmul %248, %236, %cst_84 {dimension_numbers = #tpu.dot_dimension_numbers<[1], [0], [0], [1], [0, 0, 1, 1], [], []>} : vector<17x17xf32>, vector<17x4xf32>, vector<17x4xf32> -> vector<17x4xf32>
    %250 = vector.extract_strided_slice %167 {offsets = [0, 20], sizes = [17, 4], strides = [1, 1]} : vector<17x32xf32> to vector<17x4xf32>
    %251 = vector.extract_strided_slice %168 {offsets = [0, 20], sizes = [17, 4], strides = [1, 1]} : vector<17x32xf32> to vector<17x4xf32>
    %252 = vector.extract_strided_slice %169 {offsets = [0, 20], sizes = [17, 4], strides = [1, 1]} : vector<17x32xf32> to vector<17x4xf32>
    %cst_85 = arith.constant dense<0.000000e+00> : vector<17x17xf32>
    %253 = tpu.matmul %250, %251, %cst_85 {dimension_numbers = #tpu.dot_dimension_numbers<[1], [1], [0], [0], [0, 0, 1, 0], [], []>} : vector<17x4xf32>, vector<17x4xf32>, vector<17x17xf32> -> vector<17x17xf32>
    %cst_86 = arith.constant 5.000000e-01 : f32
    %254 = vector.broadcast %cst_86 : f32 to vector<17x17xf32>
    %255 = arith.mulf %253, %254 : vector<17x17xf32>
    %cst_87 = arith.constant dense<0xFF800000> : vector<17xf32>
    %256 = vector.multi_reduction <maximumf>, %255, %cst_87 [1] : vector<17x17xf32> to vector<17xf32>
    %257 = vector.shape_cast %256 : vector<17xf32> to vector<17x1xf32>
    %258 = vector.broadcast %257 : vector<17x1xf32> to vector<17x17xf32>
    %259 = arith.subf %255, %258 : vector<17x17xf32>
    %260 = math.exp %259 : vector<17x17xf32>
    %cst_88 = arith.constant dense<0.000000e+00> : vector<17xf32>
    %261 = vector.multi_reduction <add>, %260, %cst_88 [1] : vector<17x17xf32> to vector<17xf32>
    %262 = vector.shape_cast %261 : vector<17xf32> to vector<17x1xf32>
    %263 = vector.broadcast %262 : vector<17x1xf32> to vector<17x17xf32>
    %264 = arith.divf %260, %263 : vector<17x17xf32>
    %cst_89 = arith.constant dense<0.000000e+00> : vector<17x4xf32>
    %265 = tpu.matmul %264, %252, %cst_89 {dimension_numbers = #tpu.dot_dimension_numbers<[1], [0], [0], [1], [0, 0, 1, 1], [], []>} : vector<17x17xf32>, vector<17x4xf32>, vector<17x4xf32> -> vector<17x4xf32>
    %266 = vector.extract_strided_slice %167 {offsets = [0, 24], sizes = [17, 4], strides = [1, 1]} : vector<17x32xf32> to vector<17x4xf32>
    %267 = vector.extract_strided_slice %168 {offsets = [0, 24], sizes = [17, 4], strides = [1, 1]} : vector<17x32xf32> to vector<17x4xf32>
    %268 = vector.extract_strided_slice %169 {offsets = [0, 24], sizes = [17, 4], strides = [1, 1]} : vector<17x32xf32> to vector<17x4xf32>
    %cst_90 = arith.constant dense<0.000000e+00> : vector<17x17xf32>
    %269 = tpu.matmul %266, %267, %cst_90 {dimension_numbers = #tpu.dot_dimension_numbers<[1], [1], [0], [0], [0, 0, 1, 0], [], []>} : vector<17x4xf32>, vector<17x4xf32>, vector<17x17xf32> -> vector<17x17xf32>
    %cst_91 = arith.constant 5.000000e-01 : f32
    %270 = vector.broadcast %cst_91 : f32 to vector<17x17xf32>
    %271 = arith.mulf %269, %270 : vector<17x17xf32>
    %cst_92 = arith.constant dense<0xFF800000> : vector<17xf32>
    %272 = vector.multi_reduction <maximumf>, %271, %cst_92 [1] : vector<17x17xf32> to vector<17xf32>
    %273 = vector.shape_cast %272 : vector<17xf32> to vector<17x1xf32>
    %274 = vector.broadcast %273 : vector<17x1xf32> to vector<17x17xf32>
    %275 = arith.subf %271, %274 : vector<17x17xf32>
    %276 = math.exp %275 : vector<17x17xf32>
    %cst_93 = arith.constant dense<0.000000e+00> : vector<17xf32>
    %277 = vector.multi_reduction <add>, %276, %cst_93 [1] : vector<17x17xf32> to vector<17xf32>
    %278 = vector.shape_cast %277 : vector<17xf32> to vector<17x1xf32>
    %279 = vector.broadcast %278 : vector<17x1xf32> to vector<17x17xf32>
    %280 = arith.divf %276, %279 : vector<17x17xf32>
    %cst_94 = arith.constant dense<0.000000e+00> : vector<17x4xf32>
    %281 = tpu.matmul %280, %268, %cst_94 {dimension_numbers = #tpu.dot_dimension_numbers<[1], [0], [0], [1], [0, 0, 1, 1], [], []>} : vector<17x17xf32>, vector<17x4xf32>, vector<17x4xf32> -> vector<17x4xf32>
    %282 = vector.extract_strided_slice %167 {offsets = [0, 28], sizes = [17, 4], strides = [1, 1]} : vector<17x32xf32> to vector<17x4xf32>
    %283 = vector.extract_strided_slice %168 {offsets = [0, 28], sizes = [17, 4], strides = [1, 1]} : vector<17x32xf32> to vector<17x4xf32>
    %284 = vector.extract_strided_slice %169 {offsets = [0, 28], sizes = [17, 4], strides = [1, 1]} : vector<17x32xf32> to vector<17x4xf32>
    %cst_95 = arith.constant dense<0.000000e+00> : vector<17x17xf32>
    %285 = tpu.matmul %282, %283, %cst_95 {dimension_numbers = #tpu.dot_dimension_numbers<[1], [1], [0], [0], [0, 0, 1, 0], [], []>} : vector<17x4xf32>, vector<17x4xf32>, vector<17x17xf32> -> vector<17x17xf32>
    %cst_96 = arith.constant 5.000000e-01 : f32
    %286 = vector.broadcast %cst_96 : f32 to vector<17x17xf32>
    %287 = arith.mulf %285, %286 : vector<17x17xf32>
    %cst_97 = arith.constant dense<0xFF800000> : vector<17xf32>
    %288 = vector.multi_reduction <maximumf>, %287, %cst_97 [1] : vector<17x17xf32> to vector<17xf32>
    %289 = vector.shape_cast %288 : vector<17xf32> to vector<17x1xf32>
    %290 = vector.broadcast %289 : vector<17x1xf32> to vector<17x17xf32>
    %291 = arith.subf %287, %290 : vector<17x17xf32>
    %292 = math.exp %291 : vector<17x17xf32>
    %cst_98 = arith.constant dense<0.000000e+00> : vector<17xf32>
    %293 = vector.multi_reduction <add>, %292, %cst_98 [1] : vector<17x17xf32> to vector<17xf32>
    %294 = vector.shape_cast %293 : vector<17xf32> to vector<17x1xf32>
    %295 = vector.broadcast %294 : vector<17x1xf32> to vector<17x17xf32>
    %296 = arith.divf %292, %295 : vector<17x17xf32>
    %cst_99 = arith.constant dense<0.000000e+00> : vector<17x4xf32>
    %297 = tpu.matmul %296, %284, %cst_99 {dimension_numbers = #tpu.dot_dimension_numbers<[1], [0], [0], [1], [0, 0, 1, 1], [], []>} : vector<17x17xf32>, vector<17x4xf32>, vector<17x4xf32> -> vector<17x4xf32>
    %298 = tpu.concatenate %185, %201, %217, %233, %249, %265, %281, %297 in 1 : vector<17x4xf32>, vector<17x4xf32>, vector<17x4xf32>, vector<17x4xf32>, vector<17x4xf32>, vector<17x4xf32>, vector<17x4xf32>, vector<17x4xf32> -> vector<17x32xf32>
    %299 = tpu.concatenate %166, %298 in 0 : vector<17x32xf32>, vector<17x32xf32> -> vector<34x32xf32>
    %c0_100 = arith.constant 0 : index
    %c0_101 = arith.constant 0 : index
    %c0_102 = arith.constant 0 : index
    %300 = vector.load %arg6[%c0_100, %c0_101, %c0_102] : memref<2x32x32xf32, #tpu.memory_space<vmem>>, vector<1x32x32xf32>
    %301 = vector.shape_cast %300 : vector<1x32x32xf32> to vector<32x32xf32>
    %cst_103 = arith.constant dense<0.000000e+00> : vector<34x32xf32>
    %302 = tpu.matmul %299, %301, %cst_103 {dimension_numbers = #tpu.dot_dimension_numbers<[1], [0], [0], [1], [0, 0, 1, 1], [], []>} : vector<34x32xf32>, vector<32x32xf32>, vector<34x32xf32> -> vector<34x32xf32>
    %303 = arith.addf %5, %302 : vector<34x32xf32>
    %c0_104 = arith.constant 0 : index
    %c0_105 = arith.constant 0 : index
    %c0_106 = arith.constant 0 : index
    %304 = vector.load %arg7[%c0_104, %c0_105, %c0_106] : memref<2x1x32xf32, #tpu.memory_space<vmem>>, vector<1x1x32xf32>
    %305 = vector.shape_cast %304 : vector<1x1x32xf32> to vector<1x32xf32>
    %c0_107 = arith.constant 0 : index
    %c0_108 = arith.constant 0 : index
    %c0_109 = arith.constant 0 : index
    %306 = vector.load %arg8[%c0_107, %c0_108, %c0_109] : memref<2x1x32xf32, #tpu.memory_space<vmem>>, vector<1x1x32xf32>
    %307 = vector.shape_cast %306 : vector<1x1x32xf32> to vector<1x32xf32>
    %cst_110 = arith.constant dense<0.000000e+00> : vector<34xf32>
    %308 = vector.multi_reduction <add>, %303, %cst_110 [1] : vector<34x32xf32> to vector<34xf32>
    %309 = vector.shape_cast %308 : vector<34xf32> to vector<34x1xf32>
    %cst_111 = arith.constant 3.200000e+01 : f32
    %310 = vector.broadcast %cst_111 : f32 to vector<34x1xf32>
    %311 = arith.divf %309, %310 : vector<34x1xf32>
    %312 = vector.broadcast %311 : vector<34x1xf32> to vector<34x32xf32>
    %313 = arith.subf %303, %312 : vector<34x32xf32>
    %314 = arith.mulf %313, %313 : vector<34x32xf32>
    %cst_112 = arith.constant dense<0.000000e+00> : vector<34xf32>
    %315 = vector.multi_reduction <add>, %314, %cst_112 [1] : vector<34x32xf32> to vector<34xf32>
    %316 = vector.shape_cast %315 : vector<34xf32> to vector<34x1xf32>
    %cst_113 = arith.constant 3.200000e+01 : f32
    %317 = vector.broadcast %cst_113 : f32 to vector<34x1xf32>
    %318 = arith.divf %316, %317 : vector<34x1xf32>
    %319 = vector.broadcast %311 : vector<34x1xf32> to vector<34x32xf32>
    %320 = arith.subf %303, %319 : vector<34x32xf32>
    %cst_114 = arith.constant 9.99999974E-6 : f32
    %321 = vector.broadcast %cst_114 : f32 to vector<34x1xf32>
    %322 = arith.addf %318, %321 : vector<34x1xf32>
    %323 = math.rsqrt %322 : vector<34x1xf32>
    %324 = vector.broadcast %323 : vector<34x1xf32> to vector<34x32xf32>
    %325 = arith.mulf %320, %324 : vector<34x32xf32>
    %326 = vector.broadcast %305 : vector<1x32xf32> to vector<34x32xf32>
    %327 = arith.mulf %325, %326 : vector<34x32xf32>
    %328 = vector.broadcast %307 : vector<1x32xf32> to vector<34x32xf32>
    %329 = arith.addf %327, %328 : vector<34x32xf32>
    %c0_115 = arith.constant 0 : index
    %c0_116 = arith.constant 0 : index
    %c0_117 = arith.constant 0 : index
    %330 = vector.load %arg9[%c0_115, %c0_116, %c0_117] : memref<2x32x128xf32, #tpu.memory_space<vmem>>, vector<1x32x128xf32>
    %331 = vector.shape_cast %330 : vector<1x32x128xf32> to vector<32x128xf32>
    %cst_118 = arith.constant dense<0.000000e+00> : vector<34x128xf32>
    %332 = tpu.matmul %329, %331, %cst_118 {dimension_numbers = #tpu.dot_dimension_numbers<[1], [0], [0], [1], [0, 0, 1, 1], [], []>} : vector<34x32xf32>, vector<32x128xf32>, vector<34x128xf32> -> vector<34x128xf32>
    %c0_119 = arith.constant 0 : index
    %c0_120 = arith.constant 0 : index
    %c0_121 = arith.constant 0 : index
    %333 = vector.load %arg10[%c0_119, %c0_120, %c0_121] : memref<2x1x128xf32, #tpu.memory_space<vmem>>, vector<1x1x128xf32>
    %334 = vector.shape_cast %333 : vector<1x1x128xf32> to vector<1x128xf32>
    %335 = vector.broadcast %334 : vector<1x128xf32> to vector<34x128xf32>
    %336 = arith.addf %332, %335 : vector<34x128xf32>
    %cst_122 = arith.constant 5.000000e-01 : f32
    %337 = vector.broadcast %cst_122 : f32 to vector<34x128xf32>
    %338 = arith.mulf %337, %336 : vector<34x128xf32>
    %cst_123 = arith.constant 0.707106769 : f32
    %339 = vector.broadcast %cst_123 : f32 to vector<34x128xf32>
    %340 = arith.mulf %336, %339 : vector<34x128xf32>
    %341 = math.erf %340 : vector<34x128xf32>
    %cst_124 = arith.constant 1.000000e+00 : f32
    %342 = vector.broadcast %cst_124 : f32 to vector<34x128xf32>
    %343 = arith.addf %342, %341 : vector<34x128xf32>
    %344 = arith.mulf %338, %343 : vector<34x128xf32>
    %c0_125 = arith.constant 0 : index
    %c0_126 = arith.constant 0 : index
    %c0_127 = arith.constant 0 : index
    %345 = vector.load %arg11[%c0_125, %c0_126, %c0_127] : memref<2x128x32xf32, #tpu.memory_space<vmem>>, vector<1x128x32xf32>
    %346 = vector.shape_cast %345 : vector<1x128x32xf32> to vector<128x32xf32>
    %cst_128 = arith.constant dense<0.000000e+00> : vector<34x32xf32>
    %347 = tpu.matmul %344, %346, %cst_128 {dimension_numbers = #tpu.dot_dimension_numbers<[1], [0], [0], [1], [0, 0, 1, 1], [], []>} : vector<34x128xf32>, vector<128x32xf32>, vector<34x32xf32> -> vector<34x32xf32>
    %c0_129 = arith.constant 0 : index
    %c0_130 = arith.constant 0 : index
    %c0_131 = arith.constant 0 : index
    %348 = vector.load %arg12[%c0_129, %c0_130, %c0_131] : memref<2x1x32xf32, #tpu.memory_space<vmem>>, vector<1x1x32xf32>
    %349 = vector.shape_cast %348 : vector<1x1x32xf32> to vector<1x32xf32>
    %350 = vector.broadcast %349 : vector<1x32xf32> to vector<34x32xf32>
    %351 = arith.addf %347, %350 : vector<34x32xf32>
    %352 = arith.addf %303, %351 : vector<34x32xf32>
    %c1 = arith.constant 1 : index
    %c0_132 = arith.constant 0 : index
    %c0_133 = arith.constant 0 : index
    %353 = vector.load %arg3[%c1, %c0_132, %c0_133] : memref<2x1x32xf32, #tpu.memory_space<vmem>>, vector<1x1x32xf32>
    %354 = vector.shape_cast %353 : vector<1x1x32xf32> to vector<1x32xf32>
    %c1_134 = arith.constant 1 : index
    %c0_135 = arith.constant 0 : index
    %c0_136 = arith.constant 0 : index
    %355 = vector.load %arg4[%c1_134, %c0_135, %c0_136] : memref<2x1x32xf32, #tpu.memory_space<vmem>>, vector<1x1x32xf32>
    %356 = vector.shape_cast %355 : vector<1x1x32xf32> to vector<1x32xf32>
    %cst_137 = arith.constant dense<0.000000e+00> : vector<34xf32>
    %357 = vector.multi_reduction <add>, %352, %cst_137 [1] : vector<34x32xf32> to vector<34xf32>
    %358 = vector.shape_cast %357 : vector<34xf32> to vector<34x1xf32>
    %cst_138 = arith.constant 3.200000e+01 : f32
    %359 = vector.broadcast %cst_138 : f32 to vector<34x1xf32>
    %360 = arith.divf %358, %359 : vector<34x1xf32>
    %361 = vector.broadcast %360 : vector<34x1xf32> to vector<34x32xf32>
    %362 = arith.subf %352, %361 : vector<34x32xf32>
    %363 = arith.mulf %362, %362 : vector<34x32xf32>
    %cst_139 = arith.constant dense<0.000000e+00> : vector<34xf32>
    %364 = vector.multi_reduction <add>, %363, %cst_139 [1] : vector<34x32xf32> to vector<34xf32>
    %365 = vector.shape_cast %364 : vector<34xf32> to vector<34x1xf32>
    %cst_140 = arith.constant 3.200000e+01 : f32
    %366 = vector.broadcast %cst_140 : f32 to vector<34x1xf32>
    %367 = arith.divf %365, %366 : vector<34x1xf32>
    %368 = vector.broadcast %360 : vector<34x1xf32> to vector<34x32xf32>
    %369 = arith.subf %352, %368 : vector<34x32xf32>
    %cst_141 = arith.constant 9.99999974E-6 : f32
    %370 = vector.broadcast %cst_141 : f32 to vector<34x1xf32>
    %371 = arith.addf %367, %370 : vector<34x1xf32>
    %372 = math.rsqrt %371 : vector<34x1xf32>
    %373 = vector.broadcast %372 : vector<34x1xf32> to vector<34x32xf32>
    %374 = arith.mulf %369, %373 : vector<34x32xf32>
    %375 = vector.broadcast %354 : vector<1x32xf32> to vector<34x32xf32>
    %376 = arith.mulf %374, %375 : vector<34x32xf32>
    %377 = vector.broadcast %356 : vector<1x32xf32> to vector<34x32xf32>
    %378 = arith.addf %376, %377 : vector<34x32xf32>
    %c1_142 = arith.constant 1 : index
    %c0_143 = arith.constant 0 : index
    %c0_144 = arith.constant 0 : index
    %379 = vector.load %arg5[%c1_142, %c0_143, %c0_144] : memref<2x32x96xf32, #tpu.memory_space<vmem>>, vector<1x32x96xf32>
    %380 = vector.shape_cast %379 : vector<1x32x96xf32> to vector<32x96xf32>
    %cst_145 = arith.constant dense<0.000000e+00> : vector<34x96xf32>
    %381 = tpu.matmul %378, %380, %cst_145 {dimension_numbers = #tpu.dot_dimension_numbers<[1], [0], [0], [1], [0, 0, 1, 1], [], []>} : vector<34x32xf32>, vector<32x96xf32>, vector<34x96xf32> -> vector<34x96xf32>
    %382 = vector.extract_strided_slice %381 {offsets = [0, 0], sizes = [17, 32], strides = [1, 1]} : vector<34x96xf32> to vector<17x32xf32>
    %383 = vector.extract_strided_slice %381 {offsets = [0, 32], sizes = [17, 32], strides = [1, 1]} : vector<34x96xf32> to vector<17x32xf32>
    %384 = vector.extract_strided_slice %381 {offsets = [0, 64], sizes = [17, 32], strides = [1, 1]} : vector<34x96xf32> to vector<17x32xf32>
    %385 = vector.extract_strided_slice %382 {offsets = [0, 0], sizes = [17, 4], strides = [1, 1]} : vector<17x32xf32> to vector<17x4xf32>
    %386 = vector.extract_strided_slice %383 {offsets = [0, 0], sizes = [17, 4], strides = [1, 1]} : vector<17x32xf32> to vector<17x4xf32>
    %387 = vector.extract_strided_slice %384 {offsets = [0, 0], sizes = [17, 4], strides = [1, 1]} : vector<17x32xf32> to vector<17x4xf32>
    %cst_146 = arith.constant dense<0.000000e+00> : vector<17x17xf32>
    %388 = tpu.matmul %385, %386, %cst_146 {dimension_numbers = #tpu.dot_dimension_numbers<[1], [1], [0], [0], [0, 0, 1, 0], [], []>} : vector<17x4xf32>, vector<17x4xf32>, vector<17x17xf32> -> vector<17x17xf32>
    %cst_147 = arith.constant 5.000000e-01 : f32
    %389 = vector.broadcast %cst_147 : f32 to vector<17x17xf32>
    %390 = arith.mulf %388, %389 : vector<17x17xf32>
    %cst_148 = arith.constant dense<0xFF800000> : vector<17xf32>
    %391 = vector.multi_reduction <maximumf>, %390, %cst_148 [1] : vector<17x17xf32> to vector<17xf32>
    %392 = vector.shape_cast %391 : vector<17xf32> to vector<17x1xf32>
    %393 = vector.broadcast %392 : vector<17x1xf32> to vector<17x17xf32>
    %394 = arith.subf %390, %393 : vector<17x17xf32>
    %395 = math.exp %394 : vector<17x17xf32>
    %cst_149 = arith.constant dense<0.000000e+00> : vector<17xf32>
    %396 = vector.multi_reduction <add>, %395, %cst_149 [1] : vector<17x17xf32> to vector<17xf32>
    %397 = vector.shape_cast %396 : vector<17xf32> to vector<17x1xf32>
    %398 = vector.broadcast %397 : vector<17x1xf32> to vector<17x17xf32>
    %399 = arith.divf %395, %398 : vector<17x17xf32>
    %cst_150 = arith.constant dense<0.000000e+00> : vector<17x4xf32>
    %400 = tpu.matmul %399, %387, %cst_150 {dimension_numbers = #tpu.dot_dimension_numbers<[1], [0], [0], [1], [0, 0, 1, 1], [], []>} : vector<17x17xf32>, vector<17x4xf32>, vector<17x4xf32> -> vector<17x4xf32>
    %401 = vector.extract_strided_slice %382 {offsets = [0, 4], sizes = [17, 4], strides = [1, 1]} : vector<17x32xf32> to vector<17x4xf32>
    %402 = vector.extract_strided_slice %383 {offsets = [0, 4], sizes = [17, 4], strides = [1, 1]} : vector<17x32xf32> to vector<17x4xf32>
    %403 = vector.extract_strided_slice %384 {offsets = [0, 4], sizes = [17, 4], strides = [1, 1]} : vector<17x32xf32> to vector<17x4xf32>
    %cst_151 = arith.constant dense<0.000000e+00> : vector<17x17xf32>
    %404 = tpu.matmul %401, %402, %cst_151 {dimension_numbers = #tpu.dot_dimension_numbers<[1], [1], [0], [0], [0, 0, 1, 0], [], []>} : vector<17x4xf32>, vector<17x4xf32>, vector<17x17xf32> -> vector<17x17xf32>
    %cst_152 = arith.constant 5.000000e-01 : f32
    %405 = vector.broadcast %cst_152 : f32 to vector<17x17xf32>
    %406 = arith.mulf %404, %405 : vector<17x17xf32>
    %cst_153 = arith.constant dense<0xFF800000> : vector<17xf32>
    %407 = vector.multi_reduction <maximumf>, %406, %cst_153 [1] : vector<17x17xf32> to vector<17xf32>
    %408 = vector.shape_cast %407 : vector<17xf32> to vector<17x1xf32>
    %409 = vector.broadcast %408 : vector<17x1xf32> to vector<17x17xf32>
    %410 = arith.subf %406, %409 : vector<17x17xf32>
    %411 = math.exp %410 : vector<17x17xf32>
    %cst_154 = arith.constant dense<0.000000e+00> : vector<17xf32>
    %412 = vector.multi_reduction <add>, %411, %cst_154 [1] : vector<17x17xf32> to vector<17xf32>
    %413 = vector.shape_cast %412 : vector<17xf32> to vector<17x1xf32>
    %414 = vector.broadcast %413 : vector<17x1xf32> to vector<17x17xf32>
    %415 = arith.divf %411, %414 : vector<17x17xf32>
    %cst_155 = arith.constant dense<0.000000e+00> : vector<17x4xf32>
    %416 = tpu.matmul %415, %403, %cst_155 {dimension_numbers = #tpu.dot_dimension_numbers<[1], [0], [0], [1], [0, 0, 1, 1], [], []>} : vector<17x17xf32>, vector<17x4xf32>, vector<17x4xf32> -> vector<17x4xf32>
    %417 = vector.extract_strided_slice %382 {offsets = [0, 8], sizes = [17, 4], strides = [1, 1]} : vector<17x32xf32> to vector<17x4xf32>
    %418 = vector.extract_strided_slice %383 {offsets = [0, 8], sizes = [17, 4], strides = [1, 1]} : vector<17x32xf32> to vector<17x4xf32>
    %419 = vector.extract_strided_slice %384 {offsets = [0, 8], sizes = [17, 4], strides = [1, 1]} : vector<17x32xf32> to vector<17x4xf32>
    %cst_156 = arith.constant dense<0.000000e+00> : vector<17x17xf32>
    %420 = tpu.matmul %417, %418, %cst_156 {dimension_numbers = #tpu.dot_dimension_numbers<[1], [1], [0], [0], [0, 0, 1, 0], [], []>} : vector<17x4xf32>, vector<17x4xf32>, vector<17x17xf32> -> vector<17x17xf32>
    %cst_157 = arith.constant 5.000000e-01 : f32
    %421 = vector.broadcast %cst_157 : f32 to vector<17x17xf32>
    %422 = arith.mulf %420, %421 : vector<17x17xf32>
    %cst_158 = arith.constant dense<0xFF800000> : vector<17xf32>
    %423 = vector.multi_reduction <maximumf>, %422, %cst_158 [1] : vector<17x17xf32> to vector<17xf32>
    %424 = vector.shape_cast %423 : vector<17xf32> to vector<17x1xf32>
    %425 = vector.broadcast %424 : vector<17x1xf32> to vector<17x17xf32>
    %426 = arith.subf %422, %425 : vector<17x17xf32>
    %427 = math.exp %426 : vector<17x17xf32>
    %cst_159 = arith.constant dense<0.000000e+00> : vector<17xf32>
    %428 = vector.multi_reduction <add>, %427, %cst_159 [1] : vector<17x17xf32> to vector<17xf32>
    %429 = vector.shape_cast %428 : vector<17xf32> to vector<17x1xf32>
    %430 = vector.broadcast %429 : vector<17x1xf32> to vector<17x17xf32>
    %431 = arith.divf %427, %430 : vector<17x17xf32>
    %cst_160 = arith.constant dense<0.000000e+00> : vector<17x4xf32>
    %432 = tpu.matmul %431, %419, %cst_160 {dimension_numbers = #tpu.dot_dimension_numbers<[1], [0], [0], [1], [0, 0, 1, 1], [], []>} : vector<17x17xf32>, vector<17x4xf32>, vector<17x4xf32> -> vector<17x4xf32>
    %433 = vector.extract_strided_slice %382 {offsets = [0, 12], sizes = [17, 4], strides = [1, 1]} : vector<17x32xf32> to vector<17x4xf32>
    %434 = vector.extract_strided_slice %383 {offsets = [0, 12], sizes = [17, 4], strides = [1, 1]} : vector<17x32xf32> to vector<17x4xf32>
    %435 = vector.extract_strided_slice %384 {offsets = [0, 12], sizes = [17, 4], strides = [1, 1]} : vector<17x32xf32> to vector<17x4xf32>
    %cst_161 = arith.constant dense<0.000000e+00> : vector<17x17xf32>
    %436 = tpu.matmul %433, %434, %cst_161 {dimension_numbers = #tpu.dot_dimension_numbers<[1], [1], [0], [0], [0, 0, 1, 0], [], []>} : vector<17x4xf32>, vector<17x4xf32>, vector<17x17xf32> -> vector<17x17xf32>
    %cst_162 = arith.constant 5.000000e-01 : f32
    %437 = vector.broadcast %cst_162 : f32 to vector<17x17xf32>
    %438 = arith.mulf %436, %437 : vector<17x17xf32>
    %cst_163 = arith.constant dense<0xFF800000> : vector<17xf32>
    %439 = vector.multi_reduction <maximumf>, %438, %cst_163 [1] : vector<17x17xf32> to vector<17xf32>
    %440 = vector.shape_cast %439 : vector<17xf32> to vector<17x1xf32>
    %441 = vector.broadcast %440 : vector<17x1xf32> to vector<17x17xf32>
    %442 = arith.subf %438, %441 : vector<17x17xf32>
    %443 = math.exp %442 : vector<17x17xf32>
    %cst_164 = arith.constant dense<0.000000e+00> : vector<17xf32>
    %444 = vector.multi_reduction <add>, %443, %cst_164 [1] : vector<17x17xf32> to vector<17xf32>
    %445 = vector.shape_cast %444 : vector<17xf32> to vector<17x1xf32>
    %446 = vector.broadcast %445 : vector<17x1xf32> to vector<17x17xf32>
    %447 = arith.divf %443, %446 : vector<17x17xf32>
    %cst_165 = arith.constant dense<0.000000e+00> : vector<17x4xf32>
    %448 = tpu.matmul %447, %435, %cst_165 {dimension_numbers = #tpu.dot_dimension_numbers<[1], [0], [0], [1], [0, 0, 1, 1], [], []>} : vector<17x17xf32>, vector<17x4xf32>, vector<17x4xf32> -> vector<17x4xf32>
    %449 = vector.extract_strided_slice %382 {offsets = [0, 16], sizes = [17, 4], strides = [1, 1]} : vector<17x32xf32> to vector<17x4xf32>
    %450 = vector.extract_strided_slice %383 {offsets = [0, 16], sizes = [17, 4], strides = [1, 1]} : vector<17x32xf32> to vector<17x4xf32>
    %451 = vector.extract_strided_slice %384 {offsets = [0, 16], sizes = [17, 4], strides = [1, 1]} : vector<17x32xf32> to vector<17x4xf32>
    %cst_166 = arith.constant dense<0.000000e+00> : vector<17x17xf32>
    %452 = tpu.matmul %449, %450, %cst_166 {dimension_numbers = #tpu.dot_dimension_numbers<[1], [1], [0], [0], [0, 0, 1, 0], [], []>} : vector<17x4xf32>, vector<17x4xf32>, vector<17x17xf32> -> vector<17x17xf32>
    %cst_167 = arith.constant 5.000000e-01 : f32
    %453 = vector.broadcast %cst_167 : f32 to vector<17x17xf32>
    %454 = arith.mulf %452, %453 : vector<17x17xf32>
    %cst_168 = arith.constant dense<0xFF800000> : vector<17xf32>
    %455 = vector.multi_reduction <maximumf>, %454, %cst_168 [1] : vector<17x17xf32> to vector<17xf32>
    %456 = vector.shape_cast %455 : vector<17xf32> to vector<17x1xf32>
    %457 = vector.broadcast %456 : vector<17x1xf32> to vector<17x17xf32>
    %458 = arith.subf %454, %457 : vector<17x17xf32>
    %459 = math.exp %458 : vector<17x17xf32>
    %cst_169 = arith.constant dense<0.000000e+00> : vector<17xf32>
    %460 = vector.multi_reduction <add>, %459, %cst_169 [1] : vector<17x17xf32> to vector<17xf32>
    %461 = vector.shape_cast %460 : vector<17xf32> to vector<17x1xf32>
    %462 = vector.broadcast %461 : vector<17x1xf32> to vector<17x17xf32>
    %463 = arith.divf %459, %462 : vector<17x17xf32>
    %cst_170 = arith.constant dense<0.000000e+00> : vector<17x4xf32>
    %464 = tpu.matmul %463, %451, %cst_170 {dimension_numbers = #tpu.dot_dimension_numbers<[1], [0], [0], [1], [0, 0, 1, 1], [], []>} : vector<17x17xf32>, vector<17x4xf32>, vector<17x4xf32> -> vector<17x4xf32>
    %465 = vector.extract_strided_slice %382 {offsets = [0, 20], sizes = [17, 4], strides = [1, 1]} : vector<17x32xf32> to vector<17x4xf32>
    %466 = vector.extract_strided_slice %383 {offsets = [0, 20], sizes = [17, 4], strides = [1, 1]} : vector<17x32xf32> to vector<17x4xf32>
    %467 = vector.extract_strided_slice %384 {offsets = [0, 20], sizes = [17, 4], strides = [1, 1]} : vector<17x32xf32> to vector<17x4xf32>
    %cst_171 = arith.constant dense<0.000000e+00> : vector<17x17xf32>
    %468 = tpu.matmul %465, %466, %cst_171 {dimension_numbers = #tpu.dot_dimension_numbers<[1], [1], [0], [0], [0, 0, 1, 0], [], []>} : vector<17x4xf32>, vector<17x4xf32>, vector<17x17xf32> -> vector<17x17xf32>
    %cst_172 = arith.constant 5.000000e-01 : f32
    %469 = vector.broadcast %cst_172 : f32 to vector<17x17xf32>
    %470 = arith.mulf %468, %469 : vector<17x17xf32>
    %cst_173 = arith.constant dense<0xFF800000> : vector<17xf32>
    %471 = vector.multi_reduction <maximumf>, %470, %cst_173 [1] : vector<17x17xf32> to vector<17xf32>
    %472 = vector.shape_cast %471 : vector<17xf32> to vector<17x1xf32>
    %473 = vector.broadcast %472 : vector<17x1xf32> to vector<17x17xf32>
    %474 = arith.subf %470, %473 : vector<17x17xf32>
    %475 = math.exp %474 : vector<17x17xf32>
    %cst_174 = arith.constant dense<0.000000e+00> : vector<17xf32>
    %476 = vector.multi_reduction <add>, %475, %cst_174 [1] : vector<17x17xf32> to vector<17xf32>
    %477 = vector.shape_cast %476 : vector<17xf32> to vector<17x1xf32>
    %478 = vector.broadcast %477 : vector<17x1xf32> to vector<17x17xf32>
    %479 = arith.divf %475, %478 : vector<17x17xf32>
    %cst_175 = arith.constant dense<0.000000e+00> : vector<17x4xf32>
    %480 = tpu.matmul %479, %467, %cst_175 {dimension_numbers = #tpu.dot_dimension_numbers<[1], [0], [0], [1], [0, 0, 1, 1], [], []>} : vector<17x17xf32>, vector<17x4xf32>, vector<17x4xf32> -> vector<17x4xf32>
    %481 = vector.extract_strided_slice %382 {offsets = [0, 24], sizes = [17, 4], strides = [1, 1]} : vector<17x32xf32> to vector<17x4xf32>
    %482 = vector.extract_strided_slice %383 {offsets = [0, 24], sizes = [17, 4], strides = [1, 1]} : vector<17x32xf32> to vector<17x4xf32>
    %483 = vector.extract_strided_slice %384 {offsets = [0, 24], sizes = [17, 4], strides = [1, 1]} : vector<17x32xf32> to vector<17x4xf32>
    %cst_176 = arith.constant dense<0.000000e+00> : vector<17x17xf32>
    %484 = tpu.matmul %481, %482, %cst_176 {dimension_numbers = #tpu.dot_dimension_numbers<[1], [1], [0], [0], [0, 0, 1, 0], [], []>} : vector<17x4xf32>, vector<17x4xf32>, vector<17x17xf32> -> vector<17x17xf32>
    %cst_177 = arith.constant 5.000000e-01 : f32
    %485 = vector.broadcast %cst_177 : f32 to vector<17x17xf32>
    %486 = arith.mulf %484, %485 : vector<17x17xf32>
    %cst_178 = arith.constant dense<0xFF800000> : vector<17xf32>
    %487 = vector.multi_reduction <maximumf>, %486, %cst_178 [1] : vector<17x17xf32> to vector<17xf32>
    %488 = vector.shape_cast %487 : vector<17xf32> to vector<17x1xf32>
    %489 = vector.broadcast %488 : vector<17x1xf32> to vector<17x17xf32>
    %490 = arith.subf %486, %489 : vector<17x17xf32>
    %491 = math.exp %490 : vector<17x17xf32>
    %cst_179 = arith.constant dense<0.000000e+00> : vector<17xf32>
    %492 = vector.multi_reduction <add>, %491, %cst_179 [1] : vector<17x17xf32> to vector<17xf32>
    %493 = vector.shape_cast %492 : vector<17xf32> to vector<17x1xf32>
    %494 = vector.broadcast %493 : vector<17x1xf32> to vector<17x17xf32>
    %495 = arith.divf %491, %494 : vector<17x17xf32>
    %cst_180 = arith.constant dense<0.000000e+00> : vector<17x4xf32>
    %496 = tpu.matmul %495, %483, %cst_180 {dimension_numbers = #tpu.dot_dimension_numbers<[1], [0], [0], [1], [0, 0, 1, 1], [], []>} : vector<17x17xf32>, vector<17x4xf32>, vector<17x4xf32> -> vector<17x4xf32>
    %497 = vector.extract_strided_slice %382 {offsets = [0, 28], sizes = [17, 4], strides = [1, 1]} : vector<17x32xf32> to vector<17x4xf32>
    %498 = vector.extract_strided_slice %383 {offsets = [0, 28], sizes = [17, 4], strides = [1, 1]} : vector<17x32xf32> to vector<17x4xf32>
    %499 = vector.extract_strided_slice %384 {offsets = [0, 28], sizes = [17, 4], strides = [1, 1]} : vector<17x32xf32> to vector<17x4xf32>
    %cst_181 = arith.constant dense<0.000000e+00> : vector<17x17xf32>
    %500 = tpu.matmul %497, %498, %cst_181 {dimension_numbers = #tpu.dot_dimension_numbers<[1], [1], [0], [0], [0, 0, 1, 0], [], []>} : vector<17x4xf32>, vector<17x4xf32>, vector<17x17xf32> -> vector<17x17xf32>
    %cst_182 = arith.constant 5.000000e-01 : f32
    %501 = vector.broadcast %cst_182 : f32 to vector<17x17xf32>
    %502 = arith.mulf %500, %501 : vector<17x17xf32>
    %cst_183 = arith.constant dense<0xFF800000> : vector<17xf32>
    %503 = vector.multi_reduction <maximumf>, %502, %cst_183 [1] : vector<17x17xf32> to vector<17xf32>
    %504 = vector.shape_cast %503 : vector<17xf32> to vector<17x1xf32>
    %505 = vector.broadcast %504 : vector<17x1xf32> to vector<17x17xf32>
    %506 = arith.subf %502, %505 : vector<17x17xf32>
    %507 = math.exp %506 : vector<17x17xf32>
    %cst_184 = arith.constant dense<0.000000e+00> : vector<17xf32>
    %508 = vector.multi_reduction <add>, %507, %cst_184 [1] : vector<17x17xf32> to vector<17xf32>
    %509 = vector.shape_cast %508 : vector<17xf32> to vector<17x1xf32>
    %510 = vector.broadcast %509 : vector<17x1xf32> to vector<17x17xf32>
    %511 = arith.divf %507, %510 : vector<17x17xf32>
    %cst_185 = arith.constant dense<0.000000e+00> : vector<17x4xf32>
    %512 = tpu.matmul %511, %499, %cst_185 {dimension_numbers = #tpu.dot_dimension_numbers<[1], [0], [0], [1], [0, 0, 1, 1], [], []>} : vector<17x17xf32>, vector<17x4xf32>, vector<17x4xf32> -> vector<17x4xf32>
    %513 = tpu.concatenate %400, %416, %432, %448, %464, %480, %496, %512 in 1 : vector<17x4xf32>, vector<17x4xf32>, vector<17x4xf32>, vector<17x4xf32>, vector<17x4xf32>, vector<17x4xf32>, vector<17x4xf32>, vector<17x4xf32> -> vector<17x32xf32>
    %514 = vector.extract_strided_slice %381 {offsets = [17, 0], sizes = [17, 32], strides = [1, 1]} : vector<34x96xf32> to vector<17x32xf32>
    %515 = vector.extract_strided_slice %381 {offsets = [17, 32], sizes = [17, 32], strides = [1, 1]} : vector<34x96xf32> to vector<17x32xf32>
    %516 = vector.extract_strided_slice %381 {offsets = [17, 64], sizes = [17, 32], strides = [1, 1]} : vector<34x96xf32> to vector<17x32xf32>
    %517 = vector.extract_strided_slice %514 {offsets = [0, 0], sizes = [17, 4], strides = [1, 1]} : vector<17x32xf32> to vector<17x4xf32>
    %518 = vector.extract_strided_slice %515 {offsets = [0, 0], sizes = [17, 4], strides = [1, 1]} : vector<17x32xf32> to vector<17x4xf32>
    %519 = vector.extract_strided_slice %516 {offsets = [0, 0], sizes = [17, 4], strides = [1, 1]} : vector<17x32xf32> to vector<17x4xf32>
    %cst_186 = arith.constant dense<0.000000e+00> : vector<17x17xf32>
    %520 = tpu.matmul %517, %518, %cst_186 {dimension_numbers = #tpu.dot_dimension_numbers<[1], [1], [0], [0], [0, 0, 1, 0], [], []>} : vector<17x4xf32>, vector<17x4xf32>, vector<17x17xf32> -> vector<17x17xf32>
    %cst_187 = arith.constant 5.000000e-01 : f32
    %521 = vector.broadcast %cst_187 : f32 to vector<17x17xf32>
    %522 = arith.mulf %520, %521 : vector<17x17xf32>
    %cst_188 = arith.constant dense<0xFF800000> : vector<17xf32>
    %523 = vector.multi_reduction <maximumf>, %522, %cst_188 [1] : vector<17x17xf32> to vector<17xf32>
    %524 = vector.shape_cast %523 : vector<17xf32> to vector<17x1xf32>
    %525 = vector.broadcast %524 : vector<17x1xf32> to vector<17x17xf32>
    %526 = arith.subf %522, %525 : vector<17x17xf32>
    %527 = math.exp %526 : vector<17x17xf32>
    %cst_189 = arith.constant dense<0.000000e+00> : vector<17xf32>
    %528 = vector.multi_reduction <add>, %527, %cst_189 [1] : vector<17x17xf32> to vector<17xf32>
    %529 = vector.shape_cast %528 : vector<17xf32> to vector<17x1xf32>
    %530 = vector.broadcast %529 : vector<17x1xf32> to vector<17x17xf32>
    %531 = arith.divf %527, %530 : vector<17x17xf32>
    %cst_190 = arith.constant dense<0.000000e+00> : vector<17x4xf32>
    %532 = tpu.matmul %531, %519, %cst_190 {dimension_numbers = #tpu.dot_dimension_numbers<[1], [0], [0], [1], [0, 0, 1, 1], [], []>} : vector<17x17xf32>, vector<17x4xf32>, vector<17x4xf32> -> vector<17x4xf32>
    %533 = vector.extract_strided_slice %514 {offsets = [0, 4], sizes = [17, 4], strides = [1, 1]} : vector<17x32xf32> to vector<17x4xf32>
    %534 = vector.extract_strided_slice %515 {offsets = [0, 4], sizes = [17, 4], strides = [1, 1]} : vector<17x32xf32> to vector<17x4xf32>
    %535 = vector.extract_strided_slice %516 {offsets = [0, 4], sizes = [17, 4], strides = [1, 1]} : vector<17x32xf32> to vector<17x4xf32>
    %cst_191 = arith.constant dense<0.000000e+00> : vector<17x17xf32>
    %536 = tpu.matmul %533, %534, %cst_191 {dimension_numbers = #tpu.dot_dimension_numbers<[1], [1], [0], [0], [0, 0, 1, 0], [], []>} : vector<17x4xf32>, vector<17x4xf32>, vector<17x17xf32> -> vector<17x17xf32>
    %cst_192 = arith.constant 5.000000e-01 : f32
    %537 = vector.broadcast %cst_192 : f32 to vector<17x17xf32>
    %538 = arith.mulf %536, %537 : vector<17x17xf32>
    %cst_193 = arith.constant dense<0xFF800000> : vector<17xf32>
    %539 = vector.multi_reduction <maximumf>, %538, %cst_193 [1] : vector<17x17xf32> to vector<17xf32>
    %540 = vector.shape_cast %539 : vector<17xf32> to vector<17x1xf32>
    %541 = vector.broadcast %540 : vector<17x1xf32> to vector<17x17xf32>
    %542 = arith.subf %538, %541 : vector<17x17xf32>
    %543 = math.exp %542 : vector<17x17xf32>
    %cst_194 = arith.constant dense<0.000000e+00> : vector<17xf32>
    %544 = vector.multi_reduction <add>, %543, %cst_194 [1] : vector<17x17xf32> to vector<17xf32>
    %545 = vector.shape_cast %544 : vector<17xf32> to vector<17x1xf32>
    %546 = vector.broadcast %545 : vector<17x1xf32> to vector<17x17xf32>
    %547 = arith.divf %543, %546 : vector<17x17xf32>
    %cst_195 = arith.constant dense<0.000000e+00> : vector<17x4xf32>
    %548 = tpu.matmul %547, %535, %cst_195 {dimension_numbers = #tpu.dot_dimension_numbers<[1], [0], [0], [1], [0, 0, 1, 1], [], []>} : vector<17x17xf32>, vector<17x4xf32>, vector<17x4xf32> -> vector<17x4xf32>
    %549 = vector.extract_strided_slice %514 {offsets = [0, 8], sizes = [17, 4], strides = [1, 1]} : vector<17x32xf32> to vector<17x4xf32>
    %550 = vector.extract_strided_slice %515 {offsets = [0, 8], sizes = [17, 4], strides = [1, 1]} : vector<17x32xf32> to vector<17x4xf32>
    %551 = vector.extract_strided_slice %516 {offsets = [0, 8], sizes = [17, 4], strides = [1, 1]} : vector<17x32xf32> to vector<17x4xf32>
    %cst_196 = arith.constant dense<0.000000e+00> : vector<17x17xf32>
    %552 = tpu.matmul %549, %550, %cst_196 {dimension_numbers = #tpu.dot_dimension_numbers<[1], [1], [0], [0], [0, 0, 1, 0], [], []>} : vector<17x4xf32>, vector<17x4xf32>, vector<17x17xf32> -> vector<17x17xf32>
    %cst_197 = arith.constant 5.000000e-01 : f32
    %553 = vector.broadcast %cst_197 : f32 to vector<17x17xf32>
    %554 = arith.mulf %552, %553 : vector<17x17xf32>
    %cst_198 = arith.constant dense<0xFF800000> : vector<17xf32>
    %555 = vector.multi_reduction <maximumf>, %554, %cst_198 [1] : vector<17x17xf32> to vector<17xf32>
    %556 = vector.shape_cast %555 : vector<17xf32> to vector<17x1xf32>
    %557 = vector.broadcast %556 : vector<17x1xf32> to vector<17x17xf32>
    %558 = arith.subf %554, %557 : vector<17x17xf32>
    %559 = math.exp %558 : vector<17x17xf32>
    %cst_199 = arith.constant dense<0.000000e+00> : vector<17xf32>
    %560 = vector.multi_reduction <add>, %559, %cst_199 [1] : vector<17x17xf32> to vector<17xf32>
    %561 = vector.shape_cast %560 : vector<17xf32> to vector<17x1xf32>
    %562 = vector.broadcast %561 : vector<17x1xf32> to vector<17x17xf32>
    %563 = arith.divf %559, %562 : vector<17x17xf32>
    %cst_200 = arith.constant dense<0.000000e+00> : vector<17x4xf32>
    %564 = tpu.matmul %563, %551, %cst_200 {dimension_numbers = #tpu.dot_dimension_numbers<[1], [0], [0], [1], [0, 0, 1, 1], [], []>} : vector<17x17xf32>, vector<17x4xf32>, vector<17x4xf32> -> vector<17x4xf32>
    %565 = vector.extract_strided_slice %514 {offsets = [0, 12], sizes = [17, 4], strides = [1, 1]} : vector<17x32xf32> to vector<17x4xf32>
    %566 = vector.extract_strided_slice %515 {offsets = [0, 12], sizes = [17, 4], strides = [1, 1]} : vector<17x32xf32> to vector<17x4xf32>
    %567 = vector.extract_strided_slice %516 {offsets = [0, 12], sizes = [17, 4], strides = [1, 1]} : vector<17x32xf32> to vector<17x4xf32>
    %cst_201 = arith.constant dense<0.000000e+00> : vector<17x17xf32>
    %568 = tpu.matmul %565, %566, %cst_201 {dimension_numbers = #tpu.dot_dimension_numbers<[1], [1], [0], [0], [0, 0, 1, 0], [], []>} : vector<17x4xf32>, vector<17x4xf32>, vector<17x17xf32> -> vector<17x17xf32>
    %cst_202 = arith.constant 5.000000e-01 : f32
    %569 = vector.broadcast %cst_202 : f32 to vector<17x17xf32>
    %570 = arith.mulf %568, %569 : vector<17x17xf32>
    %cst_203 = arith.constant dense<0xFF800000> : vector<17xf32>
    %571 = vector.multi_reduction <maximumf>, %570, %cst_203 [1] : vector<17x17xf32> to vector<17xf32>
    %572 = vector.shape_cast %571 : vector<17xf32> to vector<17x1xf32>
    %573 = vector.broadcast %572 : vector<17x1xf32> to vector<17x17xf32>
    %574 = arith.subf %570, %573 : vector<17x17xf32>
    %575 = math.exp %574 : vector<17x17xf32>
    %cst_204 = arith.constant dense<0.000000e+00> : vector<17xf32>
    %576 = vector.multi_reduction <add>, %575, %cst_204 [1] : vector<17x17xf32> to vector<17xf32>
    %577 = vector.shape_cast %576 : vector<17xf32> to vector<17x1xf32>
    %578 = vector.broadcast %577 : vector<17x1xf32> to vector<17x17xf32>
    %579 = arith.divf %575, %578 : vector<17x17xf32>
    %cst_205 = arith.constant dense<0.000000e+00> : vector<17x4xf32>
    %580 = tpu.matmul %579, %567, %cst_205 {dimension_numbers = #tpu.dot_dimension_numbers<[1], [0], [0], [1], [0, 0, 1, 1], [], []>} : vector<17x17xf32>, vector<17x4xf32>, vector<17x4xf32> -> vector<17x4xf32>
    %581 = vector.extract_strided_slice %514 {offsets = [0, 16], sizes = [17, 4], strides = [1, 1]} : vector<17x32xf32> to vector<17x4xf32>
    %582 = vector.extract_strided_slice %515 {offsets = [0, 16], sizes = [17, 4], strides = [1, 1]} : vector<17x32xf32> to vector<17x4xf32>
    %583 = vector.extract_strided_slice %516 {offsets = [0, 16], sizes = [17, 4], strides = [1, 1]} : vector<17x32xf32> to vector<17x4xf32>
    %cst_206 = arith.constant dense<0.000000e+00> : vector<17x17xf32>
    %584 = tpu.matmul %581, %582, %cst_206 {dimension_numbers = #tpu.dot_dimension_numbers<[1], [1], [0], [0], [0, 0, 1, 0], [], []>} : vector<17x4xf32>, vector<17x4xf32>, vector<17x17xf32> -> vector<17x17xf32>
    %cst_207 = arith.constant 5.000000e-01 : f32
    %585 = vector.broadcast %cst_207 : f32 to vector<17x17xf32>
    %586 = arith.mulf %584, %585 : vector<17x17xf32>
    %cst_208 = arith.constant dense<0xFF800000> : vector<17xf32>
    %587 = vector.multi_reduction <maximumf>, %586, %cst_208 [1] : vector<17x17xf32> to vector<17xf32>
    %588 = vector.shape_cast %587 : vector<17xf32> to vector<17x1xf32>
    %589 = vector.broadcast %588 : vector<17x1xf32> to vector<17x17xf32>
    %590 = arith.subf %586, %589 : vector<17x17xf32>
    %591 = math.exp %590 : vector<17x17xf32>
    %cst_209 = arith.constant dense<0.000000e+00> : vector<17xf32>
    %592 = vector.multi_reduction <add>, %591, %cst_209 [1] : vector<17x17xf32> to vector<17xf32>
    %593 = vector.shape_cast %592 : vector<17xf32> to vector<17x1xf32>
    %594 = vector.broadcast %593 : vector<17x1xf32> to vector<17x17xf32>
    %595 = arith.divf %591, %594 : vector<17x17xf32>
    %cst_210 = arith.constant dense<0.000000e+00> : vector<17x4xf32>
    %596 = tpu.matmul %595, %583, %cst_210 {dimension_numbers = #tpu.dot_dimension_numbers<[1], [0], [0], [1], [0, 0, 1, 1], [], []>} : vector<17x17xf32>, vector<17x4xf32>, vector<17x4xf32> -> vector<17x4xf32>
    %597 = vector.extract_strided_slice %514 {offsets = [0, 20], sizes = [17, 4], strides = [1, 1]} : vector<17x32xf32> to vector<17x4xf32>
    %598 = vector.extract_strided_slice %515 {offsets = [0, 20], sizes = [17, 4], strides = [1, 1]} : vector<17x32xf32> to vector<17x4xf32>
    %599 = vector.extract_strided_slice %516 {offsets = [0, 20], sizes = [17, 4], strides = [1, 1]} : vector<17x32xf32> to vector<17x4xf32>
    %cst_211 = arith.constant dense<0.000000e+00> : vector<17x17xf32>
    %600 = tpu.matmul %597, %598, %cst_211 {dimension_numbers = #tpu.dot_dimension_numbers<[1], [1], [0], [0], [0, 0, 1, 0], [], []>} : vector<17x4xf32>, vector<17x4xf32>, vector<17x17xf32> -> vector<17x17xf32>
    %cst_212 = arith.constant 5.000000e-01 : f32
    %601 = vector.broadcast %cst_212 : f32 to vector<17x17xf32>
    %602 = arith.mulf %600, %601 : vector<17x17xf32>
    %cst_213 = arith.constant dense<0xFF800000> : vector<17xf32>
    %603 = vector.multi_reduction <maximumf>, %602, %cst_213 [1] : vector<17x17xf32> to vector<17xf32>
    %604 = vector.shape_cast %603 : vector<17xf32> to vector<17x1xf32>
    %605 = vector.broadcast %604 : vector<17x1xf32> to vector<17x17xf32>
    %606 = arith.subf %602, %605 : vector<17x17xf32>
    %607 = math.exp %606 : vector<17x17xf32>
    %cst_214 = arith.constant dense<0.000000e+00> : vector<17xf32>
    %608 = vector.multi_reduction <add>, %607, %cst_214 [1] : vector<17x17xf32> to vector<17xf32>
    %609 = vector.shape_cast %608 : vector<17xf32> to vector<17x1xf32>
    %610 = vector.broadcast %609 : vector<17x1xf32> to vector<17x17xf32>
    %611 = arith.divf %607, %610 : vector<17x17xf32>
    %cst_215 = arith.constant dense<0.000000e+00> : vector<17x4xf32>
    %612 = tpu.matmul %611, %599, %cst_215 {dimension_numbers = #tpu.dot_dimension_numbers<[1], [0], [0], [1], [0, 0, 1, 1], [], []>} : vector<17x17xf32>, vector<17x4xf32>, vector<17x4xf32> -> vector<17x4xf32>
    %613 = vector.extract_strided_slice %514 {offsets = [0, 24], sizes = [17, 4], strides = [1, 1]} : vector<17x32xf32> to vector<17x4xf32>
    %614 = vector.extract_strided_slice %515 {offsets = [0, 24], sizes = [17, 4], strides = [1, 1]} : vector<17x32xf32> to vector<17x4xf32>
    %615 = vector.extract_strided_slice %516 {offsets = [0, 24], sizes = [17, 4], strides = [1, 1]} : vector<17x32xf32> to vector<17x4xf32>
    %cst_216 = arith.constant dense<0.000000e+00> : vector<17x17xf32>
    %616 = tpu.matmul %613, %614, %cst_216 {dimension_numbers = #tpu.dot_dimension_numbers<[1], [1], [0], [0], [0, 0, 1, 0], [], []>} : vector<17x4xf32>, vector<17x4xf32>, vector<17x17xf32> -> vector<17x17xf32>
    %cst_217 = arith.constant 5.000000e-01 : f32
    %617 = vector.broadcast %cst_217 : f32 to vector<17x17xf32>
    %618 = arith.mulf %616, %617 : vector<17x17xf32>
    %cst_218 = arith.constant dense<0xFF800000> : vector<17xf32>
    %619 = vector.multi_reduction <maximumf>, %618, %cst_218 [1] : vector<17x17xf32> to vector<17xf32>
    %620 = vector.shape_cast %619 : vector<17xf32> to vector<17x1xf32>
    %621 = vector.broadcast %620 : vector<17x1xf32> to vector<17x17xf32>
    %622 = arith.subf %618, %621 : vector<17x17xf32>
    %623 = math.exp %622 : vector<17x17xf32>
    %cst_219 = arith.constant dense<0.000000e+00> : vector<17xf32>
    %624 = vector.multi_reduction <add>, %623, %cst_219 [1] : vector<17x17xf32> to vector<17xf32>
    %625 = vector.shape_cast %624 : vector<17xf32> to vector<17x1xf32>
    %626 = vector.broadcast %625 : vector<17x1xf32> to vector<17x17xf32>
    %627 = arith.divf %623, %626 : vector<17x17xf32>
    %cst_220 = arith.constant dense<0.000000e+00> : vector<17x4xf32>
    %628 = tpu.matmul %627, %615, %cst_220 {dimension_numbers = #tpu.dot_dimension_numbers<[1], [0], [0], [1], [0, 0, 1, 1], [], []>} : vector<17x17xf32>, vector<17x4xf32>, vector<17x4xf32> -> vector<17x4xf32>
    %629 = vector.extract_strided_slice %514 {offsets = [0, 28], sizes = [17, 4], strides = [1, 1]} : vector<17x32xf32> to vector<17x4xf32>
    %630 = vector.extract_strided_slice %515 {offsets = [0, 28], sizes = [17, 4], strides = [1, 1]} : vector<17x32xf32> to vector<17x4xf32>
    %631 = vector.extract_strided_slice %516 {offsets = [0, 28], sizes = [17, 4], strides = [1, 1]} : vector<17x32xf32> to vector<17x4xf32>
    %cst_221 = arith.constant dense<0.000000e+00> : vector<17x17xf32>
    %632 = tpu.matmul %629, %630, %cst_221 {dimension_numbers = #tpu.dot_dimension_numbers<[1], [1], [0], [0], [0, 0, 1, 0], [], []>} : vector<17x4xf32>, vector<17x4xf32>, vector<17x17xf32> -> vector<17x17xf32>
    %cst_222 = arith.constant 5.000000e-01 : f32
    %633 = vector.broadcast %cst_222 : f32 to vector<17x17xf32>
    %634 = arith.mulf %632, %633 : vector<17x17xf32>
    %cst_223 = arith.constant dense<0xFF800000> : vector<17xf32>
    %635 = vector.multi_reduction <maximumf>, %634, %cst_223 [1] : vector<17x17xf32> to vector<17xf32>
    %636 = vector.shape_cast %635 : vector<17xf32> to vector<17x1xf32>
    %637 = vector.broadcast %636 : vector<17x1xf32> to vector<17x17xf32>
    %638 = arith.subf %634, %637 : vector<17x17xf32>
    %639 = math.exp %638 : vector<17x17xf32>
    %cst_224 = arith.constant dense<0.000000e+00> : vector<17xf32>
    %640 = vector.multi_reduction <add>, %639, %cst_224 [1] : vector<17x17xf32> to vector<17xf32>
    %641 = vector.shape_cast %640 : vector<17xf32> to vector<17x1xf32>
    %642 = vector.broadcast %641 : vector<17x1xf32> to vector<17x17xf32>
    %643 = arith.divf %639, %642 : vector<17x17xf32>
    %cst_225 = arith.constant dense<0.000000e+00> : vector<17x4xf32>
    %644 = tpu.matmul %643, %631, %cst_225 {dimension_numbers = #tpu.dot_dimension_numbers<[1], [0], [0], [1], [0, 0, 1, 1], [], []>} : vector<17x17xf32>, vector<17x4xf32>, vector<17x4xf32> -> vector<17x4xf32>
    %645 = tpu.concatenate %532, %548, %564, %580, %596, %612, %628, %644 in 1 : vector<17x4xf32>, vector<17x4xf32>, vector<17x4xf32>, vector<17x4xf32>, vector<17x4xf32>, vector<17x4xf32>, vector<17x4xf32>, vector<17x4xf32> -> vector<17x32xf32>
    %646 = tpu.concatenate %513, %645 in 0 : vector<17x32xf32>, vector<17x32xf32> -> vector<34x32xf32>
    %c1_226 = arith.constant 1 : index
    %c0_227 = arith.constant 0 : index
    %c0_228 = arith.constant 0 : index
    %647 = vector.load %arg6[%c1_226, %c0_227, %c0_228] : memref<2x32x32xf32, #tpu.memory_space<vmem>>, vector<1x32x32xf32>
    %648 = vector.shape_cast %647 : vector<1x32x32xf32> to vector<32x32xf32>
    %cst_229 = arith.constant dense<0.000000e+00> : vector<34x32xf32>
    %649 = tpu.matmul %646, %648, %cst_229 {dimension_numbers = #tpu.dot_dimension_numbers<[1], [0], [0], [1], [0, 0, 1, 1], [], []>} : vector<34x32xf32>, vector<32x32xf32>, vector<34x32xf32> -> vector<34x32xf32>
    %650 = arith.addf %352, %649 : vector<34x32xf32>
    %c1_230 = arith.constant 1 : index
    %c0_231 = arith.constant 0 : index
    %c0_232 = arith.constant 0 : index
    %651 = vector.load %arg7[%c1_230, %c0_231, %c0_232] : memref<2x1x32xf32, #tpu.memory_space<vmem>>, vector<1x1x32xf32>
    %652 = vector.shape_cast %651 : vector<1x1x32xf32> to vector<1x32xf32>
    %c1_233 = arith.constant 1 : index
    %c0_234 = arith.constant 0 : index
    %c0_235 = arith.constant 0 : index
    %653 = vector.load %arg8[%c1_233, %c0_234, %c0_235] : memref<2x1x32xf32, #tpu.memory_space<vmem>>, vector<1x1x32xf32>
    %654 = vector.shape_cast %653 : vector<1x1x32xf32> to vector<1x32xf32>
    %cst_236 = arith.constant dense<0.000000e+00> : vector<34xf32>
    %655 = vector.multi_reduction <add>, %650, %cst_236 [1] : vector<34x32xf32> to vector<34xf32>
    %656 = vector.shape_cast %655 : vector<34xf32> to vector<34x1xf32>
    %cst_237 = arith.constant 3.200000e+01 : f32
    %657 = vector.broadcast %cst_237 : f32 to vector<34x1xf32>
    %658 = arith.divf %656, %657 : vector<34x1xf32>
    %659 = vector.broadcast %658 : vector<34x1xf32> to vector<34x32xf32>
    %660 = arith.subf %650, %659 : vector<34x32xf32>
    %661 = arith.mulf %660, %660 : vector<34x32xf32>
    %cst_238 = arith.constant dense<0.000000e+00> : vector<34xf32>
    %662 = vector.multi_reduction <add>, %661, %cst_238 [1] : vector<34x32xf32> to vector<34xf32>
    %663 = vector.shape_cast %662 : vector<34xf32> to vector<34x1xf32>
    %cst_239 = arith.constant 3.200000e+01 : f32
    %664 = vector.broadcast %cst_239 : f32 to vector<34x1xf32>
    %665 = arith.divf %663, %664 : vector<34x1xf32>
    %666 = vector.broadcast %658 : vector<34x1xf32> to vector<34x32xf32>
    %667 = arith.subf %650, %666 : vector<34x32xf32>
    %cst_240 = arith.constant 9.99999974E-6 : f32
    %668 = vector.broadcast %cst_240 : f32 to vector<34x1xf32>
    %669 = arith.addf %665, %668 : vector<34x1xf32>
    %670 = math.rsqrt %669 : vector<34x1xf32>
    %671 = vector.broadcast %670 : vector<34x1xf32> to vector<34x32xf32>
    %672 = arith.mulf %667, %671 : vector<34x32xf32>
    %673 = vector.broadcast %652 : vector<1x32xf32> to vector<34x32xf32>
    %674 = arith.mulf %672, %673 : vector<34x32xf32>
    %675 = vector.broadcast %654 : vector<1x32xf32> to vector<34x32xf32>
    %676 = arith.addf %674, %675 : vector<34x32xf32>
    %c1_241 = arith.constant 1 : index
    %c0_242 = arith.constant 0 : index
    %c0_243 = arith.constant 0 : index
    %677 = vector.load %arg9[%c1_241, %c0_242, %c0_243] : memref<2x32x128xf32, #tpu.memory_space<vmem>>, vector<1x32x128xf32>
    %678 = vector.shape_cast %677 : vector<1x32x128xf32> to vector<32x128xf32>
    %cst_244 = arith.constant dense<0.000000e+00> : vector<34x128xf32>
    %679 = tpu.matmul %676, %678, %cst_244 {dimension_numbers = #tpu.dot_dimension_numbers<[1], [0], [0], [1], [0, 0, 1, 1], [], []>} : vector<34x32xf32>, vector<32x128xf32>, vector<34x128xf32> -> vector<34x128xf32>
    %c1_245 = arith.constant 1 : index
    %c0_246 = arith.constant 0 : index
    %c0_247 = arith.constant 0 : index
    %680 = vector.load %arg10[%c1_245, %c0_246, %c0_247] : memref<2x1x128xf32, #tpu.memory_space<vmem>>, vector<1x1x128xf32>
    %681 = vector.shape_cast %680 : vector<1x1x128xf32> to vector<1x128xf32>
    %682 = vector.broadcast %681 : vector<1x128xf32> to vector<34x128xf32>
    %683 = arith.addf %679, %682 : vector<34x128xf32>
    %cst_248 = arith.constant 5.000000e-01 : f32
    %684 = vector.broadcast %cst_248 : f32 to vector<34x128xf32>
    %685 = arith.mulf %684, %683 : vector<34x128xf32>
    %cst_249 = arith.constant 0.707106769 : f32
    %686 = vector.broadcast %cst_249 : f32 to vector<34x128xf32>
    %687 = arith.mulf %683, %686 : vector<34x128xf32>
    %688 = math.erf %687 : vector<34x128xf32>
    %cst_250 = arith.constant 1.000000e+00 : f32
    %689 = vector.broadcast %cst_250 : f32 to vector<34x128xf32>
    %690 = arith.addf %689, %688 : vector<34x128xf32>
    %691 = arith.mulf %685, %690 : vector<34x128xf32>
    %c1_251 = arith.constant 1 : index
    %c0_252 = arith.constant 0 : index
    %c0_253 = arith.constant 0 : index
    %692 = vector.load %arg11[%c1_251, %c0_252, %c0_253] : memref<2x128x32xf32, #tpu.memory_space<vmem>>, vector<1x128x32xf32>
    %693 = vector.shape_cast %692 : vector<1x128x32xf32> to vector<128x32xf32>
    %cst_254 = arith.constant dense<0.000000e+00> : vector<34x32xf32>
    %694 = tpu.matmul %691, %693, %cst_254 {dimension_numbers = #tpu.dot_dimension_numbers<[1], [0], [0], [1], [0, 0, 1, 1], [], []>} : vector<34x128xf32>, vector<128x32xf32>, vector<34x32xf32> -> vector<34x32xf32>
    %c1_255 = arith.constant 1 : index
    %c0_256 = arith.constant 0 : index
    %c0_257 = arith.constant 0 : index
    %695 = vector.load %arg12[%c1_255, %c0_256, %c0_257] : memref<2x1x32xf32, #tpu.memory_space<vmem>>, vector<1x1x32xf32>
    %696 = vector.shape_cast %695 : vector<1x1x32xf32> to vector<1x32xf32>
    %697 = vector.broadcast %696 : vector<1x32xf32> to vector<34x32xf32>
    %698 = arith.addf %694, %697 : vector<34x32xf32>
    %699 = arith.addf %650, %698 : vector<34x32xf32>
    %700 = vector.extract_strided_slice %699 {offsets = [0, 0], sizes = [1, 32], strides = [1, 1]} : vector<34x32xf32> to vector<1x32xf32>
    %701 = vector.extract_strided_slice %699 {offsets = [17, 0], sizes = [1, 32], strides = [1, 1]} : vector<34x32xf32> to vector<1x32xf32>
    %702 = tpu.concatenate %700, %701 in 0 : vector<1x32xf32>, vector<1x32xf32> -> vector<2x32xf32>
    %c0_258 = arith.constant 0 : index
    %c0_259 = arith.constant 0 : index
    %703 = vector.load %arg13[%c0_258, %c0_259] : memref<1x32xf32, #tpu.memory_space<vmem>>, vector<1x32xf32>
    %c0_260 = arith.constant 0 : index
    %c0_261 = arith.constant 0 : index
    %704 = vector.load %arg14[%c0_260, %c0_261] : memref<1x32xf32, #tpu.memory_space<vmem>>, vector<1x32xf32>
    %cst_262 = arith.constant dense<0.000000e+00> : vector<2xf32>
    %705 = vector.multi_reduction <add>, %702, %cst_262 [1] : vector<2x32xf32> to vector<2xf32>
    %706 = vector.shape_cast %705 : vector<2xf32> to vector<2x1xf32>
    %cst_263 = arith.constant 3.200000e+01 : f32
    %707 = vector.broadcast %cst_263 : f32 to vector<2x1xf32>
    %708 = arith.divf %706, %707 : vector<2x1xf32>
    %709 = vector.broadcast %708 : vector<2x1xf32> to vector<2x32xf32>
    %710 = arith.subf %702, %709 : vector<2x32xf32>
    %711 = arith.mulf %710, %710 : vector<2x32xf32>
    %cst_264 = arith.constant dense<0.000000e+00> : vector<2xf32>
    %712 = vector.multi_reduction <add>, %711, %cst_264 [1] : vector<2x32xf32> to vector<2xf32>
    %713 = vector.shape_cast %712 : vector<2xf32> to vector<2x1xf32>
    %cst_265 = arith.constant 3.200000e+01 : f32
    %714 = vector.broadcast %cst_265 : f32 to vector<2x1xf32>
    %715 = arith.divf %713, %714 : vector<2x1xf32>
    %716 = vector.broadcast %708 : vector<2x1xf32> to vector<2x32xf32>
    %717 = arith.subf %702, %716 : vector<2x32xf32>
    %cst_266 = arith.constant 9.99999974E-6 : f32
    %718 = vector.broadcast %cst_266 : f32 to vector<2x1xf32>
    %719 = arith.addf %715, %718 : vector<2x1xf32>
    %720 = math.rsqrt %719 : vector<2x1xf32>
    %721 = vector.broadcast %720 : vector<2x1xf32> to vector<2x32xf32>
    %722 = arith.mulf %717, %721 : vector<2x32xf32>
    %723 = vector.broadcast %703 : vector<1x32xf32> to vector<2x32xf32>
    %724 = arith.mulf %722, %723 : vector<2x32xf32>
    %725 = vector.broadcast %704 : vector<1x32xf32> to vector<2x32xf32>
    %726 = arith.addf %724, %725 : vector<2x32xf32>
    %c0_267 = arith.constant 0 : index
    %c0_268 = arith.constant 0 : index
    %727 = vector.load %arg15[%c0_267, %c0_268] : memref<32x2xf32, #tpu.memory_space<vmem>>, vector<32x2xf32>
    %cst_269 = arith.constant dense<0.000000e+00> : vector<2x2xf32>
    %728 = tpu.matmul %726, %727, %cst_269 {dimension_numbers = #tpu.dot_dimension_numbers<[1], [0], [0], [1], [0, 0, 1, 1], [], []>} : vector<2x32xf32>, vector<32x2xf32>, vector<2x2xf32> -> vector<2x2xf32>
    %c0_270 = arith.constant 0 : index
    %c0_271 = arith.constant 0 : index
    %729 = vector.load %arg16[%c0_270, %c0_271] : memref<1x2xf32, #tpu.memory_space<vmem>>, vector<1x2xf32>
    %730 = vector.broadcast %729 : vector<1x2xf32> to vector<2x2xf32>
    %731 = arith.addf %728, %730 : vector<2x2xf32>
    %c0_272 = arith.constant 0 : index
    %c0_273 = arith.constant 0 : index
    %732 = vector.load %arg17[%c0_272, %c0_273] : memref<2x2xf32, #tpu.memory_space<vmem>>, vector<2x2xf32>
    tpu.vector_store %arg17[%c0_272, %c0_273], %731 {strides = array<i32>} : memref<2x2xf32, #tpu.memory_space<vmem>>, vector<2x2xf32>,
    return
  }
}

</mosaic_0001>

<llo_original>
// kernel: vit_forward.1
$region0: #{vit_forward.1}
  #allocation0 [shape = 'u32[]', space=smem, size = 0x4, offset = 0x4, fixed_abs, tag = 'smem constant byte address 0x4 - core index']
  #allocation1 [shape = 'u32[144,128]{1,0:T(1,128)}', space=vmem, size = 0x12000, scoped, tag = 'internal scratch']
  %s0 = inlined_call_operand.vmem [shape: f32[34,64], index: 0, kind: input, shape index: {}]
  %s1 = inlined_call_operand.vmem [shape: f32[64,32], index: 1, kind: input, shape index: {}]
  %s2 = inlined_call_operand.vmem [shape: f32[17,32], index: 2, kind: input, shape index: {}]
  %s3 = inlined_call_operand.vmem [shape: f32[2,1,32], index: 3, kind: input, shape index: {}]
  %s4 = inlined_call_operand.vmem [shape: f32[2,1,32], index: 4, kind: input, shape index: {}]
  %s5 = inlined_call_operand.vmem [shape: f32[2,32,96], index: 5, kind: input, shape index: {}]
  %s6 = inlined_call_operand.vmem [shape: f32[2,32,32], index: 6, kind: input, shape index: {}]
  %s7 = inlined_call_operand.vmem [shape: f32[2,1,32], index: 7, kind: input, shape index: {}]
  %s8 = inlined_call_operand.vmem [shape: f32[2,1,32], index: 8, kind: input, shape index: {}]
  %s9 = inlined_call_operand.vmem [shape: f32[2,32,128], index: 9, kind: input, shape index: {}]
  %s10 = inlined_call_operand.vmem [shape: f32[2,1,128], index: 10, kind: input, shape index: {}]
  %s11 = inlined_call_operand.vmem [shape: f32[2,128,32], index: 11, kind: input, shape index: {}]
  %s12 = inlined_call_operand.vmem [shape: f32[2,1,32], index: 12, kind: input, shape index: {}]
  %s13 = inlined_call_operand.vmem [shape: f32[1,32], index: 13, kind: input, shape index: {}]
  %s14 = inlined_call_operand.vmem [shape: f32[1,32], index: 14, kind: input, shape index: {}]
  %s15 = inlined_call_operand.vmem [shape: f32[32,2], index: 15, kind: input, shape index: {}]
  %s16 = inlined_call_operand.vmem [shape: f32[1,2], index: 16, kind: input, shape index: {}]
  %s17 = inlined_call_operand.hbm [shape: f32[2,2], index: 17, kind: output, shape index: {}]
  %s18 = sld [smem:[#allocation0]]
  $region78: #{vit_forward.1} parent=0
    _
  %s20 = ssub.s32 1, %s18
  %s21 = scalar_select 0, %s20, %s18
  $region1: #{vit_forward.1} parent=0
    #allocation2 [shape = 'u8[1024]{0}', space=vmem, size = 0x400, scoped, tag = 'output window, operand 0, single buffered']
    #allocation3 [shape = 's32[1]{0}', space=sflag, size = 0x4, scoped, tag = 'scoped memory for vit_forward.1']
    %22 = vsyncpa [#allocation3], 0
    // Predicated region
    $region2: #{vit_forward.1} parent=1 // pred_check
      _
    $region3: #{vit_forward.1} parent=1 // pred_check_branch
      %24 = sbr.rel (0) target = $region5
    $region4: #{vit_forward.1} parent=1 // pred_region
      _
    $region5: #{vit_forward.1} parent=1 // pred_fallthru
      _
    // Predicated region
    $region6: #{vit_forward.1} parent=1 // pred_check
      _
    $region7: #{vit_forward.1} parent=1 // pred_check_branch
      %26 = sbr.rel (0) target = $region9
    $region8: #{vit_forward.1} parent=1 // pred_region
      _
    $region9: #{vit_forward.1} parent=1 // pred_fallthru
      _
    // Predicated region
    $region10: #{vit_forward.1} parent=1 // pred_check
      _
    $region11: #{vit_forward.1} parent=1 // pred_check_branch
      %28 = sbr.rel (0) target = $region13
    $region12: #{vit_forward.1} parent=1 // pred_region
      _
    $region13: #{vit_forward.1} parent=1 // pred_fallthru
      _
    // Predicated region
    $region14: #{vit_forward.1} parent=1 // pred_check
      _
    $region15: #{vit_forward.1} parent=1 // pred_check_branch
      %30 = sbr.rel (0) target = $region17
    $region16: #{vit_forward.1} parent=1 // pred_region
      _
    $region17: #{vit_forward.1} parent=1 // pred_fallthru
      _
    // Predicated region
    $region18: #{vit_forward.1} parent=1 // pred_check
      _
    $region19: #{vit_forward.1} parent=1 // pred_check_branch
      %32 = sbr.rel (0) target = $region21
    $region20: #{vit_forward.1} parent=1 // pred_region
      _
    $region21: #{vit_forward.1} parent=1 // pred_fallthru
      _
    // Predicated region
    $region22: #{vit_forward.1} parent=1 // pred_check
      _
    $region23: #{vit_forward.1} parent=1 // pred_check_branch
      %34 = sbr.rel (0) target = $region25
    $region24: #{vit_forward.1} parent=1 // pred_region
      _
    $region25: #{vit_forward.1} parent=1 // pred_fallthru
      _
    // Predicated region
    $region26: #{vit_forward.1} parent=1 // pred_check
      _
    $region27: #{vit_forward.1} parent=1 // pred_check_branch
      %36 = sbr.rel (0) target = $region29
    $region28: #{vit_forward.1} parent=1 // pred_region
      _
    $region29: #{vit_forward.1} parent=1 // pred_fallthru
      _
    // Predicated region
    $region30: #{vit_forward.1} parent=1 // pred_check
      _
    $region31: #{vit_forward.1} parent=1 // pred_check_branch
      %38 = sbr.rel (0) target = $region33
    $region32: #{vit_forward.1} parent=1 // pred_region
      _
    $region33: #{vit_forward.1} parent=1 // pred_fallthru
      _
    // Predicated region
    $region34: #{vit_forward.1} parent=1 // pred_check
      _
    $region35: #{vit_forward.1} parent=1 // pred_check_branch
      %40 = sbr.rel (0) target = $region37
    $region36: #{vit_forward.1} parent=1 // pred_region
      _
    $region37: #{vit_forward.1} parent=1 // pred_fallthru
      _
    // Predicated region
    $region38: #{vit_forward.1} parent=1 // pred_check
      _
    $region39: #{vit_forward.1} parent=1 // pred_check_branch
      %42 = sbr.rel (0) target = $region41
    $region40: #{vit_forward.1} parent=1 // pred_region
      _
    $region41: #{vit_forward.1} parent=1 // pred_fallthru
      _
    // Predicated region
    $region42: #{vit_forward.1} parent=1 // pred_check
      _
    $region43: #{vit_forward.1} parent=1 // pred_check_branch
      %44 = sbr.rel (0) target = $region45
    $region44: #{vit_forward.1} parent=1 // pred_region
      _
    $region45: #{vit_forward.1} parent=1 // pred_fallthru
      _
    // Predicated region
    $region46: #{vit_forward.1} parent=1 // pred_check
      _
    $region47: #{vit_forward.1} parent=1 // pred_check_branch
      %46 = sbr.rel (0) target = $region49
    $region48: #{vit_forward.1} parent=1 // pred_region
      _
    $region49: #{vit_forward.1} parent=1 // pred_fallthru
      _
    // Predicated region
    $region50: #{vit_forward.1} parent=1 // pred_check
      _
    $region51: #{vit_forward.1} parent=1 // pred_check_branch
      %48 = sbr.rel (0) target = $region53
    $region52: #{vit_forward.1} parent=1 // pred_region
      _
    $region53: #{vit_forward.1} parent=1 // pred_fallthru
      _
    // Predicated region
    $region54: #{vit_forward.1} parent=1 // pred_check
      _
    $region55: #{vit_forward.1} parent=1 // pred_check_branch
      %50 = sbr.rel (0) target = $region57
    $region56: #{vit_forward.1} parent=1 // pred_region
      _
    $region57: #{vit_forward.1} parent=1 // pred_fallthru
      _
    // Predicated region
    $region58: #{vit_forward.1} parent=1 // pred_check
      _
    $region59: #{vit_forward.1} parent=1 // pred_check_branch
      %52 = sbr.rel (0) target = $region61
    $region60: #{vit_forward.1} parent=1 // pred_region
      _
    $region61: #{vit_forward.1} parent=1 // pred_fallthru
      _
    // Predicated region
    $region62: #{vit_forward.1} parent=1 // pred_check
      _
    $region63: #{vit_forward.1} parent=1 // pred_check_branch
      %54 = sbr.rel (0) target = $region65
    $region64: #{vit_forward.1} parent=1 // pred_region
      _
    $region65: #{vit_forward.1} parent=1 // pred_fallthru
      _
    // Predicated region
    $region66: #{vit_forward.1} parent=1 // pred_check
      _
    $region67: #{vit_forward.1} parent=1 // pred_check_branch
      %56 = sbr.rel (0) target = $region69
    $region68: #{vit_forward.1} parent=1 // pred_region
      _
    $region69: #{vit_forward.1} parent=1 // pred_fallthru
      _
    %v57 = vld [vmem:[%s0] sm:$0xff]
    %v58 = vld [vmem:[%s0 + $0x8] sm:$0xff]
    %v59 = vld [vmem:[%s0 + $0x10] sm:$0xff]
    %v60 = vld [vmem:[%s0 + $0x18] sm:$0xff]
    %v61 = vld [vmem:[%s0 + $0x20] sm:$0x3]
    %v62 = vld [vmem:[%s2] sm:$0xff]
    %v63 = vld [vmem:[%s2 + $0x8] sm:$0xff]
    %v64 = vld [vmem:[%s2 + $0x10] sm:$0x1]
    %vm68 = vcmask 1040384
    %v69 = vrot.slane %v62, 7
    %v70 = vrot.slane %v63, 7
    %v71 = vsel %vm68, %v69, %v70
    %v72 = vrot.slane %v64, 7
    %v73 = vsel %vm68, %v70, %v72
    %v77 = vsel %vm68, %v64, %v69
    %v78 = vld [vmem:[%s1] sm:$0xff]
    %v79 = vld [vmem:[%s1 + $0x8] sm:$0xff]
    %v80 = vld [vmem:[%s1 + $0x10] sm:$0xff]
    %v81 = vld [vmem:[%s1 + $0x18] sm:$0xff]
    %v82 = vld [vmem:[%s1 + $0x20] sm:$0xff]
    %v83 = vld [vmem:[%s1 + $0x28] sm:$0xff]
    %v84 = vld [vmem:[%s1 + $0x30] sm:$0xff]
    %v85 = vld [vmem:[%s1 + $0x38] sm:$0xff]
    %vm86 = vcmask 523264
    %v88 = vsel %vm86, %v57, 0
    %v91 = vsel %vm86, %v58, 0
    %v94 = vsel %vm86, %v59, 0
    %v97 = vsel %vm86, %v60, 0
    %v100 = vsel %vm86, %v61, 0
    %102 = vmatprep.subr.mxu0 0.0
    %103 = vmatpush1.msra.mxu0 0.0
    %104 = vmatprep.subr.mxu0 0.0
    %105 = vmatpush1.msra.mxu0 0.0
    %106 = vmatprep.subr.mxu0 0.0
    %107 = vmatpush1.msra.mxu0 0.0
    %108 = vmatprep.subr.mxu0 0.0
    %109 = vmatpush1.msra.mxu0 0.0
    %110 = vmatprep.subr.mxu0 0.0
    %111 = vmatpush1.msra.mxu0 0.0
    %112 = vmatprep.subr.mxu0 0.0
    %113 = vmatpush1.msra.mxu0 0.0
    %114 = vmatprep.subr.mxu0 0.0
    %115 = vmatpush1.msra.mxu0 0.0
    %116 = vmatprep.subr.mxu0 0.0
    %117 = vmatpush1.msra.mxu0 0.0
    %118 = vmatprep.subr.mxu0 0.0
    %119 = vmatpush1.msra.mxu0 %v85
    %120 = vmatprep.subr.mxu0 0.0
    %121 = vmatpush1.msra.mxu0 %v84
    %122 = vmatprep.subr.mxu0 0.0
    %123 = vmatpush1.msra.mxu0 %v83
    %124 = vmatprep.subr.mxu0 0.0
    %125 = vmatpush1.msra.mxu0 %v82
    %126 = vmatprep.subr.mxu0 0.0
    %127 = vmatpush1.msra.mxu0 %v81
    %128 = vmatprep.subr.mxu0 0.0
    %129 = vmatpush1.msra.mxu0 %v80
    %130 = vmatprep.subr.mxu0 0.0
    %131 = vmatpush1.msra.mxu0 %v79
    %132 = vmatprep.subr.mxu0 0.0
    %133 = vmatpush1.msra.mxu0 %v78
    %134 = vmatprep.subr.mxu0 0.0
    %135 = vmatpush2.msra.mxu0 0.0
    %136 = vmatprep.subr.mxu0 0.0
    %137 = vmatpush2.msra.mxu0 0.0
    %138 = vmatprep.subr.mxu0 0.0
    %139 = vmatpush2.msra.mxu0 0.0
    %140 = vmatprep.subr.mxu0 0.0
    %141 = vmatpush2.msra.mxu0 0.0
    %142 = vmatprep.subr.mxu0 0.0
    %143 = vmatpush2.msra.mxu0 0.0
    %144 = vmatprep.subr.mxu0 0.0
    %145 = vmatpush2.msra.mxu0 0.0
    %146 = vmatprep.subr.mxu0 0.0
    %147 = vmatpush2.msra.mxu0 0.0
    %148 = vmatprep.subr.mxu0 0.0
    %149 = vmatpush2.msra.mxu0 0.0
    %150 = vmatprep.subr.mxu0 0.0
    %151 = vmatpush2.msra.mxu0 0.0
    %152 = vmatprep.subr.mxu0 0.0
    %153 = vmatpush2.msra.mxu0 0.0
    %154 = vmatprep.subr.mxu0 0.0
    %155 = vmatpush2.msra.mxu0 0.0
    %156 = vmatprep.subr.mxu0 0.0
    %157 = vmatpush2.msra.mxu0 0.0
    %158 = vmatprep.subr.mxu0 0.0
    %159 = vmatpush2.msra.mxu0 0.0
    %160 = vmatprep.subr.mxu0 0.0
    %161 = vmatpush2.msra.mxu0 0.0
    %162 = vmatprep.subr.mxu0 0.0
    %163 = vmatpush2.msra.mxu0 0.0
    %164 = vmatprep.subr.mxu0 0.0
    %165 = vmatpush2.msra.mxu0 0.0
    %166 = vmatprep.mubr.f32.mxu0 0.0
    %167 = vmatmul.mubr.f32.gmra.mxu0 %v88
    %v168 = vpop.f32.mrf.mxu0
    %v169 = vadd.f32 %v62, %v168
    %v170 = vpop.f32.mrf.mxu0
    %171 = vmatprep.mubr.f32.mxu0 0.0
    %172 = vmatmul.mubr.f32.gmra.mxu0 %v91
    %v173 = vpop.f32.mrf.mxu0
    %v174 = vadd.f32 %v63, %v173
    %v175 = vpop.f32.mrf.mxu0
    %176 = vmatprep.mubr.f32.mxu0 0.0
    %177 = vmatmul.mubr.f32.gmra.mxu0 %v94
    %v178 = vpop.f32.mrf.mxu0
    %v179 = vadd.f32 %v77, %v178
    %v180 = vpop.f32.mrf.mxu0
    %181 = vmatprep.mubr.f32.mxu0 0.0
    %182 = vmatmul.mubr.f32.gmra.mxu0 %v97
    %v183 = vpop.f32.mrf.mxu0
    %v184 = vadd.f32 %v71, %v183
    %v185 = vpop.f32.mrf.mxu0
    %186 = vmatprep.mubr.f32.mxu0 0.0
    %187 = vmatmul.mubr.f32.gmra.mxu0 %v100
    %v188 = vpop.f32.mrf.mxu0
    %v189 = vadd.f32 %v73, %v188
    %v190 = vpop.f32.mrf.mxu0
    %191 = vdwg.mxu0
    %v192 = vld [vmem:[%s3] sm:$0x1]
    %v193 = vld [vmem:[%s4] sm:$0x1]
    %vm194 = vcmask 261120
    %v195 = vsel %vm194, %v169, 0.0
    %196 = vadd.xlane.f32.xlu0 %v195
    %v197 = vpop.xlane.xlu0 %196
    %v198 = vsel %vm194, %v174, 0.0
    %199 = vadd.xlane.f32.xlu0 %v198
    %v200 = vpop.xlane.xlu0 %199
    %v201 = vsel %vm194, %v179, 0.0
    %202 = vadd.xlane.f32.xlu0 %v201
    %v203 = vpop.xlane.xlu0 %202
    %v204 = vsel %vm194, %v184, 0.0
    %205 = vadd.xlane.f32.xlu0 %v204
    %v206 = vpop.xlane.xlu0 %205
    %vm207 = vcmask 254976
    %v208 = vsel %vm207, %v189, 0.0
    %209 = vadd.xlane.f32.xlu0 %v208
    %v210 = vpop.xlane.xlu0 %209
    %v211 = vrcp.pop 32.0
    %v212 = vmul.f32 %v197, %v211
    %v213 = vmul.f32 %v200, %v211
    %v214 = vmul.f32 %v203, %v211
    %v215 = vmul.f32 %v206, %v211
    %v216 = vmul.f32 %v210, %v211
    %v217 = vsub.f32 %v169, %v212
    %v218 = vsub.f32 %v174, %v213
    %v219 = vsub.f32 %v179, %v214
    %v220 = vsub.f32 %v184, %v215
    %v221 = vsub.f32 %v189, %v216
    %v222 = vmul.f32 %v217, %v217
    %v223 = vmul.f32 %v218, %v218
    %v224 = vmul.f32 %v219, %v219
    %v225 = vmul.f32 %v220, %v220
    %v226 = vmul.f32 %v221, %v221
    %v227 = vsel %vm194, %v222, 0.0
    %228 = vadd.xlane.f32.xlu0 %v227
    %v229 = vpop.xlane.xlu0 %228
    %v230 = vsel %vm194, %v223, 0.0
    %231 = vadd.xlane.f32.xlu0 %v230
    %v232 = vpop.xlane.xlu0 %231
    %v233 = vsel %vm194, %v224, 0.0
    %234 = vadd.xlane.f32.xlu0 %v233
    %v235 = vpop.xlane.xlu0 %234
    %v236 = vsel %vm194, %v225, 0.0
    %237 = vadd.xlane.f32.xlu0 %v236
    %v238 = vpop.xlane.xlu0 %237
    %v239 = vsel %vm207, %v226, 0.0
    %240 = vadd.xlane.f32.xlu0 %v239
    %v241 = vpop.xlane.xlu0 %240
    %v242 = vmul.f32 %v229, %v211
    %v243 = vmul.f32 %v232, %v211
    %v244 = vmul.f32 %v235, %v211
    %v245 = vmul.f32 %v238, %v211
    %v246 = vmul.f32 %v241, %v211
    %v247 = vadd.f32 %v242, 1e-05
    %v248 = vadd.f32 %v243, 1e-05
    %v249 = vadd.f32 %v244, 1e-05
    %v250 = vadd.f32 %v245, 1e-05
    %v251 = vadd.f32 %v246, 1e-05
    %v252 = vrsqrt.pop %v247
    %v253 = vrsqrt.pop %v248
    %v254 = vrsqrt.pop %v249
    %v255 = vrsqrt.pop %v250
    %v256 = vrsqrt.pop %v251
    %v257 = vmul.f32 %v217, %v252
    %v258 = vmul.f32 %v218, %v253
    %v259 = vmul.f32 %v219, %v254
    %v260 = vmul.f32 %v220, %v255
    %v261 = vmul.f32 %v221, %v256
    %v263 = vlaneseq
    %v264 = vshrl.u32 %v263, 7
    %v265 = vsub.s32 0, %v264
    %v266 = vrot.slane %v192, %v265
    %v268 = vmul.f32 %v257, %v266
    %v269 = vmul.f32 %v258, %v266
    %v270 = vmul.f32 %v259, %v266
    %v271 = vmul.f32 %v260, %v266
    %v272 = vmul.f32 %v261, %v266
    %v274 = vlaneseq
    %v275 = vshrl.u32 %v274, 7
    %v276 = vsub.s32 0, %v275
    %v277 = vrot.slane %v193, %v276
    %v279 = vadd.f32 %v268, %v277
    %v280 = vadd.f32 %v269, %v277
    %v281 = vadd.f32 %v270, %v277
    %v282 = vadd.f32 %v271, %v277
    %v283 = vadd.f32 %v272, %v277
    %v284 = vld [vmem:[%s5] sm:$0xff]
    %v285 = vld [vmem:[%s5 + $0x8] sm:$0xff]
    %v286 = vld [vmem:[%s5 + $0x10] sm:$0xff]
    %v287 = vld [vmem:[%s5 + $0x18] sm:$0xff]
    %v289 = vsel %vm194, %v279, 0
    %v292 = vsel %vm194, %v280, 0
    %v295 = vsel %vm194, %v281, 0
    %v298 = vsel %vm194, %v282, 0
    %v301 = vsel %vm194, %v283, 0
    %303 = vmatprep.subr.mxu0 0.0
    %304 = vmatpush1.msra.mxu0 0.0
    %305 = vmatprep.subr.mxu0 0.0
    %306 = vmatpush1.msra.mxu0 0.0
    %307 = vmatprep.subr.mxu0 0.0
    %308 = vmatpush1.msra.mxu0 0.0
    %309 = vmatprep.subr.mxu0 0.0
    %310 = vmatpush1.msra.mxu0 0.0
    %311 = vmatprep.subr.mxu0 0.0
    %312 = vmatpush1.msra.mxu0 0.0
    %313 = vmatprep.subr.mxu0 0.0
    %314 = vmatpush1.msra.mxu0 0.0
    %315 = vmatprep.subr.mxu0 0.0
    %316 = vmatpush1.msra.mxu0 0.0
    %317 = vmatprep.subr.mxu0 0.0
    %318 = vmatpush1.msra.mxu0 0.0
    %319 = vmatprep.subr.mxu0 0.0
    %320 = vmatpush1.msra.mxu0 0.0
    %321 = vmatprep.subr.mxu0 0.0
    %322 = vmatpush1.msra.mxu0 0.0
    %323 = vmatprep.subr.mxu0 0.0
    %324 = vmatpush1.msra.mxu0 0.0
    %325 = vmatprep.subr.mxu0 0.0
    %326 = vmatpush1.msra.mxu0 0.0
    %327 = vmatprep.subr.mxu0 0.0
    %328 = vmatpush1.msra.mxu0 %v287
    %329 = vmatprep.subr.mxu0 0.0
    %330 = vmatpush1.msra.mxu0 %v286
    %331 = vmatprep.subr.mxu0 0.0
    %332 = vmatpush1.msra.mxu0 %v285
    %333 = vmatprep.subr.mxu0 0.0
    %334 = vmatpush1.msra.mxu0 %v284
    %335 = vmatprep.subr.mxu0 0.0
    %336 = vmatpush2.msra.mxu0 0.0
    %337 = vmatprep.subr.mxu0 0.0
    %338 = vmatpush2.msra.mxu0 0.0
    %339 = vmatprep.subr.mxu0 0.0
    %340 = vmatpush2.msra.mxu0 0.0
    %341 = vmatprep.subr.mxu0 0.0
    %342 = vmatpush2.msra.mxu0 0.0
    %343 = vmatprep.subr.mxu0 0.0
    %344 = vmatpush2.msra.mxu0 0.0
    %345 = vmatprep.subr.mxu0 0.0
    %346 = vmatpush2.msra.mxu0 0.0
    %347 = vmatprep.subr.mxu0 0.0
    %348 = vmatpush2.msra.mxu0 0.0
    %349 = vmatprep.subr.mxu0 0.0
    %350 = vmatpush2.msra.mxu0 0.0
    %351 = vmatprep.subr.mxu0 0.0
    %352 = vmatpush2.msra.mxu0 0.0
    %353 = vmatprep.subr.mxu0 0.0
    %354 = vmatpush2.msra.mxu0 0.0
    %355 = vmatprep.subr.mxu0 0.0
    %356 = vmatpush2.msra.mxu0 0.0
    %357 = vmatprep.subr.mxu0 0.0
    %358 = vmatpush2.msra.mxu0 0.0
    %359 = vmatprep.subr.mxu0 0.0
    %360 = vmatpush2.msra.mxu0 0.0
    %361 = vmatprep.subr.mxu0 0.0
    %362 = vmatpush2.msra.mxu0 0.0
    %363 = vmatprep.subr.mxu0 0.0
    %364 = vmatpush2.msra.mxu0 0.0
    %365 = vmatprep.subr.mxu0 0.0
    %366 = vmatpush2.msra.mxu0 0.0
    %367 = vmatprep.mubr.f32.mxu0 0.0
    %368 = vmatmul.mubr.f32.gmra.mxu0 %v289
    %v369 = vpop.f32.mrf.mxu0
    %v370 = vadd.f32 0.0, %v369
    %v371 = vpop.f32.mrf.mxu0
    %372 = vmatprep.mubr.f32.mxu0 0.0
    %373 = vmatmul.mubr.f32.gmra.mxu0 %v292
    %v374 = vpop.f32.mrf.mxu0
    %v375 = vadd.f32 0.0, %v374
    %v376 = vpop.f32.mrf.mxu0
    %377 = vmatprep.mubr.f32.mxu0 0.0
    %378 = vmatmul.mubr.f32.gmra.mxu0 %v295
    %v379 = vpop.f32.mrf.mxu0
    %v380 = vadd.f32 0.0, %v379
    %v381 = vpop.f32.mrf.mxu0
    %382 = vmatprep.mubr.f32.mxu0 0.0
    %383 = vmatmul.mubr.f32.gmra.mxu0 %v298
    %v384 = vpop.f32.mrf.mxu0
    %v385 = vadd.f32 0.0, %v384
    %v386 = vpop.f32.mrf.mxu0
    %387 = vmatprep.mubr.f32.mxu0 0.0
    %388 = vmatmul.mubr.f32.gmra.mxu0 %v301
    %v389 = vpop.f32.mrf.mxu0
    %v390 = vadd.f32 0.0, %v389
    %v391 = vpop.f32.mrf.mxu0
    %392 = vdwg.mxu0
    %396 = vrot.lane.b32.xlu0 %v370, 96
    %v397 = vpop.permute.xlu0 %396
    %398 = vrot.lane.b32.xlu0 %v375, 96
    %v399 = vpop.permute.xlu0 %398
    %400 = vrot.lane.b32.xlu0 %v380, 96
    %v401 = vpop.permute.xlu0 %400
    %vm402 = vcmask 31744
    %v403 = vsel %vm402, %v370, 0
    %v405 = vsel %vm402, %v375, 0
    %v407 = vsel %vm402, %v380, 0
    %v409 = vsel %vm402, %v397, 0
    %v411 = vsel %vm402, %v399, 0
    %v413 = vsel %vm402, %v401, 0
    %415 = vmatprep.subr.mxu0 0.0
    %416 = vmatpush1.xpose.msra.mxu0 0.0
    %417 = vmatprep.subr.mxu0 0.0
    %418 = vmatpush1.xpose.msra.mxu0 0.0
    %419 = vmatprep.subr.mxu0 0.0
    %420 = vmatpush1.xpose.msra.mxu0 0.0
    %421 = vmatprep.subr.mxu0 0.0
    %422 = vmatpush1.xpose.msra.mxu0 0.0
    %423 = vmatprep.subr.mxu0 0.0
    %424 = vmatpush1.xpose.msra.mxu0 0.0
    %425 = vmatprep.subr.mxu0 0.0
    %426 = vmatpush1.xpose.msra.mxu0 0.0
    %427 = vmatprep.subr.mxu0 0.0
    %428 = vmatpush1.xpose.msra.mxu0 0.0
    %429 = vmatprep.subr.mxu0 0.0
    %430 = vmatpush1.xpose.msra.mxu0 0.0
    %431 = vmatprep.subr.mxu0 0.0
    %432 = vmatpush1.xpose.msra.mxu0 0.0
    %433 = vmatprep.subr.mxu0 0.0
    %434 = vmatpush1.xpose.msra.mxu0 0.0
    %435 = vmatprep.subr.mxu0 0.0
    %436 = vmatpush1.xpose.msra.mxu0 0.0
    %437 = vmatprep.subr.mxu0 0.0
    %438 = vmatpush1.xpose.msra.mxu0 0.0
    %439 = vmatprep.subr.mxu0 0.0
    %440 = vmatpush1.xpose.msra.mxu0 0.0
    %441 = vmatprep.subr.mxu0 0.0
    %442 = vmatpush1.xpose.msra.mxu0 %v413
    %443 = vmatprep.subr.mxu0 0.0
    %444 = vmatpush1.xpose.msra.mxu0 %v411
    %445 = vmatprep.subr.mxu0 0.0
    %446 = vmatpush1.xpose.msra.mxu0 %v409
    %447 = vmatprep.subr.mxu0 0.0
    %448 = vmatpush2.xpose.msra.mxu0 0.0
    %449 = vmatprep.subr.mxu0 0.0
    %450 = vmatpush2.xpose.msra.mxu0 0.0
    %451 = vmatprep.subr.mxu0 0.0
    %452 = vmatpush2.xpose.msra.mxu0 0.0
    %453 = vmatprep.subr.mxu0 0.0
    %454 = vmatpush2.xpose.msra.mxu0 0.0
    %455 = vmatprep.subr.mxu0 0.0
    %456 = vmatpush2.xpose.msra.mxu0 0.0
    %457 = vmatprep.subr.mxu0 0.0
    %458 = vmatpush2.xpose.msra.mxu0 0.0
    %459 = vmatprep.subr.mxu0 0.0
    %460 = vmatpush2.xpose.msra.mxu0 0.0
    %461 = vmatprep.subr.mxu0 0.0
    %462 = vmatpush2.xpose.msra.mxu0 0.0
    %463 = vmatprep.subr.mxu0 0.0
    %464 = vmatpush2.xpose.msra.mxu0 0.0
    %465 = vmatprep.subr.mxu0 0.0
    %466 = vmatpush2.xpose.msra.mxu0 0.0
    %467 = vmatprep.subr.mxu0 0.0
    %468 = vmatpush2.xpose.msra.mxu0 0.0
    %469 = vmatprep.subr.mxu0 0.0
    %470 = vmatpush2.xpose.msra.mxu0 0.0
    %471 = vmatprep.subr.mxu0 0.0
    %472 = vmatpush2.xpose.msra.mxu0 0.0
    %473 = vmatprep.subr.mxu0 0.0
    %474 = vmatpush2.xpose.msra.mxu0 0.0
    %475 = vmatprep.subr.mxu0 0.0
    %476 = vmatpush2.xpose.msra.mxu0 0.0
    %477 = vmatprep.subr.mxu0 0.0
    %478 = vmatpush2.xpose.msra.mxu0 0.0
    %479 = vmatprep.mubr.f32.mxu0 0.0
    %480 = vmatmul.mubr.f32.gmra.mxu0 %v403
    %v481 = vpop.f32.mrf.mxu0
    %v482 = vadd.f32 0.0, %v481
    %v483 = vpop.f32.mrf.mxu0
    %484 = vmatprep.mubr.f32.mxu0 0.0
    %485 = vmatmul.mubr.f32.gmra.mxu0 %v405
    %v486 = vpop.f32.mrf.mxu0
    %v487 = vadd.f32 0.0, %v486
    %v488 = vpop.f32.mrf.mxu0
    %489 = vmatprep.mubr.f32.mxu0 0.0
    %490 = vmatmul.mubr.f32.gmra.mxu0 %v407
    %v491 = vpop.f32.mrf.mxu0
    %v492 = vadd.f32 0.0, %v491
    %v493 = vpop.f32.mrf.mxu0
    %494 = vdwg.mxu0
    %v495 = vmul.f32 %v482, 0.5
    %v496 = vmul.f32 %v487, 0.5
    %v497 = vmul.f32 %v492, 0.5
    %vm498 = vcmask 138240
    %v499 = vsel %vm498, %v495, -inf
    %500 = vmax.xlane.f32.xlu0 %v499
    %v501 = vpop.xlane.xlu0 %500
    %v502 = vsel %vm498, %v496, -inf
    %503 = vmax.xlane.f32.xlu0 %v502
    %v504 = vpop.xlane.xlu0 %503
    %vm505 = vcmask 131072
    %v506 = vsel %vm505, %v497, -inf
    %507 = vmax.xlane.f32.xlu0 %v506
    %v508 = vpop.xlane.xlu0 %507
    %v509 = vsub.f32 %v495, %v501
    %v510 = vsub.f32 %v496, %v504
    %v511 = vsub.f32 %v497, %v508
    %v512 = vmul.f32 %v509, 1.442695
    %v513 = vpow.pop %v512
    %v514 = vmul.f32 %v510, 1.442695
    %v515 = vpow.pop %v514
    %v516 = vmul.f32 %v511, 1.442695
    %v517 = vpow.pop %v516
    %v518 = vsel %vm498, %v513, 0.0
    %519 = vadd.xlane.f32.xlu0 %v518
    %v520 = vpop.xlane.xlu0 %519
    %v521 = vsel %vm498, %v515, 0.0
    %522 = vadd.xlane.f32.xlu0 %v521
    %v523 = vpop.xlane.xlu0 %522
    %v524 = vsel %vm505, %v517, 0.0
    %525 = vadd.xlane.f32.xlu0 %v524
    %v526 = vpop.xlane.xlu0 %525
    %v527 = vrcp.pop %v520
    %v528 = vmul.f32 %v513, %v527
    %v529 = vrcp.pop %v523
    %v530 = vmul.f32 %v515, %v529
    %v531 = vrcp.pop %v526
    %v532 = vmul.f32 %v517, %v531
    %533 = vrot.lane.b32.xlu0 %v370, 64
    %v534 = vpop.permute.xlu0 %533
    %535 = vrot.lane.b32.xlu0 %v375, 64
    %v536 = vpop.permute.xlu0 %535
    %537 = vrot.lane.b32.xlu0 %v380, 64
    %v538 = vpop.permute.xlu0 %537
    %v542 = vsel %vm498, %v528, 0
    %v545 = vsel %vm498, %v530, 0
    %v548 = vsel %vm498, %v532, 0
    %v550 = vsel %vm68, %v538, 0
    %552 = vmatprep.subr.mxu0 0.0
    %553 = vmatpush1.msra.mxu0 0.0
    %554 = vmatprep.subr.mxu0 0.0
    %555 = vmatpush1.msra.mxu0 0.0
    %556 = vmatprep.subr.mxu0 0.0
    %557 = vmatpush1.msra.mxu0 0.0
    %558 = vmatprep.subr.mxu0 0.0
    %559 = vmatpush1.msra.mxu0 0.0
    %560 = vmatprep.subr.mxu0 0.0
    %561 = vmatpush1.msra.mxu0 0.0
    %562 = vmatprep.subr.mxu0 0.0
    %563 = vmatpush1.msra.mxu0 0.0
    %564 = vmatprep.subr.mxu0 0.0
    %565 = vmatpush1.msra.mxu0 0.0
    %566 = vmatprep.subr.mxu0 0.0
    %567 = vmatpush1.msra.mxu0 0.0
    %568 = vmatprep.subr.mxu0 0.0
    %569 = vmatpush1.msra.mxu0 0.0
    %570 = vmatprep.subr.mxu0 0.0
    %571 = vmatpush1.msra.mxu0 0.0
    %572 = vmatprep.subr.mxu0 0.0
    %573 = vmatpush1.msra.mxu0 0.0
    %574 = vmatprep.subr.mxu0 0.0
    %575 = vmatpush1.msra.mxu0 0.0
    %576 = vmatprep.subr.mxu0 0.0
    %577 = vmatpush1.msra.mxu0 0.0
    %578 = vmatprep.subr.mxu0 0.0
    %579 = vmatpush1.msra.mxu0 %v550
    %580 = vmatprep.subr.mxu0 0.0
    %581 = vmatpush1.msra.mxu0 %v536
    %582 = vmatprep.subr.mxu0 0.0
    %583 = vmatpush1.msra.mxu0 %v534
    %584 = vmatprep.subr.mxu0 0.0
    %585 = vmatpush2.msra.mxu0 0.0
    %586 = vmatprep.subr.mxu0 0.0
    %587 = vmatpush2.msra.mxu0 0.0
    %588 = vmatprep.subr.mxu0 0.0
    %589 = vmatpush2.msra.mxu0 0.0
    %590 = vmatprep.subr.mxu0 0.0
    %591 = vmatpush2.msra.mxu0 0.0
    %592 = vmatprep.subr.mxu0 0.0
    %593 = vmatpush2.msra.mxu0 0.0
    %594 = vmatprep.subr.mxu0 0.0
    %595 = vmatpush2.msra.mxu0 0.0
    %596 = vmatprep.subr.mxu0 0.0
    %597 = vmatpush2.msra.mxu0 0.0
    %598 = vmatprep.subr.mxu0 0.0
    %599 = vmatpush2.msra.mxu0 0.0
    %600 = vmatprep.subr.mxu0 0.0
    %601 = vmatpush2.msra.mxu0 0.0
    %602 = vmatprep.subr.mxu0 0.0
    %603 = vmatpush2.msra.mxu0 0.0
    %604 = vmatprep.subr.mxu0 0.0
    %605 = vmatpush2.msra.mxu0 0.0
    %606 = vmatprep.subr.mxu0 0.0
    %607 = vmatpush2.msra.mxu0 0.0
    %608 = vmatprep.subr.mxu0 0.0
    %609 = vmatpush2.msra.mxu0 0.0
    %610 = vmatprep.subr.mxu0 0.0
    %611 = vmatpush2.msra.mxu0 0.0
    %612 = vmatprep.subr.mxu0 0.0
    %613 = vmatpush2.msra.mxu0 0.0
    %614 = vmatprep.subr.mxu0 0.0
    %615 = vmatpush2.msra.mxu0 0.0
    %616 = vmatprep.mubr.f32.mxu0 0.0
    %617 = vmatmul.mubr.f32.gmra.mxu0 %v542
    %v618 = vpop.f32.mrf.mxu0
    %v619 = vadd.f32 0.0, %v618
    %v620 = vpop.f32.mrf.mxu0
    %621 = vmatprep.mubr.f32.mxu0 0.0
    %622 = vmatmul.mubr.f32.gmra.mxu0 %v545
    %v623 = vpop.f32.mrf.mxu0
    %v624 = vadd.f32 0.0, %v623
    %v625 = vpop.f32.mrf.mxu0
    %626 = vmatprep.mubr.f32.mxu0 0.0
    %627 = vmatmul.mubr.f32.gmra.mxu0 %v548
    %v628 = vpop.f32.mrf.mxu0
    %v629 = vadd.f32 0.0, %v628
    %v630 = vpop.f32.mrf.mxu0
    %631 = vdwg.mxu0
    %632 = vrot.lane.b32.xlu0 %v370, 124
    %v633 = vpop.permute.xlu0 %632
    %634 = vrot.lane.b32.xlu0 %v375, 124
    %v635 = vpop.permute.xlu0 %634
    %636 = vrot.lane.b32.xlu0 %v380, 124
    %v637 = vpop.permute.xlu0 %636
    %638 = vrot.lane.b32.xlu0 %v370, 92
    %v639 = vpop.permute.xlu0 %638
    %640 = vrot.lane.b32.xlu0 %v375, 92
    %v641 = vpop.permute.xlu0 %640
    %642 = vrot.lane.b32.xlu0 %v380, 92
    %v643 = vpop.permute.xlu0 %642
    %v644 = vsel %vm402, %v633, 0
    %v646 = vsel %vm402, %v635, 0
    %v648 = vsel %vm402, %v637, 0
    %v650 = vsel %vm402, %v639, 0
    %v652 = vsel %vm402, %v641, 0
    %v654 = vsel %vm402, %v643, 0
    %656 = vmatprep.subr.mxu0 0.0
    %657 = vmatpush1.xpose.msra.mxu0 0.0
    %658 = vmatprep.subr.mxu0 0.0
    %659 = vmatpush1.xpose.msra.mxu0 0.0
    %660 = vmatprep.subr.mxu0 0.0
    %661 = vmatpush1.xpose.msra.mxu0 0.0
    %662 = vmatprep.subr.mxu0 0.0
    %663 = vmatpush1.xpose.msra.mxu0 0.0
    %664 = vmatprep.subr.mxu0 0.0
    %665 = vmatpush1.xpose.msra.mxu0 0.0
    %666 = vmatprep.subr.mxu0 0.0
    %667 = vmatpush1.xpose.msra.mxu0 0.0
    %668 = vmatprep.subr.mxu0 0.0
    %669 = vmatpush1.xpose.msra.mxu0 0.0
    %670 = vmatprep.subr.mxu0 0.0
    %671 = vmatpush1.xpose.msra.mxu0 0.0
    %672 = vmatprep.subr.mxu0 0.0
    %673 = vmatpush1.xpose.msra.mxu0 0.0
    %674 = vmatprep.subr.mxu0 0.0
    %675 = vmatpush1.xpose.msra.mxu0 0.0
    %676 = vmatprep.subr.mxu0 0.0
    %677 = vmatpush1.xpose.msra.mxu0 0.0
    %678 = vmatprep.subr.mxu0 0.0
    %679 = vmatpush1.xpose.msra.mxu0 0.0
    %680 = vmatprep.subr.mxu0 0.0
    %681 = vmatpush1.xpose.msra.mxu0 0.0
    %682 = vmatprep.subr.mxu0 0.0
    %683 = vmatpush1.xpose.msra.mxu0 %v654
    %684 = vmatprep.subr.mxu0 0.0
    %685 = vmatpush1.xpose.msra.mxu0 %v652
    %686 = vmatprep.subr.mxu0 0.0
    %687 = vmatpush1.xpose.msra.mxu0 %v650
    %688 = vmatprep.subr.mxu0 0.0
    %689 = vmatpush2.xpose.msra.mxu0 0.0
    %690 = vmatprep.subr.mxu0 0.0
    %691 = vmatpush2.xpose.msra.mxu0 0.0
    %692 = vmatprep.subr.mxu0 0.0
    %693 = vmatpush2.xpose.msra.mxu0 0.0
    %694 = vmatprep.subr.mxu0 0.0
    %695 = vmatpush2.xpose.msra.mxu0 0.0
    %696 = vmatprep.subr.mxu0 0.0
    %697 = vmatpush2.xpose.msra.mxu0 0.0
    %698 = vmatprep.subr.mxu0 0.0
    %699 = vmatpush2.xpose.msra.mxu0 0.0
    %700 = vmatprep.subr.mxu0 0.0
    %701 = vmatpush2.xpose.msra.mxu0 0.0
    %702 = vmatprep.subr.mxu0 0.0
    %703 = vmatpush2.xpose.msra.mxu0 0.0
    %704 = vmatprep.subr.mxu0 0.0
    %705 = vmatpush2.xpose.msra.mxu0 0.0
    %706 = vmatprep.subr.mxu0 0.0
    %707 = vmatpush2.xpose.msra.mxu0 0.0
    %708 = vmatprep.subr.mxu0 0.0
    %709 = vmatpush2.xpose.msra.mxu0 0.0
    %710 = vmatprep.subr.mxu0 0.0
    %711 = vmatpush2.xpose.msra.mxu0 0.0
    %712 = vmatprep.subr.mxu0 0.0
    %713 = vmatpush2.xpose.msra.mxu0 0.0
    %714 = vmatprep.subr.mxu0 0.0
    %715 = vmatpush2.xpose.msra.mxu0 0.0
    %716 = vmatprep.subr.mxu0 0.0
    %717 = vmatpush2.xpose.msra.mxu0 0.0
    %718 = vmatprep.subr.mxu0 0.0
    %719 = vmatpush2.xpose.msra.mxu0 0.0
    %720 = vmatprep.mubr.f32.mxu0 0.0
    %721 = vmatmul.mubr.f32.gmra.mxu0 %v644
    %v722 = vpop.f32.mrf.mxu0
    %v723 = vadd.f32 0.0, %v722
    %v724 = vpop.f32.mrf.mxu0
    %725 = vmatprep.mubr.f32.mxu0 0.0
    %726 = vmatmul.mubr.f32.gmra.mxu0 %v646
    %v727 = vpop.f32.mrf.mxu0
    %v728 = vadd.f32 0.0, %v727
    %v729 = vpop.f32.mrf.mxu0
    %730 = vmatprep.mubr.f32.mxu0 0.0
    %731 = vmatmul.mubr.f32.gmra.mxu0 %v648
    %v732 = vpop.f32.mrf.mxu0
    %v733 = vadd.f32 0.0, %v732
    %v734 = vpop.f32.mrf.mxu0
    %735 = vdwg.mxu0
    %v736 = vmul.f32 %v723, 0.5
    %v737 = vmul.f32 %v728, 0.5
    %v738 = vmul.f32 %v733, 0.5
    %v739 = vsel %vm498, %v736, -inf
    %740 = vmax.xlane.f32.xlu0 %v739
    %v741 = vpop.xlane.xlu0 %740
    %v742 = vsel %vm498, %v737, -inf
    %743 = vmax.xlane.f32.xlu0 %v742
    %v744 = vpop.xlane.xlu0 %743
    %v745 = vsel %vm505, %v738, -inf
    %746 = vmax.xlane.f32.xlu0 %v745
    %v747 = vpop.xlane.xlu0 %746
    %v748 = vsub.f32 %v736, %v741
    %v749 = vsub.f32 %v737, %v744
    %v750 = vsub.f32 %v738, %v747
    %v751 = vmul.f32 %v748, 1.442695
    %v752 = vpow.pop %v751
    %v753 = vmul.f32 %v749, 1.442695
    %v754 = vpow.pop %v753
    %v755 = vmul.f32 %v750, 1.442695
    %v756 = vpow.pop %v755
    %v757 = vsel %vm498, %v752, 0.0
    %758 = vadd.xlane.f32.xlu0 %v757
    %v759 = vpop.xlane.xlu0 %758
    %v760 = vsel %vm498, %v754, 0.0
    %761 = vadd.xlane.f32.xlu0 %v760
    %v762 = vpop.xlane.xlu0 %761
    %v763 = vsel %vm505, %v756, 0.0
    %764 = vadd.xlane.f32.xlu0 %v763
    %v765 = vpop.xlane.xlu0 %764
    %v766 = vrcp.pop %v759
    %v767 = vmul.f32 %v752, %v766
    %v768 = vrcp.pop %v762
    %v769 = vmul.f32 %v754, %v768
    %v770 = vrcp.pop %v765
    %v771 = vmul.f32 %v756, %v770
    %772 = vrot.lane.b32.xlu0 %v370, 60
    %v773 = vpop.permute.xlu0 %772
    %774 = vrot.lane.b32.xlu0 %v375, 60
    %v775 = vpop.permute.xlu0 %774
    %776 = vrot.lane.b32.xlu0 %v380, 60
    %v777 = vpop.permute.xlu0 %776
    %v781 = vsel %vm498, %v767, 0
    %v784 = vsel %vm498, %v769, 0
    %v787 = vsel %vm498, %v771, 0
    %v789 = vsel %vm68, %v777, 0
    %791 = vmatprep.subr.mxu0 0.0
    %792 = vmatpush1.msra.mxu0 0.0
    %793 = vmatprep.subr.mxu0 0.0
    %794 = vmatpush1.msra.mxu0 0.0
    %795 = vmatprep.subr.mxu0 0.0
    %796 = vmatpush1.msra.mxu0 0.0
    %797 = vmatprep.subr.mxu0 0.0
    %798 = vmatpush1.msra.mxu0 0.0
    %799 = vmatprep.subr.mxu0 0.0
    %800 = vmatpush1.msra.mxu0 0.0
    %801 = vmatprep.subr.mxu0 0.0
    %802 = vmatpush1.msra.mxu0 0.0
    %803 = vmatprep.subr.mxu0 0.0
    %804 = vmatpush1.msra.mxu0 0.0
    %805 = vmatprep.subr.mxu0 0.0
    %806 = vmatpush1.msra.mxu0 0.0
    %807 = vmatprep.subr.mxu0 0.0
    %808 = vmatpush1.msra.mxu0 0.0
    %809 = vmatprep.subr.mxu0 0.0
    %810 = vmatpush1.msra.mxu0 0.0
    %811 = vmatprep.subr.mxu0 0.0
    %812 = vmatpush1.msra.mxu0 0.0
    %813 = vmatprep.subr.mxu0 0.0
    %814 = vmatpush1.msra.mxu0 0.0
    %815 = vmatprep.subr.mxu0 0.0
    %816 = vmatpush1.msra.mxu0 0.0
    %817 = vmatprep.subr.mxu0 0.0
    %818 = vmatpush1.msra.mxu0 %v789
    %819 = vmatprep.subr.mxu0 0.0
    %820 = vmatpush1.msra.mxu0 %v775
    %821 = vmatprep.subr.mxu0 0.0
    %822 = vmatpush1.msra.mxu0 %v773
    %823 = vmatprep.subr.mxu0 0.0
    %824 = vmatpush2.msra.mxu0 0.0
    %825 = vmatprep.subr.mxu0 0.0
    %826 = vmatpush2.msra.mxu0 0.0
    %827 = vmatprep.subr.mxu0 0.0
    %828 = vmatpush2.msra.mxu0 0.0
    %829 = vmatprep.subr.mxu0 0.0
    %830 = vmatpush2.msra.mxu0 0.0
    %831 = vmatprep.subr.mxu0 0.0
    %832 = vmatpush2.msra.mxu0 0.0
    %833 = vmatprep.subr.mxu0 0.0
    %834 = vmatpush2.msra.mxu0 0.0
    %835 = vmatprep.subr.mxu0 0.0
    %836 = vmatpush2.msra.mxu0 0.0
    %837 = vmatprep.subr.mxu0 0.0
    %838 = vmatpush2.msra.mxu0 0.0
    %839 = vmatprep.subr.mxu0 0.0
    %840 = vmatpush2.msra.mxu0 0.0
    %841 = vmatprep.subr.mxu0 0.0
    %842 = vmatpush2.msra.mxu0 0.0
    %843 = vmatprep.subr.mxu0 0.0
    %844 = vmatpush2.msra.mxu0 0.0
    %845 = vmatprep.subr.mxu0 0.0
    %846 = vmatpush2.msra.mxu0 0.0
    %847 = vmatprep.subr.mxu0 0.0
    %848 = vmatpush2.msra.mxu0 0.0
    %849 = vmatprep.subr.mxu0 0.0
    %850 = vmatpush2.msra.mxu0 0.0
    %851 = vmatprep.subr.mxu0 0.0
    %852 = vmatpush2.msra.mxu0 0.0
    %853 = vmatprep.subr.mxu0 0.0
    %854 = vmatpush2.msra.mxu0 0.0
    %855 = vmatprep.mubr.f32.mxu0 0.0
    %856 = vmatmul.mubr.f32.gmra.mxu0 %v781
    %v857 = vpop.f32.mrf.mxu0
    %v858 = vadd.f32 0.0, %v857
    %v859 = vpop.f32.mrf.mxu0
    %860 = vmatprep.mubr.f32.mxu0 0.0
    %861 = vmatmul.mubr.f32.gmra.mxu0 %v784
    %v862 = vpop.f32.mrf.mxu0
    %v863 = vadd.f32 0.0, %v862
    %v864 = vpop.f32.mrf.mxu0
    %865 = vmatprep.mubr.f32.mxu0 0.0
    %866 = vmatmul.mubr.f32.gmra.mxu0 %v787
    %v867 = vpop.f32.mrf.mxu0
    %v868 = vadd.f32 0.0, %v867
    %v869 = vpop.f32.mrf.mxu0
    %870 = vdwg.mxu0
    %871 = vrot.lane.b32.xlu0 %v370, 120
    %v872 = vpop.permute.xlu0 %871
    %873 = vrot.lane.b32.xlu0 %v375, 120
    %v874 = vpop.permute.xlu0 %873
    %875 = vrot.lane.b32.xlu0 %v380, 120
    %v876 = vpop.permute.xlu0 %875
    %877 = vrot.lane.b32.xlu0 %v370, 88
    %v878 = vpop.permute.xlu0 %877
    %879 = vrot.lane.b32.xlu0 %v375, 88
    %v880 = vpop.permute.xlu0 %879
    %881 = vrot.lane.b32.xlu0 %v380, 88
    %v882 = vpop.permute.xlu0 %881
    %v883 = vsel %vm402, %v872, 0
    %v885 = vsel %vm402, %v874, 0
    %v887 = vsel %vm402, %v876, 0
    %v889 = vsel %vm402, %v878, 0
    %v891 = vsel %vm402, %v880, 0
    %v893 = vsel %vm402, %v882, 0
    %895 = vmatprep.subr.mxu0 0.0
    %896 = vmatpush1.xpose.msra.mxu0 0.0
    %897 = vmatprep.subr.mxu0 0.0
    %898 = vmatpush1.xpose.msra.mxu0 0.0
    %899 = vmatprep.subr.mxu0 0.0
    %900 = vmatpush1.xpose.msra.mxu0 0.0
    %901 = vmatprep.subr.mxu0 0.0
    %902 = vmatpush1.xpose.msra.mxu0 0.0
    %903 = vmatprep.subr.mxu0 0.0
    %904 = vmatpush1.xpose.msra.mxu0 0.0
    %905 = vmatprep.subr.mxu0 0.0
    %906 = vmatpush1.xpose.msra.mxu0 0.0
    %907 = vmatprep.subr.mxu0 0.0
    %908 = vmatpush1.xpose.msra.mxu0 0.0
    %909 = vmatprep.subr.mxu0 0.0
    %910 = vmatpush1.xpose.msra.mxu0 0.0
    %911 = vmatprep.subr.mxu0 0.0
    %912 = vmatpush1.xpose.msra.mxu0 0.0
    %913 = vmatprep.subr.mxu0 0.0
    %914 = vmatpush1.xpose.msra.mxu0 0.0
    %915 = vmatprep.subr.mxu0 0.0
    %916 = vmatpush1.xpose.msra.mxu0 0.0
    %917 = vmatprep.subr.mxu0 0.0
    %918 = vmatpush1.xpose.msra.mxu0 0.0
    %919 = vmatprep.subr.mxu0 0.0
    %920 = vmatpush1.xpose.msra.mxu0 0.0
    %921 = vmatprep.subr.mxu0 0.0
    %922 = vmatpush1.xpose.msra.mxu0 %v893
    %923 = vmatprep.subr.mxu0 0.0
    %924 = vmatpush1.xpose.msra.mxu0 %v891
    %925 = vmatprep.subr.mxu0 0.0
    %926 = vmatpush1.xpose.msra.mxu0 %v889
    %927 = vmatprep.subr.mxu0 0.0
    %928 = vmatpush2.xpose.msra.mxu0 0.0
    %929 = vmatprep.subr.mxu0 0.0
    %930 = vmatpush2.xpose.msra.mxu0 0.0
    %931 = vmatprep.subr.mxu0 0.0
    %932 = vmatpush2.xpose.msra.mxu0 0.0
    %933 = vmatprep.subr.mxu0 0.0
    %934 = vmatpush2.xpose.msra.mxu0 0.0
    %935 = vmatprep.subr.mxu0 0.0
    %936 = vmatpush2.xpose.msra.mxu0 0.0
    %937 = vmatprep.subr.mxu0 0.0
    %938 = vmatpush2.xpose.msra.mxu0 0.0
    %939 = vmatprep.subr.mxu0 0.0
    %940 = vmatpush2.xpose.msra.mxu0 0.0
    %941 = vmatprep.subr.mxu0 0.0
    %942 = vmatpush2.xpose.msra.mxu0 0.0
    %943 = vmatprep.subr.mxu0 0.0
    %944 = vmatpush2.xpose.msra.mxu0 0.0
    %945 = vmatprep.subr.mxu0 0.0
    %946 = vmatpush2.xpose.msra.mxu0 0.0
    %947 = vmatprep.subr.mxu0 0.0
    %948 = vmatpush2.xpose.msra.mxu0 0.0
    %949 = vmatprep.subr.mxu0 0.0
    %950 = vmatpush2.xpose.msra.mxu0 0.0
    %951 = vmatprep.subr.mxu0 0.0
    %952 = vmatpush2.xpose.msra.mxu0 0.0
    %953 = vmatprep.subr.mxu0 0.0
    %954 = vmatpush2.xpose.msra.mxu0 0.0
    %955 = vmatprep.subr.mxu0 0.0
    %956 = vmatpush2.xpose.msra.mxu0 0.0
    %957 = vmatprep.subr.mxu0 0.0
    %958 = vmatpush2.xpose.msra.mxu0 0.0
    %959 = vmatprep.mubr.f32.mxu0 0.0
    %960 = vmatmul.mubr.f32.gmra.mxu0 %v883
    %v961 = vpop.f32.mrf.mxu0
    %v962 = vadd.f32 0.0, %v961
    %v963 = vpop.f32.mrf.mxu0
    %964 = vmatprep.mubr.f32.mxu0 0.0
    %965 = vmatmul.mubr.f32.gmra.mxu0 %v885
    %v966 = vpop.f32.mrf.mxu0
    %v967 = vadd.f32 0.0, %v966
    %v968 = vpop.f32.mrf.mxu0
    %969 = vmatprep.mubr.f32.mxu0 0.0
    %970 = vmatmul.mubr.f32.gmra.mxu0 %v887
    %v971 = vpop.f32.mrf.mxu0
    %v972 = vadd.f32 0.0, %v971
    %v973 = vpop.f32.mrf.mxu0
    %974 = vdwg.mxu0
    %v975 = vmul.f32 %v962, 0.5
    %v976 = vmul.f32 %v967, 0.5
    %v977 = vmul.f32 %v972, 0.5
    %v978 = vsel %vm498, %v975, -inf
    %979 = vmax.xlane.f32.xlu0 %v978
    %v980 = vpop.xlane.xlu0 %979
    %v981 = vsel %vm498, %v976, -inf
    %982 = vmax.xlane.f32.xlu0 %v981
    %v983 = vpop.xlane.xlu0 %982
    %v984 = vsel %vm505, %v977, -inf
    %985 = vmax.xlane.f32.xlu0 %v984
    %v986 = vpop.xlane.xlu0 %985
    %v987 = vsub.f32 %v975, %v980
    %v988 = vsub.f32 %v976, %v983
    %v989 = vsub.f32 %v977, %v986
    %v990 = vmul.f32 %v987, 1.442695
    %v991 = vpow.pop %v990
    %v992 = vmul.f32 %v988, 1.442695
    %v993 = vpow.pop %v992
    %v994 = vmul.f32 %v989, 1.442695
    %v995 = vpow.pop %v994
    %v996 = vsel %vm498, %v991, 0.0
    %997 = vadd.xlane.f32.xlu0 %v996
    %v998 = vpop.xlane.xlu0 %997
    %v999 = vsel %vm498, %v993, 0.0
    %1000 = vadd.xlane.f32.xlu0 %v999
    %v1001 = vpop.xlane.xlu0 %1000
    %v1002 = vsel %vm505, %v995, 0.0
    %1003 = vadd.xlane.f32.xlu0 %v1002
    %v1004 = vpop.xlane.xlu0 %1003
    %v1005 = vrcp.pop %v998
    %v1006 = vmul.f32 %v991, %v1005
    %v1007 = vrcp.pop %v1001
    %v1008 = vmul.f32 %v993, %v1007
    %v1009 = vrcp.pop %v1004
    %v1010 = vmul.f32 %v995, %v1009
    %1011 = vrot.lane.b32.xlu0 %v370, 56
    %v1012 = vpop.permute.xlu0 %1011
    %1013 = vrot.lane.b32.xlu0 %v375, 56
    %v1014 = vpop.permute.xlu0 %1013
    %1015 = vrot.lane.b32.xlu0 %v380, 56
    %v1016 = vpop.permute.xlu0 %1015
    %v1020 = vsel %vm498, %v1006, 0
    %v1023 = vsel %vm498, %v1008, 0
    %v1026 = vsel %vm498, %v1010, 0
    %v1028 = vsel %vm68, %v1016, 0
    %1030 = vmatprep.subr.mxu0 0.0
    %1031 = vmatpush1.msra.mxu0 0.0
    %1032 = vmatprep.subr.mxu0 0.0
    %1033 = vmatpush1.msra.mxu0 0.0
    %1034 = vmatprep.subr.mxu0 0.0
    %1035 = vmatpush1.msra.mxu0 0.0
    %1036 = vmatprep.subr.mxu0 0.0
    %1037 = vmatpush1.msra.mxu0 0.0
    %1038 = vmatprep.subr.mxu0 0.0
    %1039 = vmatpush1.msra.mxu0 0.0
    %1040 = vmatprep.subr.mxu0 0.0
    %1041 = vmatpush1.msra.mxu0 0.0
    %1042 = vmatprep.subr.mxu0 0.0
    %1043 = vmatpush1.msra.mxu0 0.0
    %1044 = vmatprep.subr.mxu0 0.0
    %1045 = vmatpush1.msra.mxu0 0.0
    %1046 = vmatprep.subr.mxu0 0.0
    %1047 = vmatpush1.msra.mxu0 0.0
    %1048 = vmatprep.subr.mxu0 0.0
    %1049 = vmatpush1.msra.mxu0 0.0
    %1050 = vmatprep.subr.mxu0 0.0
    %1051 = vmatpush1.msra.mxu0 0.0
    %1052 = vmatprep.subr.mxu0 0.0
    %1053 = vmatpush1.msra.mxu0 0.0
    %1054 = vmatprep.subr.mxu0 0.0
    %1055 = vmatpush1.msra.mxu0 0.0
    %1056 = vmatprep.subr.mxu0 0.0
    %1057 = vmatpush1.msra.mxu0 %v1028
    %1058 = vmatprep.subr.mxu0 0.0
    %1059 = vmatpush1.msra.mxu0 %v1014
    %1060 = vmatprep.subr.mxu0 0.0
    %1061 = vmatpush1.msra.mxu0 %v1012
    %1062 = vmatprep.subr.mxu0 0.0
    %1063 = vmatpush2.msra.mxu0 0.0
    %1064 = vmatprep.subr.mxu0 0.0
    %1065 = vmatpush2.msra.mxu0 0.0
    %1066 = vmatprep.subr.mxu0 0.0
    %1067 = vmatpush2.msra.mxu0 0.0
    %1068 = vmatprep.subr.mxu0 0.0
    %1069 = vmatpush2.msra.mxu0 0.0
    %1070 = vmatprep.subr.mxu0 0.0
    %1071 = vmatpush2.msra.mxu0 0.0
    %1072 = vmatprep.subr.mxu0 0.0
    %1073 = vmatpush2.msra.mxu0 0.0
    %1074 = vmatprep.subr.mxu0 0.0
    %1075 = vmatpush2.msra.mxu0 0.0
    %1076 = vmatprep.subr.mxu0 0.0
    %1077 = vmatpush2.msra.mxu0 0.0
    %1078 = vmatprep.subr.mxu0 0.0
    %1079 = vmatpush2.msra.mxu0 0.0
    %1080 = vmatprep.subr.mxu0 0.0
    %1081 = vmatpush2.msra.mxu0 0.0
    %1082 = vmatprep.subr.mxu0 0.0
    %1083 = vmatpush2.msra.mxu0 0.0
    %1084 = vmatprep.subr.mxu0 0.0
    %1085 = vmatpush2.msra.mxu0 0.0
    %1086 = vmatprep.subr.mxu0 0.0
    %1087 = vmatpush2.msra.mxu0 0.0
    %1088 = vmatprep.subr.mxu0 0.0
    %1089 = vmatpush2.msra.mxu0 0.0
    %1090 = vmatprep.subr.mxu0 0.0
    %1091 = vmatpush2.msra.mxu0 0.0
    %1092 = vmatprep.subr.mxu0 0.0
    %1093 = vmatpush2.msra.mxu0 0.0
    %1094 = vmatprep.mubr.f32.mxu0 0.0
    %1095 = vmatmul.mubr.f32.gmra.mxu0 %v1020
    %v1096 = vpop.f32.mrf.mxu0
    %v1097 = vadd.f32 0.0, %v1096
    %v1098 = vpop.f32.mrf.mxu0
    %1099 = vmatprep.mubr.f32.mxu0 0.0
    %1100 = vmatmul.mubr.f32.gmra.mxu0 %v1023
    %v1101 = vpop.f32.mrf.mxu0
    %v1102 = vadd.f32 0.0, %v1101
    %v1103 = vpop.f32.mrf.mxu0
    %1104 = vmatprep.mubr.f32.mxu0 0.0
    %1105 = vmatmul.mubr.f32.gmra.mxu0 %v1026
    %v1106 = vpop.f32.mrf.mxu0
    %v1107 = vadd.f32 0.0, %v1106
    %v1108 = vpop.f32.mrf.mxu0
    %1109 = vdwg.mxu0
    %1110 = vrot.lane.b32.xlu0 %v370, 116
    %v1111 = vpop.permute.xlu0 %1110
    %1112 = vrot.lane.b32.xlu0 %v375, 116
    %v1113 = vpop.permute.xlu0 %1112
    %1114 = vrot.lane.b32.xlu0 %v380, 116
    %v1115 = vpop.permute.xlu0 %1114
    %1116 = vrot.lane.b32.xlu0 %v370, 84
    %v1117 = vpop.permute.xlu0 %1116
    %1118 = vrot.lane.b32.xlu0 %v375, 84
    %v1119 = vpop.permute.xlu0 %1118
    %1120 = vrot.lane.b32.xlu0 %v380, 84
    %v1121 = vpop.permute.xlu0 %1120
    %v1122 = vsel %vm402, %v1111, 0
    %v1124 = vsel %vm402, %v1113, 0
    %v1126 = vsel %vm402, %v1115, 0
    %v1128 = vsel %vm402, %v1117, 0
    %v1130 = vsel %vm402, %v1119, 0
    %v1132 = vsel %vm402, %v1121, 0
    %1134 = vmatprep.subr.mxu0 0.0
    %1135 = vmatpush1.xpose.msra.mxu0 0.0
    %1136 = vmatprep.subr.mxu0 0.0
    %1137 = vmatpush1.xpose.msra.mxu0 0.0
    %1138 = vmatprep.subr.mxu0 0.0
    %1139 = vmatpush1.xpose.msra.mxu0 0.0
    %1140 = vmatprep.subr.mxu0 0.0
    %1141 = vmatpush1.xpose.msra.mxu0 0.0
    %1142 = vmatprep.subr.mxu0 0.0
    %1143 = vmatpush1.xpose.msra.mxu0 0.0
    %1144 = vmatprep.subr.mxu0 0.0
    %1145 = vmatpush1.xpose.msra.mxu0 0.0
    %1146 = vmatprep.subr.mxu0 0.0
    %1147 = vmatpush1.xpose.msra.mxu0 0.0
    %1148 = vmatprep.subr.mxu0 0.0
    %1149 = vmatpush1.xpose.msra.mxu0 0.0
    %1150 = vmatprep.subr.mxu0 0.0
    %1151 = vmatpush1.xpose.msra.mxu0 0.0
    %1152 = vmatprep.subr.mxu0 0.0
    %1153 = vmatpush1.xpose.msra.mxu0 0.0
    %1154 = vmatprep.subr.mxu0 0.0
    %1155 = vmatpush1.xpose.msra.mxu0 0.0
    %1156 = vmatprep.subr.mxu0 0.0
    %1157 = vmatpush1.xpose.msra.mxu0 0.0
    %1158 = vmatprep.subr.mxu0 0.0
    %1159 = vmatpush1.xpose.msra.mxu0 0.0
    %1160 = vmatprep.subr.mxu0 0.0
    %1161 = vmatpush1.xpose.msra.mxu0 %v1132
    %1162 = vmatprep.subr.mxu0 0.0
    %1163 = vmatpush1.xpose.msra.mxu0 %v1130
    %1164 = vmatprep.subr.mxu0 0.0
    %1165 = vmatpush1.xpose.msra.mxu0 %v1128
    %1166 = vmatprep.subr.mxu0 0.0
    %1167 = vmatpush2.xpose.msra.mxu0 0.0
    %1168 = vmatprep.subr.mxu0 0.0
    %1169 = vmatpush2.xpose.msra.mxu0 0.0
    %1170 = vmatprep.subr.mxu0 0.0
    %1171 = vmatpush2.xpose.msra.mxu0 0.0
    %1172 = vmatprep.subr.mxu0 0.0
    %1173 = vmatpush2.xpose.msra.mxu0 0.0
    %1174 = vmatprep.subr.mxu0 0.0
    %1175 = vmatpush2.xpose.msra.mxu0 0.0
    %1176 = vmatprep.subr.mxu0 0.0
    %1177 = vmatpush2.xpose.msra.mxu0 0.0
    %1178 = vmatprep.subr.mxu0 0.0
    %1179 = vmatpush2.xpose.msra.mxu0 0.0
    %1180 = vmatprep.subr.mxu0 0.0
    %1181 = vmatpush2.xpose.msra.mxu0 0.0
    %1182 = vmatprep.subr.mxu0 0.0
    %1183 = vmatpush2.xpose.msra.mxu0 0.0
    %1184 = vmatprep.subr.mxu0 0.0
    %1185 = vmatpush2.xpose.msra.mxu0 0.0
    %1186 = vmatprep.subr.mxu0 0.0
    %1187 = vmatpush2.xpose.msra.mxu0 0.0
    %1188 = vmatprep.subr.mxu0 0.0
    %1189 = vmatpush2.xpose.msra.mxu0 0.0
    %1190 = vmatprep.subr.mxu0 0.0
    %1191 = vmatpush2.xpose.msra.mxu0 0.0
    %1192 = vmatprep.subr.mxu0 0.0
    %1193 = vmatpush2.xpose.msra.mxu0 0.0
    %1194 = vmatprep.subr.mxu0 0.0
    %1195 = vmatpush2.xpose.msra.mxu0 0.0
    %1196 = vmatprep.subr.mxu0 0.0
    %1197 = vmatpush2.xpose.msra.mxu0 0.0
    %1198 = vmatprep.mubr.f32.mxu0 0.0
    %1199 = vmatmul.mubr.f32.gmra.mxu0 %v1122
    %v1200 = vpop.f32.mrf.mxu0
    %v1201 = vadd.f32 0.0, %v1200
    %v1202 = vpop.f32.mrf.mxu0
    %1203 = vmatprep.mubr.f32.mxu0 0.0
    %1204 = vmatmul.mubr.f32.gmra.mxu0 %v1124
    %v1205 = vpop.f32.mrf.mxu0
    %v1206 = vadd.f32 0.0, %v1205
    %v1207 = vpop.f32.mrf.mxu0
    %1208 = vmatprep.mubr.f32.mxu0 0.0
    %1209 = vmatmul.mubr.f32.gmra.mxu0 %v1126
    %v1210 = vpop.f32.mrf.mxu0
    %v1211 = vadd.f32 0.0, %v1210
    %v1212 = vpop.f32.mrf.mxu0
    %1213 = vdwg.mxu0
    %v1214 = vmul.f32 %v1201, 0.5
    %v1215 = vmul.f32 %v1206, 0.5
    %v1216 = vmul.f32 %v1211, 0.5
    %v1217 = vsel %vm498, %v1214, -inf
    %1218 = vmax.xlane.f32.xlu0 %v1217
    %v1219 = vpop.xlane.xlu0 %1218
    %v1220 = vsel %vm498, %v1215, -inf
    %1221 = vmax.xlane.f32.xlu0 %v1220
    %v1222 = vpop.xlane.xlu0 %1221
    %v1223 = vsel %vm505, %v1216, -inf
    %1224 = vmax.xlane.f32.xlu0 %v1223
    %v1225 = vpop.xlane.xlu0 %1224
    %v1226 = vsub.f32 %v1214, %v1219
    %v1227 = vsub.f32 %v1215, %v1222
    %v1228 = vsub.f32 %v1216, %v1225
    %v1229 = vmul.f32 %v1226, 1.442695
    %v1230 = vpow.pop %v1229
    %v1231 = vmul.f32 %v1227, 1.442695
    %v1232 = vpow.pop %v1231
    %v1233 = vmul.f32 %v1228, 1.442695
    %v1234 = vpow.pop %v1233
    %v1235 = vsel %vm498, %v1230, 0.0
    %1236 = vadd.xlane.f32.xlu0 %v1235
    %v1237 = vpop.xlane.xlu0 %1236
    %v1238 = vsel %vm498, %v1232, 0.0
    %1239 = vadd.xlane.f32.xlu0 %v1238
    %v1240 = vpop.xlane.xlu0 %1239
    %v1241 = vsel %vm505, %v1234, 0.0
    %1242 = vadd.xlane.f32.xlu0 %v1241
    %v1243 = vpop.xlane.xlu0 %1242
    %v1244 = vrcp.pop %v1237
    %v1245 = vmul.f32 %v1230, %v1244
    %v1246 = vrcp.pop %v1240
    %v1247 = vmul.f32 %v1232, %v1246
    %v1248 = vrcp.pop %v1243
    %v1249 = vmul.f32 %v1234, %v1248
    %1250 = vrot.lane.b32.xlu0 %v370, 52
    %v1251 = vpop.permute.xlu0 %1250
    %1252 = vrot.lane.b32.xlu0 %v375, 52
    %v1253 = vpop.permute.xlu0 %1252
    %1254 = vrot.lane.b32.xlu0 %v380, 52
    %v1255 = vpop.permute.xlu0 %1254
    %v1259 = vsel %vm498, %v1245, 0
    %v1262 = vsel %vm498, %v1247, 0
    %v1265 = vsel %vm498, %v1249, 0
    %v1267 = vsel %vm68, %v1255, 0
    %1269 = vmatprep.subr.mxu0 0.0
    %1270 = vmatpush1.msra.mxu0 0.0
    %1271 = vmatprep.subr.mxu0 0.0
    %1272 = vmatpush1.msra.mxu0 0.0
    %1273 = vmatprep.subr.mxu0 0.0
    %1274 = vmatpush1.msra.mxu0 0.0
    %1275 = vmatprep.subr.mxu0 0.0
    %1276 = vmatpush1.msra.mxu0 0.0
    %1277 = vmatprep.subr.mxu0 0.0
    %1278 = vmatpush1.msra.mxu0 0.0
    %1279 = vmatprep.subr.mxu0 0.0
    %1280 = vmatpush1.msra.mxu0 0.0
    %1281 = vmatprep.subr.mxu0 0.0
    %1282 = vmatpush1.msra.mxu0 0.0
    %1283 = vmatprep.subr.mxu0 0.0
    %1284 = vmatpush1.msra.mxu0 0.0
    %1285 = vmatprep.subr.mxu0 0.0
    %1286 = vmatpush1.msra.mxu0 0.0
    %1287 = vmatprep.subr.mxu0 0.0
    %1288 = vmatpush1.msra.mxu0 0.0
    %1289 = vmatprep.subr.mxu0 0.0
    %1290 = vmatpush1.msra.mxu0 0.0
    %1291 = vmatprep.subr.mxu0 0.0
    %1292 = vmatpush1.msra.mxu0 0.0
    %1293 = vmatprep.subr.mxu0 0.0
    %1294 = vmatpush1.msra.mxu0 0.0
    %1295 = vmatprep.subr.mxu0 0.0
    %1296 = vmatpush1.msra.mxu0 %v1267
    %1297 = vmatprep.subr.mxu0 0.0
    %1298 = vmatpush1.msra.mxu0 %v1253
    %1299 = vmatprep.subr.mxu0 0.0
    %1300 = vmatpush1.msra.mxu0 %v1251
    %1301 = vmatprep.subr.mxu0 0.0
    %1302 = vmatpush2.msra.mxu0 0.0
    %1303 = vmatprep.subr.mxu0 0.0
    %1304 = vmatpush2.msra.mxu0 0.0
    %1305 = vmatprep.subr.mxu0 0.0
    %1306 = vmatpush2.msra.mxu0 0.0
    %1307 = vmatprep.subr.mxu0 0.0
    %1308 = vmatpush2.msra.mxu0 0.0
    %1309 = vmatprep.subr.mxu0 0.0
    %1310 = vmatpush2.msra.mxu0 0.0
    %1311 = vmatprep.subr.mxu0 0.0
    %1312 = vmatpush2.msra.mxu0 0.0
    %1313 = vmatprep.subr.mxu0 0.0
    %1314 = vmatpush2.msra.mxu0 0.0
    %1315 = vmatprep.subr.mxu0 0.0
    %1316 = vmatpush2.msra.mxu0 0.0
    %1317 = vmatprep.subr.mxu0 0.0
    %1318 = vmatpush2.msra.mxu0 0.0
    %1319 = vmatprep.subr.mxu0 0.0
    %1320 = vmatpush2.msra.mxu0 0.0
    %1321 = vmatprep.subr.mxu0 0.0
    %1322 = vmatpush2.msra.mxu0 0.0
    %1323 = vmatprep.subr.mxu0 0.0
    %1324 = vmatpush2.msra.mxu0 0.0
    %1325 = vmatprep.subr.mxu0 0.0
    %1326 = vmatpush2.msra.mxu0 0.0
    %1327 = vmatprep.subr.mxu0 0.0
    %1328 = vmatpush2.msra.mxu0 0.0
    %1329 = vmatprep.subr.mxu0 0.0
    %1330 = vmatpush2.msra.mxu0 0.0
    %1331 = vmatprep.subr.mxu0 0.0
    %1332 = vmatpush2.msra.mxu0 0.0
    %1333 = vmatprep.mubr.f32.mxu0 0.0
    %1334 = vmatmul.mubr.f32.gmra.mxu0 %v1259
    %v1335 = vpop.f32.mrf.mxu0
    %v1336 = vadd.f32 0.0, %v1335
    %v1337 = vpop.f32.mrf.mxu0
    %1338 = vmatprep.mubr.f32.mxu0 0.0
    %1339 = vmatmul.mubr.f32.gmra.mxu0 %v1262
    %v1340 = vpop.f32.mrf.mxu0
    %v1341 = vadd.f32 0.0, %v1340
    %v1342 = vpop.f32.mrf.mxu0
    %1343 = vmatprep.mubr.f32.mxu0 0.0
    %1344 = vmatmul.mubr.f32.gmra.mxu0 %v1265
    %v1345 = vpop.f32.mrf.mxu0
    %v1346 = vadd.f32 0.0, %v1345
    %v1347 = vpop.f32.mrf.mxu0
    %1348 = vdwg.mxu0
    %1349 = vrot.lane.b32.xlu0 %v370, 112
    %v1350 = vpop.permute.xlu0 %1349
    %1351 = vrot.lane.b32.xlu0 %v375, 112
    %v1352 = vpop.permute.xlu0 %1351
    %1353 = vrot.lane.b32.xlu0 %v380, 112
    %v1354 = vpop.permute.xlu0 %1353
    %1355 = vrot.lane.b32.xlu0 %v370, 80
    %v1356 = vpop.permute.xlu0 %1355
    %1357 = vrot.lane.b32.xlu0 %v375, 80
    %v1358 = vpop.permute.xlu0 %1357
    %1359 = vrot.lane.b32.xlu0 %v380, 80
    %v1360 = vpop.permute.xlu0 %1359
    %v1361 = vsel %vm402, %v1350, 0
    %v1363 = vsel %vm402, %v1352, 0
    %v1365 = vsel %vm402, %v1354, 0
    %v1367 = vsel %vm402, %v1356, 0
    %v1369 = vsel %vm402, %v1358, 0
    %v1371 = vsel %vm402, %v1360, 0
    %1373 = vmatprep.subr.mxu0 0.0
    %1374 = vmatpush1.xpose.msra.mxu0 0.0
    %1375 = vmatprep.subr.mxu0 0.0
    %1376 = vmatpush1.xpose.msra.mxu0 0.0
    %1377 = vmatprep.subr.mxu0 0.0
    %1378 = vmatpush1.xpose.msra.mxu0 0.0
    %1379 = vmatprep.subr.mxu0 0.0
    %1380 = vmatpush1.xpose.msra.mxu0 0.0
    %1381 = vmatprep.subr.mxu0 0.0
    %1382 = vmatpush1.xpose.msra.mxu0 0.0
    %1383 = vmatprep.subr.mxu0 0.0
    %1384 = vmatpush1.xpose.msra.mxu0 0.0
    %1385 = vmatprep.subr.mxu0 0.0
    %1386 = vmatpush1.xpose.msra.mxu0 0.0
    %1387 = vmatprep.subr.mxu0 0.0
    %1388 = vmatpush1.xpose.msra.mxu0 0.0
    %1389 = vmatprep.subr.mxu0 0.0
    %1390 = vmatpush1.xpose.msra.mxu0 0.0
    %1391 = vmatprep.subr.mxu0 0.0
    %1392 = vmatpush1.xpose.msra.mxu0 0.0
    %1393 = vmatprep.subr.mxu0 0.0
    %1394 = vmatpush1.xpose.msra.mxu0 0.0
    %1395 = vmatprep.subr.mxu0 0.0
    %1396 = vmatpush1.xpose.msra.mxu0 0.0
    %1397 = vmatprep.subr.mxu0 0.0
    %1398 = vmatpush1.xpose.msra.mxu0 0.0
    %1399 = vmatprep.subr.mxu0 0.0
    %1400 = vmatpush1.xpose.msra.mxu0 %v1371
    %1401 = vmatprep.subr.mxu0 0.0
    %1402 = vmatpush1.xpose.msra.mxu0 %v1369
    %1403 = vmatprep.subr.mxu0 0.0
    %1404 = vmatpush1.xpose.msra.mxu0 %v1367
    %1405 = vmatprep.subr.mxu0 0.0
    %1406 = vmatpush2.xpose.msra.mxu0 0.0
    %1407 = vmatprep.subr.mxu0 0.0
    %1408 = vmatpush2.xpose.msra.mxu0 0.0
    %1409 = vmatprep.subr.mxu0 0.0
    %1410 = vmatpush2.xpose.msra.mxu0 0.0
    %1411 = vmatprep.subr.mxu0 0.0
    %1412 = vmatpush2.xpose.msra.mxu0 0.0
    %1413 = vmatprep.subr.mxu0 0.0
    %1414 = vmatpush2.xpose.msra.mxu0 0.0
    %1415 = vmatprep.subr.mxu0 0.0
    %1416 = vmatpush2.xpose.msra.mxu0 0.0
    %1417 = vmatprep.subr.mxu0 0.0
    %1418 = vmatpush2.xpose.msra.mxu0 0.0
    %1419 = vmatprep.subr.mxu0 0.0
    %1420 = vmatpush2.xpose.msra.mxu0 0.0
    %1421 = vmatprep.subr.mxu0 0.0
    %1422 = vmatpush2.xpose.msra.mxu0 0.0
    %1423 = vmatprep.subr.mxu0 0.0
    %1424 = vmatpush2.xpose.msra.mxu0 0.0
    %1425 = vmatprep.subr.mxu0 0.0
    %1426 = vmatpush2.xpose.msra.mxu0 0.0
    %1427 = vmatprep.subr.mxu0 0.0
    %1428 = vmatpush2.xpose.msra.mxu0 0.0
    %1429 = vmatprep.subr.mxu0 0.0
    %1430 = vmatpush2.xpose.msra.mxu0 0.0
    %1431 = vmatprep.subr.mxu0 0.0
    %1432 = vmatpush2.xpose.msra.mxu0 0.0
    %1433 = vmatprep.subr.mxu0 0.0
    %1434 = vmatpush2.xpose.msra.mxu0 0.0
    %1435 = vmatprep.subr.mxu0 0.0
    %1436 = vmatpush2.xpose.msra.mxu0 0.0
    %1437 = vmatprep.mubr.f32.mxu0 0.0
    %1438 = vmatmul.mubr.f32.gmra.mxu0 %v1361
    %v1439 = vpop.f32.mrf.mxu0
    %v1440 = vadd.f32 0.0, %v1439
    %v1441 = vpop.f32.mrf.mxu0
    %1442 = vmatprep.mubr.f32.mxu0 0.0
    %1443 = vmatmul.mubr.f32.gmra.mxu0 %v1363
    %v1444 = vpop.f32.mrf.mxu0
    %v1445 = vadd.f32 0.0, %v1444
    %v1446 = vpop.f32.mrf.mxu0
    %1447 = vmatprep.mubr.f32.mxu0 0.0
    %1448 = vmatmul.mubr.f32.gmra.mxu0 %v1365
    %v1449 = vpop.f32.mrf.mxu0
    %v1450 = vadd.f32 0.0, %v1449
    %v1451 = vpop.f32.mrf.mxu0
    %1452 = vdwg.mxu0
    %v1453 = vmul.f32 %v1440, 0.5
    %v1454 = vmul.f32 %v1445, 0.5
    %v1455 = vmul.f32 %v1450, 0.5
    %v1456 = vsel %vm498, %v1453, -inf
    %1457 = vmax.xlane.f32.xlu0 %v1456
    %v1458 = vpop.xlane.xlu0 %1457
    %v1459 = vsel %vm498, %v1454, -inf
    %1460 = vmax.xlane.f32.xlu0 %v1459
    %v1461 = vpop.xlane.xlu0 %1460
    %v1462 = vsel %vm505, %v1455, -inf
    %1463 = vmax.xlane.f32.xlu0 %v1462
    %v1464 = vpop.xlane.xlu0 %1463
    %v1465 = vsub.f32 %v1453, %v1458
    %v1466 = vsub.f32 %v1454, %v1461
    %v1467 = vsub.f32 %v1455, %v1464
    %v1468 = vmul.f32 %v1465, 1.442695
    %v1469 = vpow.pop %v1468
    %v1470 = vmul.f32 %v1466, 1.442695
    %v1471 = vpow.pop %v1470
    %v1472 = vmul.f32 %v1467, 1.442695
    %v1473 = vpow.pop %v1472
    %v1474 = vsel %vm498, %v1469, 0.0
    %1475 = vadd.xlane.f32.xlu0 %v1474
    %v1476 = vpop.xlane.xlu0 %1475
    %v1477 = vsel %vm498, %v1471, 0.0
    %1478 = vadd.xlane.f32.xlu0 %v1477
    %v1479 = vpop.xlane.xlu0 %1478
    %v1480 = vsel %vm505, %v1473, 0.0
    %1481 = vadd.xlane.f32.xlu0 %v1480
    %v1482 = vpop.xlane.xlu0 %1481
    %v1483 = vrcp.pop %v1476
    %v1484 = vmul.f32 %v1469, %v1483
    %v1485 = vrcp.pop %v1479
    %v1486 = vmul.f32 %v1471, %v1485
    %v1487 = vrcp.pop %v1482
    %v1488 = vmul.f32 %v1473, %v1487
    %1489 = vrot.lane.b32.xlu0 %v370, 48
    %v1490 = vpop.permute.xlu0 %1489
    %1491 = vrot.lane.b32.xlu0 %v375, 48
    %v1492 = vpop.permute.xlu0 %1491
    %1493 = vrot.lane.b32.xlu0 %v380, 48
    %v1494 = vpop.permute.xlu0 %1493
    %v1498 = vsel %vm498, %v1484, 0
    %v1501 = vsel %vm498, %v1486, 0
    %v1504 = vsel %vm498, %v1488, 0
    %v1506 = vsel %vm68, %v1494, 0
    %1508 = vmatprep.subr.mxu0 0.0
    %1509 = vmatpush1.msra.mxu0 0.0
    %1510 = vmatprep.subr.mxu0 0.0
    %1511 = vmatpush1.msra.mxu0 0.0
    %1512 = vmatprep.subr.mxu0 0.0
    %1513 = vmatpush1.msra.mxu0 0.0
    %1514 = vmatprep.subr.mxu0 0.0
    %1515 = vmatpush1.msra.mxu0 0.0
    %1516 = vmatprep.subr.mxu0 0.0
    %1517 = vmatpush1.msra.mxu0 0.0
    %1518 = vmatprep.subr.mxu0 0.0
    %1519 = vmatpush1.msra.mxu0 0.0
    %1520 = vmatprep.subr.mxu0 0.0
    %1521 = vmatpush1.msra.mxu0 0.0
    %1522 = vmatprep.subr.mxu0 0.0
    %1523 = vmatpush1.msra.mxu0 0.0
    %1524 = vmatprep.subr.mxu0 0.0
    %1525 = vmatpush1.msra.mxu0 0.0
    %1526 = vmatprep.subr.mxu0 0.0
    %1527 = vmatpush1.msra.mxu0 0.0
    %1528 = vmatprep.subr.mxu0 0.0
    %1529 = vmatpush1.msra.mxu0 0.0
    %1530 = vmatprep.subr.mxu0 0.0
    %1531 = vmatpush1.msra.mxu0 0.0
    %1532 = vmatprep.subr.mxu0 0.0
    %1533 = vmatpush1.msra.mxu0 0.0
    %1534 = vmatprep.subr.mxu0 0.0
    %1535 = vmatpush1.msra.mxu0 %v1506
    %1536 = vmatprep.subr.mxu0 0.0
    %1537 = vmatpush1.msra.mxu0 %v1492
    %1538 = vmatprep.subr.mxu0 0.0
    %1539 = vmatpush1.msra.mxu0 %v1490
    %1540 = vmatprep.subr.mxu0 0.0
    %1541 = vmatpush2.msra.mxu0 0.0
    %1542 = vmatprep.subr.mxu0 0.0
    %1543 = vmatpush2.msra.mxu0 0.0
    %1544 = vmatprep.subr.mxu0 0.0
    %1545 = vmatpush2.msra.mxu0 0.0
    %1546 = vmatprep.subr.mxu0 0.0
    %1547 = vmatpush2.msra.mxu0 0.0
    %1548 = vmatprep.subr.mxu0 0.0
    %1549 = vmatpush2.msra.mxu0 0.0
    %1550 = vmatprep.subr.mxu0 0.0
    %1551 = vmatpush2.msra.mxu0 0.0
    %1552 = vmatprep.subr.mxu0 0.0
    %1553 = vmatpush2.msra.mxu0 0.0
    %1554 = vmatprep.subr.mxu0 0.0
    %1555 = vmatpush2.msra.mxu0 0.0
    %1556 = vmatprep.subr.mxu0 0.0
    %1557 = vmatpush2.msra.mxu0 0.0
    %1558 = vmatprep.subr.mxu0 0.0
    %1559 = vmatpush2.msra.mxu0 0.0
    %1560 = vmatprep.subr.mxu0 0.0
    %1561 = vmatpush2.msra.mxu0 0.0
    %1562 = vmatprep.subr.mxu0 0.0
    %1563 = vmatpush2.msra.mxu0 0.0
    %1564 = vmatprep.subr.mxu0 0.0
    %1565 = vmatpush2.msra.mxu0 0.0
    %1566 = vmatprep.subr.mxu0 0.0
    %1567 = vmatpush2.msra.mxu0 0.0
    %1568 = vmatprep.subr.mxu0 0.0
    %1569 = vmatpush2.msra.mxu0 0.0
    %1570 = vmatprep.subr.mxu0 0.0
    %1571 = vmatpush2.msra.mxu0 0.0
    %1572 = vmatprep.mubr.f32.mxu0 0.0
    %1573 = vmatmul.mubr.f32.gmra.mxu0 %v1498
    %v1574 = vpop.f32.mrf.mxu0
    %v1575 = vadd.f32 0.0, %v1574
    %v1576 = vpop.f32.mrf.mxu0
    %1577 = vmatprep.mubr.f32.mxu0 0.0
    %1578 = vmatmul.mubr.f32.gmra.mxu0 %v1501
    %v1579 = vpop.f32.mrf.mxu0
    %v1580 = vadd.f32 0.0, %v1579
    %v1581 = vpop.f32.mrf.mxu0
    %1582 = vmatprep.mubr.f32.mxu0 0.0
    %1583 = vmatmul.mubr.f32.gmra.mxu0 %v1504
    %v1584 = vpop.f32.mrf.mxu0
    %v1585 = vadd.f32 0.0, %v1584
    %v1586 = vpop.f32.mrf.mxu0
    %1587 = vdwg.mxu0
    %1588 = vrot.lane.b32.xlu0 %v370, 108
    %v1589 = vpop.permute.xlu0 %1588
    %1590 = vrot.lane.b32.xlu0 %v375, 108
    %v1591 = vpop.permute.xlu0 %1590
    %1592 = vrot.lane.b32.xlu0 %v380, 108
    %v1593 = vpop.permute.xlu0 %1592
    %1594 = vrot.lane.b32.xlu0 %v370, 76
    %v1595 = vpop.permute.xlu0 %1594
    %1596 = vrot.lane.b32.xlu0 %v375, 76
    %v1597 = vpop.permute.xlu0 %1596
    %1598 = vrot.lane.b32.xlu0 %v380, 76
    %v1599 = vpop.permute.xlu0 %1598
    %v1600 = vsel %vm402, %v1589, 0
    %v1602 = vsel %vm402, %v1591, 0
    %v1604 = vsel %vm402, %v1593, 0
    %v1606 = vsel %vm402, %v1595, 0
    %v1608 = vsel %vm402, %v1597, 0
    %v1610 = vsel %vm402, %v1599, 0
    %1612 = vmatprep.subr.mxu0 0.0
    %1613 = vmatpush1.xpose.msra.mxu0 0.0
    %1614 = vmatprep.subr.mxu0 0.0
    %1615 = vmatpush1.xpose.msra.mxu0 0.0
    %1616 = vmatprep.subr.mxu0 0.0
    %1617 = vmatpush1.xpose.msra.mxu0 0.0
    %1618 = vmatprep.subr.mxu0 0.0
    %1619 = vmatpush1.xpose.msra.mxu0 0.0
    %1620 = vmatprep.subr.mxu0 0.0
    %1621 = vmatpush1.xpose.msra.mxu0 0.0
    %1622 = vmatprep.subr.mxu0 0.0
    %1623 = vmatpush1.xpose.msra.mxu0 0.0
    %1624 = vmatprep.subr.mxu0 0.0
    %1625 = vmatpush1.xpose.msra.mxu0 0.0
    %1626 = vmatprep.subr.mxu0 0.0
    %1627 = vmatpush1.xpose.msra.mxu0 0.0
    %1628 = vmatprep.subr.mxu0 0.0
    %1629 = vmatpush1.xpose.msra.mxu0 0.0
    %1630 = vmatprep.subr.mxu0 0.0
    %1631 = vmatpush1.xpose.msra.mxu0 0.0
    %1632 = vmatprep.subr.mxu0 0.0
    %1633 = vmatpush1.xpose.msra.mxu0 0.0
    %1634 = vmatprep.subr.mxu0 0.0
    %1635 = vmatpush1.xpose.msra.mxu0 0.0
    %1636 = vmatprep.subr.mxu0 0.0
    %1637 = vmatpush1.xpose.msra.mxu0 0.0
    %1638 = vmatprep.subr.mxu0 0.0
    %1639 = vmatpush1.xpose.msra.mxu0 %v1610
    %1640 = vmatprep.subr.mxu0 0.0
    %1641 = vmatpush1.xpose.msra.mxu0 %v1608
    %1642 = vmatprep.subr.mxu0 0.0
    %1643 = vmatpush1.xpose.msra.mxu0 %v1606
    %1644 = vmatprep.subr.mxu0 0.0
    %1645 = vmatpush2.xpose.msra.mxu0 0.0
    %1646 = vmatprep.subr.mxu0 0.0
    %1647 = vmatpush2.xpose.msra.mxu0 0.0
    %1648 = vmatprep.subr.mxu0 0.0
    %1649 = vmatpush2.xpose.msra.mxu0 0.0
    %1650 = vmatprep.subr.mxu0 0.0
    %1651 = vmatpush2.xpose.msra.mxu0 0.0
    %1652 = vmatprep.subr.mxu0 0.0
    %1653 = vmatpush2.xpose.msra.mxu0 0.0
    %1654 = vmatprep.subr.mxu0 0.0
    %1655 = vmatpush2.xpose.msra.mxu0 0.0
    %1656 = vmatprep.subr.mxu0 0.0
    %1657 = vmatpush2.xpose.msra.mxu0 0.0
    %1658 = vmatprep.subr.mxu0 0.0
    %1659 = vmatpush2.xpose.msra.mxu0 0.0
    %1660 = vmatprep.subr.mxu0 0.0
    %1661 = vmatpush2.xpose.msra.mxu0 0.0
    %1662 = vmatprep.subr.mxu0 0.0
    %1663 = vmatpush2.xpose.msra.mxu0 0.0
    %1664 = vmatprep.subr.mxu0 0.0
    %1665 = vmatpush2.xpose.msra.mxu0 0.0
    %1666 = vmatprep.subr.mxu0 0.0
    %1667 = vmatpush2.xpose.msra.mxu0 0.0
    %1668 = vmatprep.subr.mxu0 0.0
    %1669 = vmatpush2.xpose.msra.mxu0 0.0
    %1670 = vmatprep.subr.mxu0 0.0
    %1671 = vmatpush2.xpose.msra.mxu0 0.0
    %1672 = vmatprep.subr.mxu0 0.0
    %1673 = vmatpush2.xpose.msra.mxu0 0.0
    %1674 = vmatprep.subr.mxu0 0.0
    %1675 = vmatpush2.xpose.msra.mxu0 0.0
    %1676 = vmatprep.mubr.f32.mxu0 0.0
    %1677 = vmatmul.mubr.f32.gmra.mxu0 %v1600
    %v1678 = vpop.f32.mrf.mxu0
    %v1679 = vadd.f32 0.0, %v1678
    %v1680 = vpop.f32.mrf.mxu0
    %1681 = vmatprep.mubr.f32.mxu0 0.0
    %1682 = vmatmul.mubr.f32.gmra.mxu0 %v1602
    %v1683 = vpop.f32.mrf.mxu0
    %v1684 = vadd.f32 0.0, %v1683
    %v1685 = vpop.f32.mrf.mxu0
    %1686 = vmatprep.mubr.f32.mxu0 0.0
    %1687 = vmatmul.mubr.f32.gmra.mxu0 %v1604
    %v1688 = vpop.f32.mrf.mxu0
    %v1689 = vadd.f32 0.0, %v1688
    %v1690 = vpop.f32.mrf.mxu0
    %1691 = vdwg.mxu0
    %v1692 = vmul.f32 %v1679, 0.5
    %v1693 = vmul.f32 %v1684, 0.5
    %v1694 = vmul.f32 %v1689, 0.5
    %v1695 = vsel %vm498, %v1692, -inf
    %1696 = vmax.xlane.f32.xlu0 %v1695
    %v1697 = vpop.xlane.xlu0 %1696
    %v1698 = vsel %vm498, %v1693, -inf
    %1699 = vmax.xlane.f32.xlu0 %v1698
    %v1700 = vpop.xlane.xlu0 %1699
    %v1701 = vsel %vm505, %v1694, -inf
    %1702 = vmax.xlane.f32.xlu0 %v1701
    %v1703 = vpop.xlane.xlu0 %1702
    %v1704 = vsub.f32 %v1692, %v1697
    %v1705 = vsub.f32 %v1693, %v1700
    %v1706 = vsub.f32 %v1694, %v1703
    %v1707 = vmul.f32 %v1704, 1.442695
    %v1708 = vpow.pop %v1707
    %v1709 = vmul.f32 %v1705, 1.442695
    %v1710 = vpow.pop %v1709
    %v1711 = vmul.f32 %v1706, 1.442695
    %v1712 = vpow.pop %v1711
    %v1713 = vsel %vm498, %v1708, 0.0
    %1714 = vadd.xlane.f32.xlu0 %v1713
    %v1715 = vpop.xlane.xlu0 %1714
    %v1716 = vsel %vm498, %v1710, 0.0
    %1717 = vadd.xlane.f32.xlu0 %v1716
    %v1718 = vpop.xlane.xlu0 %1717
    %v1719 = vsel %vm505, %v1712, 0.0
    %1720 = vadd.xlane.f32.xlu0 %v1719
    %v1721 = vpop.xlane.xlu0 %1720
    %v1722 = vrcp.pop %v1715
    %v1723 = vmul.f32 %v1708, %v1722
    %v1724 = vrcp.pop %v1718
    %v1725 = vmul.f32 %v1710, %v1724
    %v1726 = vrcp.pop %v1721
    %v1727 = vmul.f32 %v1712, %v1726
    %1728 = vrot.lane.b32.xlu0 %v370, 44
    %v1729 = vpop.permute.xlu0 %1728
    %1730 = vrot.lane.b32.xlu0 %v375, 44
    %v1731 = vpop.permute.xlu0 %1730
    %1732 = vrot.lane.b32.xlu0 %v380, 44
    %v1733 = vpop.permute.xlu0 %1732
    %v1737 = vsel %vm498, %v1723, 0
    %v1740 = vsel %vm498, %v1725, 0
    %v1743 = vsel %vm498, %v1727, 0
    %v1745 = vsel %vm68, %v1733, 0
    %1747 = vmatprep.subr.mxu0 0.0
    %1748 = vmatpush1.msra.mxu0 0.0
    %1749 = vmatprep.subr.mxu0 0.0
    %1750 = vmatpush1.msra.mxu0 0.0
    %1751 = vmatprep.subr.mxu0 0.0
    %1752 = vmatpush1.msra.mxu0 0.0
    %1753 = vmatprep.subr.mxu0 0.0
    %1754 = vmatpush1.msra.mxu0 0.0
    %1755 = vmatprep.subr.mxu0 0.0
    %1756 = vmatpush1.msra.mxu0 0.0
    %1757 = vmatprep.subr.mxu0 0.0
    %1758 = vmatpush1.msra.mxu0 0.0
    %1759 = vmatprep.subr.mxu0 0.0
    %1760 = vmatpush1.msra.mxu0 0.0
    %1761 = vmatprep.subr.mxu0 0.0
    %1762 = vmatpush1.msra.mxu0 0.0
    %1763 = vmatprep.subr.mxu0 0.0
    %1764 = vmatpush1.msra.mxu0 0.0
    %1765 = vmatprep.subr.mxu0 0.0
    %1766 = vmatpush1.msra.mxu0 0.0
    %1767 = vmatprep.subr.mxu0 0.0
    %1768 = vmatpush1.msra.mxu0 0.0
    %1769 = vmatprep.subr.mxu0 0.0
    %1770 = vmatpush1.msra.mxu0 0.0
    %1771 = vmatprep.subr.mxu0 0.0
    %1772 = vmatpush1.msra.mxu0 0.0
    %1773 = vmatprep.subr.mxu0 0.0
    %1774 = vmatpush1.msra.mxu0 %v1745
    %1775 = vmatprep.subr.mxu0 0.0
    %1776 = vmatpush1.msra.mxu0 %v1731
    %1777 = vmatprep.subr.mxu0 0.0
    %1778 = vmatpush1.msra.mxu0 %v1729
    %1779 = vmatprep.subr.mxu0 0.0
    %1780 = vmatpush2.msra.mxu0 0.0
    %1781 = vmatprep.subr.mxu0 0.0
    %1782 = vmatpush2.msra.mxu0 0.0
    %1783 = vmatprep.subr.mxu0 0.0
    %1784 = vmatpush2.msra.mxu0 0.0
    %1785 = vmatprep.subr.mxu0 0.0
    %1786 = vmatpush2.msra.mxu0 0.0
    %1787 = vmatprep.subr.mxu0 0.0
    %1788 = vmatpush2.msra.mxu0 0.0
    %1789 = vmatprep.subr.mxu0 0.0
    %1790 = vmatpush2.msra.mxu0 0.0
    %1791 = vmatprep.subr.mxu0 0.0
    %1792 = vmatpush2.msra.mxu0 0.0
    %1793 = vmatprep.subr.mxu0 0.0
    %1794 = vmatpush2.msra.mxu0 0.0
    %1795 = vmatprep.subr.mxu0 0.0
    %1796 = vmatpush2.msra.mxu0 0.0
    %1797 = vmatprep.subr.mxu0 0.0
    %1798 = vmatpush2.msra.mxu0 0.0
    %1799 = vmatprep.subr.mxu0 0.0
    %1800 = vmatpush2.msra.mxu0 0.0
    %1801 = vmatprep.subr.mxu0 0.0
    %1802 = vmatpush2.msra.mxu0 0.0
    %1803 = vmatprep.subr.mxu0 0.0
    %1804 = vmatpush2.msra.mxu0 0.0
    %1805 = vmatprep.subr.mxu0 0.0
    %1806 = vmatpush2.msra.mxu0 0.0
    %1807 = vmatprep.subr.mxu0 0.0
    %1808 = vmatpush2.msra.mxu0 0.0
    %1809 = vmatprep.subr.mxu0 0.0
    %1810 = vmatpush2.msra.mxu0 0.0
    %1811 = vmatprep.mubr.f32.mxu0 0.0
    %1812 = vmatmul.mubr.f32.gmra.mxu0 %v1737
    %v1813 = vpop.f32.mrf.mxu0
    %v1814 = vadd.f32 0.0, %v1813
    %v1815 = vpop.f32.mrf.mxu0
    %1816 = vmatprep.mubr.f32.mxu0 0.0
    %1817 = vmatmul.mubr.f32.gmra.mxu0 %v1740
    %v1818 = vpop.f32.mrf.mxu0
    %v1819 = vadd.f32 0.0, %v1818
    %v1820 = vpop.f32.mrf.mxu0
    %1821 = vmatprep.mubr.f32.mxu0 0.0
    %1822 = vmatmul.mubr.f32.gmra.mxu0 %v1743
    %v1823 = vpop.f32.mrf.mxu0
    %v1824 = vadd.f32 0.0, %v1823
    %v1825 = vpop.f32.mrf.mxu0
    %1826 = vdwg.mxu0
    %1827 = vrot.lane.b32.xlu0 %v370, 104
    %v1828 = vpop.permute.xlu0 %1827
    %1829 = vrot.lane.b32.xlu0 %v375, 104
    %v1830 = vpop.permute.xlu0 %1829
    %1831 = vrot.lane.b32.xlu0 %v380, 104
    %v1832 = vpop.permute.xlu0 %1831
    %1833 = vrot.lane.b32.xlu0 %v370, 72
    %v1834 = vpop.permute.xlu0 %1833
    %1835 = vrot.lane.b32.xlu0 %v375, 72
    %v1836 = vpop.permute.xlu0 %1835
    %1837 = vrot.lane.b32.xlu0 %v380, 72
    %v1838 = vpop.permute.xlu0 %1837
    %v1839 = vsel %vm402, %v1828, 0
    %v1841 = vsel %vm402, %v1830, 0
    %v1843 = vsel %vm402, %v1832, 0
    %v1845 = vsel %vm402, %v1834, 0
    %v1847 = vsel %vm402, %v1836, 0
    %v1849 = vsel %vm402, %v1838, 0
    %1851 = vmatprep.subr.mxu0 0.0
    %1852 = vmatpush1.xpose.msra.mxu0 0.0
    %1853 = vmatprep.subr.mxu0 0.0
    %1854 = vmatpush1.xpose.msra.mxu0 0.0
    %1855 = vmatprep.subr.mxu0 0.0
    %1856 = vmatpush1.xpose.msra.mxu0 0.0
    %1857 = vmatprep.subr.mxu0 0.0
    %1858 = vmatpush1.xpose.msra.mxu0 0.0
    %1859 = vmatprep.subr.mxu0 0.0
    %1860 = vmatpush1.xpose.msra.mxu0 0.0
    %1861 = vmatprep.subr.mxu0 0.0
    %1862 = vmatpush1.xpose.msra.mxu0 0.0
    %1863 = vmatprep.subr.mxu0 0.0
    %1864 = vmatpush1.xpose.msra.mxu0 0.0
    %1865 = vmatprep.subr.mxu0 0.0
    %1866 = vmatpush1.xpose.msra.mxu0 0.0
    %1867 = vmatprep.subr.mxu0 0.0
    %1868 = vmatpush1.xpose.msra.mxu0 0.0
    %1869 = vmatprep.subr.mxu0 0.0
    %1870 = vmatpush1.xpose.msra.mxu0 0.0
    %1871 = vmatprep.subr.mxu0 0.0
    %1872 = vmatpush1.xpose.msra.mxu0 0.0
    %1873 = vmatprep.subr.mxu0 0.0
    %1874 = vmatpush1.xpose.msra.mxu0 0.0
    %1875 = vmatprep.subr.mxu0 0.0
    %1876 = vmatpush1.xpose.msra.mxu0 0.0
    %1877 = vmatprep.subr.mxu0 0.0
    %1878 = vmatpush1.xpose.msra.mxu0 %v1849
    %1879 = vmatprep.subr.mxu0 0.0
    %1880 = vmatpush1.xpose.msra.mxu0 %v1847
    %1881 = vmatprep.subr.mxu0 0.0
    %1882 = vmatpush1.xpose.msra.mxu0 %v1845
    %1883 = vmatprep.subr.mxu0 0.0
    %1884 = vmatpush2.xpose.msra.mxu0 0.0
    %1885 = vmatprep.subr.mxu0 0.0
    %1886 = vmatpush2.xpose.msra.mxu0 0.0
    %1887 = vmatprep.subr.mxu0 0.0
    %1888 = vmatpush2.xpose.msra.mxu0 0.0
    %1889 = vmatprep.subr.mxu0 0.0
    %1890 = vmatpush2.xpose.msra.mxu0 0.0
    %1891 = vmatprep.subr.mxu0 0.0
    %1892 = vmatpush2.xpose.msra.mxu0 0.0
    %1893 = vmatprep.subr.mxu0 0.0
    %1894 = vmatpush2.xpose.msra.mxu0 0.0
    %1895 = vmatprep.subr.mxu0 0.0
    %1896 = vmatpush2.xpose.msra.mxu0 0.0
    %1897 = vmatprep.subr.mxu0 0.0
    %1898 = vmatpush2.xpose.msra.mxu0 0.0
    %1899 = vmatprep.subr.mxu0 0.0
    %1900 = vmatpush2.xpose.msra.mxu0 0.0
    %1901 = vmatprep.subr.mxu0 0.0
    %1902 = vmatpush2.xpose.msra.mxu0 0.0
    %1903 = vmatprep.subr.mxu0 0.0
    %1904 = vmatpush2.xpose.msra.mxu0 0.0
    %1905 = vmatprep.subr.mxu0 0.0
    %1906 = vmatpush2.xpose.msra.mxu0 0.0
    %1907 = vmatprep.subr.mxu0 0.0
    %1908 = vmatpush2.xpose.msra.mxu0 0.0
    %1909 = vmatprep.subr.mxu0 0.0
    %1910 = vmatpush2.xpose.msra.mxu0 0.0
    %1911 = vmatprep.subr.mxu0 0.0
    %1912 = vmatpush2.xpose.msra.mxu0 0.0
    %1913 = vmatprep.subr.mxu0 0.0
    %1914 = vmatpush2.xpose.msra.mxu0 0.0
    %1915 = vmatprep.mubr.f32.mxu0 0.0
    %1916 = vmatmul.mubr.f32.gmra.mxu0 %v1839
    %v1917 = vpop.f32.mrf.mxu0
    %v1918 = vadd.f32 0.0, %v1917
    %v1919 = vpop.f32.mrf.mxu0
    %1920 = vmatprep.mubr.f32.mxu0 0.0
    %1921 = vmatmul.mubr.f32.gmra.mxu0 %v1841
    %v1922 = vpop.f32.mrf.mxu0
    %v1923 = vadd.f32 0.0, %v1922
    %v1924 = vpop.f32.mrf.mxu0
    %1925 = vmatprep.mubr.f32.mxu0 0.0
    %1926 = vmatmul.mubr.f32.gmra.mxu0 %v1843
    %v1927 = vpop.f32.mrf.mxu0
    %v1928 = vadd.f32 0.0, %v1927
    %v1929 = vpop.f32.mrf.mxu0
    %1930 = vdwg.mxu0
    %v1931 = vmul.f32 %v1918, 0.5
    %v1932 = vmul.f32 %v1923, 0.5
    %v1933 = vmul.f32 %v1928, 0.5
    %v1934 = vsel %vm498, %v1931, -inf
    %1935 = vmax.xlane.f32.xlu0 %v1934
    %v1936 = vpop.xlane.xlu0 %1935
    %v1937 = vsel %vm498, %v1932, -inf
    %1938 = vmax.xlane.f32.xlu0 %v1937
    %v1939 = vpop.xlane.xlu0 %1938
    %v1940 = vsel %vm505, %v1933, -inf
    %1941 = vmax.xlane.f32.xlu0 %v1940
    %v1942 = vpop.xlane.xlu0 %1941
    %v1943 = vsub.f32 %v1931, %v1936
    %v1944 = vsub.f32 %v1932, %v1939
    %v1945 = vsub.f32 %v1933, %v1942
    %v1946 = vmul.f32 %v1943, 1.442695
    %v1947 = vpow.pop %v1946
    %v1948 = vmul.f32 %v1944, 1.442695
    %v1949 = vpow.pop %v1948
    %v1950 = vmul.f32 %v1945, 1.442695
    %v1951 = vpow.pop %v1950
    %v1952 = vsel %vm498, %v1947, 0.0
    %1953 = vadd.xlane.f32.xlu0 %v1952
    %v1954 = vpop.xlane.xlu0 %1953
    %v1955 = vsel %vm498, %v1949, 0.0
    %1956 = vadd.xlane.f32.xlu0 %v1955
    %v1957 = vpop.xlane.xlu0 %1956
    %v1958 = vsel %vm505, %v1951, 0.0
    %1959 = vadd.xlane.f32.xlu0 %v1958
    %v1960 = vpop.xlane.xlu0 %1959
    %v1961 = vrcp.pop %v1954
    %v1962 = vmul.f32 %v1947, %v1961
    %v1963 = vrcp.pop %v1957
    %v1964 = vmul.f32 %v1949, %v1963
    %v1965 = vrcp.pop %v1960
    %v1966 = vmul.f32 %v1951, %v1965
    %1967 = vrot.lane.b32.xlu0 %v370, 40
    %v1968 = vpop.permute.xlu0 %1967
    %1969 = vrot.lane.b32.xlu0 %v375, 40
    %v1970 = vpop.permute.xlu0 %1969
    %1971 = vrot.lane.b32.xlu0 %v380, 40
    %v1972 = vpop.permute.xlu0 %1971
    %v1976 = vsel %vm498, %v1962, 0
    %v1979 = vsel %vm498, %v1964, 0
    %v1982 = vsel %vm498, %v1966, 0
    %v1984 = vsel %vm68, %v1972, 0
    %1986 = vmatprep.subr.mxu0 0.0
    %1987 = vmatpush1.msra.mxu0 0.0
    %1988 = vmatprep.subr.mxu0 0.0
    %1989 = vmatpush1.msra.mxu0 0.0
    %1990 = vmatprep.subr.mxu0 0.0
    %1991 = vmatpush1.msra.mxu0 0.0
    %1992 = vmatprep.subr.mxu0 0.0
    %1993 = vmatpush1.msra.mxu0 0.0
    %1994 = vmatprep.subr.mxu0 0.0
    %1995 = vmatpush1.msra.mxu0 0.0
    %1996 = vmatprep.subr.mxu0 0.0
    %1997 = vmatpush1.msra.mxu0 0.0
    %1998 = vmatprep.subr.mxu0 0.0
    %1999 = vmatpush1.msra.mxu0 0.0
    %2000 = vmatprep.subr.mxu0 0.0
    %2001 = vmatpush1.msra.mxu0 0.0
    %2002 = vmatprep.subr.mxu0 0.0
    %2003 = vmatpush1.msra.mxu0 0.0
    %2004 = vmatprep.subr.mxu0 0.0
    %2005 = vmatpush1.msra.mxu0 0.0
    %2006 = vmatprep.subr.mxu0 0.0
    %2007 = vmatpush1.msra.mxu0 0.0
    %2008 = vmatprep.subr.mxu0 0.0
    %2009 = vmatpush1.msra.mxu0 0.0
    %2010 = vmatprep.subr.mxu0 0.0
    %2011 = vmatpush1.msra.mxu0 0.0
    %2012 = vmatprep.subr.mxu0 0.0
    %2013 = vmatpush1.msra.mxu0 %v1984
    %2014 = vmatprep.subr.mxu0 0.0
    %2015 = vmatpush1.msra.mxu0 %v1970
    %2016 = vmatprep.subr.mxu0 0.0
    %2017 = vmatpush1.msra.mxu0 %v1968
    %2018 = vmatprep.subr.mxu0 0.0
    %2019 = vmatpush2.msra.mxu0 0.0
    %2020 = vmatprep.subr.mxu0 0.0
    %2021 = vmatpush2.msra.mxu0 0.0
    %2022 = vmatprep.subr.mxu0 0.0
    %2023 = vmatpush2.msra.mxu0 0.0
    %2024 = vmatprep.subr.mxu0 0.0
    %2025 = vmatpush2.msra.mxu0 0.0
    %2026 = vmatprep.subr.mxu0 0.0
    %2027 = vmatpush2.msra.mxu0 0.0
    %2028 = vmatprep.subr.mxu0 0.0
    %2029 = vmatpush2.msra.mxu0 0.0
    %2030 = vmatprep.subr.mxu0 0.0
    %2031 = vmatpush2.msra.mxu0 0.0
    %2032 = vmatprep.subr.mxu0 0.0
    %2033 = vmatpush2.msra.mxu0 0.0
    %2034 = vmatprep.subr.mxu0 0.0
    %2035 = vmatpush2.msra.mxu0 0.0
    %2036 = vmatprep.subr.mxu0 0.0
    %2037 = vmatpush2.msra.mxu0 0.0
    %2038 = vmatprep.subr.mxu0 0.0
    %2039 = vmatpush2.msra.mxu0 0.0
    %2040 = vmatprep.subr.mxu0 0.0
    %2041 = vmatpush2.msra.mxu0 0.0
    %2042 = vmatprep.subr.mxu0 0.0
    %2043 = vmatpush2.msra.mxu0 0.0
    %2044 = vmatprep.subr.mxu0 0.0
    %2045 = vmatpush2.msra.mxu0 0.0
    %2046 = vmatprep.subr.mxu0 0.0
    %2047 = vmatpush2.msra.mxu0 0.0
    %2048 = vmatprep.subr.mxu0 0.0
    %2049 = vmatpush2.msra.mxu0 0.0
    %2050 = vmatprep.mubr.f32.mxu0 0.0
    %2051 = vmatmul.mubr.f32.gmra.mxu0 %v1976
    %v2052 = vpop.f32.mrf.mxu0
    %v2053 = vadd.f32 0.0, %v2052
    %v2054 = vpop.f32.mrf.mxu0
    %2055 = vmatprep.mubr.f32.mxu0 0.0
    %2056 = vmatmul.mubr.f32.gmra.mxu0 %v1979
    %v2057 = vpop.f32.mrf.mxu0
    %v2058 = vadd.f32 0.0, %v2057
    %v2059 = vpop.f32.mrf.mxu0
    %2060 = vmatprep.mubr.f32.mxu0 0.0
    %2061 = vmatmul.mubr.f32.gmra.mxu0 %v1982
    %v2062 = vpop.f32.mrf.mxu0
    %v2063 = vadd.f32 0.0, %v2062
    %v2064 = vpop.f32.mrf.mxu0
    %2065 = vdwg.mxu0
    %2066 = vrot.lane.b32.xlu0 %v370, 100
    %v2067 = vpop.permute.xlu0 %2066
    %2068 = vrot.lane.b32.xlu0 %v375, 100
    %v2069 = vpop.permute.xlu0 %2068
    %2070 = vrot.lane.b32.xlu0 %v380, 100
    %v2071 = vpop.permute.xlu0 %2070
    %2072 = vrot.lane.b32.xlu0 %v370, 68
    %v2073 = vpop.permute.xlu0 %2072
    %2074 = vrot.lane.b32.xlu0 %v375, 68
    %v2075 = vpop.permute.xlu0 %2074
    %2076 = vrot.lane.b32.xlu0 %v380, 68
    %v2077 = vpop.permute.xlu0 %2076
    %v2078 = vsel %vm402, %v2067, 0
    %v2080 = vsel %vm402, %v2069, 0
    %v2082 = vsel %vm402, %v2071, 0
    %v2084 = vsel %vm402, %v2073, 0
    %v2086 = vsel %vm402, %v2075, 0
    %v2088 = vsel %vm402, %v2077, 0
    %2090 = vmatprep.subr.mxu0 0.0
    %2091 = vmatpush1.xpose.msra.mxu0 0.0
    %2092 = vmatprep.subr.mxu0 0.0
    %2093 = vmatpush1.xpose.msra.mxu0 0.0
    %2094 = vmatprep.subr.mxu0 0.0
    %2095 = vmatpush1.xpose.msra.mxu0 0.0
    %2096 = vmatprep.subr.mxu0 0.0
    %2097 = vmatpush1.xpose.msra.mxu0 0.0
    %2098 = vmatprep.subr.mxu0 0.0
    %2099 = vmatpush1.xpose.msra.mxu0 0.0
    %2100 = vmatprep.subr.mxu0 0.0
    %2101 = vmatpush1.xpose.msra.mxu0 0.0
    %2102 = vmatprep.subr.mxu0 0.0
    %2103 = vmatpush1.xpose.msra.mxu0 0.0
    %2104 = vmatprep.subr.mxu0 0.0
    %2105 = vmatpush1.xpose.msra.mxu0 0.0
    %2106 = vmatprep.subr.mxu0 0.0
    %2107 = vmatpush1.xpose.msra.mxu0 0.0
    %2108 = vmatprep.subr.mxu0 0.0
    %2109 = vmatpush1.xpose.msra.mxu0 0.0
    %2110 = vmatprep.subr.mxu0 0.0
    %2111 = vmatpush1.xpose.msra.mxu0 0.0
    %2112 = vmatprep.subr.mxu0 0.0
    %2113 = vmatpush1.xpose.msra.mxu0 0.0
    %2114 = vmatprep.subr.mxu0 0.0
    %2115 = vmatpush1.xpose.msra.mxu0 0.0
    %2116 = vmatprep.subr.mxu0 0.0
    %2117 = vmatpush1.xpose.msra.mxu0 %v2088
    %2118 = vmatprep.subr.mxu0 0.0
    %2119 = vmatpush1.xpose.msra.mxu0 %v2086
    %2120 = vmatprep.subr.mxu0 0.0
    %2121 = vmatpush1.xpose.msra.mxu0 %v2084
    %2122 = vmatprep.subr.mxu0 0.0
    %2123 = vmatpush2.xpose.msra.mxu0 0.0
    %2124 = vmatprep.subr.mxu0 0.0
    %2125 = vmatpush2.xpose.msra.mxu0 0.0
    %2126 = vmatprep.subr.mxu0 0.0
    %2127 = vmatpush2.xpose.msra.mxu0 0.0
    %2128 = vmatprep.subr.mxu0 0.0
    %2129 = vmatpush2.xpose.msra.mxu0 0.0
    %2130 = vmatprep.subr.mxu0 0.0
    %2131 = vmatpush2.xpose.msra.mxu0 0.0
    %2132 = vmatprep.subr.mxu0 0.0
    %2133 = vmatpush2.xpose.msra.mxu0 0.0
    %2134 = vmatprep.subr.mxu0 0.0
    %2135 = vmatpush2.xpose.msra.mxu0 0.0
    %2136 = vmatprep.subr.mxu0 0.0
    %2137 = vmatpush2.xpose.msra.mxu0 0.0
    %2138 = vmatprep.subr.mxu0 0.0
    %2139 = vmatpush2.xpose.msra.mxu0 0.0
    %2140 = vmatprep.subr.mxu0 0.0
    %2141 = vmatpush2.xpose.msra.mxu0 0.0
    %2142 = vmatprep.subr.mxu0 0.0
    %2143 = vmatpush2.xpose.msra.mxu0 0.0
    %2144 = vmatprep.subr.mxu0 0.0
    %2145 = vmatpush2.xpose.msra.mxu0 0.0
    %2146 = vmatprep.subr.mxu0 0.0
    %2147 = vmatpush2.xpose.msra.mxu0 0.0
    %2148 = vmatprep.subr.mxu0 0.0
    %2149 = vmatpush2.xpose.msra.mxu0 0.0
    %2150 = vmatprep.subr.mxu0 0.0
    %2151 = vmatpush2.xpose.msra.mxu0 0.0
    %2152 = vmatprep.subr.mxu0 0.0
    %2153 = vmatpush2.xpose.msra.mxu0 0.0
    %2154 = vmatprep.mubr.f32.mxu0 0.0
    %2155 = vmatmul.mubr.f32.gmra.mxu0 %v2078
    %v2156 = vpop.f32.mrf.mxu0
    %v2157 = vadd.f32 0.0, %v2156
    %v2158 = vpop.f32.mrf.mxu0
    %2159 = vmatprep.mubr.f32.mxu0 0.0
    %2160 = vmatmul.mubr.f32.gmra.mxu0 %v2080
    %v2161 = vpop.f32.mrf.mxu0
    %v2162 = vadd.f32 0.0, %v2161
    %v2163 = vpop.f32.mrf.mxu0
    %2164 = vmatprep.mubr.f32.mxu0 0.0
    %2165 = vmatmul.mubr.f32.gmra.mxu0 %v2082
    %v2166 = vpop.f32.mrf.mxu0
    %v2167 = vadd.f32 0.0, %v2166
    %v2168 = vpop.f32.mrf.mxu0
    %2169 = vdwg.mxu0
    %v2170 = vmul.f32 %v2157, 0.5
    %v2171 = vmul.f32 %v2162, 0.5
    %v2172 = vmul.f32 %v2167, 0.5
    %v2173 = vsel %vm498, %v2170, -inf
    %2174 = vmax.xlane.f32.xlu0 %v2173
    %v2175 = vpop.xlane.xlu0 %2174
    %v2176 = vsel %vm498, %v2171, -inf
    %2177 = vmax.xlane.f32.xlu0 %v2176
    %v2178 = vpop.xlane.xlu0 %2177
    %v2179 = vsel %vm505, %v2172, -inf
    %2180 = vmax.xlane.f32.xlu0 %v2179
    %v2181 = vpop.xlane.xlu0 %2180
    %v2182 = vsub.f32 %v2170, %v2175
    %v2183 = vsub.f32 %v2171, %v2178
    %v2184 = vsub.f32 %v2172, %v2181
    %v2185 = vmul.f32 %v2182, 1.442695
    %v2186 = vpow.pop %v2185
    %v2187 = vmul.f32 %v2183, 1.442695
    %v2188 = vpow.pop %v2187
    %v2189 = vmul.f32 %v2184, 1.442695
    %v2190 = vpow.pop %v2189
    %v2191 = vsel %vm498, %v2186, 0.0
    %2192 = vadd.xlane.f32.xlu0 %v2191
    %v2193 = vpop.xlane.xlu0 %2192
    %v2194 = vsel %vm498, %v2188, 0.0
    %2195 = vadd.xlane.f32.xlu0 %v2194
    %v2196 = vpop.xlane.xlu0 %2195
    %v2197 = vsel %vm505, %v2190, 0.0
    %2198 = vadd.xlane.f32.xlu0 %v2197
    %v2199 = vpop.xlane.xlu0 %2198
    %v2200 = vrcp.pop %v2193
    %v2201 = vmul.f32 %v2186, %v2200
    %v2202 = vrcp.pop %v2196
    %v2203 = vmul.f32 %v2188, %v2202
    %v2204 = vrcp.pop %v2199
    %v2205 = vmul.f32 %v2190, %v2204
    %2206 = vrot.lane.b32.xlu0 %v370, 36
    %v2207 = vpop.permute.xlu0 %2206
    %2208 = vrot.lane.b32.xlu0 %v375, 36
    %v2209 = vpop.permute.xlu0 %2208
    %2210 = vrot.lane.b32.xlu0 %v380, 36
    %v2211 = vpop.permute.xlu0 %2210
    %v2215 = vsel %vm498, %v2201, 0
    %v2218 = vsel %vm498, %v2203, 0
    %v2221 = vsel %vm498, %v2205, 0
    %v2223 = vsel %vm68, %v2211, 0
    %2225 = vmatprep.subr.mxu0 0.0
    %2226 = vmatpush1.msra.mxu0 0.0
    %2227 = vmatprep.subr.mxu0 0.0
    %2228 = vmatpush1.msra.mxu0 0.0
    %2229 = vmatprep.subr.mxu0 0.0
    %2230 = vmatpush1.msra.mxu0 0.0
    %2231 = vmatprep.subr.mxu0 0.0
    %2232 = vmatpush1.msra.mxu0 0.0
    %2233 = vmatprep.subr.mxu0 0.0
    %2234 = vmatpush1.msra.mxu0 0.0
    %2235 = vmatprep.subr.mxu0 0.0
    %2236 = vmatpush1.msra.mxu0 0.0
    %2237 = vmatprep.subr.mxu0 0.0
    %2238 = vmatpush1.msra.mxu0 0.0
    %2239 = vmatprep.subr.mxu0 0.0
    %2240 = vmatpush1.msra.mxu0 0.0
    %2241 = vmatprep.subr.mxu0 0.0
    %2242 = vmatpush1.msra.mxu0 0.0
    %2243 = vmatprep.subr.mxu0 0.0
    %2244 = vmatpush1.msra.mxu0 0.0
    %2245 = vmatprep.subr.mxu0 0.0
    %2246 = vmatpush1.msra.mxu0 0.0
    %2247 = vmatprep.subr.mxu0 0.0
    %2248 = vmatpush1.msra.mxu0 0.0
    %2249 = vmatprep.subr.mxu0 0.0
    %2250 = vmatpush1.msra.mxu0 0.0
    %2251 = vmatprep.subr.mxu0 0.0
    %2252 = vmatpush1.msra.mxu0 %v2223
    %2253 = vmatprep.subr.mxu0 0.0
    %2254 = vmatpush1.msra.mxu0 %v2209
    %2255 = vmatprep.subr.mxu0 0.0
    %2256 = vmatpush1.msra.mxu0 %v2207
    %2257 = vmatprep.subr.mxu0 0.0
    %2258 = vmatpush2.msra.mxu0 0.0
    %2259 = vmatprep.subr.mxu0 0.0
    %2260 = vmatpush2.msra.mxu0 0.0
    %2261 = vmatprep.subr.mxu0 0.0
    %2262 = vmatpush2.msra.mxu0 0.0
    %2263 = vmatprep.subr.mxu0 0.0
    %2264 = vmatpush2.msra.mxu0 0.0
    %2265 = vmatprep.subr.mxu0 0.0
    %2266 = vmatpush2.msra.mxu0 0.0
    %2267 = vmatprep.subr.mxu0 0.0
    %2268 = vmatpush2.msra.mxu0 0.0
    %2269 = vmatprep.subr.mxu0 0.0
    %2270 = vmatpush2.msra.mxu0 0.0
    %2271 = vmatprep.subr.mxu0 0.0
    %2272 = vmatpush2.msra.mxu0 0.0
    %2273 = vmatprep.subr.mxu0 0.0
    %2274 = vmatpush2.msra.mxu0 0.0
    %2275 = vmatprep.subr.mxu0 0.0
    %2276 = vmatpush2.msra.mxu0 0.0
    %2277 = vmatprep.subr.mxu0 0.0
    %2278 = vmatpush2.msra.mxu0 0.0
    %2279 = vmatprep.subr.mxu0 0.0
    %2280 = vmatpush2.msra.mxu0 0.0
    %2281 = vmatprep.subr.mxu0 0.0
    %2282 = vmatpush2.msra.mxu0 0.0
    %2283 = vmatprep.subr.mxu0 0.0
    %2284 = vmatpush2.msra.mxu0 0.0
    %2285 = vmatprep.subr.mxu0 0.0
    %2286 = vmatpush2.msra.mxu0 0.0
    %2287 = vmatprep.subr.mxu0 0.0
    %2288 = vmatpush2.msra.mxu0 0.0
    %2289 = vmatprep.mubr.f32.mxu0 0.0
    %2290 = vmatmul.mubr.f32.gmra.mxu0 %v2215
    %v2291 = vpop.f32.mrf.mxu0
    %v2292 = vadd.f32 0.0, %v2291
    %v2293 = vpop.f32.mrf.mxu0
    %2294 = vmatprep.mubr.f32.mxu0 0.0
    %2295 = vmatmul.mubr.f32.gmra.mxu0 %v2218
    %v2296 = vpop.f32.mrf.mxu0
    %v2297 = vadd.f32 0.0, %v2296
    %v2298 = vpop.f32.mrf.mxu0
    %2299 = vmatprep.mubr.f32.mxu0 0.0
    %2300 = vmatmul.mubr.f32.gmra.mxu0 %v2221
    %v2301 = vpop.f32.mrf.mxu0
    %v2302 = vadd.f32 0.0, %v2301
    %v2303 = vpop.f32.mrf.mxu0
    %2304 = vdwg.mxu0
    %2308 = vrot.lane.b32.xlu0 %v858, 4
    %v2309 = vpop.permute.xlu0 %2308
    %2310 = vrot.lane.b32.xlu0 %v863, 4
    %v2311 = vpop.permute.xlu0 %2310
    %2312 = vrot.lane.b32.xlu0 %v868, 4
    %v2313 = vpop.permute.xlu0 %2312
    %2320 = vrot.lane.b32.xlu0 %v1097, 8
    %v2321 = vpop.permute.xlu0 %2320
    %2322 = vrot.lane.b32.xlu0 %v1102, 8
    %v2323 = vpop.permute.xlu0 %2322
    %2324 = vrot.lane.b32.xlu0 %v1107, 8
    %v2325 = vpop.permute.xlu0 %2324
    %2332 = vrot.lane.b32.xlu0 %v1336, 12
    %v2333 = vpop.permute.xlu0 %2332
    %2334 = vrot.lane.b32.xlu0 %v1341, 12
    %v2335 = vpop.permute.xlu0 %2334
    %2336 = vrot.lane.b32.xlu0 %v1346, 12
    %v2337 = vpop.permute.xlu0 %2336
    %2344 = vrot.lane.b32.xlu0 %v1575, 16
    %v2345 = vpop.permute.xlu0 %2344
    %2346 = vrot.lane.b32.xlu0 %v1580, 16
    %v2347 = vpop.permute.xlu0 %2346
    %2348 = vrot.lane.b32.xlu0 %v1585, 16
    %v2349 = vpop.permute.xlu0 %2348
    %2356 = vrot.lane.b32.xlu0 %v1814, 20
    %v2357 = vpop.permute.xlu0 %2356
    %2358 = vrot.lane.b32.xlu0 %v1819, 20
    %v2359 = vpop.permute.xlu0 %2358
    %2360 = vrot.lane.b32.xlu0 %v1824, 20
    %v2361 = vpop.permute.xlu0 %2360
    %2368 = vrot.lane.b32.xlu0 %v2053, 24
    %v2369 = vpop.permute.xlu0 %2368
    %2370 = vrot.lane.b32.xlu0 %v2058, 24
    %v2371 = vpop.permute.xlu0 %2370
    %2372 = vrot.lane.b32.xlu0 %v2063, 24
    %v2373 = vpop.permute.xlu0 %2372
    %2380 = vrot.lane.b32.xlu0 %v2292, 28
    %v2381 = vpop.permute.xlu0 %2380
    %2382 = vrot.lane.b32.xlu0 %v2297, 28
    %v2383 = vpop.permute.xlu0 %2382
    %2384 = vrot.lane.b32.xlu0 %v2302, 28
    %v2385 = vpop.permute.xlu0 %2384
    %v2389 = vsel %vm402, %v619, %v2309
    %v2390 = vsel %vm402, %v624, %v2311
    %v2391 = vsel %vm402, %v629, %v2313
    %vm2392 = vcmask 64512
    %v2393 = vsel %vm2392, %v2389, %v2321
    %v2394 = vsel %vm2392, %v2390, %v2323
    %v2395 = vsel %vm2392, %v2391, %v2325
    %vm2396 = vcmask 97280
    %v2397 = vsel %vm2396, %v2393, %v2333
    %v2398 = vsel %vm2396, %v2394, %v2335
    %v2399 = vsel %vm2396, %v2395, %v2337
    %vm2400 = vcmask 130048
    %v2401 = vsel %vm2400, %v2397, %v2345
    %v2402 = vsel %vm2400, %v2398, %v2347
    %v2403 = vsel %vm2400, %v2399, %v2349
    %vm2404 = vcmask 162816
    %v2405 = vsel %vm2404, %v2401, %v2357
    %v2406 = vsel %vm2404, %v2402, %v2359
    %v2407 = vsel %vm2404, %v2403, %v2361
    %vm2408 = vcmask 195584
    %v2409 = vsel %vm2408, %v2405, %v2369
    %v2410 = vsel %vm2408, %v2406, %v2371
    %v2411 = vsel %vm2408, %v2407, %v2373
    %vm2412 = vcmask 228352
    %v2413 = vsel %vm2412, %v2409, %v2381
    %v2414 = vsel %vm2412, %v2410, %v2383
    %v2415 = vsel %vm2412, %v2411, %v2385
    %vm2418 = vcmask 1046528
    %v2419 = vrot.slane %v380, 1
    %v2420 = vrot.slane %v385, 1
    %v2421 = vsel %vm2418, %v2419, %v2420
    %v2422 = vrot.slane %v390, 1
    %v2423 = vsel %vm2418, %v2420, %v2422
    %2424 = vrot.lane.b32.xlu0 %v2421, 96
    %v2425 = vpop.permute.xlu0 %2424
    %2426 = vrot.lane.b32.xlu0 %v2423, 96
    %v2427 = vpop.permute.xlu0 %2426
    %2428 = vrot.lane.b32.xlu0 %v2422, 96
    %v2429 = vpop.permute.xlu0 %2428
    %v2430 = vsel %vm402, %v2421, 0
    %v2432 = vsel %vm402, %v2423, 0
    %v2434 = vsel %vm402, %v2422, 0
    %v2436 = vsel %vm402, %v2425, 0
    %v2438 = vsel %vm402, %v2427, 0
    %v2440 = vsel %vm402, %v2429, 0
    %2442 = vmatprep.subr.mxu0 0.0
    %2443 = vmatpush1.xpose.msra.mxu0 0.0
    %2444 = vmatprep.subr.mxu0 0.0
    %2445 = vmatpush1.xpose.msra.mxu0 0.0
    %2446 = vmatprep.subr.mxu0 0.0
    %2447 = vmatpush1.xpose.msra.mxu0 0.0
    %2448 = vmatprep.subr.mxu0 0.0
    %2449 = vmatpush1.xpose.msra.mxu0 0.0
    %2450 = vmatprep.subr.mxu0 0.0
    %2451 = vmatpush1.xpose.msra.mxu0 0.0
    %2452 = vmatprep.subr.mxu0 0.0
    %2453 = vmatpush1.xpose.msra.mxu0 0.0
    %2454 = vmatprep.subr.mxu0 0.0
    %2455 = vmatpush1.xpose.msra.mxu0 0.0
    %2456 = vmatprep.subr.mxu0 0.0
    %2457 = vmatpush1.xpose.msra.mxu0 0.0
    %2458 = vmatprep.subr.mxu0 0.0
    %2459 = vmatpush1.xpose.msra.mxu0 0.0
    %2460 = vmatprep.subr.mxu0 0.0
    %2461 = vmatpush1.xpose.msra.mxu0 0.0
    %2462 = vmatprep.subr.mxu0 0.0
    %2463 = vmatpush1.xpose.msra.mxu0 0.0
    %2464 = vmatprep.subr.mxu0 0.0
    %2465 = vmatpush1.xpose.msra.mxu0 0.0
    %2466 = vmatprep.subr.mxu0 0.0
    %2467 = vmatpush1.xpose.msra.mxu0 0.0
    %2468 = vmatprep.subr.mxu0 0.0
    %2469 = vmatpush1.xpose.msra.mxu0 %v2440
    %2470 = vmatprep.subr.mxu0 0.0
    %2471 = vmatpush1.xpose.msra.mxu0 %v2438
    %2472 = vmatprep.subr.mxu0 0.0
    %2473 = vmatpush1.xpose.msra.mxu0 %v2436
    %2474 = vmatprep.subr.mxu0 0.0
    %2475 = vmatpush2.xpose.msra.mxu0 0.0
    %2476 = vmatprep.subr.mxu0 0.0
    %2477 = vmatpush2.xpose.msra.mxu0 0.0
    %2478 = vmatprep.subr.mxu0 0.0
    %2479 = vmatpush2.xpose.msra.mxu0 0.0
    %2480 = vmatprep.subr.mxu0 0.0
    %2481 = vmatpush2.xpose.msra.mxu0 0.0
    %2482 = vmatprep.subr.mxu0 0.0
    %2483 = vmatpush2.xpose.msra.mxu0 0.0
    %2484 = vmatprep.subr.mxu0 0.0
    %2485 = vmatpush2.xpose.msra.mxu0 0.0
    %2486 = vmatprep.subr.mxu0 0.0
    %2487 = vmatpush2.xpose.msra.mxu0 0.0
    %2488 = vmatprep.subr.mxu0 0.0
    %2489 = vmatpush2.xpose.msra.mxu0 0.0
    %2490 = vmatprep.subr.mxu0 0.0
    %2491 = vmatpush2.xpose.msra.mxu0 0.0
    %2492 = vmatprep.subr.mxu0 0.0
    %2493 = vmatpush2.xpose.msra.mxu0 0.0
    %2494 = vmatprep.subr.mxu0 0.0
    %2495 = vmatpush2.xpose.msra.mxu0 0.0
    %2496 = vmatprep.subr.mxu0 0.0
    %2497 = vmatpush2.xpose.msra.mxu0 0.0
    %2498 = vmatprep.subr.mxu0 0.0
    %2499 = vmatpush2.xpose.msra.mxu0 0.0
    %2500 = vmatprep.subr.mxu0 0.0
    %2501 = vmatpush2.xpose.msra.mxu0 0.0
    %2502 = vmatprep.subr.mxu0 0.0
    %2503 = vmatpush2.xpose.msra.mxu0 0.0
    %2504 = vmatprep.subr.mxu0 0.0
    %2505 = vmatpush2.xpose.msra.mxu0 0.0
    %2506 = vmatprep.mubr.f32.mxu0 0.0
    %2507 = vmatmul.mubr.f32.gmra.mxu0 %v2430
    %v2508 = vpop.f32.mrf.mxu0
    %v2509 = vadd.f32 0.0, %v2508
    %v2510 = vpop.f32.mrf.mxu0
    %2511 = vmatprep.mubr.f32.mxu0 0.0
    %2512 = vmatmul.mubr.f32.gmra.mxu0 %v2432
    %v2513 = vpop.f32.mrf.mxu0
    %v2514 = vadd.f32 0.0, %v2513
    %v2515 = vpop.f32.mrf.mxu0
    %2516 = vmatprep.mubr.f32.mxu0 0.0
    %2517 = vmatmul.mubr.f32.gmra.mxu0 %v2434
    %v2518 = vpop.f32.mrf.mxu0
    %v2519 = vadd.f32 0.0, %v2518
    %v2520 = vpop.f32.mrf.mxu0
    %2521 = vdwg.mxu0
    %v2522 = vmul.f32 %v2509, 0.5
    %v2523 = vmul.f32 %v2514, 0.5
    %v2524 = vmul.f32 %v2519, 0.5
    %v2525 = vsel %vm498, %v2522, -inf
    %2526 = vmax.xlane.f32.xlu0 %v2525
    %v2527 = vpop.xlane.xlu0 %2526
    %v2528 = vsel %vm498, %v2523, -inf
    %2529 = vmax.xlane.f32.xlu0 %v2528
    %v2530 = vpop.xlane.xlu0 %2529
    %v2531 = vsel %vm505, %v2524, -inf
    %2532 = vmax.xlane.f32.xlu0 %v2531
    %v2533 = vpop.xlane.xlu0 %2532
    %v2534 = vsub.f32 %v2522, %v2527
    %v2535 = vsub.f32 %v2523, %v2530
    %v2536 = vsub.f32 %v2524, %v2533
    %v2537 = vmul.f32 %v2534, 1.442695
    %v2538 = vpow.pop %v2537
    %v2539 = vmul.f32 %v2535, 1.442695
    %v2540 = vpow.pop %v2539
    %v2541 = vmul.f32 %v2536, 1.442695
    %v2542 = vpow.pop %v2541
    %v2543 = vsel %vm498, %v2538, 0.0
    %2544 = vadd.xlane.f32.xlu0 %v2543
    %v2545 = vpop.xlane.xlu0 %2544
    %v2546 = vsel %vm498, %v2540, 0.0
    %2547 = vadd.xlane.f32.xlu0 %v2546
    %v2548 = vpop.xlane.xlu0 %2547
    %v2549 = vsel %vm505, %v2542, 0.0
    %2550 = vadd.xlane.f32.xlu0 %v2549
    %v2551 = vpop.xlane.xlu0 %2550
    %v2552 = vrcp.pop %v2545
    %v2553 = vmul.f32 %v2538, %v2552
    %v2554 = vrcp.pop %v2548
    %v2555 = vmul.f32 %v2540, %v2554
    %v2556 = vrcp.pop %v2551
    %v2557 = vmul.f32 %v2542, %v2556
    %2558 = vrot.lane.b32.xlu0 %v2421, 64
    %v2559 = vpop.permute.xlu0 %2558
    %2560 = vrot.lane.b32.xlu0 %v2423, 64
    %v2561 = vpop.permute.xlu0 %2560
    %2562 = vrot.lane.b32.xlu0 %v2422, 64
    %v2563 = vpop.permute.xlu0 %2562
    %v2567 = vsel %vm498, %v2553, 0
    %v2570 = vsel %vm498, %v2555, 0
    %v2573 = vsel %vm498, %v2557, 0
    %v2575 = vsel %vm68, %v2563, 0
    %2577 = vmatprep.subr.mxu0 0.0
    %2578 = vmatpush1.msra.mxu0 0.0
    %2579 = vmatprep.subr.mxu0 0.0
    %2580 = vmatpush1.msra.mxu0 0.0
    %2581 = vmatprep.subr.mxu0 0.0
    %2582 = vmatpush1.msra.mxu0 0.0
    %2583 = vmatprep.subr.mxu0 0.0
    %2584 = vmatpush1.msra.mxu0 0.0
    %2585 = vmatprep.subr.mxu0 0.0
    %2586 = vmatpush1.msra.mxu0 0.0
    %2587 = vmatprep.subr.mxu0 0.0
    %2588 = vmatpush1.msra.mxu0 0.0
    %2589 = vmatprep.subr.mxu0 0.0
    %2590 = vmatpush1.msra.mxu0 0.0
    %2591 = vmatprep.subr.mxu0 0.0
    %2592 = vmatpush1.msra.mxu0 0.0
    %2593 = vmatprep.subr.mxu0 0.0
    %2594 = vmatpush1.msra.mxu0 0.0
    %2595 = vmatprep.subr.mxu0 0.0
    %2596 = vmatpush1.msra.mxu0 0.0
    %2597 = vmatprep.subr.mxu0 0.0
    %2598 = vmatpush1.msra.mxu0 0.0
    %2599 = vmatprep.subr.mxu0 0.0
    %2600 = vmatpush1.msra.mxu0 0.0
    %2601 = vmatprep.subr.mxu0 0.0
    %2602 = vmatpush1.msra.mxu0 0.0
    %2603 = vmatprep.subr.mxu0 0.0
    %2604 = vmatpush1.msra.mxu0 %v2575
    %2605 = vmatprep.subr.mxu0 0.0
    %2606 = vmatpush1.msra.mxu0 %v2561
    %2607 = vmatprep.subr.mxu0 0.0
    %2608 = vmatpush1.msra.mxu0 %v2559
    %2609 = vmatprep.subr.mxu0 0.0
    %2610 = vmatpush2.msra.mxu0 0.0
    %2611 = vmatprep.subr.mxu0 0.0
    %2612 = vmatpush2.msra.mxu0 0.0
    %2613 = vmatprep.subr.mxu0 0.0
    %2614 = vmatpush2.msra.mxu0 0.0
    %2615 = vmatprep.subr.mxu0 0.0
    %2616 = vmatpush2.msra.mxu0 0.0
    %2617 = vmatprep.subr.mxu0 0.0
    %2618 = vmatpush2.msra.mxu0 0.0
    %2619 = vmatprep.subr.mxu0 0.0
    %2620 = vmatpush2.msra.mxu0 0.0
    %2621 = vmatprep.subr.mxu0 0.0
    %2622 = vmatpush2.msra.mxu0 0.0
    %2623 = vmatprep.subr.mxu0 0.0
    %2624 = vmatpush2.msra.mxu0 0.0
    %2625 = vmatprep.subr.mxu0 0.0
    %2626 = vmatpush2.msra.mxu0 0.0
    %2627 = vmatprep.subr.mxu0 0.0
    %2628 = vmatpush2.msra.mxu0 0.0
    %2629 = vmatprep.subr.mxu0 0.0
    %2630 = vmatpush2.msra.mxu0 0.0
    %2631 = vmatprep.subr.mxu0 0.0
    %2632 = vmatpush2.msra.mxu0 0.0
    %2633 = vmatprep.subr.mxu0 0.0
    %2634 = vmatpush2.msra.mxu0 0.0
    %2635 = vmatprep.subr.mxu0 0.0
    %2636 = vmatpush2.msra.mxu0 0.0
    %2637 = vmatprep.subr.mxu0 0.0
    %2638 = vmatpush2.msra.mxu0 0.0
    %2639 = vmatprep.subr.mxu0 0.0
    %2640 = vmatpush2.msra.mxu0 0.0
    %2641 = vmatprep.mubr.f32.mxu0 0.0
    %2642 = vmatmul.mubr.f32.gmra.mxu0 %v2567
    %v2643 = vpop.f32.mrf.mxu0
    %v2644 = vadd.f32 0.0, %v2643
    %v2645 = vpop.f32.mrf.mxu0
    %2646 = vmatprep.mubr.f32.mxu0 0.0
    %2647 = vmatmul.mubr.f32.gmra.mxu0 %v2570
    %v2648 = vpop.f32.mrf.mxu0
    %v2649 = vadd.f32 0.0, %v2648
    %v2650 = vpop.f32.mrf.mxu0
    %2651 = vmatprep.mubr.f32.mxu0 0.0
    %2652 = vmatmul.mubr.f32.gmra.mxu0 %v2573
    %v2653 = vpop.f32.mrf.mxu0
    %v2654 = vadd.f32 0.0, %v2653
    %v2655 = vpop.f32.mrf.mxu0
    %2656 = vdwg.mxu0
    %2657 = vrot.lane.b32.xlu0 %v2421, 124
    %v2658 = vpop.permute.xlu0 %2657
    %2659 = vrot.lane.b32.xlu0 %v2423, 124
    %v2660 = vpop.permute.xlu0 %2659
    %2661 = vrot.lane.b32.xlu0 %v2422, 124
    %v2662 = vpop.permute.xlu0 %2661
    %2663 = vrot.lane.b32.xlu0 %v2421, 92
    %v2664 = vpop.permute.xlu0 %2663
    %2665 = vrot.lane.b32.xlu0 %v2423, 92
    %v2666 = vpop.permute.xlu0 %2665
    %2667 = vrot.lane.b32.xlu0 %v2422, 92
    %v2668 = vpop.permute.xlu0 %2667
    %v2669 = vsel %vm402, %v2658, 0
    %v2671 = vsel %vm402, %v2660, 0
    %v2673 = vsel %vm402, %v2662, 0
    %v2675 = vsel %vm402, %v2664, 0
    %v2677 = vsel %vm402, %v2666, 0
    %v2679 = vsel %vm402, %v2668, 0
    %2681 = vmatprep.subr.mxu0 0.0
    %2682 = vmatpush1.xpose.msra.mxu0 0.0
    %2683 = vmatprep.subr.mxu0 0.0
    %2684 = vmatpush1.xpose.msra.mxu0 0.0
    %2685 = vmatprep.subr.mxu0 0.0
    %2686 = vmatpush1.xpose.msra.mxu0 0.0
    %2687 = vmatprep.subr.mxu0 0.0
    %2688 = vmatpush1.xpose.msra.mxu0 0.0
    %2689 = vmatprep.subr.mxu0 0.0
    %2690 = vmatpush1.xpose.msra.mxu0 0.0
    %2691 = vmatprep.subr.mxu0 0.0
    %2692 = vmatpush1.xpose.msra.mxu0 0.0
    %2693 = vmatprep.subr.mxu0 0.0
    %2694 = vmatpush1.xpose.msra.mxu0 0.0
    %2695 = vmatprep.subr.mxu0 0.0
    %2696 = vmatpush1.xpose.msra.mxu0 0.0
    %2697 = vmatprep.subr.mxu0 0.0
    %2698 = vmatpush1.xpose.msra.mxu0 0.0
    %2699 = vmatprep.subr.mxu0 0.0
    %2700 = vmatpush1.xpose.msra.mxu0 0.0
    %2701 = vmatprep.subr.mxu0 0.0
    %2702 = vmatpush1.xpose.msra.mxu0 0.0
    %2703 = vmatprep.subr.mxu0 0.0
    %2704 = vmatpush1.xpose.msra.mxu0 0.0
    %2705 = vmatprep.subr.mxu0 0.0
    %2706 = vmatpush1.xpose.msra.mxu0 0.0
    %2707 = vmatprep.subr.mxu0 0.0
    %2708 = vmatpush1.xpose.msra.mxu0 %v2679
    %2709 = vmatprep.subr.mxu0 0.0
    %2710 = vmatpush1.xpose.msra.mxu0 %v2677
    %2711 = vmatprep.subr.mxu0 0.0
    %2712 = vmatpush1.xpose.msra.mxu0 %v2675
    %2713 = vmatprep.subr.mxu0 0.0
    %2714 = vmatpush2.xpose.msra.mxu0 0.0
    %2715 = vmatprep.subr.mxu0 0.0
    %2716 = vmatpush2.xpose.msra.mxu0 0.0
    %2717 = vmatprep.subr.mxu0 0.0
    %2718 = vmatpush2.xpose.msra.mxu0 0.0
    %2719 = vmatprep.subr.mxu0 0.0
    %2720 = vmatpush2.xpose.msra.mxu0 0.0
    %2721 = vmatprep.subr.mxu0 0.0
    %2722 = vmatpush2.xpose.msra.mxu0 0.0
    %2723 = vmatprep.subr.mxu0 0.0
    %2724 = vmatpush2.xpose.msra.mxu0 0.0
    %2725 = vmatprep.subr.mxu0 0.0
    %2726 = vmatpush2.xpose.msra.mxu0 0.0
    %2727 = vmatprep.subr.mxu0 0.0
    %2728 = vmatpush2.xpose.msra.mxu0 0.0
    %2729 = vmatprep.subr.mxu0 0.0
    %2730 = vmatpush2.xpose.msra.mxu0 0.0
    %2731 = vmatprep.subr.mxu0 0.0
    %2732 = vmatpush2.xpose.msra.mxu0 0.0
    %2733 = vmatprep.subr.mxu0 0.0
    %2734 = vmatpush2.xpose.msra.mxu0 0.0
    %2735 = vmatprep.subr.mxu0 0.0
    %2736 = vmatpush2.xpose.msra.mxu0 0.0
    %2737 = vmatprep.subr.mxu0 0.0
    %2738 = vmatpush2.xpose.msra.mxu0 0.0
    %2739 = vmatprep.subr.mxu0 0.0
    %2740 = vmatpush2.xpose.msra.mxu0 0.0
    %2741 = vmatprep.subr.mxu0 0.0
    %2742 = vmatpush2.xpose.msra.mxu0 0.0
    %2743 = vmatprep.subr.mxu0 0.0
    %2744 = vmatpush2.xpose.msra.mxu0 0.0
    %2745 = vmatprep.mubr.f32.mxu0 0.0
    %2746 = vmatmul.mubr.f32.gmra.mxu0 %v2669
    %v2747 = vpop.f32.mrf.mxu0
    %v2748 = vadd.f32 0.0, %v2747
    %v2749 = vpop.f32.mrf.mxu0
    %2750 = vmatprep.mubr.f32.mxu0 0.0
    %2751 = vmatmul.mubr.f32.gmra.mxu0 %v2671
    %v2752 = vpop.f32.mrf.mxu0
    %v2753 = vadd.f32 0.0, %v2752
    %v2754 = vpop.f32.mrf.mxu0
    %2755 = vmatprep.mubr.f32.mxu0 0.0
    %2756 = vmatmul.mubr.f32.gmra.mxu0 %v2673
    %v2757 = vpop.f32.mrf.mxu0
    %v2758 = vadd.f32 0.0, %v2757
    %v2759 = vpop.f32.mrf.mxu0
    %2760 = vdwg.mxu0
    %v2761 = vmul.f32 %v2748, 0.5
    %v2762 = vmul.f32 %v2753, 0.5
    %v2763 = vmul.f32 %v2758, 0.5
    %v2764 = vsel %vm498, %v2761, -inf
    %2765 = vmax.xlane.f32.xlu0 %v2764
    %v2766 = vpop.xlane.xlu0 %2765
    %v2767 = vsel %vm498, %v2762, -inf
    %2768 = vmax.xlane.f32.xlu0 %v2767
    %v2769 = vpop.xlane.xlu0 %2768
    %v2770 = vsel %vm505, %v2763, -inf
    %2771 = vmax.xlane.f32.xlu0 %v2770
    %v2772 = vpop.xlane.xlu0 %2771
    %v2773 = vsub.f32 %v2761, %v2766
    %v2774 = vsub.f32 %v2762, %v2769
    %v2775 = vsub.f32 %v2763, %v2772
    %v2776 = vmul.f32 %v2773, 1.442695
    %v2777 = vpow.pop %v2776
    %v2778 = vmul.f32 %v2774, 1.442695
    %v2779 = vpow.pop %v2778
    %v2780 = vmul.f32 %v2775, 1.442695
    %v2781 = vpow.pop %v2780
    %v2782 = vsel %vm498, %v2777, 0.0
    %2783 = vadd.xlane.f32.xlu0 %v2782
    %v2784 = vpop.xlane.xlu0 %2783
    %v2785 = vsel %vm498, %v2779, 0.0
    %2786 = vadd.xlane.f32.xlu0 %v2785
    %v2787 = vpop.xlane.xlu0 %2786
    %v2788 = vsel %vm505, %v2781, 0.0
    %2789 = vadd.xlane.f32.xlu0 %v2788
    %v2790 = vpop.xlane.xlu0 %2789
    %v2791 = vrcp.pop %v2784
    %v2792 = vmul.f32 %v2777, %v2791
    %v2793 = vrcp.pop %v2787
    %v2794 = vmul.f32 %v2779, %v2793
    %v2795 = vrcp.pop %v2790
    %v2796 = vmul.f32 %v2781, %v2795
    %2797 = vrot.lane.b32.xlu0 %v2421, 60
    %v2798 = vpop.permute.xlu0 %2797
    %2799 = vrot.lane.b32.xlu0 %v2423, 60
    %v2800 = vpop.permute.xlu0 %2799
    %2801 = vrot.lane.b32.xlu0 %v2422, 60
    %v2802 = vpop.permute.xlu0 %2801
    %v2806 = vsel %vm498, %v2792, 0
    %v2809 = vsel %vm498, %v2794, 0
    %v2812 = vsel %vm498, %v2796, 0
    %v2814 = vsel %vm68, %v2802, 0
    %2816 = vmatprep.subr.mxu0 0.0
    %2817 = vmatpush1.msra.mxu0 0.0
    %2818 = vmatprep.subr.mxu0 0.0
    %2819 = vmatpush1.msra.mxu0 0.0
    %2820 = vmatprep.subr.mxu0 0.0
    %2821 = vmatpush1.msra.mxu0 0.0
    %2822 = vmatprep.subr.mxu0 0.0
    %2823 = vmatpush1.msra.mxu0 0.0
    %2824 = vmatprep.subr.mxu0 0.0
    %2825 = vmatpush1.msra.mxu0 0.0
    %2826 = vmatprep.subr.mxu0 0.0
    %2827 = vmatpush1.msra.mxu0 0.0
    %2828 = vmatprep.subr.mxu0 0.0
    %2829 = vmatpush1.msra.mxu0 0.0
    %2830 = vmatprep.subr.mxu0 0.0
    %2831 = vmatpush1.msra.mxu0 0.0
    %2832 = vmatprep.subr.mxu0 0.0
    %2833 = vmatpush1.msra.mxu0 0.0
    %2834 = vmatprep.subr.mxu0 0.0
    %2835 = vmatpush1.msra.mxu0 0.0
    %2836 = vmatprep.subr.mxu0 0.0
    %2837 = vmatpush1.msra.mxu0 0.0
    %2838 = vmatprep.subr.mxu0 0.0
    %2839 = vmatpush1.msra.mxu0 0.0
    %2840 = vmatprep.subr.mxu0 0.0
    %2841 = vmatpush1.msra.mxu0 0.0
    %2842 = vmatprep.subr.mxu0 0.0
    %2843 = vmatpush1.msra.mxu0 %v2814
    %2844 = vmatprep.subr.mxu0 0.0
    %2845 = vmatpush1.msra.mxu0 %v2800
    %2846 = vmatprep.subr.mxu0 0.0
    %2847 = vmatpush1.msra.mxu0 %v2798
    %2848 = vmatprep.subr.mxu0 0.0
    %2849 = vmatpush2.msra.mxu0 0.0
    %2850 = vmatprep.subr.mxu0 0.0
    %2851 = vmatpush2.msra.mxu0 0.0
    %2852 = vmatprep.subr.mxu0 0.0
    %2853 = vmatpush2.msra.mxu0 0.0
    %2854 = vmatprep.subr.mxu0 0.0
    %2855 = vmatpush2.msra.mxu0 0.0
    %2856 = vmatprep.subr.mxu0 0.0
    %2857 = vmatpush2.msra.mxu0 0.0
    %2858 = vmatprep.subr.mxu0 0.0
    %2859 = vmatpush2.msra.mxu0 0.0
    %2860 = vmatprep.subr.mxu0 0.0
    %2861 = vmatpush2.msra.mxu0 0.0
    %2862 = vmatprep.subr.mxu0 0.0
    %2863 = vmatpush2.msra.mxu0 0.0
    %2864 = vmatprep.subr.mxu0 0.0
    %2865 = vmatpush2.msra.mxu0 0.0
    %2866 = vmatprep.subr.mxu0 0.0
    %2867 = vmatpush2.msra.mxu0 0.0
    %2868 = vmatprep.subr.mxu0 0.0
    %2869 = vmatpush2.msra.mxu0 0.0
    %2870 = vmatprep.subr.mxu0 0.0
    %2871 = vmatpush2.msra.mxu0 0.0
    %2872 = vmatprep.subr.mxu0 0.0
    %2873 = vmatpush2.msra.mxu0 0.0
    %2874 = vmatprep.subr.mxu0 0.0
    %2875 = vmatpush2.msra.mxu0 0.0
    %2876 = vmatprep.subr.mxu0 0.0
    %2877 = vmatpush2.msra.mxu0 0.0
    %2878 = vmatprep.subr.mxu0 0.0
    %2879 = vmatpush2.msra.mxu0 0.0
    %2880 = vmatprep.mubr.f32.mxu0 0.0
    %2881 = vmatmul.mubr.f32.gmra.mxu0 %v2806
    %v2882 = vpop.f32.mrf.mxu0
    %v2883 = vadd.f32 0.0, %v2882
    %v2884 = vpop.f32.mrf.mxu0
    %2885 = vmatprep.mubr.f32.mxu0 0.0
    %2886 = vmatmul.mubr.f32.gmra.mxu0 %v2809
    %v2887 = vpop.f32.mrf.mxu0
    %v2888 = vadd.f32 0.0, %v2887
    %v2889 = vpop.f32.mrf.mxu0
    %2890 = vmatprep.mubr.f32.mxu0 0.0
    %2891 = vmatmul.mubr.f32.gmra.mxu0 %v2812
    %v2892 = vpop.f32.mrf.mxu0
    %v2893 = vadd.f32 0.0, %v2892
    %v2894 = vpop.f32.mrf.mxu0
    %2895 = vdwg.mxu0
    %2896 = vrot.lane.b32.xlu0 %v2421, 120
    %v2897 = vpop.permute.xlu0 %2896
    %2898 = vrot.lane.b32.xlu0 %v2423, 120
    %v2899 = vpop.permute.xlu0 %2898
    %2900 = vrot.lane.b32.xlu0 %v2422, 120
    %v2901 = vpop.permute.xlu0 %2900
    %2902 = vrot.lane.b32.xlu0 %v2421, 88
    %v2903 = vpop.permute.xlu0 %2902
    %2904 = vrot.lane.b32.xlu0 %v2423, 88
    %v2905 = vpop.permute.xlu0 %2904
    %2906 = vrot.lane.b32.xlu0 %v2422, 88
    %v2907 = vpop.permute.xlu0 %2906
    %v2908 = vsel %vm402, %v2897, 0
    %v2910 = vsel %vm402, %v2899, 0
    %v2912 = vsel %vm402, %v2901, 0
    %v2914 = vsel %vm402, %v2903, 0
    %v2916 = vsel %vm402, %v2905, 0
    %v2918 = vsel %vm402, %v2907, 0
    %2920 = vmatprep.subr.mxu0 0.0
    %2921 = vmatpush1.xpose.msra.mxu0 0.0
    %2922 = vmatprep.subr.mxu0 0.0
    %2923 = vmatpush1.xpose.msra.mxu0 0.0
    %2924 = vmatprep.subr.mxu0 0.0
    %2925 = vmatpush1.xpose.msra.mxu0 0.0
    %2926 = vmatprep.subr.mxu0 0.0
    %2927 = vmatpush1.xpose.msra.mxu0 0.0
    %2928 = vmatprep.subr.mxu0 0.0
    %2929 = vmatpush1.xpose.msra.mxu0 0.0
    %2930 = vmatprep.subr.mxu0 0.0
    %2931 = vmatpush1.xpose.msra.mxu0 0.0
    %2932 = vmatprep.subr.mxu0 0.0
    %2933 = vmatpush1.xpose.msra.mxu0 0.0
    %2934 = vmatprep.subr.mxu0 0.0
    %2935 = vmatpush1.xpose.msra.mxu0 0.0
    %2936 = vmatprep.subr.mxu0 0.0
    %2937 = vmatpush1.xpose.msra.mxu0 0.0
    %2938 = vmatprep.subr.mxu0 0.0
    %2939 = vmatpush1.xpose.msra.mxu0 0.0
    %2940 = vmatprep.subr.mxu0 0.0
    %2941 = vmatpush1.xpose.msra.mxu0 0.0
    %2942 = vmatprep.subr.mxu0 0.0
    %2943 = vmatpush1.xpose.msra.mxu0 0.0
    %2944 = vmatprep.subr.mxu0 0.0
    %2945 = vmatpush1.xpose.msra.mxu0 0.0
    %2946 = vmatprep.subr.mxu0 0.0
    %2947 = vmatpush1.xpose.msra.mxu0 %v2918
    %2948 = vmatprep.subr.mxu0 0.0
    %2949 = vmatpush1.xpose.msra.mxu0 %v2916
    %2950 = vmatprep.subr.mxu0 0.0
    %2951 = vmatpush1.xpose.msra.mxu0 %v2914
    %2952 = vmatprep.subr.mxu0 0.0
    %2953 = vmatpush2.xpose.msra.mxu0 0.0
    %2954 = vmatprep.subr.mxu0 0.0
    %2955 = vmatpush2.xpose.msra.mxu0 0.0
    %2956 = vmatprep.subr.mxu0 0.0
    %2957 = vmatpush2.xpose.msra.mxu0 0.0
    %2958 = vmatprep.subr.mxu0 0.0
    %2959 = vmatpush2.xpose.msra.mxu0 0.0
    %2960 = vmatprep.subr.mxu0 0.0
    %2961 = vmatpush2.xpose.msra.mxu0 0.0
    %2962 = vmatprep.subr.mxu0 0.0
    %2963 = vmatpush2.xpose.msra.mxu0 0.0
    %2964 = vmatprep.subr.mxu0 0.0
    %2965 = vmatpush2.xpose.msra.mxu0 0.0
    %2966 = vmatprep.subr.mxu0 0.0
    %2967 = vmatpush2.xpose.msra.mxu0 0.0
    %2968 = vmatprep.subr.mxu0 0.0
    %2969 = vmatpush2.xpose.msra.mxu0 0.0
    %2970 = vmatprep.subr.mxu0 0.0
    %2971 = vmatpush2.xpose.msra.mxu0 0.0
    %2972 = vmatprep.subr.mxu0 0.0
    %2973 = vmatpush2.xpose.msra.mxu0 0.0
    %2974 = vmatprep.subr.mxu0 0.0
    %2975 = vmatpush2.xpose.msra.mxu0 0.0
    %2976 = vmatprep.subr.mxu0 0.0
    %2977 = vmatpush2.xpose.msra.mxu0 0.0
    %2978 = vmatprep.subr.mxu0 0.0
    %2979 = vmatpush2.xpose.msra.mxu0 0.0
    %2980 = vmatprep.subr.mxu0 0.0
    %2981 = vmatpush2.xpose.msra.mxu0 0.0
    %2982 = vmatprep.subr.mxu0 0.0
    %2983 = vmatpush2.xpose.msra.mxu0 0.0
    %2984 = vmatprep.mubr.f32.mxu0 0.0
    %2985 = vmatmul.mubr.f32.gmra.mxu0 %v2908
    %v2986 = vpop.f32.mrf.mxu0
    %v2987 = vadd.f32 0.0, %v2986
    %v2988 = vpop.f32.mrf.mxu0
    %2989 = vmatprep.mubr.f32.mxu0 0.0
    %2990 = vmatmul.mubr.f32.gmra.mxu0 %v2910
    %v2991 = vpop.f32.mrf.mxu0
    %v2992 = vadd.f32 0.0, %v2991
    %v2993 = vpop.f32.mrf.mxu0
    %2994 = vmatprep.mubr.f32.mxu0 0.0
    %2995 = vmatmul.mubr.f32.gmra.mxu0 %v2912
    %v2996 = vpop.f32.mrf.mxu0
    %v2997 = vadd.f32 0.0, %v2996
    %v2998 = vpop.f32.mrf.mxu0
    %2999 = vdwg.mxu0
    %v3000 = vmul.f32 %v2987, 0.5
    %v3001 = vmul.f32 %v2992, 0.5
    %v3002 = vmul.f32 %v2997, 0.5
    %v3003 = vsel %vm498, %v3000, -inf
    %3004 = vmax.xlane.f32.xlu0 %v3003
    %v3005 = vpop.xlane.xlu0 %3004
    %v3006 = vsel %vm498, %v3001, -inf
    %3007 = vmax.xlane.f32.xlu0 %v3006
    %v3008 = vpop.xlane.xlu0 %3007
    %v3009 = vsel %vm505, %v3002, -inf
    %3010 = vmax.xlane.f32.xlu0 %v3009
    %v3011 = vpop.xlane.xlu0 %3010
    %v3012 = vsub.f32 %v3000, %v3005
    %v3013 = vsub.f32 %v3001, %v3008
    %v3014 = vsub.f32 %v3002, %v3011
    %v3015 = vmul.f32 %v3012, 1.442695
    %v3016 = vpow.pop %v3015
    %v3017 = vmul.f32 %v3013, 1.442695
    %v3018 = vpow.pop %v3017
    %v3019 = vmul.f32 %v3014, 1.442695
    %v3020 = vpow.pop %v3019
    %v3021 = vsel %vm498, %v3016, 0.0
    %3022 = vadd.xlane.f32.xlu0 %v3021
    %v3023 = vpop.xlane.xlu0 %3022
    %v3024 = vsel %vm498, %v3018, 0.0
    %3025 = vadd.xlane.f32.xlu0 %v3024
    %v3026 = vpop.xlane.xlu0 %3025
    %v3027 = vsel %vm505, %v3020, 0.0
    %3028 = vadd.xlane.f32.xlu0 %v3027
    %v3029 = vpop.xlane.xlu0 %3028
    %v3030 = vrcp.pop %v3023
    %v3031 = vmul.f32 %v3016, %v3030
    %v3032 = vrcp.pop %v3026
    %v3033 = vmul.f32 %v3018, %v3032
    %v3034 = vrcp.pop %v3029
    %v3035 = vmul.f32 %v3020, %v3034
    %3036 = vrot.lane.b32.xlu0 %v2421, 56
    %v3037 = vpop.permute.xlu0 %3036
    %3038 = vrot.lane.b32.xlu0 %v2423, 56
    %v3039 = vpop.permute.xlu0 %3038
    %3040 = vrot.lane.b32.xlu0 %v2422, 56
    %v3041 = vpop.permute.xlu0 %3040
    %v3045 = vsel %vm498, %v3031, 0
    %v3048 = vsel %vm498, %v3033, 0
    %v3051 = vsel %vm498, %v3035, 0
    %v3053 = vsel %vm68, %v3041, 0
    %3055 = vmatprep.subr.mxu0 0.0
    %3056 = vmatpush1.msra.mxu0 0.0
    %3057 = vmatprep.subr.mxu0 0.0
    %3058 = vmatpush1.msra.mxu0 0.0
    %3059 = vmatprep.subr.mxu0 0.0
    %3060 = vmatpush1.msra.mxu0 0.0
    %3061 = vmatprep.subr.mxu0 0.0
    %3062 = vmatpush1.msra.mxu0 0.0
    %3063 = vmatprep.subr.mxu0 0.0
    %3064 = vmatpush1.msra.mxu0 0.0
    %3065 = vmatprep.subr.mxu0 0.0
    %3066 = vmatpush1.msra.mxu0 0.0
    %3067 = vmatprep.subr.mxu0 0.0
    %3068 = vmatpush1.msra.mxu0 0.0
    %3069 = vmatprep.subr.mxu0 0.0
    %3070 = vmatpush1.msra.mxu0 0.0
    %3071 = vmatprep.subr.mxu0 0.0
    %3072 = vmatpush1.msra.mxu0 0.0
    %3073 = vmatprep.subr.mxu0 0.0
    %3074 = vmatpush1.msra.mxu0 0.0
    %3075 = vmatprep.subr.mxu0 0.0
    %3076 = vmatpush1.msra.mxu0 0.0
    %3077 = vmatprep.subr.mxu0 0.0
    %3078 = vmatpush1.msra.mxu0 0.0
    %3079 = vmatprep.subr.mxu0 0.0
    %3080 = vmatpush1.msra.mxu0 0.0
    %3081 = vmatprep.subr.mxu0 0.0
    %3082 = vmatpush1.msra.mxu0 %v3053
    %3083 = vmatprep.subr.mxu0 0.0
    %3084 = vmatpush1.msra.mxu0 %v3039
    %3085 = vmatprep.subr.mxu0 0.0
    %3086 = vmatpush1.msra.mxu0 %v3037
    %3087 = vmatprep.subr.mxu0 0.0
    %3088 = vmatpush2.msra.mxu0 0.0
    %3089 = vmatprep.subr.mxu0 0.0
    %3090 = vmatpush2.msra.mxu0 0.0
    %3091 = vmatprep.subr.mxu0 0.0
    %3092 = vmatpush2.msra.mxu0 0.0
    %3093 = vmatprep.subr.mxu0 0.0
    %3094 = vmatpush2.msra.mxu0 0.0
    %3095 = vmatprep.subr.mxu0 0.0
    %3096 = vmatpush2.msra.mxu0 0.0
    %3097 = vmatprep.subr.mxu0 0.0
    %3098 = vmatpush2.msra.mxu0 0.0
    %3099 = vmatprep.subr.mxu0 0.0
    %3100 = vmatpush2.msra.mxu0 0.0
    %3101 = vmatprep.subr.mxu0 0.0
    %3102 = vmatpush2.msra.mxu0 0.0
    %3103 = vmatprep.subr.mxu0 0.0
    %3104 = vmatpush2.msra.mxu0 0.0
    %3105 = vmatprep.subr.mxu0 0.0
    %3106 = vmatpush2.msra.mxu0 0.0
    %3107 = vmatprep.subr.mxu0 0.0
    %3108 = vmatpush2.msra.mxu0 0.0
    %3109 = vmatprep.subr.mxu0 0.0
    %3110 = vmatpush2.msra.mxu0 0.0
    %3111 = vmatprep.subr.mxu0 0.0
    %3112 = vmatpush2.msra.mxu0 0.0
    %3113 = vmatprep.subr.mxu0 0.0
    %3114 = vmatpush2.msra.mxu0 0.0
    %3115 = vmatprep.subr.mxu0 0.0
    %3116 = vmatpush2.msra.mxu0 0.0
    %3117 = vmatprep.subr.mxu0 0.0
    %3118 = vmatpush2.msra.mxu0 0.0
    %3119 = vmatprep.mubr.f32.mxu0 0.0
    %3120 = vmatmul.mubr.f32.gmra.mxu0 %v3045
    %v3121 = vpop.f32.mrf.mxu0
    %v3122 = vadd.f32 0.0, %v3121
    %v3123 = vpop.f32.mrf.mxu0
    %3124 = vmatprep.mubr.f32.mxu0 0.0
    %3125 = vmatmul.mubr.f32.gmra.mxu0 %v3048
    %v3126 = vpop.f32.mrf.mxu0
    %v3127 = vadd.f32 0.0, %v3126
    %v3128 = vpop.f32.mrf.mxu0
    %3129 = vmatprep.mubr.f32.mxu0 0.0
    %3130 = vmatmul.mubr.f32.gmra.mxu0 %v3051
    %v3131 = vpop.f32.mrf.mxu0
    %v3132 = vadd.f32 0.0, %v3131
    %v3133 = vpop.f32.mrf.mxu0
    %3134 = vdwg.mxu0
    %3135 = vrot.lane.b32.xlu0 %v2421, 116
    %v3136 = vpop.permute.xlu0 %3135
    %3137 = vrot.lane.b32.xlu0 %v2423, 116
    %v3138 = vpop.permute.xlu0 %3137
    %3139 = vrot.lane.b32.xlu0 %v2422, 116
    %v3140 = vpop.permute.xlu0 %3139
    %3141 = vrot.lane.b32.xlu0 %v2421, 84
    %v3142 = vpop.permute.xlu0 %3141
    %3143 = vrot.lane.b32.xlu0 %v2423, 84
    %v3144 = vpop.permute.xlu0 %3143
    %3145 = vrot.lane.b32.xlu0 %v2422, 84
    %v3146 = vpop.permute.xlu0 %3145
    %v3147 = vsel %vm402, %v3136, 0
    %v3149 = vsel %vm402, %v3138, 0
    %v3151 = vsel %vm402, %v3140, 0
    %v3153 = vsel %vm402, %v3142, 0
    %v3155 = vsel %vm402, %v3144, 0
    %v3157 = vsel %vm402, %v3146, 0
    %3159 = vmatprep.subr.mxu0 0.0
    %3160 = vmatpush1.xpose.msra.mxu0 0.0
    %3161 = vmatprep.subr.mxu0 0.0
    %3162 = vmatpush1.xpose.msra.mxu0 0.0
    %3163 = vmatprep.subr.mxu0 0.0
    %3164 = vmatpush1.xpose.msra.mxu0 0.0
    %3165 = vmatprep.subr.mxu0 0.0
    %3166 = vmatpush1.xpose.msra.mxu0 0.0
    %3167 = vmatprep.subr.mxu0 0.0
    %3168 = vmatpush1.xpose.msra.mxu0 0.0
    %3169 = vmatprep.subr.mxu0 0.0
    %3170 = vmatpush1.xpose.msra.mxu0 0.0
    %3171 = vmatprep.subr.mxu0 0.0
    %3172 = vmatpush1.xpose.msra.mxu0 0.0
    %3173 = vmatprep.subr.mxu0 0.0
    %3174 = vmatpush1.xpose.msra.mxu0 0.0
    %3175 = vmatprep.subr.mxu0 0.0
    %3176 = vmatpush1.xpose.msra.mxu0 0.0
    %3177 = vmatprep.subr.mxu0 0.0
    %3178 = vmatpush1.xpose.msra.mxu0 0.0
    %3179 = vmatprep.subr.mxu0 0.0
    %3180 = vmatpush1.xpose.msra.mxu0 0.0
    %3181 = vmatprep.subr.mxu0 0.0
    %3182 = vmatpush1.xpose.msra.mxu0 0.0
    %3183 = vmatprep.subr.mxu0 0.0
    %3184 = vmatpush1.xpose.msra.mxu0 0.0
    %3185 = vmatprep.subr.mxu0 0.0
    %3186 = vmatpush1.xpose.msra.mxu0 %v3157
    %3187 = vmatprep.subr.mxu0 0.0
    %3188 = vmatpush1.xpose.msra.mxu0 %v3155
    %3189 = vmatprep.subr.mxu0 0.0
    %3190 = vmatpush1.xpose.msra.mxu0 %v3153
    %3191 = vmatprep.subr.mxu0 0.0
    %3192 = vmatpush2.xpose.msra.mxu0 0.0
    %3193 = vmatprep.subr.mxu0 0.0
    %3194 = vmatpush2.xpose.msra.mxu0 0.0
    %3195 = vmatprep.subr.mxu0 0.0
    %3196 = vmatpush2.xpose.msra.mxu0 0.0
    %3197 = vmatprep.subr.mxu0 0.0
    %3198 = vmatpush2.xpose.msra.mxu0 0.0
    %3199 = vmatprep.subr.mxu0 0.0
    %3200 = vmatpush2.xpose.msra.mxu0 0.0
    %3201 = vmatprep.subr.mxu0 0.0
    %3202 = vmatpush2.xpose.msra.mxu0 0.0
    %3203 = vmatprep.subr.mxu0 0.0
    %3204 = vmatpush2.xpose.msra.mxu0 0.0
    %3205 = vmatprep.subr.mxu0 0.0
    %3206 = vmatpush2.xpose.msra.mxu0 0.0
    %3207 = vmatprep.subr.mxu0 0.0
    %3208 = vmatpush2.xpose.msra.mxu0 0.0
    %3209 = vmatprep.subr.mxu0 0.0
    %3210 = vmatpush2.xpose.msra.mxu0 0.0
    %3211 = vmatprep.subr.mxu0 0.0
    %3212 = vmatpush2.xpose.msra.mxu0 0.0
    %3213 = vmatprep.subr.mxu0 0.0
    %3214 = vmatpush2.xpose.msra.mxu0 0.0
    %3215 = vmatprep.subr.mxu0 0.0
    %3216 = vmatpush2.xpose.msra.mxu0 0.0
    %3217 = vmatprep.subr.mxu0 0.0
    %3218 = vmatpush2.xpose.msra.mxu0 0.0
    %3219 = vmatprep.subr.mxu0 0.0
    %3220 = vmatpush2.xpose.msra.mxu0 0.0
    %3221 = vmatprep.subr.mxu0 0.0
    %3222 = vmatpush2.xpose.msra.mxu0 0.0
    %3223 = vmatprep.mubr.f32.mxu0 0.0
    %3224 = vmatmul.mubr.f32.gmra.mxu0 %v3147
    %v3225 = vpop.f32.mrf.mxu0
    %v3226 = vadd.f32 0.0, %v3225
    %v3227 = vpop.f32.mrf.mxu0
    %3228 = vmatprep.mubr.f32.mxu0 0.0
    %3229 = vmatmul.mubr.f32.gmra.mxu0 %v3149
    %v3230 = vpop.f32.mrf.mxu0
    %v3231 = vadd.f32 0.0, %v3230
    %v3232 = vpop.f32.mrf.mxu0
    %3233 = vmatprep.mubr.f32.mxu0 0.0
    %3234 = vmatmul.mubr.f32.gmra.mxu0 %v3151
    %v3235 = vpop.f32.mrf.mxu0
    %v3236 = vadd.f32 0.0, %v3235
    %v3237 = vpop.f32.mrf.mxu0
    %3238 = vdwg.mxu0
    %v3239 = vmul.f32 %v3226, 0.5
    %v3240 = vmul.f32 %v3231, 0.5
    %v3241 = vmul.f32 %v3236, 0.5
    %v3242 = vsel %vm498, %v3239, -inf
    %3243 = vmax.xlane.f32.xlu0 %v3242
    %v3244 = vpop.xlane.xlu0 %3243
    %v3245 = vsel %vm498, %v3240, -inf
    %3246 = vmax.xlane.f32.xlu0 %v3245
    %v3247 = vpop.xlane.xlu0 %3246
    %v3248 = vsel %vm505, %v3241, -inf
    %3249 = vmax.xlane.f32.xlu0 %v3248
    %v3250 = vpop.xlane.xlu0 %3249
    %v3251 = vsub.f32 %v3239, %v3244
    %v3252 = vsub.f32 %v3240, %v3247
    %v3253 = vsub.f32 %v3241, %v3250
    %v3254 = vmul.f32 %v3251, 1.442695
    %v3255 = vpow.pop %v3254
    %v3256 = vmul.f32 %v3252, 1.442695
    %v3257 = vpow.pop %v3256
    %v3258 = vmul.f32 %v3253, 1.442695
    %v3259 = vpow.pop %v3258
    %v3260 = vsel %vm498, %v3255, 0.0
    %3261 = vadd.xlane.f32.xlu0 %v3260
    %v3262 = vpop.xlane.xlu0 %3261
    %v3263 = vsel %vm498, %v3257, 0.0
    %3264 = vadd.xlane.f32.xlu0 %v3263
    %v3265 = vpop.xlane.xlu0 %3264
    %v3266 = vsel %vm505, %v3259, 0.0
    %3267 = vadd.xlane.f32.xlu0 %v3266
    %v3268 = vpop.xlane.xlu0 %3267
    %v3269 = vrcp.pop %v3262
    %v3270 = vmul.f32 %v3255, %v3269
    %v3271 = vrcp.pop %v3265
    %v3272 = vmul.f32 %v3257, %v3271
    %v3273 = vrcp.pop %v3268
    %v3274 = vmul.f32 %v3259, %v3273
    %3275 = vrot.lane.b32.xlu0 %v2421, 52
    %v3276 = vpop.permute.xlu0 %3275
    %3277 = vrot.lane.b32.xlu0 %v2423, 52
    %v3278 = vpop.permute.xlu0 %3277
    %3279 = vrot.lane.b32.xlu0 %v2422, 52
    %v3280 = vpop.permute.xlu0 %3279
    %v3284 = vsel %vm498, %v3270, 0
    %v3287 = vsel %vm498, %v3272, 0
    %v3290 = vsel %vm498, %v3274, 0
    %v3292 = vsel %vm68, %v3280, 0
    %3294 = vmatprep.subr.mxu0 0.0
    %3295 = vmatpush1.msra.mxu0 0.0
    %3296 = vmatprep.subr.mxu0 0.0
    %3297 = vmatpush1.msra.mxu0 0.0
    %3298 = vmatprep.subr.mxu0 0.0
    %3299 = vmatpush1.msra.mxu0 0.0
    %3300 = vmatprep.subr.mxu0 0.0
    %3301 = vmatpush1.msra.mxu0 0.0
    %3302 = vmatprep.subr.mxu0 0.0
    %3303 = vmatpush1.msra.mxu0 0.0
    %3304 = vmatprep.subr.mxu0 0.0
    %3305 = vmatpush1.msra.mxu0 0.0
    %3306 = vmatprep.subr.mxu0 0.0
    %3307 = vmatpush1.msra.mxu0 0.0
    %3308 = vmatprep.subr.mxu0 0.0
    %3309 = vmatpush1.msra.mxu0 0.0
    %3310 = vmatprep.subr.mxu0 0.0
    %3311 = vmatpush1.msra.mxu0 0.0
    %3312 = vmatprep.subr.mxu0 0.0
    %3313 = vmatpush1.msra.mxu0 0.0
    %3314 = vmatprep.subr.mxu0 0.0
    %3315 = vmatpush1.msra.mxu0 0.0
    %3316 = vmatprep.subr.mxu0 0.0
    %3317 = vmatpush1.msra.mxu0 0.0
    %3318 = vmatprep.subr.mxu0 0.0
    %3319 = vmatpush1.msra.mxu0 0.0
    %3320 = vmatprep.subr.mxu0 0.0
    %3321 = vmatpush1.msra.mxu0 %v3292
    %3322 = vmatprep.subr.mxu0 0.0
    %3323 = vmatpush1.msra.mxu0 %v3278
    %3324 = vmatprep.subr.mxu0 0.0
    %3325 = vmatpush1.msra.mxu0 %v3276
    %3326 = vmatprep.subr.mxu0 0.0
    %3327 = vmatpush2.msra.mxu0 0.0
    %3328 = vmatprep.subr.mxu0 0.0
    %3329 = vmatpush2.msra.mxu0 0.0
    %3330 = vmatprep.subr.mxu0 0.0
    %3331 = vmatpush2.msra.mxu0 0.0
    %3332 = vmatprep.subr.mxu0 0.0
    %3333 = vmatpush2.msra.mxu0 0.0
    %3334 = vmatprep.subr.mxu0 0.0
    %3335 = vmatpush2.msra.mxu0 0.0
    %3336 = vmatprep.subr.mxu0 0.0
    %3337 = vmatpush2.msra.mxu0 0.0
    %3338 = vmatprep.subr.mxu0 0.0
    %3339 = vmatpush2.msra.mxu0 0.0
    %3340 = vmatprep.subr.mxu0 0.0
    %3341 = vmatpush2.msra.mxu0 0.0
    %3342 = vmatprep.subr.mxu0 0.0
    %3343 = vmatpush2.msra.mxu0 0.0
    %3344 = vmatprep.subr.mxu0 0.0
    %3345 = vmatpush2.msra.mxu0 0.0
    %3346 = vmatprep.subr.mxu0 0.0
    %3347 = vmatpush2.msra.mxu0 0.0
    %3348 = vmatprep.subr.mxu0 0.0
    %3349 = vmatpush2.msra.mxu0 0.0
    %3350 = vmatprep.subr.mxu0 0.0
    %3351 = vmatpush2.msra.mxu0 0.0
    %3352 = vmatprep.subr.mxu0 0.0
    %3353 = vmatpush2.msra.mxu0 0.0
    %3354 = vmatprep.subr.mxu0 0.0
    %3355 = vmatpush2.msra.mxu0 0.0
    %3356 = vmatprep.subr.mxu0 0.0
    %3357 = vmatpush2.msra.mxu0 0.0
    %3358 = vmatprep.mubr.f32.mxu0 0.0
    %3359 = vmatmul.mubr.f32.gmra.mxu0 %v3284
    %v3360 = vpop.f32.mrf.mxu0
    %v3361 = vadd.f32 0.0, %v3360
    %v3362 = vpop.f32.mrf.mxu0
    %3363 = vmatprep.mubr.f32.mxu0 0.0
    %3364 = vmatmul.mubr.f32.gmra.mxu0 %v3287
    %v3365 = vpop.f32.mrf.mxu0
    %v3366 = vadd.f32 0.0, %v3365
    %v3367 = vpop.f32.mrf.mxu0
    %3368 = vmatprep.mubr.f32.mxu0 0.0
    %3369 = vmatmul.mubr.f32.gmra.mxu0 %v3290
    %v3370 = vpop.f32.mrf.mxu0
    %v3371 = vadd.f32 0.0, %v3370
    %v3372 = vpop.f32.mrf.mxu0
    %3373 = vdwg.mxu0
    %3374 = vrot.lane.b32.xlu0 %v2421, 112
    %v3375 = vpop.permute.xlu0 %3374
    %3376 = vrot.lane.b32.xlu0 %v2423, 112
    %v3377 = vpop.permute.xlu0 %3376
    %3378 = vrot.lane.b32.xlu0 %v2422, 112
    %v3379 = vpop.permute.xlu0 %3378
    %3380 = vrot.lane.b32.xlu0 %v2421, 80
    %v3381 = vpop.permute.xlu0 %3380
    %3382 = vrot.lane.b32.xlu0 %v2423, 80
    %v3383 = vpop.permute.xlu0 %3382
    %3384 = vrot.lane.b32.xlu0 %v2422, 80
    %v3385 = vpop.permute.xlu0 %3384
    %v3386 = vsel %vm402, %v3375, 0
    %v3388 = vsel %vm402, %v3377, 0
    %v3390 = vsel %vm402, %v3379, 0
    %v3392 = vsel %vm402, %v3381, 0
    %v3394 = vsel %vm402, %v3383, 0
    %v3396 = vsel %vm402, %v3385, 0
    %3398 = vmatprep.subr.mxu0 0.0
    %3399 = vmatpush1.xpose.msra.mxu0 0.0
    %3400 = vmatprep.subr.mxu0 0.0
    %3401 = vmatpush1.xpose.msra.mxu0 0.0
    %3402 = vmatprep.subr.mxu0 0.0
    %3403 = vmatpush1.xpose.msra.mxu0 0.0
    %3404 = vmatprep.subr.mxu0 0.0
    %3405 = vmatpush1.xpose.msra.mxu0 0.0
    %3406 = vmatprep.subr.mxu0 0.0
    %3407 = vmatpush1.xpose.msra.mxu0 0.0
    %3408 = vmatprep.subr.mxu0 0.0
    %3409 = vmatpush1.xpose.msra.mxu0 0.0
    %3410 = vmatprep.subr.mxu0 0.0
    %3411 = vmatpush1.xpose.msra.mxu0 0.0
    %3412 = vmatprep.subr.mxu0 0.0
    %3413 = vmatpush1.xpose.msra.mxu0 0.0
    %3414 = vmatprep.subr.mxu0 0.0
    %3415 = vmatpush1.xpose.msra.mxu0 0.0
    %3416 = vmatprep.subr.mxu0 0.0
    %3417 = vmatpush1.xpose.msra.mxu0 0.0
    %3418 = vmatprep.subr.mxu0 0.0
    %3419 = vmatpush1.xpose.msra.mxu0 0.0
    %3420 = vmatprep.subr.mxu0 0.0
    %3421 = vmatpush1.xpose.msra.mxu0 0.0
    %3422 = vmatprep.subr.mxu0 0.0
    %3423 = vmatpush1.xpose.msra.mxu0 0.0
    %3424 = vmatprep.subr.mxu0 0.0
    %3425 = vmatpush1.xpose.msra.mxu0 %v3396
    %3426 = vmatprep.subr.mxu0 0.0
    %3427 = vmatpush1.xpose.msra.mxu0 %v3394
    %3428 = vmatprep.subr.mxu0 0.0
    %3429 = vmatpush1.xpose.msra.mxu0 %v3392
    %3430 = vmatprep.subr.mxu0 0.0
    %3431 = vmatpush2.xpose.msra.mxu0 0.0
    %3432 = vmatprep.subr.mxu0 0.0
    %3433 = vmatpush2.xpose.msra.mxu0 0.0
    %3434 = vmatprep.subr.mxu0 0.0
    %3435 = vmatpush2.xpose.msra.mxu0 0.0
    %3436 = vmatprep.subr.mxu0 0.0
    %3437 = vmatpush2.xpose.msra.mxu0 0.0
    %3438 = vmatprep.subr.mxu0 0.0
    %3439 = vmatpush2.xpose.msra.mxu0 0.0
    %3440 = vmatprep.subr.mxu0 0.0
    %3441 = vmatpush2.xpose.msra.mxu0 0.0
    %3442 = vmatprep.subr.mxu0 0.0
    %3443 = vmatpush2.xpose.msra.mxu0 0.0
    %3444 = vmatprep.subr.mxu0 0.0
    %3445 = vmatpush2.xpose.msra.mxu0 0.0
    %3446 = vmatprep.subr.mxu0 0.0
    %3447 = vmatpush2.xpose.msra.mxu0 0.0
    %3448 = vmatprep.subr.mxu0 0.0
    %3449 = vmatpush2.xpose.msra.mxu0 0.0
    %3450 = vmatprep.subr.mxu0 0.0
    %3451 = vmatpush2.xpose.msra.mxu0 0.0
    %3452 = vmatprep.subr.mxu0 0.0
    %3453 = vmatpush2.xpose.msra.mxu0 0.0
    %3454 = vmatprep.subr.mxu0 0.0
    %3455 = vmatpush2.xpose.msra.mxu0 0.0
    %3456 = vmatprep.subr.mxu0 0.0
    %3457 = vmatpush2.xpose.msra.mxu0 0.0
    %3458 = vmatprep.subr.mxu0 0.0
    %3459 = vmatpush2.xpose.msra.mxu0 0.0
    %3460 = vmatprep.subr.mxu0 0.0
    %3461 = vmatpush2.xpose.msra.mxu0 0.0
    %3462 = vmatprep.mubr.f32.mxu0 0.0
    %3463 = vmatmul.mubr.f32.gmra.mxu0 %v3386
    %v3464 = vpop.f32.mrf.mxu0
    %v3465 = vadd.f32 0.0, %v3464
    %v3466 = vpop.f32.mrf.mxu0
    %3467 = vmatprep.mubr.f32.mxu0 0.0
    %3468 = vmatmul.mubr.f32.gmra.mxu0 %v3388
    %v3469 = vpop.f32.mrf.mxu0
    %v3470 = vadd.f32 0.0, %v3469
    %v3471 = vpop.f32.mrf.mxu0
    %3472 = vmatprep.mubr.f32.mxu0 0.0
    %3473 = vmatmul.mubr.f32.gmra.mxu0 %v3390
    %v3474 = vpop.f32.mrf.mxu0
    %v3475 = vadd.f32 0.0, %v3474
    %v3476 = vpop.f32.mrf.mxu0
    %3477 = vdwg.mxu0
    %v3478 = vmul.f32 %v3465, 0.5
    %v3479 = vmul.f32 %v3470, 0.5
    %v3480 = vmul.f32 %v3475, 0.5
    %v3481 = vsel %vm498, %v3478, -inf
    %3482 = vmax.xlane.f32.xlu0 %v3481
    %v3483 = vpop.xlane.xlu0 %3482
    %v3484 = vsel %vm498, %v3479, -inf
    %3485 = vmax.xlane.f32.xlu0 %v3484
    %v3486 = vpop.xlane.xlu0 %3485
    %v3487 = vsel %vm505, %v3480, -inf
    %3488 = vmax.xlane.f32.xlu0 %v3487
    %v3489 = vpop.xlane.xlu0 %3488
    %v3490 = vsub.f32 %v3478, %v3483
    %v3491 = vsub.f32 %v3479, %v3486
    %v3492 = vsub.f32 %v3480, %v3489
    %v3493 = vmul.f32 %v3490, 1.442695
    %v3494 = vpow.pop %v3493
    %v3495 = vmul.f32 %v3491, 1.442695
    %v3496 = vpow.pop %v3495
    %v3497 = vmul.f32 %v3492, 1.442695
    %v3498 = vpow.pop %v3497
    %v3499 = vsel %vm498, %v3494, 0.0
    %3500 = vadd.xlane.f32.xlu0 %v3499
    %v3501 = vpop.xlane.xlu0 %3500
    %v3502 = vsel %vm498, %v3496, 0.0
    %3503 = vadd.xlane.f32.xlu0 %v3502
    %v3504 = vpop.xlane.xlu0 %3503
    %v3505 = vsel %vm505, %v3498, 0.0
    %3506 = vadd.xlane.f32.xlu0 %v3505
    %v3507 = vpop.xlane.xlu0 %3506
    %v3508 = vrcp.pop %v3501
    %v3509 = vmul.f32 %v3494, %v3508
    %v3510 = vrcp.pop %v3504
    %v3511 = vmul.f32 %v3496, %v3510
    %v3512 = vrcp.pop %v3507
    %v3513 = vmul.f32 %v3498, %v3512
    %3514 = vrot.lane.b32.xlu0 %v2421, 48
    %v3515 = vpop.permute.xlu0 %3514
    %3516 = vrot.lane.b32.xlu0 %v2423, 48
    %v3517 = vpop.permute.xlu0 %3516
    %3518 = vrot.lane.b32.xlu0 %v2422, 48
    %v3519 = vpop.permute.xlu0 %3518
    %v3523 = vsel %vm498, %v3509, 0
    %v3526 = vsel %vm498, %v3511, 0
    %v3529 = vsel %vm498, %v3513, 0
    %v3531 = vsel %vm68, %v3519, 0
    %3533 = vmatprep.subr.mxu0 0.0
    %3534 = vmatpush1.msra.mxu0 0.0
    %3535 = vmatprep.subr.mxu0 0.0
    %3536 = vmatpush1.msra.mxu0 0.0
    %3537 = vmatprep.subr.mxu0 0.0
    %3538 = vmatpush1.msra.mxu0 0.0
    %3539 = vmatprep.subr.mxu0 0.0
    %3540 = vmatpush1.msra.mxu0 0.0
    %3541 = vmatprep.subr.mxu0 0.0
    %3542 = vmatpush1.msra.mxu0 0.0
    %3543 = vmatprep.subr.mxu0 0.0
    %3544 = vmatpush1.msra.mxu0 0.0
    %3545 = vmatprep.subr.mxu0 0.0
    %3546 = vmatpush1.msra.mxu0 0.0
    %3547 = vmatprep.subr.mxu0 0.0
    %3548 = vmatpush1.msra.mxu0 0.0
    %3549 = vmatprep.subr.mxu0 0.0
    %3550 = vmatpush1.msra.mxu0 0.0
    %3551 = vmatprep.subr.mxu0 0.0
    %3552 = vmatpush1.msra.mxu0 0.0
    %3553 = vmatprep.subr.mxu0 0.0
    %3554 = vmatpush1.msra.mxu0 0.0
    %3555 = vmatprep.subr.mxu0 0.0
    %3556 = vmatpush1.msra.mxu0 0.0
    %3557 = vmatprep.subr.mxu0 0.0
    %3558 = vmatpush1.msra.mxu0 0.0
    %3559 = vmatprep.subr.mxu0 0.0
    %3560 = vmatpush1.msra.mxu0 %v3531
    %3561 = vmatprep.subr.mxu0 0.0
    %3562 = vmatpush1.msra.mxu0 %v3517
    %3563 = vmatprep.subr.mxu0 0.0
    %3564 = vmatpush1.msra.mxu0 %v3515
    %3565 = vmatprep.subr.mxu0 0.0
    %3566 = vmatpush2.msra.mxu0 0.0
    %3567 = vmatprep.subr.mxu0 0.0
    %3568 = vmatpush2.msra.mxu0 0.0
    %3569 = vmatprep.subr.mxu0 0.0
    %3570 = vmatpush2.msra.mxu0 0.0
    %3571 = vmatprep.subr.mxu0 0.0
    %3572 = vmatpush2.msra.mxu0 0.0
    %3573 = vmatprep.subr.mxu0 0.0
    %3574 = vmatpush2.msra.mxu0 0.0
    %3575 = vmatprep.subr.mxu0 0.0
    %3576 = vmatpush2.msra.mxu0 0.0
    %3577 = vmatprep.subr.mxu0 0.0
    %3578 = vmatpush2.msra.mxu0 0.0
    %3579 = vmatprep.subr.mxu0 0.0
    %3580 = vmatpush2.msra.mxu0 0.0
    %3581 = vmatprep.subr.mxu0 0.0
    %3582 = vmatpush2.msra.mxu0 0.0
    %3583 = vmatprep.subr.mxu0 0.0
    %3584 = vmatpush2.msra.mxu0 0.0
    %3585 = vmatprep.subr.mxu0 0.0
    %3586 = vmatpush2.msra.mxu0 0.0
    %3587 = vmatprep.subr.mxu0 0.0
    %3588 = vmatpush2.msra.mxu0 0.0
    %3589 = vmatprep.subr.mxu0 0.0
    %3590 = vmatpush2.msra.mxu0 0.0
    %3591 = vmatprep.subr.mxu0 0.0
    %3592 = vmatpush2.msra.mxu0 0.0
    %3593 = vmatprep.subr.mxu0 0.0
    %3594 = vmatpush2.msra.mxu0 0.0
    %3595 = vmatprep.subr.mxu0 0.0
    %3596 = vmatpush2.msra.mxu0 0.0
    %3597 = vmatprep.mubr.f32.mxu0 0.0
    %3598 = vmatmul.mubr.f32.gmra.mxu0 %v3523
    %v3599 = vpop.f32.mrf.mxu0
    %v3600 = vadd.f32 0.0, %v3599
    %v3601 = vpop.f32.mrf.mxu0
    %3602 = vmatprep.mubr.f32.mxu0 0.0
    %3603 = vmatmul.mubr.f32.gmra.mxu0 %v3526
    %v3604 = vpop.f32.mrf.mxu0
    %v3605 = vadd.f32 0.0, %v3604
    %v3606 = vpop.f32.mrf.mxu0
    %3607 = vmatprep.mubr.f32.mxu0 0.0
    %3608 = vmatmul.mubr.f32.gmra.mxu0 %v3529
    %v3609 = vpop.f32.mrf.mxu0
    %v3610 = vadd.f32 0.0, %v3609
    %v3611 = vpop.f32.mrf.mxu0
    %3612 = vdwg.mxu0
    %3613 = vrot.lane.b32.xlu0 %v2421, 108
    %v3614 = vpop.permute.xlu0 %3613
    %3615 = vrot.lane.b32.xlu0 %v2423, 108
    %v3616 = vpop.permute.xlu0 %3615
    %3617 = vrot.lane.b32.xlu0 %v2422, 108
    %v3618 = vpop.permute.xlu0 %3617
    %3619 = vrot.lane.b32.xlu0 %v2421, 76
    %v3620 = vpop.permute.xlu0 %3619
    %3621 = vrot.lane.b32.xlu0 %v2423, 76
    %v3622 = vpop.permute.xlu0 %3621
    %3623 = vrot.lane.b32.xlu0 %v2422, 76
    %v3624 = vpop.permute.xlu0 %3623
    %v3625 = vsel %vm402, %v3614, 0
    %v3627 = vsel %vm402, %v3616, 0
    %v3629 = vsel %vm402, %v3618, 0
    %v3631 = vsel %vm402, %v3620, 0
    %v3633 = vsel %vm402, %v3622, 0
    %v3635 = vsel %vm402, %v3624, 0
    %3637 = vmatprep.subr.mxu0 0.0
    %3638 = vmatpush1.xpose.msra.mxu0 0.0
    %3639 = vmatprep.subr.mxu0 0.0
    %3640 = vmatpush1.xpose.msra.mxu0 0.0
    %3641 = vmatprep.subr.mxu0 0.0
    %3642 = vmatpush1.xpose.msra.mxu0 0.0
    %3643 = vmatprep.subr.mxu0 0.0
    %3644 = vmatpush1.xpose.msra.mxu0 0.0
    %3645 = vmatprep.subr.mxu0 0.0
    %3646 = vmatpush1.xpose.msra.mxu0 0.0
    %3647 = vmatprep.subr.mxu0 0.0
    %3648 = vmatpush1.xpose.msra.mxu0 0.0
    %3649 = vmatprep.subr.mxu0 0.0
    %3650 = vmatpush1.xpose.msra.mxu0 0.0
    %3651 = vmatprep.subr.mxu0 0.0
    %3652 = vmatpush1.xpose.msra.mxu0 0.0
    %3653 = vmatprep.subr.mxu0 0.0
    %3654 = vmatpush1.xpose.msra.mxu0 0.0
    %3655 = vmatprep.subr.mxu0 0.0
    %3656 = vmatpush1.xpose.msra.mxu0 0.0
    %3657 = vmatprep.subr.mxu0 0.0
    %3658 = vmatpush1.xpose.msra.mxu0 0.0
    %3659 = vmatprep.subr.mxu0 0.0
    %3660 = vmatpush1.xpose.msra.mxu0 0.0
    %3661 = vmatprep.subr.mxu0 0.0
    %3662 = vmatpush1.xpose.msra.mxu0 0.0
    %3663 = vmatprep.subr.mxu0 0.0
    %3664 = vmatpush1.xpose.msra.mxu0 %v3635
    %3665 = vmatprep.subr.mxu0 0.0
    %3666 = vmatpush1.xpose.msra.mxu0 %v3633
    %3667 = vmatprep.subr.mxu0 0.0
    %3668 = vmatpush1.xpose.msra.mxu0 %v3631
    %3669 = vmatprep.subr.mxu0 0.0
    %3670 = vmatpush2.xpose.msra.mxu0 0.0
    %3671 = vmatprep.subr.mxu0 0.0
    %3672 = vmatpush2.xpose.msra.mxu0 0.0
    %3673 = vmatprep.subr.mxu0 0.0
    %3674 = vmatpush2.xpose.msra.mxu0 0.0
    %3675 = vmatprep.subr.mxu0 0.0
    %3676 = vmatpush2.xpose.msra.mxu0 0.0
    %3677 = vmatprep.subr.mxu0 0.0
    %3678 = vmatpush2.xpose.msra.mxu0 0.0
    %3679 = vmatprep.subr.mxu0 0.0
    %3680 = vmatpush2.xpose.msra.mxu0 0.0
    %3681 = vmatprep.subr.mxu0 0.0
    %3682 = vmatpush2.xpose.msra.mxu0 0.0
    %3683 = vmatprep.subr.mxu0 0.0
    %3684 = vmatpush2.xpose.msra.mxu0 0.0
    %3685 = vmatprep.subr.mxu0 0.0
    %3686 = vmatpush2.xpose.msra.mxu0 0.0
    %3687 = vmatprep.subr.mxu0 0.0
    %3688 = vmatpush2.xpose.msra.mxu0 0.0
    %3689 = vmatprep.subr.mxu0 0.0
    %3690 = vmatpush2.xpose.msra.mxu0 0.0
    %3691 = vmatprep.subr.mxu0 0.0
    %3692 = vmatpush2.xpose.msra.mxu0 0.0
    %3693 = vmatprep.subr.mxu0 0.0
    %3694 = vmatpush2.xpose.msra.mxu0 0.0
    %3695 = vmatprep.subr.mxu0 0.0
    %3696 = vmatpush2.xpose.msra.mxu0 0.0
    %3697 = vmatprep.subr.mxu0 0.0
    %3698 = vmatpush2.xpose.msra.mxu0 0.0
    %3699 = vmatprep.subr.mxu0 0.0
    %3700 = vmatpush2.xpose.msra.mxu0 0.0
    %3701 = vmatprep.mubr.f32.mxu0 0.0
    %3702 = vmatmul.mubr.f32.gmra.mxu0 %v3625
    %v3703 = vpop.f32.mrf.mxu0
    %v3704 = vadd.f32 0.0, %v3703
    %v3705 = vpop.f32.mrf.mxu0
    %3706 = vmatprep.mubr.f32.mxu0 0.0
    %3707 = vmatmul.mubr.f32.gmra.mxu0 %v3627
    %v3708 = vpop.f32.mrf.mxu0
    %v3709 = vadd.f32 0.0, %v3708
    %v3710 = vpop.f32.mrf.mxu0
    %3711 = vmatprep.mubr.f32.mxu0 0.0
    %3712 = vmatmul.mubr.f32.gmra.mxu0 %v3629
    %v3713 = vpop.f32.mrf.mxu0
    %v3714 = vadd.f32 0.0, %v3713
    %v3715 = vpop.f32.mrf.mxu0
    %3716 = vdwg.mxu0
    %v3717 = vmul.f32 %v3704, 0.5
    %v3718 = vmul.f32 %v3709, 0.5
    %v3719 = vmul.f32 %v3714, 0.5
    %v3720 = vsel %vm498, %v3717, -inf
    %3721 = vmax.xlane.f32.xlu0 %v3720
    %v3722 = vpop.xlane.xlu0 %3721
    %v3723 = vsel %vm498, %v3718, -inf
    %3724 = vmax.xlane.f32.xlu0 %v3723
    %v3725 = vpop.xlane.xlu0 %3724
    %v3726 = vsel %vm505, %v3719, -inf
    %3727 = vmax.xlane.f32.xlu0 %v3726
    %v3728 = vpop.xlane.xlu0 %3727
    %v3729 = vsub.f32 %v3717, %v3722
    %v3730 = vsub.f32 %v3718, %v3725
    %v3731 = vsub.f32 %v3719, %v3728
    %v3732 = vmul.f32 %v3729, 1.442695
    %v3733 = vpow.pop %v3732
    %v3734 = vmul.f32 %v3730, 1.442695
    %v3735 = vpow.pop %v3734
    %v3736 = vmul.f32 %v3731, 1.442695
    %v3737 = vpow.pop %v3736
    %v3738 = vsel %vm498, %v3733, 0.0
    %3739 = vadd.xlane.f32.xlu0 %v3738
    %v3740 = vpop.xlane.xlu0 %3739
    %v3741 = vsel %vm498, %v3735, 0.0
    %3742 = vadd.xlane.f32.xlu0 %v3741
    %v3743 = vpop.xlane.xlu0 %3742
    %v3744 = vsel %vm505, %v3737, 0.0
    %3745 = vadd.xlane.f32.xlu0 %v3744
    %v3746 = vpop.xlane.xlu0 %3745
    %v3747 = vrcp.pop %v3740
    %v3748 = vmul.f32 %v3733, %v3747
    %v3749 = vrcp.pop %v3743
    %v3750 = vmul.f32 %v3735, %v3749
    %v3751 = vrcp.pop %v3746
    %v3752 = vmul.f32 %v3737, %v3751
    %3753 = vrot.lane.b32.xlu0 %v2421, 44
    %v3754 = vpop.permute.xlu0 %3753
    %3755 = vrot.lane.b32.xlu0 %v2423, 44
    %v3756 = vpop.permute.xlu0 %3755
    %3757 = vrot.lane.b32.xlu0 %v2422, 44
    %v3758 = vpop.permute.xlu0 %3757
    %v3762 = vsel %vm498, %v3748, 0
    %v3765 = vsel %vm498, %v3750, 0
    %v3768 = vsel %vm498, %v3752, 0
    %v3770 = vsel %vm68, %v3758, 0
    %3772 = vmatprep.subr.mxu0 0.0
    %3773 = vmatpush1.msra.mxu0 0.0
    %3774 = vmatprep.subr.mxu0 0.0
    %3775 = vmatpush1.msra.mxu0 0.0
    %3776 = vmatprep.subr.mxu0 0.0
    %3777 = vmatpush1.msra.mxu0 0.0
    %3778 = vmatprep.subr.mxu0 0.0
    %3779 = vmatpush1.msra.mxu0 0.0
    %3780 = vmatprep.subr.mxu0 0.0
    %3781 = vmatpush1.msra.mxu0 0.0
    %3782 = vmatprep.subr.mxu0 0.0
    %3783 = vmatpush1.msra.mxu0 0.0
    %3784 = vmatprep.subr.mxu0 0.0
    %3785 = vmatpush1.msra.mxu0 0.0
    %3786 = vmatprep.subr.mxu0 0.0
    %3787 = vmatpush1.msra.mxu0 0.0
    %3788 = vmatprep.subr.mxu0 0.0
    %3789 = vmatpush1.msra.mxu0 0.0
    %3790 = vmatprep.subr.mxu0 0.0
    %3791 = vmatpush1.msra.mxu0 0.0
    %3792 = vmatprep.subr.mxu0 0.0
    %3793 = vmatpush1.msra.mxu0 0.0
    %3794 = vmatprep.subr.mxu0 0.0
    %3795 = vmatpush1.msra.mxu0 0.0
    %3796 = vmatprep.subr.mxu0 0.0
    %3797 = vmatpush1.msra.mxu0 0.0
    %3798 = vmatprep.subr.mxu0 0.0
    %3799 = vmatpush1.msra.mxu0 %v3770
    %3800 = vmatprep.subr.mxu0 0.0
    %3801 = vmatpush1.msra.mxu0 %v3756
    %3802 = vmatprep.subr.mxu0 0.0
    %3803 = vmatpush1.msra.mxu0 %v3754
    %3804 = vmatprep.subr.mxu0 0.0
    %3805 = vmatpush2.msra.mxu0 0.0
    %3806 = vmatprep.subr.mxu0 0.0
    %3807 = vmatpush2.msra.mxu0 0.0
    %3808 = vmatprep.subr.mxu0 0.0
    %3809 = vmatpush2.msra.mxu0 0.0
    %3810 = vmatprep.subr.mxu0 0.0
    %3811 = vmatpush2.msra.mxu0 0.0
    %3812 = vmatprep.subr.mxu0 0.0
    %3813 = vmatpush2.msra.mxu0 0.0
    %3814 = vmatprep.subr.mxu0 0.0
    %3815 = vmatpush2.msra.mxu0 0.0
    %3816 = vmatprep.subr.mxu0 0.0
    %3817 = vmatpush2.msra.mxu0 0.0
    %3818 = vmatprep.subr.mxu0 0.0
    %3819 = vmatpush2.msra.mxu0 0.0
    %3820 = vmatprep.subr.mxu0 0.0
    %3821 = vmatpush2.msra.mxu0 0.0
    %3822 = vmatprep.subr.mxu0 0.0
    %3823 = vmatpush2.msra.mxu0 0.0
    %3824 = vmatprep.subr.mxu0 0.0
    %3825 = vmatpush2.msra.mxu0 0.0
    %3826 = vmatprep.subr.mxu0 0.0
    %3827 = vmatpush2.msra.mxu0 0.0
    %3828 = vmatprep.subr.mxu0 0.0
    %3829 = vmatpush2.msra.mxu0 0.0
    %3830 = vmatprep.subr.mxu0 0.0
    %3831 = vmatpush2.msra.mxu0 0.0
    %3832 = vmatprep.subr.mxu0 0.0
    %3833 = vmatpush2.msra.mxu0 0.0
    %3834 = vmatprep.subr.mxu0 0.0
    %3835 = vmatpush2.msra.mxu0 0.0
    %3836 = vmatprep.mubr.f32.mxu0 0.0
    %3837 = vmatmul.mubr.f32.gmra.mxu0 %v3762
    %v3838 = vpop.f32.mrf.mxu0
    %v3839 = vadd.f32 0.0, %v3838
    %v3840 = vpop.f32.mrf.mxu0
    %3841 = vmatprep.mubr.f32.mxu0 0.0
    %3842 = vmatmul.mubr.f32.gmra.mxu0 %v3765
    %v3843 = vpop.f32.mrf.mxu0
    %v3844 = vadd.f32 0.0, %v3843
    %v3845 = vpop.f32.mrf.mxu0
    %3846 = vmatprep.mubr.f32.mxu0 0.0
    %3847 = vmatmul.mubr.f32.gmra.mxu0 %v3768
    %v3848 = vpop.f32.mrf.mxu0
    %v3849 = vadd.f32 0.0, %v3848
    %v3850 = vpop.f32.mrf.mxu0
    %3851 = vdwg.mxu0
    %3852 = vrot.lane.b32.xlu0 %v2421, 104
    %v3853 = vpop.permute.xlu0 %3852
    %3854 = vrot.lane.b32.xlu0 %v2423, 104
    %v3855 = vpop.permute.xlu0 %3854
    %3856 = vrot.lane.b32.xlu0 %v2422, 104
    %v3857 = vpop.permute.xlu0 %3856
    %3858 = vrot.lane.b32.xlu0 %v2421, 72
    %v3859 = vpop.permute.xlu0 %3858
    %3860 = vrot.lane.b32.xlu0 %v2423, 72
    %v3861 = vpop.permute.xlu0 %3860
    %3862 = vrot.lane.b32.xlu0 %v2422, 72
    %v3863 = vpop.permute.xlu0 %3862
    %v3864 = vsel %vm402, %v3853, 0
    %v3866 = vsel %vm402, %v3855, 0
    %v3868 = vsel %vm402, %v3857, 0
    %v3870 = vsel %vm402, %v3859, 0
    %v3872 = vsel %vm402, %v3861, 0
    %v3874 = vsel %vm402, %v3863, 0
    %3876 = vmatprep.subr.mxu0 0.0
    %3877 = vmatpush1.xpose.msra.mxu0 0.0
    %3878 = vmatprep.subr.mxu0 0.0
    %3879 = vmatpush1.xpose.msra.mxu0 0.0
    %3880 = vmatprep.subr.mxu0 0.0
    %3881 = vmatpush1.xpose.msra.mxu0 0.0
    %3882 = vmatprep.subr.mxu0 0.0
    %3883 = vmatpush1.xpose.msra.mxu0 0.0
    %3884 = vmatprep.subr.mxu0 0.0
    %3885 = vmatpush1.xpose.msra.mxu0 0.0
    %3886 = vmatprep.subr.mxu0 0.0
    %3887 = vmatpush1.xpose.msra.mxu0 0.0
    %3888 = vmatprep.subr.mxu0 0.0
    %3889 = vmatpush1.xpose.msra.mxu0 0.0
    %3890 = vmatprep.subr.mxu0 0.0
    %3891 = vmatpush1.xpose.msra.mxu0 0.0
    %3892 = vmatprep.subr.mxu0 0.0
    %3893 = vmatpush1.xpose.msra.mxu0 0.0
    %3894 = vmatprep.subr.mxu0 0.0
    %3895 = vmatpush1.xpose.msra.mxu0 0.0
    %3896 = vmatprep.subr.mxu0 0.0
    %3897 = vmatpush1.xpose.msra.mxu0 0.0
    %3898 = vmatprep.subr.mxu0 0.0
    %3899 = vmatpush1.xpose.msra.mxu0 0.0
    %3900 = vmatprep.subr.mxu0 0.0
    %3901 = vmatpush1.xpose.msra.mxu0 0.0
    %3902 = vmatprep.subr.mxu0 0.0
    %3903 = vmatpush1.xpose.msra.mxu0 %v3874
    %3904 = vmatprep.subr.mxu0 0.0
    %3905 = vmatpush1.xpose.msra.mxu0 %v3872
    %3906 = vmatprep.subr.mxu0 0.0
    %3907 = vmatpush1.xpose.msra.mxu0 %v3870
    %3908 = vmatprep.subr.mxu0 0.0
    %3909 = vmatpush2.xpose.msra.mxu0 0.0
    %3910 = vmatprep.subr.mxu0 0.0
    %3911 = vmatpush2.xpose.msra.mxu0 0.0
    %3912 = vmatprep.subr.mxu0 0.0
    %3913 = vmatpush2.xpose.msra.mxu0 0.0
    %3914 = vmatprep.subr.mxu0 0.0
    %3915 = vmatpush2.xpose.msra.mxu0 0.0
    %3916 = vmatprep.subr.mxu0 0.0
    %3917 = vmatpush2.xpose.msra.mxu0 0.0
    %3918 = vmatprep.subr.mxu0 0.0
    %3919 = vmatpush2.xpose.msra.mxu0 0.0
    %3920 = vmatprep.subr.mxu0 0.0
    %3921 = vmatpush2.xpose.msra.mxu0 0.0
    %3922 = vmatprep.subr.mxu0 0.0
    %3923 = vmatpush2.xpose.msra.mxu0 0.0
    %3924 = vmatprep.subr.mxu0 0.0
    %3925 = vmatpush2.xpose.msra.mxu0 0.0
    %3926 = vmatprep.subr.mxu0 0.0
    %3927 = vmatpush2.xpose.msra.mxu0 0.0
    %3928 = vmatprep.subr.mxu0 0.0
    %3929 = vmatpush2.xpose.msra.mxu0 0.0
    %3930 = vmatprep.subr.mxu0 0.0
    %3931 = vmatpush2.xpose.msra.mxu0 0.0
    %3932 = vmatprep.subr.mxu0 0.0
    %3933 = vmatpush2.xpose.msra.mxu0 0.0
    %3934 = vmatprep.subr.mxu0 0.0
    %3935 = vmatpush2.xpose.msra.mxu0 0.0
    %3936 = vmatprep.subr.mxu0 0.0
    %3937 = vmatpush2.xpose.msra.mxu0 0.0
    %3938 = vmatprep.subr.mxu0 0.0
    %3939 = vmatpush2.xpose.msra.mxu0 0.0
    %3940 = vmatprep.mubr.f32.mxu0 0.0
    %3941 = vmatmul.mubr.f32.gmra.mxu0 %v3864
    %v3942 = vpop.f32.mrf.mxu0
    %v3943 = vadd.f32 0.0, %v3942
    %v3944 = vpop.f32.mrf.mxu0
    %3945 = vmatprep.mubr.f32.mxu0 0.0
    %3946 = vmatmul.mubr.f32.gmra.mxu0 %v3866
    %v3947 = vpop.f32.mrf.mxu0
    %v3948 = vadd.f32 0.0, %v3947
    %v3949 = vpop.f32.mrf.mxu0
    %3950 = vmatprep.mubr.f32.mxu0 0.0
    %3951 = vmatmul.mubr.f32.gmra.mxu0 %v3868
    %v3952 = vpop.f32.mrf.mxu0
    %v3953 = vadd.f32 0.0, %v3952
    %v3954 = vpop.f32.mrf.mxu0
    %3955 = vdwg.mxu0
    %v3956 = vmul.f32 %v3943, 0.5
    %v3957 = vmul.f32 %v3948, 0.5
    %v3958 = vmul.f32 %v3953, 0.5
    %v3959 = vsel %vm498, %v3956, -inf
    %3960 = vmax.xlane.f32.xlu0 %v3959
    %v3961 = vpop.xlane.xlu0 %3960
    %v3962 = vsel %vm498, %v3957, -inf
    %3963 = vmax.xlane.f32.xlu0 %v3962
    %v3964 = vpop.xlane.xlu0 %3963
    %v3965 = vsel %vm505, %v3958, -inf
    %3966 = vmax.xlane.f32.xlu0 %v3965
    %v3967 = vpop.xlane.xlu0 %3966
    %v3968 = vsub.f32 %v3956, %v3961
    %v3969 = vsub.f32 %v3957, %v3964
    %v3970 = vsub.f32 %v3958, %v3967
    %v3971 = vmul.f32 %v3968, 1.442695
    %v3972 = vpow.pop %v3971
    %v3973 = vmul.f32 %v3969, 1.442695
    %v3974 = vpow.pop %v3973
    %v3975 = vmul.f32 %v3970, 1.442695
    %v3976 = vpow.pop %v3975
    %v3977 = vsel %vm498, %v3972, 0.0
    %3978 = vadd.xlane.f32.xlu0 %v3977
    %v3979 = vpop.xlane.xlu0 %3978
    %v3980 = vsel %vm498, %v3974, 0.0
    %3981 = vadd.xlane.f32.xlu0 %v3980
    %v3982 = vpop.xlane.xlu0 %3981
    %v3983 = vsel %vm505, %v3976, 0.0
    %3984 = vadd.xlane.f32.xlu0 %v3983
    %v3985 = vpop.xlane.xlu0 %3984
    %v3986 = vrcp.pop %v3979
    %v3987 = vmul.f32 %v3972, %v3986
    %v3988 = vrcp.pop %v3982
    %v3989 = vmul.f32 %v3974, %v3988
    %v3990 = vrcp.pop %v3985
    %v3991 = vmul.f32 %v3976, %v3990
    %3992 = vrot.lane.b32.xlu0 %v2421, 40
    %v3993 = vpop.permute.xlu0 %3992
    %3994 = vrot.lane.b32.xlu0 %v2423, 40
    %v3995 = vpop.permute.xlu0 %3994
    %3996 = vrot.lane.b32.xlu0 %v2422, 40
    %v3997 = vpop.permute.xlu0 %3996
    %v4001 = vsel %vm498, %v3987, 0
    %v4004 = vsel %vm498, %v3989, 0
    %v4007 = vsel %vm498, %v3991, 0
    %v4009 = vsel %vm68, %v3997, 0
    %4011 = vmatprep.subr.mxu0 0.0
    %4012 = vmatpush1.msra.mxu0 0.0
    %4013 = vmatprep.subr.mxu0 0.0
    %4014 = vmatpush1.msra.mxu0 0.0
    %4015 = vmatprep.subr.mxu0 0.0
    %4016 = vmatpush1.msra.mxu0 0.0
    %4017 = vmatprep.subr.mxu0 0.0
    %4018 = vmatpush1.msra.mxu0 0.0
    %4019 = vmatprep.subr.mxu0 0.0
    %4020 = vmatpush1.msra.mxu0 0.0
    %4021 = vmatprep.subr.mxu0 0.0
    %4022 = vmatpush1.msra.mxu0 0.0
    %4023 = vmatprep.subr.mxu0 0.0
    %4024 = vmatpush1.msra.mxu0 0.0
    %4025 = vmatprep.subr.mxu0 0.0
    %4026 = vmatpush1.msra.mxu0 0.0
    %4027 = vmatprep.subr.mxu0 0.0
    %4028 = vmatpush1.msra.mxu0 0.0
    %4029 = vmatprep.subr.mxu0 0.0
    %4030 = vmatpush1.msra.mxu0 0.0
    %4031 = vmatprep.subr.mxu0 0.0
    %4032 = vmatpush1.msra.mxu0 0.0
    %4033 = vmatprep.subr.mxu0 0.0
    %4034 = vmatpush1.msra.mxu0 0.0
    %4035 = vmatprep.subr.mxu0 0.0
    %4036 = vmatpush1.msra.mxu0 0.0
    %4037 = vmatprep.subr.mxu0 0.0
    %4038 = vmatpush1.msra.mxu0 %v4009
    %4039 = vmatprep.subr.mxu0 0.0
    %4040 = vmatpush1.msra.mxu0 %v3995
    %4041 = vmatprep.subr.mxu0 0.0
    %4042 = vmatpush1.msra.mxu0 %v3993
    %4043 = vmatprep.subr.mxu0 0.0
    %4044 = vmatpush2.msra.mxu0 0.0
    %4045 = vmatprep.subr.mxu0 0.0
    %4046 = vmatpush2.msra.mxu0 0.0
    %4047 = vmatprep.subr.mxu0 0.0
    %4048 = vmatpush2.msra.mxu0 0.0
    %4049 = vmatprep.subr.mxu0 0.0
    %4050 = vmatpush2.msra.mxu0 0.0
    %4051 = vmatprep.subr.mxu0 0.0
    %4052 = vmatpush2.msra.mxu0 0.0
    %4053 = vmatprep.subr.mxu0 0.0
    %4054 = vmatpush2.msra.mxu0 0.0
    %4055 = vmatprep.subr.mxu0 0.0
    %4056 = vmatpush2.msra.mxu0 0.0
    %4057 = vmatprep.subr.mxu0 0.0
    %4058 = vmatpush2.msra.mxu0 0.0
    %4059 = vmatprep.subr.mxu0 0.0
    %4060 = vmatpush2.msra.mxu0 0.0
    %4061 = vmatprep.subr.mxu0 0.0
    %4062 = vmatpush2.msra.mxu0 0.0
    %4063 = vmatprep.subr.mxu0 0.0
    %4064 = vmatpush2.msra.mxu0 0.0
    %4065 = vmatprep.subr.mxu0 0.0
    %4066 = vmatpush2.msra.mxu0 0.0
    %4067 = vmatprep.subr.mxu0 0.0
    %4068 = vmatpush2.msra.mxu0 0.0
    %4069 = vmatprep.subr.mxu0 0.0
    %4070 = vmatpush2.msra.mxu0 0.0
    %4071 = vmatprep.subr.mxu0 0.0
    %4072 = vmatpush2.msra.mxu0 0.0
    %4073 = vmatprep.subr.mxu0 0.0
    %4074 = vmatpush2.msra.mxu0 0.0
    %4075 = vmatprep.mubr.f32.mxu0 0.0
    %4076 = vmatmul.mubr.f32.gmra.mxu0 %v4001
    %v4077 = vpop.f32.mrf.mxu0
    %v4078 = vadd.f32 0.0, %v4077
    %v4079 = vpop.f32.mrf.mxu0
    %4080 = vmatprep.mubr.f32.mxu0 0.0
    %4081 = vmatmul.mubr.f32.gmra.mxu0 %v4004
    %v4082 = vpop.f32.mrf.mxu0
    %v4083 = vadd.f32 0.0, %v4082
    %v4084 = vpop.f32.mrf.mxu0
    %4085 = vmatprep.mubr.f32.mxu0 0.0
    %4086 = vmatmul.mubr.f32.gmra.mxu0 %v4007
    %v4087 = vpop.f32.mrf.mxu0
    %v4088 = vadd.f32 0.0, %v4087
    %v4089 = vpop.f32.mrf.mxu0
    %4090 = vdwg.mxu0
    %4091 = vrot.lane.b32.xlu0 %v2421, 100
    %v4092 = vpop.permute.xlu0 %4091
    %4093 = vrot.lane.b32.xlu0 %v2423, 100
    %v4094 = vpop.permute.xlu0 %4093
    %4095 = vrot.lane.b32.xlu0 %v2422, 100
    %v4096 = vpop.permute.xlu0 %4095
    %4097 = vrot.lane.b32.xlu0 %v2421, 68
    %v4098 = vpop.permute.xlu0 %4097
    %4099 = vrot.lane.b32.xlu0 %v2423, 68
    %v4100 = vpop.permute.xlu0 %4099
    %4101 = vrot.lane.b32.xlu0 %v2422, 68
    %v4102 = vpop.permute.xlu0 %4101
    %v4103 = vsel %vm402, %v4092, 0
    %v4105 = vsel %vm402, %v4094, 0
    %v4107 = vsel %vm402, %v4096, 0
    %v4109 = vsel %vm402, %v4098, 0
    %v4111 = vsel %vm402, %v4100, 0
    %v4113 = vsel %vm402, %v4102, 0
    %4115 = vmatprep.subr.mxu0 0.0
    %4116 = vmatpush1.xpose.msra.mxu0 0.0
    %4117 = vmatprep.subr.mxu0 0.0
    %4118 = vmatpush1.xpose.msra.mxu0 0.0
    %4119 = vmatprep.subr.mxu0 0.0
    %4120 = vmatpush1.xpose.msra.mxu0 0.0
    %4121 = vmatprep.subr.mxu0 0.0
    %4122 = vmatpush1.xpose.msra.mxu0 0.0
    %4123 = vmatprep.subr.mxu0 0.0
    %4124 = vmatpush1.xpose.msra.mxu0 0.0
    %4125 = vmatprep.subr.mxu0 0.0
    %4126 = vmatpush1.xpose.msra.mxu0 0.0
    %4127 = vmatprep.subr.mxu0 0.0
    %4128 = vmatpush1.xpose.msra.mxu0 0.0
    %4129 = vmatprep.subr.mxu0 0.0
    %4130 = vmatpush1.xpose.msra.mxu0 0.0
    %4131 = vmatprep.subr.mxu0 0.0
    %4132 = vmatpush1.xpose.msra.mxu0 0.0
    %4133 = vmatprep.subr.mxu0 0.0
    %4134 = vmatpush1.xpose.msra.mxu0 0.0
    %4135 = vmatprep.subr.mxu0 0.0
    %4136 = vmatpush1.xpose.msra.mxu0 0.0
    %4137 = vmatprep.subr.mxu0 0.0
    %4138 = vmatpush1.xpose.msra.mxu0 0.0
    %4139 = vmatprep.subr.mxu0 0.0
    %4140 = vmatpush1.xpose.msra.mxu0 0.0
    %4141 = vmatprep.subr.mxu0 0.0
    %4142 = vmatpush1.xpose.msra.mxu0 %v4113
    %4143 = vmatprep.subr.mxu0 0.0
    %4144 = vmatpush1.xpose.msra.mxu0 %v4111
    %4145 = vmatprep.subr.mxu0 0.0
    %4146 = vmatpush1.xpose.msra.mxu0 %v4109
    %4147 = vmatprep.subr.mxu0 0.0
    %4148 = vmatpush2.xpose.msra.mxu0 0.0
    %4149 = vmatprep.subr.mxu0 0.0
    %4150 = vmatpush2.xpose.msra.mxu0 0.0
    %4151 = vmatprep.subr.mxu0 0.0
    %4152 = vmatpush2.xpose.msra.mxu0 0.0
    %4153 = vmatprep.subr.mxu0 0.0
    %4154 = vmatpush2.xpose.msra.mxu0 0.0
    %4155 = vmatprep.subr.mxu0 0.0
    %4156 = vmatpush2.xpose.msra.mxu0 0.0
    %4157 = vmatprep.subr.mxu0 0.0
    %4158 = vmatpush2.xpose.msra.mxu0 0.0
    %4159 = vmatprep.subr.mxu0 0.0
    %4160 = vmatpush2.xpose.msra.mxu0 0.0
    %4161 = vmatprep.subr.mxu0 0.0
    %4162 = vmatpush2.xpose.msra.mxu0 0.0
    %4163 = vmatprep.subr.mxu0 0.0
    %4164 = vmatpush2.xpose.msra.mxu0 0.0
    %4165 = vmatprep.subr.mxu0 0.0
    %4166 = vmatpush2.xpose.msra.mxu0 0.0
    %4167 = vmatprep.subr.mxu0 0.0
    %4168 = vmatpush2.xpose.msra.mxu0 0.0
    %4169 = vmatprep.subr.mxu0 0.0
    %4170 = vmatpush2.xpose.msra.mxu0 0.0
    %4171 = vmatprep.subr.mxu0 0.0
    %4172 = vmatpush2.xpose.msra.mxu0 0.0
    %4173 = vmatprep.subr.mxu0 0.0
    %4174 = vmatpush2.xpose.msra.mxu0 0.0
    %4175 = vmatprep.subr.mxu0 0.0
    %4176 = vmatpush2.xpose.msra.mxu0 0.0
    %4177 = vmatprep.subr.mxu0 0.0
    %4178 = vmatpush2.xpose.msra.mxu0 0.0
    %4179 = vmatprep.mubr.f32.mxu0 0.0
    %4180 = vmatmul.mubr.f32.gmra.mxu0 %v4103
    %v4181 = vpop.f32.mrf.mxu0
    %v4182 = vadd.f32 0.0, %v4181
    %v4183 = vpop.f32.mrf.mxu0
    %4184 = vmatprep.mubr.f32.mxu0 0.0
    %4185 = vmatmul.mubr.f32.gmra.mxu0 %v4105
    %v4186 = vpop.f32.mrf.mxu0
    %v4187 = vadd.f32 0.0, %v4186
    %v4188 = vpop.f32.mrf.mxu0
    %4189 = vmatprep.mubr.f32.mxu0 0.0
    %4190 = vmatmul.mubr.f32.gmra.mxu0 %v4107
    %v4191 = vpop.f32.mrf.mxu0
    %v4192 = vadd.f32 0.0, %v4191
    %v4193 = vpop.f32.mrf.mxu0
    %4194 = vdwg.mxu0
    %v4195 = vmul.f32 %v4182, 0.5
    %v4196 = vmul.f32 %v4187, 0.5
    %v4197 = vmul.f32 %v4192, 0.5
    %v4198 = vsel %vm498, %v4195, -inf
    %4199 = vmax.xlane.f32.xlu0 %v4198
    %v4200 = vpop.xlane.xlu0 %4199
    %v4201 = vsel %vm498, %v4196, -inf
    %4202 = vmax.xlane.f32.xlu0 %v4201
    %v4203 = vpop.xlane.xlu0 %4202
    %v4204 = vsel %vm505, %v4197, -inf
    %4205 = vmax.xlane.f32.xlu0 %v4204
    %v4206 = vpop.xlane.xlu0 %4205
    %v4207 = vsub.f32 %v4195, %v4200
    %v4208 = vsub.f32 %v4196, %v4203
    %v4209 = vsub.f32 %v4197, %v4206
    %v4210 = vmul.f32 %v4207, 1.442695
    %v4211 = vpow.pop %v4210
    %v4212 = vmul.f32 %v4208, 1.442695
    %v4213 = vpow.pop %v4212
    %v4214 = vmul.f32 %v4209, 1.442695
    %v4215 = vpow.pop %v4214
    %v4216 = vsel %vm498, %v4211, 0.0
    %4217 = vadd.xlane.f32.xlu0 %v4216
    %v4218 = vpop.xlane.xlu0 %4217
    %v4219 = vsel %vm498, %v4213, 0.0
    %4220 = vadd.xlane.f32.xlu0 %v4219
    %v4221 = vpop.xlane.xlu0 %4220
    %v4222 = vsel %vm505, %v4215, 0.0
    %4223 = vadd.xlane.f32.xlu0 %v4222
    %v4224 = vpop.xlane.xlu0 %4223
    %v4225 = vrcp.pop %v4218
    %v4226 = vmul.f32 %v4211, %v4225
    %v4227 = vrcp.pop %v4221
    %v4228 = vmul.f32 %v4213, %v4227
    %v4229 = vrcp.pop %v4224
    %v4230 = vmul.f32 %v4215, %v4229
    %4231 = vrot.lane.b32.xlu0 %v2421, 36
    %v4232 = vpop.permute.xlu0 %4231
    %4233 = vrot.lane.b32.xlu0 %v2423, 36
    %v4234 = vpop.permute.xlu0 %4233
    %4235 = vrot.lane.b32.xlu0 %v2422, 36
    %v4236 = vpop.permute.xlu0 %4235
    %v4240 = vsel %vm498, %v4226, 0
    %v4243 = vsel %vm498, %v4228, 0
    %v4246 = vsel %vm498, %v4230, 0
    %v4248 = vsel %vm68, %v4236, 0
    %4250 = vmatprep.subr.mxu0 0.0
    %4251 = vmatpush1.msra.mxu0 0.0
    %4252 = vmatprep.subr.mxu0 0.0
    %4253 = vmatpush1.msra.mxu0 0.0
    %4254 = vmatprep.subr.mxu0 0.0
    %4255 = vmatpush1.msra.mxu0 0.0
    %4256 = vmatprep.subr.mxu0 0.0
    %4257 = vmatpush1.msra.mxu0 0.0
    %4258 = vmatprep.subr.mxu0 0.0
    %4259 = vmatpush1.msra.mxu0 0.0
    %4260 = vmatprep.subr.mxu0 0.0
    %4261 = vmatpush1.msra.mxu0 0.0
    %4262 = vmatprep.subr.mxu0 0.0
    %4263 = vmatpush1.msra.mxu0 0.0
    %4264 = vmatprep.subr.mxu0 0.0
    %4265 = vmatpush1.msra.mxu0 0.0
    %4266 = vmatprep.subr.mxu0 0.0
    %4267 = vmatpush1.msra.mxu0 0.0
    %4268 = vmatprep.subr.mxu0 0.0
    %4269 = vmatpush1.msra.mxu0 0.0
    %4270 = vmatprep.subr.mxu0 0.0
    %4271 = vmatpush1.msra.mxu0 0.0
    %4272 = vmatprep.subr.mxu0 0.0
    %4273 = vmatpush1.msra.mxu0 0.0
    %4274 = vmatprep.subr.mxu0 0.0
    %4275 = vmatpush1.msra.mxu0 0.0
    %4276 = vmatprep.subr.mxu0 0.0
    %4277 = vmatpush1.msra.mxu0 %v4248
    %4278 = vmatprep.subr.mxu0 0.0
    %4279 = vmatpush1.msra.mxu0 %v4234
    %4280 = vmatprep.subr.mxu0 0.0
    %4281 = vmatpush1.msra.mxu0 %v4232
    %4282 = vmatprep.subr.mxu0 0.0
    %4283 = vmatpush2.msra.mxu0 0.0
    %4284 = vmatprep.subr.mxu0 0.0
    %4285 = vmatpush2.msra.mxu0 0.0
    %4286 = vmatprep.subr.mxu0 0.0
    %4287 = vmatpush2.msra.mxu0 0.0
    %4288 = vmatprep.subr.mxu0 0.0
    %4289 = vmatpush2.msra.mxu0 0.0
    %4290 = vmatprep.subr.mxu0 0.0
    %4291 = vmatpush2.msra.mxu0 0.0
    %4292 = vmatprep.subr.mxu0 0.0
    %4293 = vmatpush2.msra.mxu0 0.0
    %4294 = vmatprep.subr.mxu0 0.0
    %4295 = vmatpush2.msra.mxu0 0.0
    %4296 = vmatprep.subr.mxu0 0.0
    %4297 = vmatpush2.msra.mxu0 0.0
    %4298 = vmatprep.subr.mxu0 0.0
    %4299 = vmatpush2.msra.mxu0 0.0
    %4300 = vmatprep.subr.mxu0 0.0
    %4301 = vmatpush2.msra.mxu0 0.0
    %4302 = vmatprep.subr.mxu0 0.0
    %4303 = vmatpush2.msra.mxu0 0.0
    %4304 = vmatprep.subr.mxu0 0.0
    %4305 = vmatpush2.msra.mxu0 0.0
    %4306 = vmatprep.subr.mxu0 0.0
    %4307 = vmatpush2.msra.mxu0 0.0
    %4308 = vmatprep.subr.mxu0 0.0
    %4309 = vmatpush2.msra.mxu0 0.0
    %4310 = vmatprep.subr.mxu0 0.0
    %4311 = vmatpush2.msra.mxu0 0.0
    %4312 = vmatprep.subr.mxu0 0.0
    %4313 = vmatpush2.msra.mxu0 0.0
    %4314 = vmatprep.mubr.f32.mxu0 0.0
    %4315 = vmatmul.mubr.f32.gmra.mxu0 %v4240
    %v4316 = vpop.f32.mrf.mxu0
    %v4317 = vadd.f32 0.0, %v4316
    %v4318 = vpop.f32.mrf.mxu0
    %4319 = vmatprep.mubr.f32.mxu0 0.0
    %4320 = vmatmul.mubr.f32.gmra.mxu0 %v4243
    %v4321 = vpop.f32.mrf.mxu0
    %v4322 = vadd.f32 0.0, %v4321
    %v4323 = vpop.f32.mrf.mxu0
    %4324 = vmatprep.mubr.f32.mxu0 0.0
    %4325 = vmatmul.mubr.f32.gmra.mxu0 %v4246
    %v4326 = vpop.f32.mrf.mxu0
    %v4327 = vadd.f32 0.0, %v4326
    %v4328 = vpop.f32.mrf.mxu0
    %4329 = vdwg.mxu0
    %4333 = vrot.lane.b32.xlu0 %v2883, 4
    %v4334 = vpop.permute.xlu0 %4333
    %4335 = vrot.lane.b32.xlu0 %v2888, 4
    %v4336 = vpop.permute.xlu0 %4335
    %4337 = vrot.lane.b32.xlu0 %v2893, 4
    %v4338 = vpop.permute.xlu0 %4337
    %4345 = vrot.lane.b32.xlu0 %v3122, 8
    %v4346 = vpop.permute.xlu0 %4345
    %4347 = vrot.lane.b32.xlu0 %v3127, 8
    %v4348 = vpop.permute.xlu0 %4347
    %4349 = vrot.lane.b32.xlu0 %v3132, 8
    %v4350 = vpop.permute.xlu0 %4349
    %4357 = vrot.lane.b32.xlu0 %v3361, 12
    %v4358 = vpop.permute.xlu0 %4357
    %4359 = vrot.lane.b32.xlu0 %v3366, 12
    %v4360 = vpop.permute.xlu0 %4359
    %4361 = vrot.lane.b32.xlu0 %v3371, 12
    %v4362 = vpop.permute.xlu0 %4361
    %4369 = vrot.lane.b32.xlu0 %v3600, 16
    %v4370 = vpop.permute.xlu0 %4369
    %4371 = vrot.lane.b32.xlu0 %v3605, 16
    %v4372 = vpop.permute.xlu0 %4371
    %4373 = vrot.lane.b32.xlu0 %v3610, 16
    %v4374 = vpop.permute.xlu0 %4373
    %4381 = vrot.lane.b32.xlu0 %v3839, 20
    %v4382 = vpop.permute.xlu0 %4381
    %4383 = vrot.lane.b32.xlu0 %v3844, 20
    %v4384 = vpop.permute.xlu0 %4383
    %4385 = vrot.lane.b32.xlu0 %v3849, 20
    %v4386 = vpop.permute.xlu0 %4385
    %4393 = vrot.lane.b32.xlu0 %v4078, 24
    %v4394 = vpop.permute.xlu0 %4393
    %4395 = vrot.lane.b32.xlu0 %v4083, 24
    %v4396 = vpop.permute.xlu0 %4395
    %4397 = vrot.lane.b32.xlu0 %v4088, 24
    %v4398 = vpop.permute.xlu0 %4397
    %4405 = vrot.lane.b32.xlu0 %v4317, 28
    %v4406 = vpop.permute.xlu0 %4405
    %4407 = vrot.lane.b32.xlu0 %v4322, 28
    %v4408 = vpop.permute.xlu0 %4407
    %4409 = vrot.lane.b32.xlu0 %v4327, 28
    %v4410 = vpop.permute.xlu0 %4409
    %v4414 = vsel %vm402, %v2644, %v4334
    %v4415 = vsel %vm402, %v2649, %v4336
    %v4416 = vsel %vm402, %v2654, %v4338
    %v4417 = vsel %vm2392, %v4414, %v4346
    %v4418 = vsel %vm2392, %v4415, %v4348
    %v4419 = vsel %vm2392, %v4416, %v4350
    %v4420 = vsel %vm2396, %v4417, %v4358
    %v4421 = vsel %vm2396, %v4418, %v4360
    %v4422 = vsel %vm2396, %v4419, %v4362
    %v4423 = vsel %vm2400, %v4420, %v4370
    %v4424 = vsel %vm2400, %v4421, %v4372
    %v4425 = vsel %vm2400, %v4422, %v4374
    %v4426 = vsel %vm2404, %v4423, %v4382
    %v4427 = vsel %vm2404, %v4424, %v4384
    %v4428 = vsel %vm2404, %v4425, %v4386
    %v4429 = vsel %vm2408, %v4426, %v4394
    %v4430 = vsel %vm2408, %v4427, %v4396
    %v4431 = vsel %vm2408, %v4428, %v4398
    %v4432 = vsel %vm2412, %v4429, %v4406
    %v4433 = vsel %vm2412, %v4430, %v4408
    %v4434 = vsel %vm2412, %v4431, %v4410
    %v4438 = vrot.slane %v4432, 7
    %v4439 = vrot.slane %v4433, 7
    %v4440 = vsel %vm68, %v4438, %v4439
    %v4441 = vrot.slane %v4434, 7
    %v4442 = vsel %vm68, %v4439, %v4441
    %v4444 = vsel %vm68, %v2415, %v4438
    %v4445 = vld [vmem:[%s6] sm:$0xff]
    %v4446 = vld [vmem:[%s6 + $0x8] sm:$0xff]
    %v4447 = vld [vmem:[%s6 + $0x10] sm:$0xff]
    %v4448 = vld [vmem:[%s6 + $0x18] sm:$0xff]
    %v4450 = vsel %vm194, %v2413, 0
    %v4453 = vsel %vm194, %v2414, 0
    %v4456 = vsel %vm194, %v4444, 0
    %v4458 = vsel %vm194, %v4440, 0
    %v4460 = vsel %vm194, %v4442, 0
    %4462 = vmatprep.subr.mxu0 0.0
    %4463 = vmatpush1.msra.mxu0 0.0
    %4464 = vmatprep.subr.mxu0 0.0
    %4465 = vmatpush1.msra.mxu0 0.0
    %4466 = vmatprep.subr.mxu0 0.0
    %4467 = vmatpush1.msra.mxu0 0.0
    %4468 = vmatprep.subr.mxu0 0.0
    %4469 = vmatpush1.msra.mxu0 0.0
    %4470 = vmatprep.subr.mxu0 0.0
    %4471 = vmatpush1.msra.mxu0 0.0
    %4472 = vmatprep.subr.mxu0 0.0
    %4473 = vmatpush1.msra.mxu0 0.0
    %4474 = vmatprep.subr.mxu0 0.0
    %4475 = vmatpush1.msra.mxu0 0.0
    %4476 = vmatprep.subr.mxu0 0.0
    %4477 = vmatpush1.msra.mxu0 0.0
    %4478 = vmatprep.subr.mxu0 0.0
    %4479 = vmatpush1.msra.mxu0 0.0
    %4480 = vmatprep.subr.mxu0 0.0
    %4481 = vmatpush1.msra.mxu0 0.0
    %4482 = vmatprep.subr.mxu0 0.0
    %4483 = vmatpush1.msra.mxu0 0.0
    %4484 = vmatprep.subr.mxu0 0.0
    %4485 = vmatpush1.msra.mxu0 0.0
    %4486 = vmatprep.subr.mxu0 0.0
    %4487 = vmatpush1.msra.mxu0 %v4448
    %4488 = vmatprep.subr.mxu0 0.0
    %4489 = vmatpush1.msra.mxu0 %v4447
    %4490 = vmatprep.subr.mxu0 0.0
    %4491 = vmatpush1.msra.mxu0 %v4446
    %4492 = vmatprep.subr.mxu0 0.0
    %4493 = vmatpush1.msra.mxu0 %v4445
    %4494 = vmatprep.subr.mxu0 0.0
    %4495 = vmatpush2.msra.mxu0 0.0
    %4496 = vmatprep.subr.mxu0 0.0
    %4497 = vmatpush2.msra.mxu0 0.0
    %4498 = vmatprep.subr.mxu0 0.0
    %4499 = vmatpush2.msra.mxu0 0.0
    %4500 = vmatprep.subr.mxu0 0.0
    %4501 = vmatpush2.msra.mxu0 0.0
    %4502 = vmatprep.subr.mxu0 0.0
    %4503 = vmatpush2.msra.mxu0 0.0
    %4504 = vmatprep.subr.mxu0 0.0
    %4505 = vmatpush2.msra.mxu0 0.0
    %4506 = vmatprep.subr.mxu0 0.0
    %4507 = vmatpush2.msra.mxu0 0.0
    %4508 = vmatprep.subr.mxu0 0.0
    %4509 = vmatpush2.msra.mxu0 0.0
    %4510 = vmatprep.subr.mxu0 0.0
    %4511 = vmatpush2.msra.mxu0 0.0
    %4512 = vmatprep.subr.mxu0 0.0
    %4513 = vmatpush2.msra.mxu0 0.0
    %4514 = vmatprep.subr.mxu0 0.0
    %4515 = vmatpush2.msra.mxu0 0.0
    %4516 = vmatprep.subr.mxu0 0.0
    %4517 = vmatpush2.msra.mxu0 0.0
    %4518 = vmatprep.subr.mxu0 0.0
    %4519 = vmatpush2.msra.mxu0 0.0
    %4520 = vmatprep.subr.mxu0 0.0
    %4521 = vmatpush2.msra.mxu0 0.0
    %4522 = vmatprep.subr.mxu0 0.0
    %4523 = vmatpush2.msra.mxu0 0.0
    %4524 = vmatprep.subr.mxu0 0.0
    %4525 = vmatpush2.msra.mxu0 0.0
    %4526 = vmatprep.mubr.f32.mxu0 0.0
    %4527 = vmatmul.mubr.f32.gmra.mxu0 %v4450
    %v4528 = vpop.f32.mrf.mxu0
    %v4529 = vadd.f32 0.0, %v4528
    %v4530 = vpop.f32.mrf.mxu0
    %4531 = vmatprep.mubr.f32.mxu0 0.0
    %4532 = vmatmul.mubr.f32.gmra.mxu0 %v4453
    %v4533 = vpop.f32.mrf.mxu0
    %v4534 = vadd.f32 0.0, %v4533
    %v4535 = vpop.f32.mrf.mxu0
    %4536 = vmatprep.mubr.f32.mxu0 0.0
    %4537 = vmatmul.mubr.f32.gmra.mxu0 %v4456
    %v4538 = vpop.f32.mrf.mxu0
    %v4539 = vadd.f32 0.0, %v4538
    %v4540 = vpop.f32.mrf.mxu0
    %4541 = vmatprep.mubr.f32.mxu0 0.0
    %4542 = vmatmul.mubr.f32.gmra.mxu0 %v4458
    %v4543 = vpop.f32.mrf.mxu0
    %v4544 = vadd.f32 0.0, %v4543
    %v4545 = vpop.f32.mrf.mxu0
    %4546 = vmatprep.mubr.f32.mxu0 0.0
    %4547 = vmatmul.mubr.f32.gmra.mxu0 %v4460
    %v4548 = vpop.f32.mrf.mxu0
    %v4549 = vadd.f32 0.0, %v4548
    %v4550 = vpop.f32.mrf.mxu0
    %4551 = vdwg.mxu0
    %v4552 = vadd.f32 %v169, %v4529
    %v4553 = vadd.f32 %v174, %v4534
    %v4554 = vadd.f32 %v179, %v4539
    %v4555 = vadd.f32 %v184, %v4544
    %v4556 = vadd.f32 %v189, %v4549
    %v4557 = vld [vmem:[%s7] sm:$0x1]
    %v4558 = vld [vmem:[%s8] sm:$0x1]
    %v4559 = vsel %vm194, %v4552, 0.0
    %4560 = vadd.xlane.f32.xlu0 %v4559
    %v4561 = vpop.xlane.xlu0 %4560
    %v4562 = vsel %vm194, %v4553, 0.0
    %4563 = vadd.xlane.f32.xlu0 %v4562
    %v4564 = vpop.xlane.xlu0 %4563
    %v4565 = vsel %vm194, %v4554, 0.0
    %4566 = vadd.xlane.f32.xlu0 %v4565
    %v4567 = vpop.xlane.xlu0 %4566
    %v4568 = vsel %vm194, %v4555, 0.0
    %4569 = vadd.xlane.f32.xlu0 %v4568
    %v4570 = vpop.xlane.xlu0 %4569
    %v4571 = vsel %vm207, %v4556, 0.0
    %4572 = vadd.xlane.f32.xlu0 %v4571
    %v4573 = vpop.xlane.xlu0 %4572
    %v4574 = vmul.f32 %v4561, %v211
    %v4575 = vmul.f32 %v4564, %v211
    %v4576 = vmul.f32 %v4567, %v211
    %v4577 = vmul.f32 %v4570, %v211
    %v4578 = vmul.f32 %v4573, %v211
    %v4579 = vsub.f32 %v4552, %v4574
    %v4580 = vsub.f32 %v4553, %v4575
    %v4581 = vsub.f32 %v4554, %v4576
    %v4582 = vsub.f32 %v4555, %v4577
    %v4583 = vsub.f32 %v4556, %v4578
    %v4584 = vmul.f32 %v4579, %v4579
    %v4585 = vmul.f32 %v4580, %v4580
    %v4586 = vmul.f32 %v4581, %v4581
    %v4587 = vmul.f32 %v4582, %v4582
    %v4588 = vmul.f32 %v4583, %v4583
    %v4589 = vsel %vm194, %v4584, 0.0
    %4590 = vadd.xlane.f32.xlu0 %v4589
    %v4591 = vpop.xlane.xlu0 %4590
    %v4592 = vsel %vm194, %v4585, 0.0
    %4593 = vadd.xlane.f32.xlu0 %v4592
    %v4594 = vpop.xlane.xlu0 %4593
    %v4595 = vsel %vm194, %v4586, 0.0
    %4596 = vadd.xlane.f32.xlu0 %v4595
    %v4597 = vpop.xlane.xlu0 %4596
    %v4598 = vsel %vm194, %v4587, 0.0
    %4599 = vadd.xlane.f32.xlu0 %v4598
    %v4600 = vpop.xlane.xlu0 %4599
    %v4601 = vsel %vm207, %v4588, 0.0
    %4602 = vadd.xlane.f32.xlu0 %v4601
    %v4603 = vpop.xlane.xlu0 %4602
    %v4604 = vmul.f32 %v4591, %v211
    %v4605 = vmul.f32 %v4594, %v211
    %v4606 = vmul.f32 %v4597, %v211
    %v4607 = vmul.f32 %v4600, %v211
    %v4608 = vmul.f32 %v4603, %v211
    %v4609 = vadd.f32 %v4604, 1e-05
    %v4610 = vadd.f32 %v4605, 1e-05
    %v4611 = vadd.f32 %v4606, 1e-05
    %v4612 = vadd.f32 %v4607, 1e-05
    %v4613 = vadd.f32 %v4608, 1e-05
    %v4614 = vrsqrt.pop %v4609
    %v4615 = vrsqrt.pop %v4610
    %v4616 = vrsqrt.pop %v4611
    %v4617 = vrsqrt.pop %v4612
    %v4618 = vrsqrt.pop %v4613
    %v4619 = vmul.f32 %v4579, %v4614
    %v4620 = vmul.f32 %v4580, %v4615
    %v4621 = vmul.f32 %v4581, %v4616
    %v4622 = vmul.f32 %v4582, %v4617
    %v4623 = vmul.f32 %v4583, %v4618
    %v4625 = vlaneseq
    %v4626 = vshrl.u32 %v4625, 7
    %v4627 = vsub.s32 0, %v4626
    %v4628 = vrot.slane %v4557, %v4627
    %v4630 = vmul.f32 %v4619, %v4628
    %v4631 = vmul.f32 %v4620, %v4628
    %v4632 = vmul.f32 %v4621, %v4628
    %v4633 = vmul.f32 %v4622, %v4628
    %v4634 = vmul.f32 %v4623, %v4628
    %v4636 = vlaneseq
    %v4637 = vshrl.u32 %v4636, 7
    %v4638 = vsub.s32 0, %v4637
    %v4639 = vrot.slane %v4558, %v4638
    %v4641 = vadd.f32 %v4630, %v4639
    %v4642 = vadd.f32 %v4631, %v4639
    %v4643 = vadd.f32 %v4632, %v4639
    %v4644 = vadd.f32 %v4633, %v4639
    %v4645 = vadd.f32 %v4634, %v4639
    %v4646 = vld [vmem:[%s9] sm:$0xff]
    %v4647 = vld [vmem:[%s9 + $0x8] sm:$0xff]
    %v4648 = vld [vmem:[%s9 + $0x10] sm:$0xff]
    %v4649 = vld [vmem:[%s9 + $0x18] sm:$0xff]
    %v4650 = vld [vmem:[%s10] sm:$0x1]
    %v4652 = vlaneseq
    %v4653 = vshrl.u32 %v4652, 7
    %v4654 = vsub.s32 0, %v4653
    %v4655 = vrot.slane %v4650, %v4654
    %v4658 = vsel %vm194, %v4641, 0
    %v4661 = vsel %vm194, %v4642, 0
    %v4664 = vsel %vm194, %v4643, 0
    %v4667 = vsel %vm194, %v4644, 0
    %v4670 = vsel %vm194, %v4645, 0
    %4672 = vmatprep.subr.mxu0 0.0
    %4673 = vmatpush1.msra.mxu0 0.0
    %4674 = vmatprep.subr.mxu0 0.0
    %4675 = vmatpush1.msra.mxu0 0.0
    %4676 = vmatprep.subr.mxu0 0.0
    %4677 = vmatpush1.msra.mxu0 0.0
    %4678 = vmatprep.subr.mxu0 0.0
    %4679 = vmatpush1.msra.mxu0 0.0
    %4680 = vmatprep.subr.mxu0 0.0
    %4681 = vmatpush1.msra.mxu0 0.0
    %4682 = vmatprep.subr.mxu0 0.0
    %4683 = vmatpush1.msra.mxu0 0.0
    %4684 = vmatprep.subr.mxu0 0.0
    %4685 = vmatpush1.msra.mxu0 0.0
    %4686 = vmatprep.subr.mxu0 0.0
    %4687 = vmatpush1.msra.mxu0 0.0
    %4688 = vmatprep.subr.mxu0 0.0
    %4689 = vmatpush1.msra.mxu0 0.0
    %4690 = vmatprep.subr.mxu0 0.0
    %4691 = vmatpush1.msra.mxu0 0.0
    %4692 = vmatprep.subr.mxu0 0.0
    %4693 = vmatpush1.msra.mxu0 0.0
    %4694 = vmatprep.subr.mxu0 0.0
    %4695 = vmatpush1.msra.mxu0 0.0
    %4696 = vmatprep.subr.mxu0 0.0
    %4697 = vmatpush1.msra.mxu0 %v4649
    %4698 = vmatprep.subr.mxu0 0.0
    %4699 = vmatpush1.msra.mxu0 %v4648
    %4700 = vmatprep.subr.mxu0 0.0
    %4701 = vmatpush1.msra.mxu0 %v4647
    %4702 = vmatprep.subr.mxu0 0.0
    %4703 = vmatpush1.msra.mxu0 %v4646
    %4704 = vmatprep.subr.mxu0 0.0
    %4705 = vmatpush2.msra.mxu0 0.0
    %4706 = vmatprep.subr.mxu0 0.0
    %4707 = vmatpush2.msra.mxu0 0.0
    %4708 = vmatprep.subr.mxu0 0.0
    %4709 = vmatpush2.msra.mxu0 0.0
    %4710 = vmatprep.subr.mxu0 0.0
    %4711 = vmatpush2.msra.mxu0 0.0
    %4712 = vmatprep.subr.mxu0 0.0
    %4713 = vmatpush2.msra.mxu0 0.0
    %4714 = vmatprep.subr.mxu0 0.0
    %4715 = vmatpush2.msra.mxu0 0.0
    %4716 = vmatprep.subr.mxu0 0.0
    %4717 = vmatpush2.msra.mxu0 0.0
    %4718 = vmatprep.subr.mxu0 0.0
    %4719 = vmatpush2.msra.mxu0 0.0
    %4720 = vmatprep.subr.mxu0 0.0
    %4721 = vmatpush2.msra.mxu0 0.0
    %4722 = vmatprep.subr.mxu0 0.0
    %4723 = vmatpush2.msra.mxu0 0.0
    %4724 = vmatprep.subr.mxu0 0.0
    %4725 = vmatpush2.msra.mxu0 0.0
    %4726 = vmatprep.subr.mxu0 0.0
    %4727 = vmatpush2.msra.mxu0 0.0
    %4728 = vmatprep.subr.mxu0 0.0
    %4729 = vmatpush2.msra.mxu0 0.0
    %4730 = vmatprep.subr.mxu0 0.0
    %4731 = vmatpush2.msra.mxu0 0.0
    %4732 = vmatprep.subr.mxu0 0.0
    %4733 = vmatpush2.msra.mxu0 0.0
    %4734 = vmatprep.subr.mxu0 0.0
    %4735 = vmatpush2.msra.mxu0 0.0
    %4736 = vmatprep.mubr.f32.mxu0 0.0
    %4737 = vmatmul.mubr.f32.gmra.mxu0 %v4658
    %v4738 = vpop.f32.mrf.mxu0
    %v4739 = vadd.f32 %v4655, %v4738
    %v4740 = vpop.f32.mrf.mxu0
    %4741 = vmatprep.mubr.f32.mxu0 0.0
    %4742 = vmatmul.mubr.f32.gmra.mxu0 %v4661
    %v4743 = vpop.f32.mrf.mxu0
    %v4744 = vadd.f32 %v4655, %v4743
    %v4745 = vpop.f32.mrf.mxu0
    %4746 = vmatprep.mubr.f32.mxu0 0.0
    %4747 = vmatmul.mubr.f32.gmra.mxu0 %v4664
    %v4748 = vpop.f32.mrf.mxu0
    %v4749 = vadd.f32 %v4655, %v4748
    %v4750 = vpop.f32.mrf.mxu0
    %4751 = vmatprep.mubr.f32.mxu0 0.0
    %4752 = vmatmul.mubr.f32.gmra.mxu0 %v4667
    %v4753 = vpop.f32.mrf.mxu0
    %v4754 = vadd.f32 %v4655, %v4753
    %v4755 = vpop.f32.mrf.mxu0
    %4756 = vmatprep.mubr.f32.mxu0 0.0
    %4757 = vmatmul.mubr.f32.gmra.mxu0 %v4670
    %v4758 = vpop.f32.mrf.mxu0
    %v4759 = vadd.f32 %v4655, %v4758
    %v4760 = vpop.f32.mrf.mxu0
    %4761 = vdwg.mxu0
    %v4762 = vmul.f32 %v4739, 0.5
    %v4763 = vmul.f32 %v4744, 0.5
    %v4764 = vmul.f32 %v4749, 0.5
    %v4765 = vmul.f32 %v4754, 0.5
    %v4766 = vmul.f32 %v4759, 0.5
    %v4767 = vmul.f32 %v4739, 0.70710677
    %v4768 = vmul.f32 %v4744, 0.70710677
    %v4769 = vmul.f32 %v4749, 0.70710677
    %v4770 = vmul.f32 %v4754, 0.70710677
    %v4771 = vmul.f32 %v4759, 0.70710677
    %v4772 = verf.f32.pop %v4767
    %v4773 = verf.f32.pop %v4768
    %v4774 = verf.f32.pop %v4769
    %v4775 = verf.f32.pop %v4770
    %v4776 = verf.f32.pop %v4771
    %v4777 = vadd.f32 %v4772, 1.0
    %v4778 = vadd.f32 %v4773, 1.0
    %v4779 = vadd.f32 %v4774, 1.0
    %v4780 = vadd.f32 %v4775, 1.0
    %v4781 = vadd.f32 %v4776, 1.0
    %v4782 = vmul.f32 %v4762, %v4777
    %v4783 = vmul.f32 %v4763, %v4778
    %v4784 = vmul.f32 %v4764, %v4779
    %v4785 = vmul.f32 %v4765, %v4780
    %v4786 = vmul.f32 %v4766, %v4781
    %v4787 = vld [vmem:[%s11] sm:$0xff]
    %v4788 = vld [vmem:[%s11 + $0x8] sm:$0xff]
    %v4789 = vld [vmem:[%s11 + $0x10] sm:$0xff]
    %v4790 = vld [vmem:[%s11 + $0x18] sm:$0xff]
    %v4791 = vld [vmem:[%s11 + $0x20] sm:$0xff]
    %v4792 = vld [vmem:[%s11 + $0x28] sm:$0xff]
    %v4793 = vld [vmem:[%s11 + $0x30] sm:$0xff]
    %v4794 = vld [vmem:[%s11 + $0x38] sm:$0xff]
    %v4795 = vld [vmem:[%s11 + $0x40] sm:$0xff]
    %v4796 = vld [vmem:[%s11 + $0x48] sm:$0xff]
    %v4797 = vld [vmem:[%s11 + $0x50] sm:$0xff]
    %v4798 = vld [vmem:[%s11 + $0x58] sm:$0xff]
    %v4799 = vld [vmem:[%s11 + $0x60] sm:$0xff]
    %v4800 = vld [vmem:[%s11 + $0x68] sm:$0xff]
    %v4801 = vld [vmem:[%s11 + $0x70] sm:$0xff]
    %v4802 = vld [vmem:[%s11 + $0x78] sm:$0xff]
    %v4803 = vld [vmem:[%s12] sm:$0x1]
    %v4805 = vlaneseq
    %v4806 = vshrl.u32 %v4805, 7
    %v4807 = vsub.s32 0, %v4806
    %v4808 = vrot.slane %v4803, %v4807
    %4810 = vmatprep.subr.mxu0 0.0
    %4811 = vmatpush1.msra.mxu0 %v4802
    %4812 = vmatprep.subr.mxu0 0.0
    %4813 = vmatpush1.msra.mxu0 %v4801
    %4814 = vmatprep.subr.mxu0 0.0
    %4815 = vmatpush1.msra.mxu0 %v4800
    %4816 = vmatprep.subr.mxu0 0.0
    %4817 = vmatpush1.msra.mxu0 %v4799
    %4818 = vmatprep.subr.mxu0 0.0
    %4819 = vmatpush1.msra.mxu0 %v4798
    %4820 = vmatprep.subr.mxu0 0.0
    %4821 = vmatpush1.msra.mxu0 %v4797
    %4822 = vmatprep.subr.mxu0 0.0
    %4823 = vmatpush1.msra.mxu0 %v4796
    %4824 = vmatprep.subr.mxu0 0.0
    %4825 = vmatpush1.msra.mxu0 %v4795
    %4826 = vmatprep.subr.mxu0 0.0
    %4827 = vmatpush1.msra.mxu0 %v4794
    %4828 = vmatprep.subr.mxu0 0.0
    %4829 = vmatpush1.msra.mxu0 %v4793
    %4830 = vmatprep.subr.mxu0 0.0
    %4831 = vmatpush1.msra.mxu0 %v4792
    %4832 = vmatprep.subr.mxu0 0.0
    %4833 = vmatpush1.msra.mxu0 %v4791
    %4834 = vmatprep.subr.mxu0 0.0
    %4835 = vmatpush1.msra.mxu0 %v4790
    %4836 = vmatprep.subr.mxu0 0.0
    %4837 = vmatpush1.msra.mxu0 %v4789
    %4838 = vmatprep.subr.mxu0 0.0
    %4839 = vmatpush1.msra.mxu0 %v4788
    %4840 = vmatprep.subr.mxu0 0.0
    %4841 = vmatpush1.msra.mxu0 %v4787
    %4842 = vmatprep.subr.mxu0 0.0
    %4843 = vmatpush2.msra.mxu0 0.0
    %4844 = vmatprep.subr.mxu0 0.0
    %4845 = vmatpush2.msra.mxu0 0.0
    %4846 = vmatprep.subr.mxu0 0.0
    %4847 = vmatpush2.msra.mxu0 0.0
    %4848 = vmatprep.subr.mxu0 0.0
    %4849 = vmatpush2.msra.mxu0 0.0
    %4850 = vmatprep.subr.mxu0 0.0
    %4851 = vmatpush2.msra.mxu0 0.0
    %4852 = vmatprep.subr.mxu0 0.0
    %4853 = vmatpush2.msra.mxu0 0.0
    %4854 = vmatprep.subr.mxu0 0.0
    %4855 = vmatpush2.msra.mxu0 0.0
    %4856 = vmatprep.subr.mxu0 0.0
    %4857 = vmatpush2.msra.mxu0 0.0
    %4858 = vmatprep.subr.mxu0 0.0
    %4859 = vmatpush2.msra.mxu0 0.0
    %4860 = vmatprep.subr.mxu0 0.0
    %4861 = vmatpush2.msra.mxu0 0.0
    %4862 = vmatprep.subr.mxu0 0.0
    %4863 = vmatpush2.msra.mxu0 0.0
    %4864 = vmatprep.subr.mxu0 0.0
    %4865 = vmatpush2.msra.mxu0 0.0
    %4866 = vmatprep.subr.mxu0 0.0
    %4867 = vmatpush2.msra.mxu0 0.0
    %4868 = vmatprep.subr.mxu0 0.0
    %4869 = vmatpush2.msra.mxu0 0.0
    %4870 = vmatprep.subr.mxu0 0.0
    %4871 = vmatpush2.msra.mxu0 0.0
    %4872 = vmatprep.subr.mxu0 0.0
    %4873 = vmatpush2.msra.mxu0 0.0
    %4874 = vmatprep.mubr.f32.mxu0 0.0
    %4875 = vmatmul.mubr.f32.gmra.mxu0 %v4782
    %v4876 = vpop.f32.mrf.mxu0
    %v4877 = vadd.f32 %v4808, %v4876
    %v4878 = vpop.f32.mrf.mxu0
    %4879 = vmatprep.mubr.f32.mxu0 0.0
    %4880 = vmatmul.mubr.f32.gmra.mxu0 %v4783
    %v4881 = vpop.f32.mrf.mxu0
    %v4882 = vadd.f32 %v4808, %v4881
    %v4883 = vpop.f32.mrf.mxu0
    %4884 = vmatprep.mubr.f32.mxu0 0.0
    %4885 = vmatmul.mubr.f32.gmra.mxu0 %v4784
    %v4886 = vpop.f32.mrf.mxu0
    %v4887 = vadd.f32 %v4808, %v4886
    %v4888 = vpop.f32.mrf.mxu0
    %4889 = vmatprep.mubr.f32.mxu0 0.0
    %4890 = vmatmul.mubr.f32.gmra.mxu0 %v4785
    %v4891 = vpop.f32.mrf.mxu0
    %v4892 = vadd.f32 %v4808, %v4891
    %v4893 = vpop.f32.mrf.mxu0
    %4894 = vmatprep.mubr.f32.mxu0 0.0
    %4895 = vmatmul.mubr.f32.gmra.mxu0 %v4786
    %v4896 = vpop.f32.mrf.mxu0
    %v4897 = vadd.f32 %v4808, %v4896
    %v4898 = vpop.f32.mrf.mxu0
    %4899 = vdwg.mxu0
    %v4900 = vadd.f32 %v4552, %v4877
    %v4901 = vadd.f32 %v4553, %v4882
    %v4902 = vadd.f32 %v4554, %v4887
    %v4903 = vadd.f32 %v4555, %v4892
    %v4904 = vadd.f32 %v4556, %v4897
    %s4905 = scalar_lea.vmem %s3, 1
    %v4906 = vld [vmem:[%s4905] sm:$0x1]
    %s4907 = scalar_lea.vmem %s4, 1
    %v4908 = vld [vmem:[%s4907] sm:$0x1]
    %v4909 = vsel %vm194, %v4900, 0.0
    %4910 = vadd.xlane.f32.xlu0 %v4909
    %v4911 = vpop.xlane.xlu0 %4910
    %v4912 = vsel %vm194, %v4901, 0.0
    %4913 = vadd.xlane.f32.xlu0 %v4912
    %v4914 = vpop.xlane.xlu0 %4913
    %v4915 = vsel %vm194, %v4902, 0.0
    %4916 = vadd.xlane.f32.xlu0 %v4915
    %v4917 = vpop.xlane.xlu0 %4916
    %v4918 = vsel %vm194, %v4903, 0.0
    %4919 = vadd.xlane.f32.xlu0 %v4918
    %v4920 = vpop.xlane.xlu0 %4919
    %v4921 = vsel %vm207, %v4904, 0.0
    %4922 = vadd.xlane.f32.xlu0 %v4921
    %v4923 = vpop.xlane.xlu0 %4922
    %v4924 = vmul.f32 %v4911, %v211
    %v4925 = vmul.f32 %v4914, %v211
    %v4926 = vmul.f32 %v4917, %v211
    %v4927 = vmul.f32 %v4920, %v211
    %v4928 = vmul.f32 %v4923, %v211
    %v4929 = vsub.f32 %v4900, %v4924
    %v4930 = vsub.f32 %v4901, %v4925
    %v4931 = vsub.f32 %v4902, %v4926
    %v4932 = vsub.f32 %v4903, %v4927
    %v4933 = vsub.f32 %v4904, %v4928
    %v4934 = vmul.f32 %v4929, %v4929
    %v4935 = vmul.f32 %v4930, %v4930
    %v4936 = vmul.f32 %v4931, %v4931
    %v4937 = vmul.f32 %v4932, %v4932
    %v4938 = vmul.f32 %v4933, %v4933
    %v4939 = vsel %vm194, %v4934, 0.0
    %4940 = vadd.xlane.f32.xlu0 %v4939
    %v4941 = vpop.xlane.xlu0 %4940
    %v4942 = vsel %vm194, %v4935, 0.0
    %4943 = vadd.xlane.f32.xlu0 %v4942
    %v4944 = vpop.xlane.xlu0 %4943
    %v4945 = vsel %vm194, %v4936, 0.0
    %4946 = vadd.xlane.f32.xlu0 %v4945
    %v4947 = vpop.xlane.xlu0 %4946
    %v4948 = vsel %vm194, %v4937, 0.0
    %4949 = vadd.xlane.f32.xlu0 %v4948
    %v4950 = vpop.xlane.xlu0 %4949
    %v4951 = vsel %vm207, %v4938, 0.0
    %4952 = vadd.xlane.f32.xlu0 %v4951
    %v4953 = vpop.xlane.xlu0 %4952
    %v4954 = vmul.f32 %v4941, %v211
    %v4955 = vmul.f32 %v4944, %v211
    %v4956 = vmul.f32 %v4947, %v211
    %v4957 = vmul.f32 %v4950, %v211
    %v4958 = vmul.f32 %v4953, %v211
    %v4959 = vadd.f32 %v4954, 1e-05
    %v4960 = vadd.f32 %v4955, 1e-05
    %v4961 = vadd.f32 %v4956, 1e-05
    %v4962 = vadd.f32 %v4957, 1e-05
    %v4963 = vadd.f32 %v4958, 1e-05
    %v4964 = vrsqrt.pop %v4959
    %v4965 = vrsqrt.pop %v4960
    %v4966 = vrsqrt.pop %v4961
    %v4967 = vrsqrt.pop %v4962
    %v4968 = vrsqrt.pop %v4963
    %v4969 = vmul.f32 %v4929, %v4964
    %v4970 = vmul.f32 %v4930, %v4965
    %v4971 = vmul.f32 %v4931, %v4966
    %v4972 = vmul.f32 %v4932, %v4967
    %v4973 = vmul.f32 %v4933, %v4968
    %v4975 = vlaneseq
    %v4976 = vshrl.u32 %v4975, 7
    %v4977 = vsub.s32 0, %v4976
    %v4978 = vrot.slane %v4906, %v4977
    %v4980 = vmul.f32 %v4969, %v4978
    %v4981 = vmul.f32 %v4970, %v4978
    %v4982 = vmul.f32 %v4971, %v4978
    %v4983 = vmul.f32 %v4972, %v4978
    %v4984 = vmul.f32 %v4973, %v4978
    %v4986 = vlaneseq
    %v4987 = vshrl.u32 %v4986, 7
    %v4988 = vsub.s32 0, %v4987
    %v4989 = vrot.slane %v4908, %v4988
    %v4991 = vadd.f32 %v4980, %v4989
    %v4992 = vadd.f32 %v4981, %v4989
    %v4993 = vadd.f32 %v4982, %v4989
    %v4994 = vadd.f32 %v4983, %v4989
    %v4995 = vadd.f32 %v4984, %v4989
    %s4996 = scalar_lea.vmem %s5, 32
    %v4997 = vld [vmem:[%s4996] sm:$0xff]
    %v4998 = vld [vmem:[%s4996 + $0x8] sm:$0xff]
    %v4999 = vld [vmem:[%s4996 + $0x10] sm:$0xff]
    %v5000 = vld [vmem:[%s4996 + $0x18] sm:$0xff]
    %v5002 = vsel %vm194, %v4991, 0
    %v5005 = vsel %vm194, %v4992, 0
    %v5008 = vsel %vm194, %v4993, 0
    %v5011 = vsel %vm194, %v4994, 0
    %v5014 = vsel %vm194, %v4995, 0
    %5016 = vmatprep.subr.mxu0 0.0
    %5017 = vmatpush1.msra.mxu0 0.0
    %5018 = vmatprep.subr.mxu0 0.0
    %5019 = vmatpush1.msra.mxu0 0.0
    %5020 = vmatprep.subr.mxu0 0.0
    %5021 = vmatpush1.msra.mxu0 0.0
    %5022 = vmatprep.subr.mxu0 0.0
    %5023 = vmatpush1.msra.mxu0 0.0
    %5024 = vmatprep.subr.mxu0 0.0
    %5025 = vmatpush1.msra.mxu0 0.0
    %5026 = vmatprep.subr.mxu0 0.0
    %5027 = vmatpush1.msra.mxu0 0.0
    %5028 = vmatprep.subr.mxu0 0.0
    %5029 = vmatpush1.msra.mxu0 0.0
    %5030 = vmatprep.subr.mxu0 0.0
    %5031 = vmatpush1.msra.mxu0 0.0
    %5032 = vmatprep.subr.mxu0 0.0
    %5033 = vmatpush1.msra.mxu0 0.0
    %5034 = vmatprep.subr.mxu0 0.0
    %5035 = vmatpush1.msra.mxu0 0.0
    %5036 = vmatprep.subr.mxu0 0.0
    %5037 = vmatpush1.msra.mxu0 0.0
    %5038 = vmatprep.subr.mxu0 0.0
    %5039 = vmatpush1.msra.mxu0 0.0
    %5040 = vmatprep.subr.mxu0 0.0
    %5041 = vmatpush1.msra.mxu0 %v5000
    %5042 = vmatprep.subr.mxu0 0.0
    %5043 = vmatpush1.msra.mxu0 %v4999
    %5044 = vmatprep.subr.mxu0 0.0
    %5045 = vmatpush1.msra.mxu0 %v4998
    %5046 = vmatprep.subr.mxu0 0.0
    %5047 = vmatpush1.msra.mxu0 %v4997
    %5048 = vmatprep.subr.mxu0 0.0
    %5049 = vmatpush2.msra.mxu0 0.0
    %5050 = vmatprep.subr.mxu0 0.0
    %5051 = vmatpush2.msra.mxu0 0.0
    %5052 = vmatprep.subr.mxu0 0.0
    %5053 = vmatpush2.msra.mxu0 0.0
    %5054 = vmatprep.subr.mxu0 0.0
    %5055 = vmatpush2.msra.mxu0 0.0
    %5056 = vmatprep.subr.mxu0 0.0
    %5057 = vmatpush2.msra.mxu0 0.0
    %5058 = vmatprep.subr.mxu0 0.0
    %5059 = vmatpush2.msra.mxu0 0.0
    %5060 = vmatprep.subr.mxu0 0.0
    %5061 = vmatpush2.msra.mxu0 0.0
    %5062 = vmatprep.subr.mxu0 0.0
    %5063 = vmatpush2.msra.mxu0 0.0
    %5064 = vmatprep.subr.mxu0 0.0
    %5065 = vmatpush2.msra.mxu0 0.0
    %5066 = vmatprep.subr.mxu0 0.0
    %5067 = vmatpush2.msra.mxu0 0.0
    %5068 = vmatprep.subr.mxu0 0.0
    %5069 = vmatpush2.msra.mxu0 0.0
    %5070 = vmatprep.subr.mxu0 0.0
    %5071 = vmatpush2.msra.mxu0 0.0
    %5072 = vmatprep.subr.mxu0 0.0
    %5073 = vmatpush2.msra.mxu0 0.0
    %5074 = vmatprep.subr.mxu0 0.0
    %5075 = vmatpush2.msra.mxu0 0.0
    %5076 = vmatprep.subr.mxu0 0.0
    %5077 = vmatpush2.msra.mxu0 0.0
    %5078 = vmatprep.subr.mxu0 0.0
    %5079 = vmatpush2.msra.mxu0 0.0
    %5080 = vmatprep.mubr.f32.mxu0 0.0
    %5081 = vmatmul.mubr.f32.gmra.mxu0 %v5002
    %v5082 = vpop.f32.mrf.mxu0
    %v5083 = vadd.f32 0.0, %v5082
    %v5084 = vpop.f32.mrf.mxu0
    %5085 = vmatprep.mubr.f32.mxu0 0.0
    %5086 = vmatmul.mubr.f32.gmra.mxu0 %v5005
    %v5087 = vpop.f32.mrf.mxu0
    %v5088 = vadd.f32 0.0, %v5087
    %v5089 = vpop.f32.mrf.mxu0
    %5090 = vmatprep.mubr.f32.mxu0 0.0
    %5091 = vmatmul.mubr.f32.gmra.mxu0 %v5008
    %v5092 = vpop.f32.mrf.mxu0
    %v5093 = vadd.f32 0.0, %v5092
    %v5094 = vpop.f32.mrf.mxu0
    %5095 = vmatprep.mubr.f32.mxu0 0.0
    %5096 = vmatmul.mubr.f32.gmra.mxu0 %v5011
    %v5097 = vpop.f32.mrf.mxu0
    %v5098 = vadd.f32 0.0, %v5097
    %v5099 = vpop.f32.mrf.mxu0
    %5100 = vmatprep.mubr.f32.mxu0 0.0
    %5101 = vmatmul.mubr.f32.gmra.mxu0 %v5014
    %v5102 = vpop.f32.mrf.mxu0
    %v5103 = vadd.f32 0.0, %v5102
    %v5104 = vpop.f32.mrf.mxu0
    %5105 = vdwg.mxu0
    %5109 = vrot.lane.b32.xlu0 %v5083, 96
    %v5110 = vpop.permute.xlu0 %5109
    %5111 = vrot.lane.b32.xlu0 %v5088, 96
    %v5112 = vpop.permute.xlu0 %5111
    %5113 = vrot.lane.b32.xlu0 %v5093, 96
    %v5114 = vpop.permute.xlu0 %5113
    %v5115 = vsel %vm402, %v5083, 0
    %v5117 = vsel %vm402, %v5088, 0
    %v5119 = vsel %vm402, %v5093, 0
    %v5121 = vsel %vm402, %v5110, 0
    %v5123 = vsel %vm402, %v5112, 0
    %v5125 = vsel %vm402, %v5114, 0
    %5127 = vmatprep.subr.mxu0 0.0
    %5128 = vmatpush1.xpose.msra.mxu0 0.0
    %5129 = vmatprep.subr.mxu0 0.0
    %5130 = vmatpush1.xpose.msra.mxu0 0.0
    %5131 = vmatprep.subr.mxu0 0.0
    %5132 = vmatpush1.xpose.msra.mxu0 0.0
    %5133 = vmatprep.subr.mxu0 0.0
    %5134 = vmatpush1.xpose.msra.mxu0 0.0
    %5135 = vmatprep.subr.mxu0 0.0
    %5136 = vmatpush1.xpose.msra.mxu0 0.0
    %5137 = vmatprep.subr.mxu0 0.0
    %5138 = vmatpush1.xpose.msra.mxu0 0.0
    %5139 = vmatprep.subr.mxu0 0.0
    %5140 = vmatpush1.xpose.msra.mxu0 0.0
    %5141 = vmatprep.subr.mxu0 0.0
    %5142 = vmatpush1.xpose.msra.mxu0 0.0
    %5143 = vmatprep.subr.mxu0 0.0
    %5144 = vmatpush1.xpose.msra.mxu0 0.0
    %5145 = vmatprep.subr.mxu0 0.0
    %5146 = vmatpush1.xpose.msra.mxu0 0.0
    %5147 = vmatprep.subr.mxu0 0.0
    %5148 = vmatpush1.xpose.msra.mxu0 0.0
    %5149 = vmatprep.subr.mxu0 0.0
    %5150 = vmatpush1.xpose.msra.mxu0 0.0
    %5151 = vmatprep.subr.mxu0 0.0
    %5152 = vmatpush1.xpose.msra.mxu0 0.0
    %5153 = vmatprep.subr.mxu0 0.0
    %5154 = vmatpush1.xpose.msra.mxu0 %v5125
    %5155 = vmatprep.subr.mxu0 0.0
    %5156 = vmatpush1.xpose.msra.mxu0 %v5123
    %5157 = vmatprep.subr.mxu0 0.0
    %5158 = vmatpush1.xpose.msra.mxu0 %v5121
    %5159 = vmatprep.subr.mxu0 0.0
    %5160 = vmatpush2.xpose.msra.mxu0 0.0
    %5161 = vmatprep.subr.mxu0 0.0
    %5162 = vmatpush2.xpose.msra.mxu0 0.0
    %5163 = vmatprep.subr.mxu0 0.0
    %5164 = vmatpush2.xpose.msra.mxu0 0.0
    %5165 = vmatprep.subr.mxu0 0.0
    %5166 = vmatpush2.xpose.msra.mxu0 0.0
    %5167 = vmatprep.subr.mxu0 0.0
    %5168 = vmatpush2.xpose.msra.mxu0 0.0
    %5169 = vmatprep.subr.mxu0 0.0
    %5170 = vmatpush2.xpose.msra.mxu0 0.0
    %5171 = vmatprep.subr.mxu0 0.0
    %5172 = vmatpush2.xpose.msra.mxu0 0.0
    %5173 = vmatprep.subr.mxu0 0.0
    %5174 = vmatpush2.xpose.msra.mxu0 0.0
    %5175 = vmatprep.subr.mxu0 0.0
    %5176 = vmatpush2.xpose.msra.mxu0 0.0
    %5177 = vmatprep.subr.mxu0 0.0
    %5178 = vmatpush2.xpose.msra.mxu0 0.0
    %5179 = vmatprep.subr.mxu0 0.0
    %5180 = vmatpush2.xpose.msra.mxu0 0.0
    %5181 = vmatprep.subr.mxu0 0.0
    %5182 = vmatpush2.xpose.msra.mxu0 0.0
    %5183 = vmatprep.subr.mxu0 0.0
    %5184 = vmatpush2.xpose.msra.mxu0 0.0
    %5185 = vmatprep.subr.mxu0 0.0
    %5186 = vmatpush2.xpose.msra.mxu0 0.0
    %5187 = vmatprep.subr.mxu0 0.0
    %5188 = vmatpush2.xpose.msra.mxu0 0.0
    %5189 = vmatprep.subr.mxu0 0.0
    %5190 = vmatpush2.xpose.msra.mxu0 0.0
    %5191 = vmatprep.mubr.f32.mxu0 0.0
    %5192 = vmatmul.mubr.f32.gmra.mxu0 %v5115
    %v5193 = vpop.f32.mrf.mxu0
    %v5194 = vadd.f32 0.0, %v5193
    %v5195 = vpop.f32.mrf.mxu0
    %5196 = vmatprep.mubr.f32.mxu0 0.0
    %5197 = vmatmul.mubr.f32.gmra.mxu0 %v5117
    %v5198 = vpop.f32.mrf.mxu0
    %v5199 = vadd.f32 0.0, %v5198
    %v5200 = vpop.f32.mrf.mxu0
    %5201 = vmatprep.mubr.f32.mxu0 0.0
    %5202 = vmatmul.mubr.f32.gmra.mxu0 %v5119
    %v5203 = vpop.f32.mrf.mxu0
    %v5204 = vadd.f32 0.0, %v5203
    %v5205 = vpop.f32.mrf.mxu0
    %5206 = vdwg.mxu0
    %v5207 = vmul.f32 %v5194, 0.5
    %v5208 = vmul.f32 %v5199, 0.5
    %v5209 = vmul.f32 %v5204, 0.5
    %v5210 = vsel %vm498, %v5207, -inf
    %5211 = vmax.xlane.f32.xlu0 %v5210
    %v5212 = vpop.xlane.xlu0 %5211
    %v5213 = vsel %vm498, %v5208, -inf
    %5214 = vmax.xlane.f32.xlu0 %v5213
    %v5215 = vpop.xlane.xlu0 %5214
    %v5216 = vsel %vm505, %v5209, -inf
    %5217 = vmax.xlane.f32.xlu0 %v5216
    %v5218 = vpop.xlane.xlu0 %5217
    %v5219 = vsub.f32 %v5207, %v5212
    %v5220 = vsub.f32 %v5208, %v5215
    %v5221 = vsub.f32 %v5209, %v5218
    %v5222 = vmul.f32 %v5219, 1.442695
    %v5223 = vpow.pop %v5222
    %v5224 = vmul.f32 %v5220, 1.442695
    %v5225 = vpow.pop %v5224
    %v5226 = vmul.f32 %v5221, 1.442695
    %v5227 = vpow.pop %v5226
    %v5228 = vsel %vm498, %v5223, 0.0
    %5229 = vadd.xlane.f32.xlu0 %v5228
    %v5230 = vpop.xlane.xlu0 %5229
    %v5231 = vsel %vm498, %v5225, 0.0
    %5232 = vadd.xlane.f32.xlu0 %v5231
    %v5233 = vpop.xlane.xlu0 %5232
    %v5234 = vsel %vm505, %v5227, 0.0
    %5235 = vadd.xlane.f32.xlu0 %v5234
    %v5236 = vpop.xlane.xlu0 %5235
    %v5237 = vrcp.pop %v5230
    %v5238 = vmul.f32 %v5223, %v5237
    %v5239 = vrcp.pop %v5233
    %v5240 = vmul.f32 %v5225, %v5239
    %v5241 = vrcp.pop %v5236
    %v5242 = vmul.f32 %v5227, %v5241
    %5243 = vrot.lane.b32.xlu0 %v5083, 64
    %v5244 = vpop.permute.xlu0 %5243
    %5245 = vrot.lane.b32.xlu0 %v5088, 64
    %v5246 = vpop.permute.xlu0 %5245
    %5247 = vrot.lane.b32.xlu0 %v5093, 64
    %v5248 = vpop.permute.xlu0 %5247
    %v5252 = vsel %vm498, %v5238, 0
    %v5255 = vsel %vm498, %v5240, 0
    %v5258 = vsel %vm498, %v5242, 0
    %v5260 = vsel %vm68, %v5248, 0
    %5262 = vmatprep.subr.mxu0 0.0
    %5263 = vmatpush1.msra.mxu0 0.0
    %5264 = vmatprep.subr.mxu0 0.0
    %5265 = vmatpush1.msra.mxu0 0.0
    %5266 = vmatprep.subr.mxu0 0.0
    %5267 = vmatpush1.msra.mxu0 0.0
    %5268 = vmatprep.subr.mxu0 0.0
    %5269 = vmatpush1.msra.mxu0 0.0
    %5270 = vmatprep.subr.mxu0 0.0
    %5271 = vmatpush1.msra.mxu0 0.0
    %5272 = vmatprep.subr.mxu0 0.0
    %5273 = vmatpush1.msra.mxu0 0.0
    %5274 = vmatprep.subr.mxu0 0.0
    %5275 = vmatpush1.msra.mxu0 0.0
    %5276 = vmatprep.subr.mxu0 0.0
    %5277 = vmatpush1.msra.mxu0 0.0
    %5278 = vmatprep.subr.mxu0 0.0
    %5279 = vmatpush1.msra.mxu0 0.0
    %5280 = vmatprep.subr.mxu0 0.0
    %5281 = vmatpush1.msra.mxu0 0.0
    %5282 = vmatprep.subr.mxu0 0.0
    %5283 = vmatpush1.msra.mxu0 0.0
    %5284 = vmatprep.subr.mxu0 0.0
    %5285 = vmatpush1.msra.mxu0 0.0
    %5286 = vmatprep.subr.mxu0 0.0
    %5287 = vmatpush1.msra.mxu0 0.0
    %5288 = vmatprep.subr.mxu0 0.0
    %5289 = vmatpush1.msra.mxu0 %v5260
    %5290 = vmatprep.subr.mxu0 0.0
    %5291 = vmatpush1.msra.mxu0 %v5246
    %5292 = vmatprep.subr.mxu0 0.0
    %5293 = vmatpush1.msra.mxu0 %v5244
    %5294 = vmatprep.subr.mxu0 0.0
    %5295 = vmatpush2.msra.mxu0 0.0
    %5296 = vmatprep.subr.mxu0 0.0
    %5297 = vmatpush2.msra.mxu0 0.0
    %5298 = vmatprep.subr.mxu0 0.0
    %5299 = vmatpush2.msra.mxu0 0.0
    %5300 = vmatprep.subr.mxu0 0.0
    %5301 = vmatpush2.msra.mxu0 0.0
    %5302 = vmatprep.subr.mxu0 0.0
    %5303 = vmatpush2.msra.mxu0 0.0
    %5304 = vmatprep.subr.mxu0 0.0
    %5305 = vmatpush2.msra.mxu0 0.0
    %5306 = vmatprep.subr.mxu0 0.0
    %5307 = vmatpush2.msra.mxu0 0.0
    %5308 = vmatprep.subr.mxu0 0.0
    %5309 = vmatpush2.msra.mxu0 0.0
    %5310 = vmatprep.subr.mxu0 0.0
    %5311 = vmatpush2.msra.mxu0 0.0
    %5312 = vmatprep.subr.mxu0 0.0
    %5313 = vmatpush2.msra.mxu0 0.0
    %5314 = vmatprep.subr.mxu0 0.0
    %5315 = vmatpush2.msra.mxu0 0.0
    %5316 = vmatprep.subr.mxu0 0.0
    %5317 = vmatpush2.msra.mxu0 0.0
    %5318 = vmatprep.subr.mxu0 0.0
    %5319 = vmatpush2.msra.mxu0 0.0
    %5320 = vmatprep.subr.mxu0 0.0
    %5321 = vmatpush2.msra.mxu0 0.0
    %5322 = vmatprep.subr.mxu0 0.0
    %5323 = vmatpush2.msra.mxu0 0.0
    %5324 = vmatprep.subr.mxu0 0.0
    %5325 = vmatpush2.msra.mxu0 0.0
    %5326 = vmatprep.mubr.f32.mxu0 0.0
    %5327 = vmatmul.mubr.f32.gmra.mxu0 %v5252
    %v5328 = vpop.f32.mrf.mxu0
    %v5329 = vadd.f32 0.0, %v5328
    %v5330 = vpop.f32.mrf.mxu0
    %5331 = vmatprep.mubr.f32.mxu0 0.0
    %5332 = vmatmul.mubr.f32.gmra.mxu0 %v5255
    %v5333 = vpop.f32.mrf.mxu0
    %v5334 = vadd.f32 0.0, %v5333
    %v5335 = vpop.f32.mrf.mxu0
    %5336 = vmatprep.mubr.f32.mxu0 0.0
    %5337 = vmatmul.mubr.f32.gmra.mxu0 %v5258
    %v5338 = vpop.f32.mrf.mxu0
    %v5339 = vadd.f32 0.0, %v5338
    %v5340 = vpop.f32.mrf.mxu0
    %5341 = vdwg.mxu0
    %5342 = vrot.lane.b32.xlu0 %v5083, 124
    %v5343 = vpop.permute.xlu0 %5342
    %5344 = vrot.lane.b32.xlu0 %v5088, 124
    %v5345 = vpop.permute.xlu0 %5344
    %5346 = vrot.lane.b32.xlu0 %v5093, 124
    %v5347 = vpop.permute.xlu0 %5346
    %5348 = vrot.lane.b32.xlu0 %v5083, 92
    %v5349 = vpop.permute.xlu0 %5348
    %5350 = vrot.lane.b32.xlu0 %v5088, 92
    %v5351 = vpop.permute.xlu0 %5350
    %5352 = vrot.lane.b32.xlu0 %v5093, 92
    %v5353 = vpop.permute.xlu0 %5352
    %v5354 = vsel %vm402, %v5343, 0
    %v5356 = vsel %vm402, %v5345, 0
    %v5358 = vsel %vm402, %v5347, 0
    %v5360 = vsel %vm402, %v5349, 0
    %v5362 = vsel %vm402, %v5351, 0
    %v5364 = vsel %vm402, %v5353, 0
    %5366 = vmatprep.subr.mxu0 0.0
    %5367 = vmatpush1.xpose.msra.mxu0 0.0
    %5368 = vmatprep.subr.mxu0 0.0
    %5369 = vmatpush1.xpose.msra.mxu0 0.0
    %5370 = vmatprep.subr.mxu0 0.0
    %5371 = vmatpush1.xpose.msra.mxu0 0.0
    %5372 = vmatprep.subr.mxu0 0.0
    %5373 = vmatpush1.xpose.msra.mxu0 0.0
    %5374 = vmatprep.subr.mxu0 0.0
    %5375 = vmatpush1.xpose.msra.mxu0 0.0
    %5376 = vmatprep.subr.mxu0 0.0
    %5377 = vmatpush1.xpose.msra.mxu0 0.0
    %5378 = vmatprep.subr.mxu0 0.0
    %5379 = vmatpush1.xpose.msra.mxu0 0.0
    %5380 = vmatprep.subr.mxu0 0.0
    %5381 = vmatpush1.xpose.msra.mxu0 0.0
    %5382 = vmatprep.subr.mxu0 0.0
    %5383 = vmatpush1.xpose.msra.mxu0 0.0
    %5384 = vmatprep.subr.mxu0 0.0
    %5385 = vmatpush1.xpose.msra.mxu0 0.0
    %5386 = vmatprep.subr.mxu0 0.0
    %5387 = vmatpush1.xpose.msra.mxu0 0.0
    %5388 = vmatprep.subr.mxu0 0.0
    %5389 = vmatpush1.xpose.msra.mxu0 0.0
    %5390 = vmatprep.subr.mxu0 0.0
    %5391 = vmatpush1.xpose.msra.mxu0 0.0
    %5392 = vmatprep.subr.mxu0 0.0
    %5393 = vmatpush1.xpose.msra.mxu0 %v5364
    %5394 = vmatprep.subr.mxu0 0.0
    %5395 = vmatpush1.xpose.msra.mxu0 %v5362
    %5396 = vmatprep.subr.mxu0 0.0
    %5397 = vmatpush1.xpose.msra.mxu0 %v5360
    %5398 = vmatprep.subr.mxu0 0.0
    %5399 = vmatpush2.xpose.msra.mxu0 0.0
    %5400 = vmatprep.subr.mxu0 0.0
    %5401 = vmatpush2.xpose.msra.mxu0 0.0
    %5402 = vmatprep.subr.mxu0 0.0
    %5403 = vmatpush2.xpose.msra.mxu0 0.0
    %5404 = vmatprep.subr.mxu0 0.0
    %5405 = vmatpush2.xpose.msra.mxu0 0.0
    %5406 = vmatprep.subr.mxu0 0.0
    %5407 = vmatpush2.xpose.msra.mxu0 0.0
    %5408 = vmatprep.subr.mxu0 0.0
    %5409 = vmatpush2.xpose.msra.mxu0 0.0
    %5410 = vmatprep.subr.mxu0 0.0
    %5411 = vmatpush2.xpose.msra.mxu0 0.0
    %5412 = vmatprep.subr.mxu0 0.0
    %5413 = vmatpush2.xpose.msra.mxu0 0.0
    %5414 = vmatprep.subr.mxu0 0.0
    %5415 = vmatpush2.xpose.msra.mxu0 0.0
    %5416 = vmatprep.subr.mxu0 0.0
    %5417 = vmatpush2.xpose.msra.mxu0 0.0
    %5418 = vmatprep.subr.mxu0 0.0
    %5419 = vmatpush2.xpose.msra.mxu0 0.0
    %5420 = vmatprep.subr.mxu0 0.0
    %5421 = vmatpush2.xpose.msra.mxu0 0.0
    %5422 = vmatprep.subr.mxu0 0.0
    %5423 = vmatpush2.xpose.msra.mxu0 0.0
    %5424 = vmatprep.subr.mxu0 0.0
    %5425 = vmatpush2.xpose.msra.mxu0 0.0
    %5426 = vmatprep.subr.mxu0 0.0
    %5427 = vmatpush2.xpose.msra.mxu0 0.0
    %5428 = vmatprep.subr.mxu0 0.0
    %5429 = vmatpush2.xpose.msra.mxu0 0.0
    %5430 = vmatprep.mubr.f32.mxu0 0.0
    %5431 = vmatmul.mubr.f32.gmra.mxu0 %v5354
    %v5432 = vpop.f32.mrf.mxu0
    %v5433 = vadd.f32 0.0, %v5432
    %v5434 = vpop.f32.mrf.mxu0
    %5435 = vmatprep.mubr.f32.mxu0 0.0
    %5436 = vmatmul.mubr.f32.gmra.mxu0 %v5356
    %v5437 = vpop.f32.mrf.mxu0
    %v5438 = vadd.f32 0.0, %v5437
    %v5439 = vpop.f32.mrf.mxu0
    %5440 = vmatprep.mubr.f32.mxu0 0.0
    %5441 = vmatmul.mubr.f32.gmra.mxu0 %v5358
    %v5442 = vpop.f32.mrf.mxu0
    %v5443 = vadd.f32 0.0, %v5442
    %v5444 = vpop.f32.mrf.mxu0
    %5445 = vdwg.mxu0
    %v5446 = vmul.f32 %v5433, 0.5
    %v5447 = vmul.f32 %v5438, 0.5
    %v5448 = vmul.f32 %v5443, 0.5
    %v5449 = vsel %vm498, %v5446, -inf
    %5450 = vmax.xlane.f32.xlu0 %v5449
    %v5451 = vpop.xlane.xlu0 %5450
    %v5452 = vsel %vm498, %v5447, -inf
    %5453 = vmax.xlane.f32.xlu0 %v5452
    %v5454 = vpop.xlane.xlu0 %5453
    %v5455 = vsel %vm505, %v5448, -inf
    %5456 = vmax.xlane.f32.xlu0 %v5455
    %v5457 = vpop.xlane.xlu0 %5456
    %v5458 = vsub.f32 %v5446, %v5451
    %v5459 = vsub.f32 %v5447, %v5454
    %v5460 = vsub.f32 %v5448, %v5457
    %v5461 = vmul.f32 %v5458, 1.442695
    %v5462 = vpow.pop %v5461
    %v5463 = vmul.f32 %v5459, 1.442695
    %v5464 = vpow.pop %v5463
    %v5465 = vmul.f32 %v5460, 1.442695
    %v5466 = vpow.pop %v5465
    %v5467 = vsel %vm498, %v5462, 0.0
    %5468 = vadd.xlane.f32.xlu0 %v5467
    %v5469 = vpop.xlane.xlu0 %5468
    %v5470 = vsel %vm498, %v5464, 0.0
    %5471 = vadd.xlane.f32.xlu0 %v5470
    %v5472 = vpop.xlane.xlu0 %5471
    %v5473 = vsel %vm505, %v5466, 0.0
    %5474 = vadd.xlane.f32.xlu0 %v5473
    %v5475 = vpop.xlane.xlu0 %5474
    %v5476 = vrcp.pop %v5469
    %v5477 = vmul.f32 %v5462, %v5476
    %v5478 = vrcp.pop %v5472
    %v5479 = vmul.f32 %v5464, %v5478
    %v5480 = vrcp.pop %v5475
    %v5481 = vmul.f32 %v5466, %v5480
    %5482 = vrot.lane.b32.xlu0 %v5083, 60
    %v5483 = vpop.permute.xlu0 %5482
    %5484 = vrot.lane.b32.xlu0 %v5088, 60
    %v5485 = vpop.permute.xlu0 %5484
    %5486 = vrot.lane.b32.xlu0 %v5093, 60
    %v5487 = vpop.permute.xlu0 %5486
    %v5491 = vsel %vm498, %v5477, 0
    %v5494 = vsel %vm498, %v5479, 0
    %v5497 = vsel %vm498, %v5481, 0
    %v5499 = vsel %vm68, %v5487, 0
    %5501 = vmatprep.subr.mxu0 0.0
    %5502 = vmatpush1.msra.mxu0 0.0
    %5503 = vmatprep.subr.mxu0 0.0
    %5504 = vmatpush1.msra.mxu0 0.0
    %5505 = vmatprep.subr.mxu0 0.0
    %5506 = vmatpush1.msra.mxu0 0.0
    %5507 = vmatprep.subr.mxu0 0.0
    %5508 = vmatpush1.msra.mxu0 0.0
    %5509 = vmatprep.subr.mxu0 0.0
    %5510 = vmatpush1.msra.mxu0 0.0
    %5511 = vmatprep.subr.mxu0 0.0
    %5512 = vmatpush1.msra.mxu0 0.0
    %5513 = vmatprep.subr.mxu0 0.0
    %5514 = vmatpush1.msra.mxu0 0.0
    %5515 = vmatprep.subr.mxu0 0.0
    %5516 = vmatpush1.msra.mxu0 0.0
    %5517 = vmatprep.subr.mxu0 0.0
    %5518 = vmatpush1.msra.mxu0 0.0
    %5519 = vmatprep.subr.mxu0 0.0
    %5520 = vmatpush1.msra.mxu0 0.0
    %5521 = vmatprep.subr.mxu0 0.0
    %5522 = vmatpush1.msra.mxu0 0.0
    %5523 = vmatprep.subr.mxu0 0.0
    %5524 = vmatpush1.msra.mxu0 0.0
    %5525 = vmatprep.subr.mxu0 0.0
    %5526 = vmatpush1.msra.mxu0 0.0
    %5527 = vmatprep.subr.mxu0 0.0
    %5528 = vmatpush1.msra.mxu0 %v5499
    %5529 = vmatprep.subr.mxu0 0.0
    %5530 = vmatpush1.msra.mxu0 %v5485
    %5531 = vmatprep.subr.mxu0 0.0
    %5532 = vmatpush1.msra.mxu0 %v5483
    %5533 = vmatprep.subr.mxu0 0.0
    %5534 = vmatpush2.msra.mxu0 0.0
    %5535 = vmatprep.subr.mxu0 0.0
    %5536 = vmatpush2.msra.mxu0 0.0
    %5537 = vmatprep.subr.mxu0 0.0
    %5538 = vmatpush2.msra.mxu0 0.0
    %5539 = vmatprep.subr.mxu0 0.0
    %5540 = vmatpush2.msra.mxu0 0.0
    %5541 = vmatprep.subr.mxu0 0.0
    %5542 = vmatpush2.msra.mxu0 0.0
    %5543 = vmatprep.subr.mxu0 0.0
    %5544 = vmatpush2.msra.mxu0 0.0
    %5545 = vmatprep.subr.mxu0 0.0
    %5546 = vmatpush2.msra.mxu0 0.0
    %5547 = vmatprep.subr.mxu0 0.0
    %5548 = vmatpush2.msra.mxu0 0.0
    %5549 = vmatprep.subr.mxu0 0.0
    %5550 = vmatpush2.msra.mxu0 0.0
    %5551 = vmatprep.subr.mxu0 0.0
    %5552 = vmatpush2.msra.mxu0 0.0
    %5553 = vmatprep.subr.mxu0 0.0
    %5554 = vmatpush2.msra.mxu0 0.0
    %5555 = vmatprep.subr.mxu0 0.0
    %5556 = vmatpush2.msra.mxu0 0.0
    %5557 = vmatprep.subr.mxu0 0.0
    %5558 = vmatpush2.msra.mxu0 0.0
    %5559 = vmatprep.subr.mxu0 0.0
    %5560 = vmatpush2.msra.mxu0 0.0
    %5561 = vmatprep.subr.mxu0 0.0
    %5562 = vmatpush2.msra.mxu0 0.0
    %5563 = vmatprep.subr.mxu0 0.0
    %5564 = vmatpush2.msra.mxu0 0.0
    %5565 = vmatprep.mubr.f32.mxu0 0.0
    %5566 = vmatmul.mubr.f32.gmra.mxu0 %v5491
    %v5567 = vpop.f32.mrf.mxu0
    %v5568 = vadd.f32 0.0, %v5567
    %v5569 = vpop.f32.mrf.mxu0
    %5570 = vmatprep.mubr.f32.mxu0 0.0
    %5571 = vmatmul.mubr.f32.gmra.mxu0 %v5494
    %v5572 = vpop.f32.mrf.mxu0
    %v5573 = vadd.f32 0.0, %v5572
    %v5574 = vpop.f32.mrf.mxu0
    %5575 = vmatprep.mubr.f32.mxu0 0.0
    %5576 = vmatmul.mubr.f32.gmra.mxu0 %v5497
    %v5577 = vpop.f32.mrf.mxu0
    %v5578 = vadd.f32 0.0, %v5577
    %v5579 = vpop.f32.mrf.mxu0
    %5580 = vdwg.mxu0
    %5581 = vrot.lane.b32.xlu0 %v5083, 120
    %v5582 = vpop.permute.xlu0 %5581
    %5583 = vrot.lane.b32.xlu0 %v5088, 120
    %v5584 = vpop.permute.xlu0 %5583
    %5585 = vrot.lane.b32.xlu0 %v5093, 120
    %v5586 = vpop.permute.xlu0 %5585
    %5587 = vrot.lane.b32.xlu0 %v5083, 88
    %v5588 = vpop.permute.xlu0 %5587
    %5589 = vrot.lane.b32.xlu0 %v5088, 88
    %v5590 = vpop.permute.xlu0 %5589
    %5591 = vrot.lane.b32.xlu0 %v5093, 88
    %v5592 = vpop.permute.xlu0 %5591
    %v5593 = vsel %vm402, %v5582, 0
    %v5595 = vsel %vm402, %v5584, 0
    %v5597 = vsel %vm402, %v5586, 0
    %v5599 = vsel %vm402, %v5588, 0
    %v5601 = vsel %vm402, %v5590, 0
    %v5603 = vsel %vm402, %v5592, 0
    %5605 = vmatprep.subr.mxu0 0.0
    %5606 = vmatpush1.xpose.msra.mxu0 0.0
    %5607 = vmatprep.subr.mxu0 0.0
    %5608 = vmatpush1.xpose.msra.mxu0 0.0
    %5609 = vmatprep.subr.mxu0 0.0
    %5610 = vmatpush1.xpose.msra.mxu0 0.0
    %5611 = vmatprep.subr.mxu0 0.0
    %5612 = vmatpush1.xpose.msra.mxu0 0.0
    %5613 = vmatprep.subr.mxu0 0.0
    %5614 = vmatpush1.xpose.msra.mxu0 0.0
    %5615 = vmatprep.subr.mxu0 0.0
    %5616 = vmatpush1.xpose.msra.mxu0 0.0
    %5617 = vmatprep.subr.mxu0 0.0
    %5618 = vmatpush1.xpose.msra.mxu0 0.0
    %5619 = vmatprep.subr.mxu0 0.0
    %5620 = vmatpush1.xpose.msra.mxu0 0.0
    %5621 = vmatprep.subr.mxu0 0.0
    %5622 = vmatpush1.xpose.msra.mxu0 0.0
    %5623 = vmatprep.subr.mxu0 0.0
    %5624 = vmatpush1.xpose.msra.mxu0 0.0
    %5625 = vmatprep.subr.mxu0 0.0
    %5626 = vmatpush1.xpose.msra.mxu0 0.0
    %5627 = vmatprep.subr.mxu0 0.0
    %5628 = vmatpush1.xpose.msra.mxu0 0.0
    %5629 = vmatprep.subr.mxu0 0.0
    %5630 = vmatpush1.xpose.msra.mxu0 0.0
    %5631 = vmatprep.subr.mxu0 0.0
    %5632 = vmatpush1.xpose.msra.mxu0 %v5603
    %5633 = vmatprep.subr.mxu0 0.0
    %5634 = vmatpush1.xpose.msra.mxu0 %v5601
    %5635 = vmatprep.subr.mxu0 0.0
    %5636 = vmatpush1.xpose.msra.mxu0 %v5599
    %5637 = vmatprep.subr.mxu0 0.0
    %5638 = vmatpush2.xpose.msra.mxu0 0.0
    %5639 = vmatprep.subr.mxu0 0.0
    %5640 = vmatpush2.xpose.msra.mxu0 0.0
    %5641 = vmatprep.subr.mxu0 0.0
    %5642 = vmatpush2.xpose.msra.mxu0 0.0
    %5643 = vmatprep.subr.mxu0 0.0
    %5644 = vmatpush2.xpose.msra.mxu0 0.0
    %5645 = vmatprep.subr.mxu0 0.0
    %5646 = vmatpush2.xpose.msra.mxu0 0.0
    %5647 = vmatprep.subr.mxu0 0.0
    %5648 = vmatpush2.xpose.msra.mxu0 0.0
    %5649 = vmatprep.subr.mxu0 0.0
    %5650 = vmatpush2.xpose.msra.mxu0 0.0
    %5651 = vmatprep.subr.mxu0 0.0
    %5652 = vmatpush2.xpose.msra.mxu0 0.0
    %5653 = vmatprep.subr.mxu0 0.0
    %5654 = vmatpush2.xpose.msra.mxu0 0.0
    %5655 = vmatprep.subr.mxu0 0.0
    %5656 = vmatpush2.xpose.msra.mxu0 0.0
    %5657 = vmatprep.subr.mxu0 0.0
    %5658 = vmatpush2.xpose.msra.mxu0 0.0
    %5659 = vmatprep.subr.mxu0 0.0
    %5660 = vmatpush2.xpose.msra.mxu0 0.0
    %5661 = vmatprep.subr.mxu0 0.0
    %5662 = vmatpush2.xpose.msra.mxu0 0.0
    %5663 = vmatprep.subr.mxu0 0.0
    %5664 = vmatpush2.xpose.msra.mxu0 0.0
    %5665 = vmatprep.subr.mxu0 0.0
    %5666 = vmatpush2.xpose.msra.mxu0 0.0
    %5667 = vmatprep.subr.mxu0 0.0
    %5668 = vmatpush2.xpose.msra.mxu0 0.0
    %5669 = vmatprep.mubr.f32.mxu0 0.0
    %5670 = vmatmul.mubr.f32.gmra.mxu0 %v5593
    %v5671 = vpop.f32.mrf.mxu0
    %v5672 = vadd.f32 0.0, %v5671
    %v5673 = vpop.f32.mrf.mxu0
    %5674 = vmatprep.mubr.f32.mxu0 0.0
    %5675 = vmatmul.mubr.f32.gmra.mxu0 %v5595
    %v5676 = vpop.f32.mrf.mxu0
    %v5677 = vadd.f32 0.0, %v5676
    %v5678 = vpop.f32.mrf.mxu0
    %5679 = vmatprep.mubr.f32.mxu0 0.0
    %5680 = vmatmul.mubr.f32.gmra.mxu0 %v5597
    %v5681 = vpop.f32.mrf.mxu0
    %v5682 = vadd.f32 0.0, %v5681
    %v5683 = vpop.f32.mrf.mxu0
    %5684 = vdwg.mxu0
    %v5685 = vmul.f32 %v5672, 0.5
    %v5686 = vmul.f32 %v5677, 0.5
    %v5687 = vmul.f32 %v5682, 0.5
    %v5688 = vsel %vm498, %v5685, -inf
    %5689 = vmax.xlane.f32.xlu0 %v5688
    %v5690 = vpop.xlane.xlu0 %5689
    %v5691 = vsel %vm498, %v5686, -inf
    %5692 = vmax.xlane.f32.xlu0 %v5691
    %v5693 = vpop.xlane.xlu0 %5692
    %v5694 = vsel %vm505, %v5687, -inf
    %5695 = vmax.xlane.f32.xlu0 %v5694
    %v5696 = vpop.xlane.xlu0 %5695
    %v5697 = vsub.f32 %v5685, %v5690
    %v5698 = vsub.f32 %v5686, %v5693
    %v5699 = vsub.f32 %v5687, %v5696
    %v5700 = vmul.f32 %v5697, 1.442695
    %v5701 = vpow.pop %v5700
    %v5702 = vmul.f32 %v5698, 1.442695
    %v5703 = vpow.pop %v5702
    %v5704 = vmul.f32 %v5699, 1.442695
    %v5705 = vpow.pop %v5704
    %v5706 = vsel %vm498, %v5701, 0.0
    %5707 = vadd.xlane.f32.xlu0 %v5706
    %v5708 = vpop.xlane.xlu0 %5707
    %v5709 = vsel %vm498, %v5703, 0.0
    %5710 = vadd.xlane.f32.xlu0 %v5709
    %v5711 = vpop.xlane.xlu0 %5710
    %v5712 = vsel %vm505, %v5705, 0.0
    %5713 = vadd.xlane.f32.xlu0 %v5712
    %v5714 = vpop.xlane.xlu0 %5713
    %v5715 = vrcp.pop %v5708
    %v5716 = vmul.f32 %v5701, %v5715
    %v5717 = vrcp.pop %v5711
    %v5718 = vmul.f32 %v5703, %v5717
    %v5719 = vrcp.pop %v5714
    %v5720 = vmul.f32 %v5705, %v5719
    %5721 = vrot.lane.b32.xlu0 %v5083, 56
    %v5722 = vpop.permute.xlu0 %5721
    %5723 = vrot.lane.b32.xlu0 %v5088, 56
    %v5724 = vpop.permute.xlu0 %5723
    %5725 = vrot.lane.b32.xlu0 %v5093, 56
    %v5726 = vpop.permute.xlu0 %5725
    %v5730 = vsel %vm498, %v5716, 0
    %v5733 = vsel %vm498, %v5718, 0
    %v5736 = vsel %vm498, %v5720, 0
    %v5738 = vsel %vm68, %v5726, 0
    %5740 = vmatprep.subr.mxu0 0.0
    %5741 = vmatpush1.msra.mxu0 0.0
    %5742 = vmatprep.subr.mxu0 0.0
    %5743 = vmatpush1.msra.mxu0 0.0
    %5744 = vmatprep.subr.mxu0 0.0
    %5745 = vmatpush1.msra.mxu0 0.0
    %5746 = vmatprep.subr.mxu0 0.0
    %5747 = vmatpush1.msra.mxu0 0.0
    %5748 = vmatprep.subr.mxu0 0.0
    %5749 = vmatpush1.msra.mxu0 0.0
    %5750 = vmatprep.subr.mxu0 0.0
    %5751 = vmatpush1.msra.mxu0 0.0
    %5752 = vmatprep.subr.mxu0 0.0
    %5753 = vmatpush1.msra.mxu0 0.0
    %5754 = vmatprep.subr.mxu0 0.0
    %5755 = vmatpush1.msra.mxu0 0.0
    %5756 = vmatprep.subr.mxu0 0.0
    %5757 = vmatpush1.msra.mxu0 0.0
    %5758 = vmatprep.subr.mxu0 0.0
    %5759 = vmatpush1.msra.mxu0 0.0
    %5760 = vmatprep.subr.mxu0 0.0
    %5761 = vmatpush1.msra.mxu0 0.0
    %5762 = vmatprep.subr.mxu0 0.0
    %5763 = vmatpush1.msra.mxu0 0.0
    %5764 = vmatprep.subr.mxu0 0.0
    %5765 = vmatpush1.msra.mxu0 0.0
    %5766 = vmatprep.subr.mxu0 0.0
    %5767 = vmatpush1.msra.mxu0 %v5738
    %5768 = vmatprep.subr.mxu0 0.0
    %5769 = vmatpush1.msra.mxu0 %v5724
    %5770 = vmatprep.subr.mxu0 0.0
    %5771 = vmatpush1.msra.mxu0 %v5722
    %5772 = vmatprep.subr.mxu0 0.0
    %5773 = vmatpush2.msra.mxu0 0.0
    %5774 = vmatprep.subr.mxu0 0.0
    %5775 = vmatpush2.msra.mxu0 0.0
    %5776 = vmatprep.subr.mxu0 0.0
    %5777 = vmatpush2.msra.mxu0 0.0
    %5778 = vmatprep.subr.mxu0 0.0
    %5779 = vmatpush2.msra.mxu0 0.0
    %5780 = vmatprep.subr.mxu0 0.0
    %5781 = vmatpush2.msra.mxu0 0.0
    %5782 = vmatprep.subr.mxu0 0.0
    %5783 = vmatpush2.msra.mxu0 0.0
    %5784 = vmatprep.subr.mxu0 0.0
    %5785 = vmatpush2.msra.mxu0 0.0
    %5786 = vmatprep.subr.mxu0 0.0
    %5787 = vmatpush2.msra.mxu0 0.0
    %5788 = vmatprep.subr.mxu0 0.0
    %5789 = vmatpush2.msra.mxu0 0.0
    %5790 = vmatprep.subr.mxu0 0.0
    %5791 = vmatpush2.msra.mxu0 0.0
    %5792 = vmatprep.subr.mxu0 0.0
    %5793 = vmatpush2.msra.mxu0 0.0
    %5794 = vmatprep.subr.mxu0 0.0
    %5795 = vmatpush2.msra.mxu0 0.0
    %5796 = vmatprep.subr.mxu0 0.0
    %5797 = vmatpush2.msra.mxu0 0.0
    %5798 = vmatprep.subr.mxu0 0.0
    %5799 = vmatpush2.msra.mxu0 0.0
    %5800 = vmatprep.subr.mxu0 0.0
    %5801 = vmatpush2.msra.mxu0 0.0
    %5802 = vmatprep.subr.mxu0 0.0
    %5803 = vmatpush2.msra.mxu0 0.0
    %5804 = vmatprep.mubr.f32.mxu0 0.0
    %5805 = vmatmul.mubr.f32.gmra.mxu0 %v5730
    %v5806 = vpop.f32.mrf.mxu0
    %v5807 = vadd.f32 0.0, %v5806
    %v5808 = vpop.f32.mrf.mxu0
    %5809 = vmatprep.mubr.f32.mxu0 0.0
    %5810 = vmatmul.mubr.f32.gmra.mxu0 %v5733
    %v5811 = vpop.f32.mrf.mxu0
    %v5812 = vadd.f32 0.0, %v5811
    %v5813 = vpop.f32.mrf.mxu0
    %5814 = vmatprep.mubr.f32.mxu0 0.0
    %5815 = vmatmul.mubr.f32.gmra.mxu0 %v5736
    %v5816 = vpop.f32.mrf.mxu0
    %v5817 = vadd.f32 0.0, %v5816
    %v5818 = vpop.f32.mrf.mxu0
    %5819 = vdwg.mxu0
    %5820 = vrot.lane.b32.xlu0 %v5083, 116
    %v5821 = vpop.permute.xlu0 %5820
    %5822 = vrot.lane.b32.xlu0 %v5088, 116
    %v5823 = vpop.permute.xlu0 %5822
    %5824 = vrot.lane.b32.xlu0 %v5093, 116
    %v5825 = vpop.permute.xlu0 %5824
    %5826 = vrot.lane.b32.xlu0 %v5083, 84
    %v5827 = vpop.permute.xlu0 %5826
    %5828 = vrot.lane.b32.xlu0 %v5088, 84
    %v5829 = vpop.permute.xlu0 %5828
    %5830 = vrot.lane.b32.xlu0 %v5093, 84
    %v5831 = vpop.permute.xlu0 %5830
    %v5832 = vsel %vm402, %v5821, 0
    %v5834 = vsel %vm402, %v5823, 0
    %v5836 = vsel %vm402, %v5825, 0
    %v5838 = vsel %vm402, %v5827, 0
    %v5840 = vsel %vm402, %v5829, 0
    %v5842 = vsel %vm402, %v5831, 0
    %5844 = vmatprep.subr.mxu0 0.0
    %5845 = vmatpush1.xpose.msra.mxu0 0.0
    %5846 = vmatprep.subr.mxu0 0.0
    %5847 = vmatpush1.xpose.msra.mxu0 0.0
    %5848 = vmatprep.subr.mxu0 0.0
    %5849 = vmatpush1.xpose.msra.mxu0 0.0
    %5850 = vmatprep.subr.mxu0 0.0
    %5851 = vmatpush1.xpose.msra.mxu0 0.0
    %5852 = vmatprep.subr.mxu0 0.0
    %5853 = vmatpush1.xpose.msra.mxu0 0.0
    %5854 = vmatprep.subr.mxu0 0.0
    %5855 = vmatpush1.xpose.msra.mxu0 0.0
    %5856 = vmatprep.subr.mxu0 0.0
    %5857 = vmatpush1.xpose.msra.mxu0 0.0
    %5858 = vmatprep.subr.mxu0 0.0
    %5859 = vmatpush1.xpose.msra.mxu0 0.0
    %5860 = vmatprep.subr.mxu0 0.0
    %5861 = vmatpush1.xpose.msra.mxu0 0.0
    %5862 = vmatprep.subr.mxu0 0.0
    %5863 = vmatpush1.xpose.msra.mxu0 0.0
    %5864 = vmatprep.subr.mxu0 0.0
    %5865 = vmatpush1.xpose.msra.mxu0 0.0
    %5866 = vmatprep.subr.mxu0 0.0
    %5867 = vmatpush1.xpose.msra.mxu0 0.0
    %5868 = vmatprep.subr.mxu0 0.0
    %5869 = vmatpush1.xpose.msra.mxu0 0.0
    %5870 = vmatprep.subr.mxu0 0.0
    %5871 = vmatpush1.xpose.msra.mxu0 %v5842
    %5872 = vmatprep.subr.mxu0 0.0
    %5873 = vmatpush1.xpose.msra.mxu0 %v5840
    %5874 = vmatprep.subr.mxu0 0.0
    %5875 = vmatpush1.xpose.msra.mxu0 %v5838
    %5876 = vmatprep.subr.mxu0 0.0
    %5877 = vmatpush2.xpose.msra.mxu0 0.0
    %5878 = vmatprep.subr.mxu0 0.0
    %5879 = vmatpush2.xpose.msra.mxu0 0.0
    %5880 = vmatprep.subr.mxu0 0.0
    %5881 = vmatpush2.xpose.msra.mxu0 0.0
    %5882 = vmatprep.subr.mxu0 0.0
    %5883 = vmatpush2.xpose.msra.mxu0 0.0
    %5884 = vmatprep.subr.mxu0 0.0
    %5885 = vmatpush2.xpose.msra.mxu0 0.0
    %5886 = vmatprep.subr.mxu0 0.0
    %5887 = vmatpush2.xpose.msra.mxu0 0.0
    %5888 = vmatprep.subr.mxu0 0.0
    %5889 = vmatpush2.xpose.msra.mxu0 0.0
    %5890 = vmatprep.subr.mxu0 0.0
    %5891 = vmatpush2.xpose.msra.mxu0 0.0
    %5892 = vmatprep.subr.mxu0 0.0
    %5893 = vmatpush2.xpose.msra.mxu0 0.0
    %5894 = vmatprep.subr.mxu0 0.0
    %5895 = vmatpush2.xpose.msra.mxu0 0.0
    %5896 = vmatprep.subr.mxu0 0.0
    %5897 = vmatpush2.xpose.msra.mxu0 0.0
    %5898 = vmatprep.subr.mxu0 0.0
    %5899 = vmatpush2.xpose.msra.mxu0 0.0
    %5900 = vmatprep.subr.mxu0 0.0
    %5901 = vmatpush2.xpose.msra.mxu0 0.0
    %5902 = vmatprep.subr.mxu0 0.0
    %5903 = vmatpush2.xpose.msra.mxu0 0.0
    %5904 = vmatprep.subr.mxu0 0.0
    %5905 = vmatpush2.xpose.msra.mxu0 0.0
    %5906 = vmatprep.subr.mxu0 0.0
    %5907 = vmatpush2.xpose.msra.mxu0 0.0
    %5908 = vmatprep.mubr.f32.mxu0 0.0
    %5909 = vmatmul.mubr.f32.gmra.mxu0 %v5832
    %v5910 = vpop.f32.mrf.mxu0
    %v5911 = vadd.f32 0.0, %v5910
    %v5912 = vpop.f32.mrf.mxu0
    %5913 = vmatprep.mubr.f32.mxu0 0.0
    %5914 = vmatmul.mubr.f32.gmra.mxu0 %v5834
    %v5915 = vpop.f32.mrf.mxu0
    %v5916 = vadd.f32 0.0, %v5915
    %v5917 = vpop.f32.mrf.mxu0
    %5918 = vmatprep.mubr.f32.mxu0 0.0
    %5919 = vmatmul.mubr.f32.gmra.mxu0 %v5836
    %v5920 = vpop.f32.mrf.mxu0
    %v5921 = vadd.f32 0.0, %v5920
    %v5922 = vpop.f32.mrf.mxu0
    %5923 = vdwg.mxu0
    %v5924 = vmul.f32 %v5911, 0.5
    %v5925 = vmul.f32 %v5916, 0.5
    %v5926 = vmul.f32 %v5921, 0.5
    %v5927 = vsel %vm498, %v5924, -inf
    %5928 = vmax.xlane.f32.xlu0 %v5927
    %v5929 = vpop.xlane.xlu0 %5928
    %v5930 = vsel %vm498, %v5925, -inf
    %5931 = vmax.xlane.f32.xlu0 %v5930
    %v5932 = vpop.xlane.xlu0 %5931
    %v5933 = vsel %vm505, %v5926, -inf
    %5934 = vmax.xlane.f32.xlu0 %v5933
    %v5935 = vpop.xlane.xlu0 %5934
    %v5936 = vsub.f32 %v5924, %v5929
    %v5937 = vsub.f32 %v5925, %v5932
    %v5938 = vsub.f32 %v5926, %v5935
    %v5939 = vmul.f32 %v5936, 1.442695
    %v5940 = vpow.pop %v5939
    %v5941 = vmul.f32 %v5937, 1.442695
    %v5942 = vpow.pop %v5941
    %v5943 = vmul.f32 %v5938, 1.442695
    %v5944 = vpow.pop %v5943
    %v5945 = vsel %vm498, %v5940, 0.0
    %5946 = vadd.xlane.f32.xlu0 %v5945
    %v5947 = vpop.xlane.xlu0 %5946
    %v5948 = vsel %vm498, %v5942, 0.0
    %5949 = vadd.xlane.f32.xlu0 %v5948
    %v5950 = vpop.xlane.xlu0 %5949
    %v5951 = vsel %vm505, %v5944, 0.0
    %5952 = vadd.xlane.f32.xlu0 %v5951
    %v5953 = vpop.xlane.xlu0 %5952
    %v5954 = vrcp.pop %v5947
    %v5955 = vmul.f32 %v5940, %v5954
    %v5956 = vrcp.pop %v5950
    %v5957 = vmul.f32 %v5942, %v5956
    %v5958 = vrcp.pop %v5953
    %v5959 = vmul.f32 %v5944, %v5958
    %5960 = vrot.lane.b32.xlu0 %v5083, 52
    %v5961 = vpop.permute.xlu0 %5960
    %5962 = vrot.lane.b32.xlu0 %v5088, 52
    %v5963 = vpop.permute.xlu0 %5962
    %5964 = vrot.lane.b32.xlu0 %v5093, 52
    %v5965 = vpop.permute.xlu0 %5964
    %v5969 = vsel %vm498, %v5955, 0
    %v5972 = vsel %vm498, %v5957, 0
    %v5975 = vsel %vm498, %v5959, 0
    %v5977 = vsel %vm68, %v5965, 0
    %5979 = vmatprep.subr.mxu0 0.0
    %5980 = vmatpush1.msra.mxu0 0.0
    %5981 = vmatprep.subr.mxu0 0.0
    %5982 = vmatpush1.msra.mxu0 0.0
    %5983 = vmatprep.subr.mxu0 0.0
    %5984 = vmatpush1.msra.mxu0 0.0
    %5985 = vmatprep.subr.mxu0 0.0
    %5986 = vmatpush1.msra.mxu0 0.0
    %5987 = vmatprep.subr.mxu0 0.0
    %5988 = vmatpush1.msra.mxu0 0.0
    %5989 = vmatprep.subr.mxu0 0.0
    %5990 = vmatpush1.msra.mxu0 0.0
    %5991 = vmatprep.subr.mxu0 0.0
    %5992 = vmatpush1.msra.mxu0 0.0
    %5993 = vmatprep.subr.mxu0 0.0
    %5994 = vmatpush1.msra.mxu0 0.0
    %5995 = vmatprep.subr.mxu0 0.0
    %5996 = vmatpush1.msra.mxu0 0.0
    %5997 = vmatprep.subr.mxu0 0.0
    %5998 = vmatpush1.msra.mxu0 0.0
    %5999 = vmatprep.subr.mxu0 0.0
    %6000 = vmatpush1.msra.mxu0 0.0
    %6001 = vmatprep.subr.mxu0 0.0
    %6002 = vmatpush1.msra.mxu0 0.0
    %6003 = vmatprep.subr.mxu0 0.0
    %6004 = vmatpush1.msra.mxu0 0.0
    %6005 = vmatprep.subr.mxu0 0.0
    %6006 = vmatpush1.msra.mxu0 %v5977
    %6007 = vmatprep.subr.mxu0 0.0
    %6008 = vmatpush1.msra.mxu0 %v5963
    %6009 = vmatprep.subr.mxu0 0.0
    %6010 = vmatpush1.msra.mxu0 %v5961
    %6011 = vmatprep.subr.mxu0 0.0
    %6012 = vmatpush2.msra.mxu0 0.0
    %6013 = vmatprep.subr.mxu0 0.0
    %6014 = vmatpush2.msra.mxu0 0.0
    %6015 = vmatprep.subr.mxu0 0.0
    %6016 = vmatpush2.msra.mxu0 0.0
    %6017 = vmatprep.subr.mxu0 0.0
    %6018 = vmatpush2.msra.mxu0 0.0
    %6019 = vmatprep.subr.mxu0 0.0
    %6020 = vmatpush2.msra.mxu0 0.0
    %6021 = vmatprep.subr.mxu0 0.0
    %6022 = vmatpush2.msra.mxu0 0.0
    %6023 = vmatprep.subr.mxu0 0.0
    %6024 = vmatpush2.msra.mxu0 0.0
    %6025 = vmatprep.subr.mxu0 0.0
    %6026 = vmatpush2.msra.mxu0 0.0
    %6027 = vmatprep.subr.mxu0 0.0
    %6028 = vmatpush2.msra.mxu0 0.0
    %6029 = vmatprep.subr.mxu0 0.0
    %6030 = vmatpush2.msra.mxu0 0.0
    %6031 = vmatprep.subr.mxu0 0.0
    %6032 = vmatpush2.msra.mxu0 0.0
    %6033 = vmatprep.subr.mxu0 0.0
    %6034 = vmatpush2.msra.mxu0 0.0
    %6035 = vmatprep.subr.mxu0 0.0
    %6036 = vmatpush2.msra.mxu0 0.0
    %6037 = vmatprep.subr.mxu0 0.0
    %6038 = vmatpush2.msra.mxu0 0.0
    %6039 = vmatprep.subr.mxu0 0.0
    %6040 = vmatpush2.msra.mxu0 0.0
    %6041 = vmatprep.subr.mxu0 0.0
    %6042 = vmatpush2.msra.mxu0 0.0
    %6043 = vmatprep.mubr.f32.mxu0 0.0
    %6044 = vmatmul.mubr.f32.gmra.mxu0 %v5969
    %v6045 = vpop.f32.mrf.mxu0
    %v6046 = vadd.f32 0.0, %v6045
    %v6047 = vpop.f32.mrf.mxu0
    %6048 = vmatprep.mubr.f32.mxu0 0.0
    %6049 = vmatmul.mubr.f32.gmra.mxu0 %v5972
    %v6050 = vpop.f32.mrf.mxu0
    %v6051 = vadd.f32 0.0, %v6050
    %v6052 = vpop.f32.mrf.mxu0
    %6053 = vmatprep.mubr.f32.mxu0 0.0
    %6054 = vmatmul.mubr.f32.gmra.mxu0 %v5975
    %v6055 = vpop.f32.mrf.mxu0
    %v6056 = vadd.f32 0.0, %v6055
    %v6057 = vpop.f32.mrf.mxu0
    %6058 = vdwg.mxu0
    %6059 = vrot.lane.b32.xlu0 %v5083, 112
    %v6060 = vpop.permute.xlu0 %6059
    %6061 = vrot.lane.b32.xlu0 %v5088, 112
    %v6062 = vpop.permute.xlu0 %6061
    %6063 = vrot.lane.b32.xlu0 %v5093, 112
    %v6064 = vpop.permute.xlu0 %6063
    %6065 = vrot.lane.b32.xlu0 %v5083, 80
    %v6066 = vpop.permute.xlu0 %6065
    %6067 = vrot.lane.b32.xlu0 %v5088, 80
    %v6068 = vpop.permute.xlu0 %6067
    %6069 = vrot.lane.b32.xlu0 %v5093, 80
    %v6070 = vpop.permute.xlu0 %6069
    %v6071 = vsel %vm402, %v6060, 0
    %v6073 = vsel %vm402, %v6062, 0
    %v6075 = vsel %vm402, %v6064, 0
    %v6077 = vsel %vm402, %v6066, 0
    %v6079 = vsel %vm402, %v6068, 0
    %v6081 = vsel %vm402, %v6070, 0
    %6083 = vmatprep.subr.mxu0 0.0
    %6084 = vmatpush1.xpose.msra.mxu0 0.0
    %6085 = vmatprep.subr.mxu0 0.0
    %6086 = vmatpush1.xpose.msra.mxu0 0.0
    %6087 = vmatprep.subr.mxu0 0.0
    %6088 = vmatpush1.xpose.msra.mxu0 0.0
    %6089 = vmatprep.subr.mxu0 0.0
    %6090 = vmatpush1.xpose.msra.mxu0 0.0
    %6091 = vmatprep.subr.mxu0 0.0
    %6092 = vmatpush1.xpose.msra.mxu0 0.0
    %6093 = vmatprep.subr.mxu0 0.0
    %6094 = vmatpush1.xpose.msra.mxu0 0.0
    %6095 = vmatprep.subr.mxu0 0.0
    %6096 = vmatpush1.xpose.msra.mxu0 0.0
    %6097 = vmatprep.subr.mxu0 0.0
    %6098 = vmatpush1.xpose.msra.mxu0 0.0
    %6099 = vmatprep.subr.mxu0 0.0
    %6100 = vmatpush1.xpose.msra.mxu0 0.0
    %6101 = vmatprep.subr.mxu0 0.0
    %6102 = vmatpush1.xpose.msra.mxu0 0.0
    %6103 = vmatprep.subr.mxu0 0.0
    %6104 = vmatpush1.xpose.msra.mxu0 0.0
    %6105 = vmatprep.subr.mxu0 0.0
    %6106 = vmatpush1.xpose.msra.mxu0 0.0
    %6107 = vmatprep.subr.mxu0 0.0
    %6108 = vmatpush1.xpose.msra.mxu0 0.0
    %6109 = vmatprep.subr.mxu0 0.0
    %6110 = vmatpush1.xpose.msra.mxu0 %v6081
    %6111 = vmatprep.subr.mxu0 0.0
    %6112 = vmatpush1.xpose.msra.mxu0 %v6079
    %6113 = vmatprep.subr.mxu0 0.0
    %6114 = vmatpush1.xpose.msra.mxu0 %v6077
    %6115 = vmatprep.subr.mxu0 0.0
    %6116 = vmatpush2.xpose.msra.mxu0 0.0
    %6117 = vmatprep.subr.mxu0 0.0
    %6118 = vmatpush2.xpose.msra.mxu0 0.0
    %6119 = vmatprep.subr.mxu0 0.0
    %6120 = vmatpush2.xpose.msra.mxu0 0.0
    %6121 = vmatprep.subr.mxu0 0.0
    %6122 = vmatpush2.xpose.msra.mxu0 0.0
    %6123 = vmatprep.subr.mxu0 0.0
    %6124 = vmatpush2.xpose.msra.mxu0 0.0
    %6125 = vmatprep.subr.mxu0 0.0
    %6126 = vmatpush2.xpose.msra.mxu0 0.0
    %6127 = vmatprep.subr.mxu0 0.0
    %6128 = vmatpush2.xpose.msra.mxu0 0.0
    %6129 = vmatprep.subr.mxu0 0.0
    %6130 = vmatpush2.xpose.msra.mxu0 0.0
    %6131 = vmatprep.subr.mxu0 0.0
    %6132 = vmatpush2.xpose.msra.mxu0 0.0
    %6133 = vmatprep.subr.mxu0 0.0
    %6134 = vmatpush2.xpose.msra.mxu0 0.0
    %6135 = vmatprep.subr.mxu0 0.0
    %6136 = vmatpush2.xpose.msra.mxu0 0.0
    %6137 = vmatprep.subr.mxu0 0.0
    %6138 = vmatpush2.xpose.msra.mxu0 0.0
    %6139 = vmatprep.subr.mxu0 0.0
    %6140 = vmatpush2.xpose.msra.mxu0 0.0
    %6141 = vmatprep.subr.mxu0 0.0
    %6142 = vmatpush2.xpose.msra.mxu0 0.0
    %6143 = vmatprep.subr.mxu0 0.0
    %6144 = vmatpush2.xpose.msra.mxu0 0.0
    %6145 = vmatprep.subr.mxu0 0.0
    %6146 = vmatpush2.xpose.msra.mxu0 0.0
    %6147 = vmatprep.mubr.f32.mxu0 0.0
    %6148 = vmatmul.mubr.f32.gmra.mxu0 %v6071
    %v6149 = vpop.f32.mrf.mxu0
    %v6150 = vadd.f32 0.0, %v6149
    %v6151 = vpop.f32.mrf.mxu0
    %6152 = vmatprep.mubr.f32.mxu0 0.0
    %6153 = vmatmul.mubr.f32.gmra.mxu0 %v6073
    %v6154 = vpop.f32.mrf.mxu0
    %v6155 = vadd.f32 0.0, %v6154
    %v6156 = vpop.f32.mrf.mxu0
    %6157 = vmatprep.mubr.f32.mxu0 0.0
    %6158 = vmatmul.mubr.f32.gmra.mxu0 %v6075
    %v6159 = vpop.f32.mrf.mxu0
    %v6160 = vadd.f32 0.0, %v6159
    %v6161 = vpop.f32.mrf.mxu0
    %6162 = vdwg.mxu0
    %v6163 = vmul.f32 %v6150, 0.5
    %v6164 = vmul.f32 %v6155, 0.5
    %v6165 = vmul.f32 %v6160, 0.5
    %v6166 = vsel %vm498, %v6163, -inf
    %6167 = vmax.xlane.f32.xlu0 %v6166
    %v6168 = vpop.xlane.xlu0 %6167
    %v6169 = vsel %vm498, %v6164, -inf
    %6170 = vmax.xlane.f32.xlu0 %v6169
    %v6171 = vpop.xlane.xlu0 %6170
    %v6172 = vsel %vm505, %v6165, -inf
    %6173 = vmax.xlane.f32.xlu0 %v6172
    %v6174 = vpop.xlane.xlu0 %6173
    %v6175 = vsub.f32 %v6163, %v6168
    %v6176 = vsub.f32 %v6164, %v6171
    %v6177 = vsub.f32 %v6165, %v6174
    %v6178 = vmul.f32 %v6175, 1.442695
    %v6179 = vpow.pop %v6178
    %v6180 = vmul.f32 %v6176, 1.442695
    %v6181 = vpow.pop %v6180
    %v6182 = vmul.f32 %v6177, 1.442695
    %v6183 = vpow.pop %v6182
    %v6184 = vsel %vm498, %v6179, 0.0
    %6185 = vadd.xlane.f32.xlu0 %v6184
    %v6186 = vpop.xlane.xlu0 %6185
    %v6187 = vsel %vm498, %v6181, 0.0
    %6188 = vadd.xlane.f32.xlu0 %v6187
    %v6189 = vpop.xlane.xlu0 %6188
    %v6190 = vsel %vm505, %v6183, 0.0
    %6191 = vadd.xlane.f32.xlu0 %v6190
    %v6192 = vpop.xlane.xlu0 %6191
    %v6193 = vrcp.pop %v6186
    %v6194 = vmul.f32 %v6179, %v6193
    %v6195 = vrcp.pop %v6189
    %v6196 = vmul.f32 %v6181, %v6195
    %v6197 = vrcp.pop %v6192
    %v6198 = vmul.f32 %v6183, %v6197
    %6199 = vrot.lane.b32.xlu0 %v5083, 48
    %v6200 = vpop.permute.xlu0 %6199
    %6201 = vrot.lane.b32.xlu0 %v5088, 48
    %v6202 = vpop.permute.xlu0 %6201
    %6203 = vrot.lane.b32.xlu0 %v5093, 48
    %v6204 = vpop.permute.xlu0 %6203
    %v6208 = vsel %vm498, %v6194, 0
    %v6211 = vsel %vm498, %v6196, 0
    %v6214 = vsel %vm498, %v6198, 0
    %v6216 = vsel %vm68, %v6204, 0
    %6218 = vmatprep.subr.mxu0 0.0
    %6219 = vmatpush1.msra.mxu0 0.0
    %6220 = vmatprep.subr.mxu0 0.0
    %6221 = vmatpush1.msra.mxu0 0.0
    %6222 = vmatprep.subr.mxu0 0.0
    %6223 = vmatpush1.msra.mxu0 0.0
    %6224 = vmatprep.subr.mxu0 0.0
    %6225 = vmatpush1.msra.mxu0 0.0
    %6226 = vmatprep.subr.mxu0 0.0
    %6227 = vmatpush1.msra.mxu0 0.0
    %6228 = vmatprep.subr.mxu0 0.0
    %6229 = vmatpush1.msra.mxu0 0.0
    %6230 = vmatprep.subr.mxu0 0.0
    %6231 = vmatpush1.msra.mxu0 0.0
    %6232 = vmatprep.subr.mxu0 0.0
    %6233 = vmatpush1.msra.mxu0 0.0
    %6234 = vmatprep.subr.mxu0 0.0
    %6235 = vmatpush1.msra.mxu0 0.0
    %6236 = vmatprep.subr.mxu0 0.0
    %6237 = vmatpush1.msra.mxu0 0.0
    %6238 = vmatprep.subr.mxu0 0.0
    %6239 = vmatpush1.msra.mxu0 0.0
    %6240 = vmatprep.subr.mxu0 0.0
    %6241 = vmatpush1.msra.mxu0 0.0
    %6242 = vmatprep.subr.mxu0 0.0
    %6243 = vmatpush1.msra.mxu0 0.0
    %6244 = vmatprep.subr.mxu0 0.0
    %6245 = vmatpush1.msra.mxu0 %v6216
    %6246 = vmatprep.subr.mxu0 0.0
    %6247 = vmatpush1.msra.mxu0 %v6202
    %6248 = vmatprep.subr.mxu0 0.0
    %6249 = vmatpush1.msra.mxu0 %v6200
    %6250 = vmatprep.subr.mxu0 0.0
    %6251 = vmatpush2.msra.mxu0 0.0
    %6252 = vmatprep.subr.mxu0 0.0
    %6253 = vmatpush2.msra.mxu0 0.0
    %6254 = vmatprep.subr.mxu0 0.0
    %6255 = vmatpush2.msra.mxu0 0.0
    %6256 = vmatprep.subr.mxu0 0.0
    %6257 = vmatpush2.msra.mxu0 0.0
    %6258 = vmatprep.subr.mxu0 0.0
    %6259 = vmatpush2.msra.mxu0 0.0
    %6260 = vmatprep.subr.mxu0 0.0
    %6261 = vmatpush2.msra.mxu0 0.0
    %6262 = vmatprep.subr.mxu0 0.0
    %6263 = vmatpush2.msra.mxu0 0.0
    %6264 = vmatprep.subr.mxu0 0.0
    %6265 = vmatpush2.msra.mxu0 0.0
    %6266 = vmatprep.subr.mxu0 0.0
    %6267 = vmatpush2.msra.mxu0 0.0
    %6268 = vmatprep.subr.mxu0 0.0
    %6269 = vmatpush2.msra.mxu0 0.0
    %6270 = vmatprep.subr.mxu0 0.0
    %6271 = vmatpush2.msra.mxu0 0.0
    %6272 = vmatprep.subr.mxu0 0.0
    %6273 = vmatpush2.msra.mxu0 0.0
    %6274 = vmatprep.subr.mxu0 0.0
    %6275 = vmatpush2.msra.mxu0 0.0
    %6276 = vmatprep.subr.mxu0 0.0
    %6277 = vmatpush2.msra.mxu0 0.0
    %6278 = vmatprep.subr.mxu0 0.0
    %6279 = vmatpush2.msra.mxu0 0.0
    %6280 = vmatprep.subr.mxu0 0.0
    %6281 = vmatpush2.msra.mxu0 0.0
    %6282 = vmatprep.mubr.f32.mxu0 0.0
    %6283 = vmatmul.mubr.f32.gmra.mxu0 %v6208
    %v6284 = vpop.f32.mrf.mxu0
    %v6285 = vadd.f32 0.0, %v6284
    %v6286 = vpop.f32.mrf.mxu0
    %6287 = vmatprep.mubr.f32.mxu0 0.0
    %6288 = vmatmul.mubr.f32.gmra.mxu0 %v6211
    %v6289 = vpop.f32.mrf.mxu0
    %v6290 = vadd.f32 0.0, %v6289
    %v6291 = vpop.f32.mrf.mxu0
    %6292 = vmatprep.mubr.f32.mxu0 0.0
    %6293 = vmatmul.mubr.f32.gmra.mxu0 %v6214
    %v6294 = vpop.f32.mrf.mxu0
    %v6295 = vadd.f32 0.0, %v6294
    %v6296 = vpop.f32.mrf.mxu0
    %6297 = vdwg.mxu0
    %6298 = vrot.lane.b32.xlu0 %v5083, 108
    %v6299 = vpop.permute.xlu0 %6298
    %6300 = vrot.lane.b32.xlu0 %v5088, 108
    %v6301 = vpop.permute.xlu0 %6300
    %6302 = vrot.lane.b32.xlu0 %v5093, 108
    %v6303 = vpop.permute.xlu0 %6302
    %6304 = vrot.lane.b32.xlu0 %v5083, 76
    %v6305 = vpop.permute.xlu0 %6304
    %6306 = vrot.lane.b32.xlu0 %v5088, 76
    %v6307 = vpop.permute.xlu0 %6306
    %6308 = vrot.lane.b32.xlu0 %v5093, 76
    %v6309 = vpop.permute.xlu0 %6308
    %v6310 = vsel %vm402, %v6299, 0
    %v6312 = vsel %vm402, %v6301, 0
    %v6314 = vsel %vm402, %v6303, 0
    %v6316 = vsel %vm402, %v6305, 0
    %v6318 = vsel %vm402, %v6307, 0
    %v6320 = vsel %vm402, %v6309, 0
    %6322 = vmatprep.subr.mxu0 0.0
    %6323 = vmatpush1.xpose.msra.mxu0 0.0
    %6324 = vmatprep.subr.mxu0 0.0
    %6325 = vmatpush1.xpose.msra.mxu0 0.0
    %6326 = vmatprep.subr.mxu0 0.0
    %6327 = vmatpush1.xpose.msra.mxu0 0.0
    %6328 = vmatprep.subr.mxu0 0.0
    %6329 = vmatpush1.xpose.msra.mxu0 0.0
    %6330 = vmatprep.subr.mxu0 0.0
    %6331 = vmatpush1.xpose.msra.mxu0 0.0
    %6332 = vmatprep.subr.mxu0 0.0
    %6333 = vmatpush1.xpose.msra.mxu0 0.0
    %6334 = vmatprep.subr.mxu0 0.0
    %6335 = vmatpush1.xpose.msra.mxu0 0.0
    %6336 = vmatprep.subr.mxu0 0.0
    %6337 = vmatpush1.xpose.msra.mxu0 0.0
    %6338 = vmatprep.subr.mxu0 0.0
    %6339 = vmatpush1.xpose.msra.mxu0 0.0
    %6340 = vmatprep.subr.mxu0 0.0
    %6341 = vmatpush1.xpose.msra.mxu0 0.0
    %6342 = vmatprep.subr.mxu0 0.0
    %6343 = vmatpush1.xpose.msra.mxu0 0.0
    %6344 = vmatprep.subr.mxu0 0.0
    %6345 = vmatpush1.xpose.msra.mxu0 0.0
    %6346 = vmatprep.subr.mxu0 0.0
    %6347 = vmatpush1.xpose.msra.mxu0 0.0
    %6348 = vmatprep.subr.mxu0 0.0
    %6349 = vmatpush1.xpose.msra.mxu0 %v6320
    %6350 = vmatprep.subr.mxu0 0.0
    %6351 = vmatpush1.xpose.msra.mxu0 %v6318
    %6352 = vmatprep.subr.mxu0 0.0
    %6353 = vmatpush1.xpose.msra.mxu0 %v6316
    %6354 = vmatprep.subr.mxu0 0.0
    %6355 = vmatpush2.xpose.msra.mxu0 0.0
    %6356 = vmatprep.subr.mxu0 0.0
    %6357 = vmatpush2.xpose.msra.mxu0 0.0
    %6358 = vmatprep.subr.mxu0 0.0
    %6359 = vmatpush2.xpose.msra.mxu0 0.0
    %6360 = vmatprep.subr.mxu0 0.0
    %6361 = vmatpush2.xpose.msra.mxu0 0.0
    %6362 = vmatprep.subr.mxu0 0.0
    %6363 = vmatpush2.xpose.msra.mxu0 0.0
    %6364 = vmatprep.subr.mxu0 0.0
    %6365 = vmatpush2.xpose.msra.mxu0 0.0
    %6366 = vmatprep.subr.mxu0 0.0
    %6367 = vmatpush2.xpose.msra.mxu0 0.0
    %6368 = vmatprep.subr.mxu0 0.0
    %6369 = vmatpush2.xpose.msra.mxu0 0.0
    %6370 = vmatprep.subr.mxu0 0.0
    %6371 = vmatpush2.xpose.msra.mxu0 0.0
    %6372 = vmatprep.subr.mxu0 0.0
    %6373 = vmatpush2.xpose.msra.mxu0 0.0
    %6374 = vmatprep.subr.mxu0 0.0
    %6375 = vmatpush2.xpose.msra.mxu0 0.0
    %6376 = vmatprep.subr.mxu0 0.0
    %6377 = vmatpush2.xpose.msra.mxu0 0.0
    %6378 = vmatprep.subr.mxu0 0.0
    %6379 = vmatpush2.xpose.msra.mxu0 0.0
    %6380 = vmatprep.subr.mxu0 0.0
    %6381 = vmatpush2.xpose.msra.mxu0 0.0
    %6382 = vmatprep.subr.mxu0 0.0
    %6383 = vmatpush2.xpose.msra.mxu0 0.0
    %6384 = vmatprep.subr.mxu0 0.0
    %6385 = vmatpush2.xpose.msra.mxu0 0.0
    %6386 = vmatprep.mubr.f32.mxu0 0.0
    %6387 = vmatmul.mubr.f32.gmra.mxu0 %v6310
    %v6388 = vpop.f32.mrf.mxu0
    %v6389 = vadd.f32 0.0, %v6388
    %v6390 = vpop.f32.mrf.mxu0
    %6391 = vmatprep.mubr.f32.mxu0 0.0
    %6392 = vmatmul.mubr.f32.gmra.mxu0 %v6312
    %v6393 = vpop.f32.mrf.mxu0
    %v6394 = vadd.f32 0.0, %v6393
    %v6395 = vpop.f32.mrf.mxu0
    %6396 = vmatprep.mubr.f32.mxu0 0.0
    %6397 = vmatmul.mubr.f32.gmra.mxu0 %v6314
    %v6398 = vpop.f32.mrf.mxu0
    %v6399 = vadd.f32 0.0, %v6398
    %v6400 = vpop.f32.mrf.mxu0
    %6401 = vdwg.mxu0
    %v6402 = vmul.f32 %v6389, 0.5
    %v6403 = vmul.f32 %v6394, 0.5
    %v6404 = vmul.f32 %v6399, 0.5
    %v6405 = vsel %vm498, %v6402, -inf
    %6406 = vmax.xlane.f32.xlu0 %v6405
    %v6407 = vpop.xlane.xlu0 %6406
    %v6408 = vsel %vm498, %v6403, -inf
    %6409 = vmax.xlane.f32.xlu0 %v6408
    %v6410 = vpop.xlane.xlu0 %6409
    %v6411 = vsel %vm505, %v6404, -inf
    %6412 = vmax.xlane.f32.xlu0 %v6411
    %v6413 = vpop.xlane.xlu0 %6412
    %v6414 = vsub.f32 %v6402, %v6407
    %v6415 = vsub.f32 %v6403, %v6410
    %v6416 = vsub.f32 %v6404, %v6413
    %v6417 = vmul.f32 %v6414, 1.442695
    %v6418 = vpow.pop %v6417
    %v6419 = vmul.f32 %v6415, 1.442695
    %v6420 = vpow.pop %v6419
    %v6421 = vmul.f32 %v6416, 1.442695
    %v6422 = vpow.pop %v6421
    %v6423 = vsel %vm498, %v6418, 0.0
    %6424 = vadd.xlane.f32.xlu0 %v6423
    %v6425 = vpop.xlane.xlu0 %6424
    %v6426 = vsel %vm498, %v6420, 0.0
    %6427 = vadd.xlane.f32.xlu0 %v6426
    %v6428 = vpop.xlane.xlu0 %6427
    %v6429 = vsel %vm505, %v6422, 0.0
    %6430 = vadd.xlane.f32.xlu0 %v6429
    %v6431 = vpop.xlane.xlu0 %6430
    %v6432 = vrcp.pop %v6425
    %v6433 = vmul.f32 %v6418, %v6432
    %v6434 = vrcp.pop %v6428
    %v6435 = vmul.f32 %v6420, %v6434
    %v6436 = vrcp.pop %v6431
    %v6437 = vmul.f32 %v6422, %v6436
    %6438 = vrot.lane.b32.xlu0 %v5083, 44
    %v6439 = vpop.permute.xlu0 %6438
    %6440 = vrot.lane.b32.xlu0 %v5088, 44
    %v6441 = vpop.permute.xlu0 %6440
    %6442 = vrot.lane.b32.xlu0 %v5093, 44
    %v6443 = vpop.permute.xlu0 %6442
    %v6447 = vsel %vm498, %v6433, 0
    %v6450 = vsel %vm498, %v6435, 0
    %v6453 = vsel %vm498, %v6437, 0
    %v6455 = vsel %vm68, %v6443, 0
    %6457 = vmatprep.subr.mxu0 0.0
    %6458 = vmatpush1.msra.mxu0 0.0
    %6459 = vmatprep.subr.mxu0 0.0
    %6460 = vmatpush1.msra.mxu0 0.0
    %6461 = vmatprep.subr.mxu0 0.0
    %6462 = vmatpush1.msra.mxu0 0.0
    %6463 = vmatprep.subr.mxu0 0.0
    %6464 = vmatpush1.msra.mxu0 0.0
    %6465 = vmatprep.subr.mxu0 0.0
    %6466 = vmatpush1.msra.mxu0 0.0
    %6467 = vmatprep.subr.mxu0 0.0
    %6468 = vmatpush1.msra.mxu0 0.0
    %6469 = vmatprep.subr.mxu0 0.0
    %6470 = vmatpush1.msra.mxu0 0.0
    %6471 = vmatprep.subr.mxu0 0.0
    %6472 = vmatpush1.msra.mxu0 0.0
    %6473 = vmatprep.subr.mxu0 0.0
    %6474 = vmatpush1.msra.mxu0 0.0
    %6475 = vmatprep.subr.mxu0 0.0
    %6476 = vmatpush1.msra.mxu0 0.0
    %6477 = vmatprep.subr.mxu0 0.0
    %6478 = vmatpush1.msra.mxu0 0.0
    %6479 = vmatprep.subr.mxu0 0.0
    %6480 = vmatpush1.msra.mxu0 0.0
    %6481 = vmatprep.subr.mxu0 0.0
    %6482 = vmatpush1.msra.mxu0 0.0
    %6483 = vmatprep.subr.mxu0 0.0
    %6484 = vmatpush1.msra.mxu0 %v6455
    %6485 = vmatprep.subr.mxu0 0.0
    %6486 = vmatpush1.msra.mxu0 %v6441
    %6487 = vmatprep.subr.mxu0 0.0
    %6488 = vmatpush1.msra.mxu0 %v6439
    %6489 = vmatprep.subr.mxu0 0.0
    %6490 = vmatpush2.msra.mxu0 0.0
    %6491 = vmatprep.subr.mxu0 0.0
    %6492 = vmatpush2.msra.mxu0 0.0
    %6493 = vmatprep.subr.mxu0 0.0
    %6494 = vmatpush2.msra.mxu0 0.0
    %6495 = vmatprep.subr.mxu0 0.0
    %6496 = vmatpush2.msra.mxu0 0.0
    %6497 = vmatprep.subr.mxu0 0.0
    %6498 = vmatpush2.msra.mxu0 0.0
    %6499 = vmatprep.subr.mxu0 0.0
    %6500 = vmatpush2.msra.mxu0 0.0
    %6501 = vmatprep.subr.mxu0 0.0
    %6502 = vmatpush2.msra.mxu0 0.0
    %6503 = vmatprep.subr.mxu0 0.0
    %6504 = vmatpush2.msra.mxu0 0.0
    %6505 = vmatprep.subr.mxu0 0.0
    %6506 = vmatpush2.msra.mxu0 0.0
    %6507 = vmatprep.subr.mxu0 0.0
    %6508 = vmatpush2.msra.mxu0 0.0
    %6509 = vmatprep.subr.mxu0 0.0
    %6510 = vmatpush2.msra.mxu0 0.0
    %6511 = vmatprep.subr.mxu0 0.0
    %6512 = vmatpush2.msra.mxu0 0.0
    %6513 = vmatprep.subr.mxu0 0.0
    %6514 = vmatpush2.msra.mxu0 0.0
    %6515 = vmatprep.subr.mxu0 0.0
    %6516 = vmatpush2.msra.mxu0 0.0
    %6517 = vmatprep.subr.mxu0 0.0
    %6518 = vmatpush2.msra.mxu0 0.0
    %6519 = vmatprep.subr.mxu0 0.0
    %6520 = vmatpush2.msra.mxu0 0.0
    %6521 = vmatprep.mubr.f32.mxu0 0.0
    %6522 = vmatmul.mubr.f32.gmra.mxu0 %v6447
    %v6523 = vpop.f32.mrf.mxu0
    %v6524 = vadd.f32 0.0, %v6523
    %v6525 = vpop.f32.mrf.mxu0
    %6526 = vmatprep.mubr.f32.mxu0 0.0
    %6527 = vmatmul.mubr.f32.gmra.mxu0 %v6450
    %v6528 = vpop.f32.mrf.mxu0
    %v6529 = vadd.f32 0.0, %v6528
    %v6530 = vpop.f32.mrf.mxu0
    %6531 = vmatprep.mubr.f32.mxu0 0.0
    %6532 = vmatmul.mubr.f32.gmra.mxu0 %v6453
    %v6533 = vpop.f32.mrf.mxu0
    %v6534 = vadd.f32 0.0, %v6533
    %v6535 = vpop.f32.mrf.mxu0
    %6536 = vdwg.mxu0
    %6537 = vrot.lane.b32.xlu0 %v5083, 104
    %v6538 = vpop.permute.xlu0 %6537
    %6539 = vrot.lane.b32.xlu0 %v5088, 104
    %v6540 = vpop.permute.xlu0 %6539
    %6541 = vrot.lane.b32.xlu0 %v5093, 104
    %v6542 = vpop.permute.xlu0 %6541
    %6543 = vrot.lane.b32.xlu0 %v5083, 72
    %v6544 = vpop.permute.xlu0 %6543
    %6545 = vrot.lane.b32.xlu0 %v5088, 72
    %v6546 = vpop.permute.xlu0 %6545
    %6547 = vrot.lane.b32.xlu0 %v5093, 72
    %v6548 = vpop.permute.xlu0 %6547
    %v6549 = vsel %vm402, %v6538, 0
    %v6551 = vsel %vm402, %v6540, 0
    %v6553 = vsel %vm402, %v6542, 0
    %v6555 = vsel %vm402, %v6544, 0
    %v6557 = vsel %vm402, %v6546, 0
    %v6559 = vsel %vm402, %v6548, 0
    %6561 = vmatprep.subr.mxu0 0.0
    %6562 = vmatpush1.xpose.msra.mxu0 0.0
    %6563 = vmatprep.subr.mxu0 0.0
    %6564 = vmatpush1.xpose.msra.mxu0 0.0
    %6565 = vmatprep.subr.mxu0 0.0
    %6566 = vmatpush1.xpose.msra.mxu0 0.0
    %6567 = vmatprep.subr.mxu0 0.0
    %6568 = vmatpush1.xpose.msra.mxu0 0.0
    %6569 = vmatprep.subr.mxu0 0.0
    %6570 = vmatpush1.xpose.msra.mxu0 0.0
    %6571 = vmatprep.subr.mxu0 0.0
    %6572 = vmatpush1.xpose.msra.mxu0 0.0
    %6573 = vmatprep.subr.mxu0 0.0
    %6574 = vmatpush1.xpose.msra.mxu0 0.0
    %6575 = vmatprep.subr.mxu0 0.0
    %6576 = vmatpush1.xpose.msra.mxu0 0.0
    %6577 = vmatprep.subr.mxu0 0.0
    %6578 = vmatpush1.xpose.msra.mxu0 0.0
    %6579 = vmatprep.subr.mxu0 0.0
    %6580 = vmatpush1.xpose.msra.mxu0 0.0
    %6581 = vmatprep.subr.mxu0 0.0
    %6582 = vmatpush1.xpose.msra.mxu0 0.0
    %6583 = vmatprep.subr.mxu0 0.0
    %6584 = vmatpush1.xpose.msra.mxu0 0.0
    %6585 = vmatprep.subr.mxu0 0.0
    %6586 = vmatpush1.xpose.msra.mxu0 0.0
    %6587 = vmatprep.subr.mxu0 0.0
    %6588 = vmatpush1.xpose.msra.mxu0 %v6559
    %6589 = vmatprep.subr.mxu0 0.0
    %6590 = vmatpush1.xpose.msra.mxu0 %v6557
    %6591 = vmatprep.subr.mxu0 0.0
    %6592 = vmatpush1.xpose.msra.mxu0 %v6555
    %6593 = vmatprep.subr.mxu0 0.0
    %6594 = vmatpush2.xpose.msra.mxu0 0.0
    %6595 = vmatprep.subr.mxu0 0.0
    %6596 = vmatpush2.xpose.msra.mxu0 0.0
    %6597 = vmatprep.subr.mxu0 0.0
    %6598 = vmatpush2.xpose.msra.mxu0 0.0
    %6599 = vmatprep.subr.mxu0 0.0
    %6600 = vmatpush2.xpose.msra.mxu0 0.0
    %6601 = vmatprep.subr.mxu0 0.0
    %6602 = vmatpush2.xpose.msra.mxu0 0.0
    %6603 = vmatprep.subr.mxu0 0.0
    %6604 = vmatpush2.xpose.msra.mxu0 0.0
    %6605 = vmatprep.subr.mxu0 0.0
    %6606 = vmatpush2.xpose.msra.mxu0 0.0
    %6607 = vmatprep.subr.mxu0 0.0
    %6608 = vmatpush2.xpose.msra.mxu0 0.0
    %6609 = vmatprep.subr.mxu0 0.0
    %6610 = vmatpush2.xpose.msra.mxu0 0.0
    %6611 = vmatprep.subr.mxu0 0.0
    %6612 = vmatpush2.xpose.msra.mxu0 0.0
    %6613 = vmatprep.subr.mxu0 0.0
    %6614 = vmatpush2.xpose.msra.mxu0 0.0
    %6615 = vmatprep.subr.mxu0 0.0
    %6616 = vmatpush2.xpose.msra.mxu0 0.0
    %6617 = vmatprep.subr.mxu0 0.0
    %6618 = vmatpush2.xpose.msra.mxu0 0.0
    %6619 = vmatprep.subr.mxu0 0.0
    %6620 = vmatpush2.xpose.msra.mxu0 0.0
    %6621 = vmatprep.subr.mxu0 0.0
    %6622 = vmatpush2.xpose.msra.mxu0 0.0
    %6623 = vmatprep.subr.mxu0 0.0
    %6624 = vmatpush2.xpose.msra.mxu0 0.0
    %6625 = vmatprep.mubr.f32.mxu0 0.0
    %6626 = vmatmul.mubr.f32.gmra.mxu0 %v6549
    %v6627 = vpop.f32.mrf.mxu0
    %v6628 = vadd.f32 0.0, %v6627
    %v6629 = vpop.f32.mrf.mxu0
    %6630 = vmatprep.mubr.f32.mxu0 0.0
    %6631 = vmatmul.mubr.f32.gmra.mxu0 %v6551
    %v6632 = vpop.f32.mrf.mxu0
    %v6633 = vadd.f32 0.0, %v6632
    %v6634 = vpop.f32.mrf.mxu0
    %6635 = vmatprep.mubr.f32.mxu0 0.0
    %6636 = vmatmul.mubr.f32.gmra.mxu0 %v6553
    %v6637 = vpop.f32.mrf.mxu0
    %v6638 = vadd.f32 0.0, %v6637
    %v6639 = vpop.f32.mrf.mxu0
    %6640 = vdwg.mxu0
    %v6641 = vmul.f32 %v6628, 0.5
    %v6642 = vmul.f32 %v6633, 0.5
    %v6643 = vmul.f32 %v6638, 0.5
    %v6644 = vsel %vm498, %v6641, -inf
    %6645 = vmax.xlane.f32.xlu0 %v6644
    %v6646 = vpop.xlane.xlu0 %6645
    %v6647 = vsel %vm498, %v6642, -inf
    %6648 = vmax.xlane.f32.xlu0 %v6647
    %v6649 = vpop.xlane.xlu0 %6648
    %v6650 = vsel %vm505, %v6643, -inf
    %6651 = vmax.xlane.f32.xlu0 %v6650
    %v6652 = vpop.xlane.xlu0 %6651
    %v6653 = vsub.f32 %v6641, %v6646
    %v6654 = vsub.f32 %v6642, %v6649
    %v6655 = vsub.f32 %v6643, %v6652
    %v6656 = vmul.f32 %v6653, 1.442695
    %v6657 = vpow.pop %v6656
    %v6658 = vmul.f32 %v6654, 1.442695
    %v6659 = vpow.pop %v6658
    %v6660 = vmul.f32 %v6655, 1.442695
    %v6661 = vpow.pop %v6660
    %v6662 = vsel %vm498, %v6657, 0.0
    %6663 = vadd.xlane.f32.xlu0 %v6662
    %v6664 = vpop.xlane.xlu0 %6663
    %v6665 = vsel %vm498, %v6659, 0.0
    %6666 = vadd.xlane.f32.xlu0 %v6665
    %v6667 = vpop.xlane.xlu0 %6666
    %v6668 = vsel %vm505, %v6661, 0.0
    %6669 = vadd.xlane.f32.xlu0 %v6668
    %v6670 = vpop.xlane.xlu0 %6669
    %v6671 = vrcp.pop %v6664
    %v6672 = vmul.f32 %v6657, %v6671
    %v6673 = vrcp.pop %v6667
    %v6674 = vmul.f32 %v6659, %v6673
    %v6675 = vrcp.pop %v6670
    %v6676 = vmul.f32 %v6661, %v6675
    %6677 = vrot.lane.b32.xlu0 %v5083, 40
    %v6678 = vpop.permute.xlu0 %6677
    %6679 = vrot.lane.b32.xlu0 %v5088, 40
    %v6680 = vpop.permute.xlu0 %6679
    %6681 = vrot.lane.b32.xlu0 %v5093, 40
    %v6682 = vpop.permute.xlu0 %6681
    %v6686 = vsel %vm498, %v6672, 0
    %v6689 = vsel %vm498, %v6674, 0
    %v6692 = vsel %vm498, %v6676, 0
    %v6694 = vsel %vm68, %v6682, 0
    %6696 = vmatprep.subr.mxu0 0.0
    %6697 = vmatpush1.msra.mxu0 0.0
    %6698 = vmatprep.subr.mxu0 0.0
    %6699 = vmatpush1.msra.mxu0 0.0
    %6700 = vmatprep.subr.mxu0 0.0
    %6701 = vmatpush1.msra.mxu0 0.0
    %6702 = vmatprep.subr.mxu0 0.0
    %6703 = vmatpush1.msra.mxu0 0.0
    %6704 = vmatprep.subr.mxu0 0.0
    %6705 = vmatpush1.msra.mxu0 0.0
    %6706 = vmatprep.subr.mxu0 0.0
    %6707 = vmatpush1.msra.mxu0 0.0
    %6708 = vmatprep.subr.mxu0 0.0
    %6709 = vmatpush1.msra.mxu0 0.0
    %6710 = vmatprep.subr.mxu0 0.0
    %6711 = vmatpush1.msra.mxu0 0.0
    %6712 = vmatprep.subr.mxu0 0.0
    %6713 = vmatpush1.msra.mxu0 0.0
    %6714 = vmatprep.subr.mxu0 0.0
    %6715 = vmatpush1.msra.mxu0 0.0
    %6716 = vmatprep.subr.mxu0 0.0
    %6717 = vmatpush1.msra.mxu0 0.0
    %6718 = vmatprep.subr.mxu0 0.0
    %6719 = vmatpush1.msra.mxu0 0.0
    %6720 = vmatprep.subr.mxu0 0.0
    %6721 = vmatpush1.msra.mxu0 0.0
    %6722 = vmatprep.subr.mxu0 0.0
    %6723 = vmatpush1.msra.mxu0 %v6694
    %6724 = vmatprep.subr.mxu0 0.0
    %6725 = vmatpush1.msra.mxu0 %v6680
    %6726 = vmatprep.subr.mxu0 0.0
    %6727 = vmatpush1.msra.mxu0 %v6678
    %6728 = vmatprep.subr.mxu0 0.0
    %6729 = vmatpush2.msra.mxu0 0.0
    %6730 = vmatprep.subr.mxu0 0.0
    %6731 = vmatpush2.msra.mxu0 0.0
    %6732 = vmatprep.subr.mxu0 0.0
    %6733 = vmatpush2.msra.mxu0 0.0
    %6734 = vmatprep.subr.mxu0 0.0
    %6735 = vmatpush2.msra.mxu0 0.0
    %6736 = vmatprep.subr.mxu0 0.0
    %6737 = vmatpush2.msra.mxu0 0.0
    %6738 = vmatprep.subr.mxu0 0.0
    %6739 = vmatpush2.msra.mxu0 0.0
    %6740 = vmatprep.subr.mxu0 0.0
    %6741 = vmatpush2.msra.mxu0 0.0
    %6742 = vmatprep.subr.mxu0 0.0
    %6743 = vmatpush2.msra.mxu0 0.0
    %6744 = vmatprep.subr.mxu0 0.0
    %6745 = vmatpush2.msra.mxu0 0.0
    %6746 = vmatprep.subr.mxu0 0.0
    %6747 = vmatpush2.msra.mxu0 0.0
    %6748 = vmatprep.subr.mxu0 0.0
    %6749 = vmatpush2.msra.mxu0 0.0
    %6750 = vmatprep.subr.mxu0 0.0
    %6751 = vmatpush2.msra.mxu0 0.0
    %6752 = vmatprep.subr.mxu0 0.0
    %6753 = vmatpush2.msra.mxu0 0.0
    %6754 = vmatprep.subr.mxu0 0.0
    %6755 = vmatpush2.msra.mxu0 0.0
    %6756 = vmatprep.subr.mxu0 0.0
    %6757 = vmatpush2.msra.mxu0 0.0
    %6758 = vmatprep.subr.mxu0 0.0
    %6759 = vmatpush2.msra.mxu0 0.0
    %6760 = vmatprep.mubr.f32.mxu0 0.0
    %6761 = vmatmul.mubr.f32.gmra.mxu0 %v6686
    %v6762 = vpop.f32.mrf.mxu0
    %v6763 = vadd.f32 0.0, %v6762
    %v6764 = vpop.f32.mrf.mxu0
    %6765 = vmatprep.mubr.f32.mxu0 0.0
    %6766 = vmatmul.mubr.f32.gmra.mxu0 %v6689
    %v6767 = vpop.f32.mrf.mxu0
    %v6768 = vadd.f32 0.0, %v6767
    %v6769 = vpop.f32.mrf.mxu0
    %6770 = vmatprep.mubr.f32.mxu0 0.0
    %6771 = vmatmul.mubr.f32.gmra.mxu0 %v6692
    %v6772 = vpop.f32.mrf.mxu0
    %v6773 = vadd.f32 0.0, %v6772
    %v6774 = vpop.f32.mrf.mxu0
    %6775 = vdwg.mxu0
    %6776 = vrot.lane.b32.xlu0 %v5083, 100
    %v6777 = vpop.permute.xlu0 %6776
    %6778 = vrot.lane.b32.xlu0 %v5088, 100
    %v6779 = vpop.permute.xlu0 %6778
    %6780 = vrot.lane.b32.xlu0 %v5093, 100
    %v6781 = vpop.permute.xlu0 %6780
    %6782 = vrot.lane.b32.xlu0 %v5083, 68
    %v6783 = vpop.permute.xlu0 %6782
    %6784 = vrot.lane.b32.xlu0 %v5088, 68
    %v6785 = vpop.permute.xlu0 %6784
    %6786 = vrot.lane.b32.xlu0 %v5093, 68
    %v6787 = vpop.permute.xlu0 %6786
    %v6788 = vsel %vm402, %v6777, 0
    %v6790 = vsel %vm402, %v6779, 0
    %v6792 = vsel %vm402, %v6781, 0
    %v6794 = vsel %vm402, %v6783, 0
    %v6796 = vsel %vm402, %v6785, 0
    %v6798 = vsel %vm402, %v6787, 0
    %6800 = vmatprep.subr.mxu0 0.0
    %6801 = vmatpush1.xpose.msra.mxu0 0.0
    %6802 = vmatprep.subr.mxu0 0.0
    %6803 = vmatpush1.xpose.msra.mxu0 0.0
    %6804 = vmatprep.subr.mxu0 0.0
    %6805 = vmatpush1.xpose.msra.mxu0 0.0
    %6806 = vmatprep.subr.mxu0 0.0
    %6807 = vmatpush1.xpose.msra.mxu0 0.0
    %6808 = vmatprep.subr.mxu0 0.0
    %6809 = vmatpush1.xpose.msra.mxu0 0.0
    %6810 = vmatprep.subr.mxu0 0.0
    %6811 = vmatpush1.xpose.msra.mxu0 0.0
    %6812 = vmatprep.subr.mxu0 0.0
    %6813 = vmatpush1.xpose.msra.mxu0 0.0
    %6814 = vmatprep.subr.mxu0 0.0
    %6815 = vmatpush1.xpose.msra.mxu0 0.0
    %6816 = vmatprep.subr.mxu0 0.0
    %6817 = vmatpush1.xpose.msra.mxu0 0.0
    %6818 = vmatprep.subr.mxu0 0.0
    %6819 = vmatpush1.xpose.msra.mxu0 0.0
    %6820 = vmatprep.subr.mxu0 0.0
    %6821 = vmatpush1.xpose.msra.mxu0 0.0
    %6822 = vmatprep.subr.mxu0 0.0
    %6823 = vmatpush1.xpose.msra.mxu0 0.0
    %6824 = vmatprep.subr.mxu0 0.0
    %6825 = vmatpush1.xpose.msra.mxu0 0.0
    %6826 = vmatprep.subr.mxu0 0.0
    %6827 = vmatpush1.xpose.msra.mxu0 %v6798
    %6828 = vmatprep.subr.mxu0 0.0
    %6829 = vmatpush1.xpose.msra.mxu0 %v6796
    %6830 = vmatprep.subr.mxu0 0.0
    %6831 = vmatpush1.xpose.msra.mxu0 %v6794
    %6832 = vmatprep.subr.mxu0 0.0
    %6833 = vmatpush2.xpose.msra.mxu0 0.0
    %6834 = vmatprep.subr.mxu0 0.0
    %6835 = vmatpush2.xpose.msra.mxu0 0.0
    %6836 = vmatprep.subr.mxu0 0.0
    %6837 = vmatpush2.xpose.msra.mxu0 0.0
    %6838 = vmatprep.subr.mxu0 0.0
    %6839 = vmatpush2.xpose.msra.mxu0 0.0
    %6840 = vmatprep.subr.mxu0 0.0
    %6841 = vmatpush2.xpose.msra.mxu0 0.0
    %6842 = vmatprep.subr.mxu0 0.0
    %6843 = vmatpush2.xpose.msra.mxu0 0.0
    %6844 = vmatprep.subr.mxu0 0.0
    %6845 = vmatpush2.xpose.msra.mxu0 0.0
    %6846 = vmatprep.subr.mxu0 0.0
    %6847 = vmatpush2.xpose.msra.mxu0 0.0
    %6848 = vmatprep.subr.mxu0 0.0
    %6849 = vmatpush2.xpose.msra.mxu0 0.0
    %6850 = vmatprep.subr.mxu0 0.0
    %6851 = vmatpush2.xpose.msra.mxu0 0.0
    %6852 = vmatprep.subr.mxu0 0.0
    %6853 = vmatpush2.xpose.msra.mxu0 0.0
    %6854 = vmatprep.subr.mxu0 0.0
    %6855 = vmatpush2.xpose.msra.mxu0 0.0
    %6856 = vmatprep.subr.mxu0 0.0
    %6857 = vmatpush2.xpose.msra.mxu0 0.0
    %6858 = vmatprep.subr.mxu0 0.0
    %6859 = vmatpush2.xpose.msra.mxu0 0.0
    %6860 = vmatprep.subr.mxu0 0.0
    %6861 = vmatpush2.xpose.msra.mxu0 0.0
    %6862 = vmatprep.subr.mxu0 0.0
    %6863 = vmatpush2.xpose.msra.mxu0 0.0
    %6864 = vmatprep.mubr.f32.mxu0 0.0
    %6865 = vmatmul.mubr.f32.gmra.mxu0 %v6788
    %v6866 = vpop.f32.mrf.mxu0
    %v6867 = vadd.f32 0.0, %v6866
    %v6868 = vpop.f32.mrf.mxu0
    %6869 = vmatprep.mubr.f32.mxu0 0.0
    %6870 = vmatmul.mubr.f32.gmra.mxu0 %v6790
    %v6871 = vpop.f32.mrf.mxu0
    %v6872 = vadd.f32 0.0, %v6871
    %v6873 = vpop.f32.mrf.mxu0
    %6874 = vmatprep.mubr.f32.mxu0 0.0
    %6875 = vmatmul.mubr.f32.gmra.mxu0 %v6792
    %v6876 = vpop.f32.mrf.mxu0
    %v6877 = vadd.f32 0.0, %v6876
    %v6878 = vpop.f32.mrf.mxu0
    %6879 = vdwg.mxu0
    %v6880 = vmul.f32 %v6867, 0.5
    %v6881 = vmul.f32 %v6872, 0.5
    %v6882 = vmul.f32 %v6877, 0.5
    %v6883 = vsel %vm498, %v6880, -inf
    %6884 = vmax.xlane.f32.xlu0 %v6883
    %v6885 = vpop.xlane.xlu0 %6884
    %v6886 = vsel %vm498, %v6881, -inf
    %6887 = vmax.xlane.f32.xlu0 %v6886
    %v6888 = vpop.xlane.xlu0 %6887
    %v6889 = vsel %vm505, %v6882, -inf
    %6890 = vmax.xlane.f32.xlu0 %v6889
    %v6891 = vpop.xlane.xlu0 %6890
    %v6892 = vsub.f32 %v6880, %v6885
    %v6893 = vsub.f32 %v6881, %v6888
    %v6894 = vsub.f32 %v6882, %v6891
    %v6895 = vmul.f32 %v6892, 1.442695
    %v6896 = vpow.pop %v6895
    %v6897 = vmul.f32 %v6893, 1.442695
    %v6898 = vpow.pop %v6897
    %v6899 = vmul.f32 %v6894, 1.442695
    %v6900 = vpow.pop %v6899
    %v6901 = vsel %vm498, %v6896, 0.0
    %6902 = vadd.xlane.f32.xlu0 %v6901
    %v6903 = vpop.xlane.xlu0 %6902
    %v6904 = vsel %vm498, %v6898, 0.0
    %6905 = vadd.xlane.f32.xlu0 %v6904
    %v6906 = vpop.xlane.xlu0 %6905
    %v6907 = vsel %vm505, %v6900, 0.0
    %6908 = vadd.xlane.f32.xlu0 %v6907
    %v6909 = vpop.xlane.xlu0 %6908
    %v6910 = vrcp.pop %v6903
    %v6911 = vmul.f32 %v6896, %v6910
    %v6912 = vrcp.pop %v6906
    %v6913 = vmul.f32 %v6898, %v6912
    %v6914 = vrcp.pop %v6909
    %v6915 = vmul.f32 %v6900, %v6914
    %6916 = vrot.lane.b32.xlu0 %v5083, 36
    %v6917 = vpop.permute.xlu0 %6916
    %6918 = vrot.lane.b32.xlu0 %v5088, 36
    %v6919 = vpop.permute.xlu0 %6918
    %6920 = vrot.lane.b32.xlu0 %v5093, 36
    %v6921 = vpop.permute.xlu0 %6920
    %v6925 = vsel %vm498, %v6911, 0
    %v6928 = vsel %vm498, %v6913, 0
    %v6931 = vsel %vm498, %v6915, 0
    %v6933 = vsel %vm68, %v6921, 0
    %6935 = vmatprep.subr.mxu0 0.0
    %6936 = vmatpush1.msra.mxu0 0.0
    %6937 = vmatprep.subr.mxu0 0.0
    %6938 = vmatpush1.msra.mxu0 0.0
    %6939 = vmatprep.subr.mxu0 0.0
    %6940 = vmatpush1.msra.mxu0 0.0
    %6941 = vmatprep.subr.mxu0 0.0
    %6942 = vmatpush1.msra.mxu0 0.0
    %6943 = vmatprep.subr.mxu0 0.0
    %6944 = vmatpush1.msra.mxu0 0.0
    %6945 = vmatprep.subr.mxu0 0.0
    %6946 = vmatpush1.msra.mxu0 0.0
    %6947 = vmatprep.subr.mxu0 0.0
    %6948 = vmatpush1.msra.mxu0 0.0
    %6949 = vmatprep.subr.mxu0 0.0
    %6950 = vmatpush1.msra.mxu0 0.0
    %6951 = vmatprep.subr.mxu0 0.0
    %6952 = vmatpush1.msra.mxu0 0.0
    %6953 = vmatprep.subr.mxu0 0.0
    %6954 = vmatpush1.msra.mxu0 0.0
    %6955 = vmatprep.subr.mxu0 0.0
    %6956 = vmatpush1.msra.mxu0 0.0
    %6957 = vmatprep.subr.mxu0 0.0
    %6958 = vmatpush1.msra.mxu0 0.0
    %6959 = vmatprep.subr.mxu0 0.0
    %6960 = vmatpush1.msra.mxu0 0.0
    %6961 = vmatprep.subr.mxu0 0.0
    %6962 = vmatpush1.msra.mxu0 %v6933
    %6963 = vmatprep.subr.mxu0 0.0
    %6964 = vmatpush1.msra.mxu0 %v6919
    %6965 = vmatprep.subr.mxu0 0.0
    %6966 = vmatpush1.msra.mxu0 %v6917
    %6967 = vmatprep.subr.mxu0 0.0
    %6968 = vmatpush2.msra.mxu0 0.0
    %6969 = vmatprep.subr.mxu0 0.0
    %6970 = vmatpush2.msra.mxu0 0.0
    %6971 = vmatprep.subr.mxu0 0.0
    %6972 = vmatpush2.msra.mxu0 0.0
    %6973 = vmatprep.subr.mxu0 0.0
    %6974 = vmatpush2.msra.mxu0 0.0
    %6975 = vmatprep.subr.mxu0 0.0
    %6976 = vmatpush2.msra.mxu0 0.0
    %6977 = vmatprep.subr.mxu0 0.0
    %6978 = vmatpush2.msra.mxu0 0.0
    %6979 = vmatprep.subr.mxu0 0.0
    %6980 = vmatpush2.msra.mxu0 0.0
    %6981 = vmatprep.subr.mxu0 0.0
    %6982 = vmatpush2.msra.mxu0 0.0
    %6983 = vmatprep.subr.mxu0 0.0
    %6984 = vmatpush2.msra.mxu0 0.0
    %6985 = vmatprep.subr.mxu0 0.0
    %6986 = vmatpush2.msra.mxu0 0.0
    %6987 = vmatprep.subr.mxu0 0.0
    %6988 = vmatpush2.msra.mxu0 0.0
    %6989 = vmatprep.subr.mxu0 0.0
    %6990 = vmatpush2.msra.mxu0 0.0
    %6991 = vmatprep.subr.mxu0 0.0
    %6992 = vmatpush2.msra.mxu0 0.0
    %6993 = vmatprep.subr.mxu0 0.0
    %6994 = vmatpush2.msra.mxu0 0.0
    %6995 = vmatprep.subr.mxu0 0.0
    %6996 = vmatpush2.msra.mxu0 0.0
    %6997 = vmatprep.subr.mxu0 0.0
    %6998 = vmatpush2.msra.mxu0 0.0
    %6999 = vmatprep.mubr.f32.mxu0 0.0
    %7000 = vmatmul.mubr.f32.gmra.mxu0 %v6925
    %v7001 = vpop.f32.mrf.mxu0
    %v7002 = vadd.f32 0.0, %v7001
    %v7003 = vpop.f32.mrf.mxu0
    %7004 = vmatprep.mubr.f32.mxu0 0.0
    %7005 = vmatmul.mubr.f32.gmra.mxu0 %v6928
    %v7006 = vpop.f32.mrf.mxu0
    %v7007 = vadd.f32 0.0, %v7006
    %v7008 = vpop.f32.mrf.mxu0
    %7009 = vmatprep.mubr.f32.mxu0 0.0
    %7010 = vmatmul.mubr.f32.gmra.mxu0 %v6931
    %v7011 = vpop.f32.mrf.mxu0
    %v7012 = vadd.f32 0.0, %v7011
    %v7013 = vpop.f32.mrf.mxu0
    %7014 = vdwg.mxu0
    %7018 = vrot.lane.b32.xlu0 %v5568, 4
    %v7019 = vpop.permute.xlu0 %7018
    %7020 = vrot.lane.b32.xlu0 %v5573, 4
    %v7021 = vpop.permute.xlu0 %7020
    %7022 = vrot.lane.b32.xlu0 %v5578, 4
    %v7023 = vpop.permute.xlu0 %7022
    %7030 = vrot.lane.b32.xlu0 %v5807, 8
    %v7031 = vpop.permute.xlu0 %7030
    %7032 = vrot.lane.b32.xlu0 %v5812, 8
    %v7033 = vpop.permute.xlu0 %7032
    %7034 = vrot.lane.b32.xlu0 %v5817, 8
    %v7035 = vpop.permute.xlu0 %7034
    %7042 = vrot.lane.b32.xlu0 %v6046, 12
    %v7043 = vpop.permute.xlu0 %7042
    %7044 = vrot.lane.b32.xlu0 %v6051, 12
    %v7045 = vpop.permute.xlu0 %7044
    %7046 = vrot.lane.b32.xlu0 %v6056, 12
    %v7047 = vpop.permute.xlu0 %7046
    %7054 = vrot.lane.b32.xlu0 %v6285, 16
    %v7055 = vpop.permute.xlu0 %7054
    %7056 = vrot.lane.b32.xlu0 %v6290, 16
    %v7057 = vpop.permute.xlu0 %7056
    %7058 = vrot.lane.b32.xlu0 %v6295, 16
    %v7059 = vpop.permute.xlu0 %7058
    %7066 = vrot.lane.b32.xlu0 %v6524, 20
    %v7067 = vpop.permute.xlu0 %7066
    %7068 = vrot.lane.b32.xlu0 %v6529, 20
    %v7069 = vpop.permute.xlu0 %7068
    %7070 = vrot.lane.b32.xlu0 %v6534, 20
    %v7071 = vpop.permute.xlu0 %7070
    %7078 = vrot.lane.b32.xlu0 %v6763, 24
    %v7079 = vpop.permute.xlu0 %7078
    %7080 = vrot.lane.b32.xlu0 %v6768, 24
    %v7081 = vpop.permute.xlu0 %7080
    %7082 = vrot.lane.b32.xlu0 %v6773, 24
    %v7083 = vpop.permute.xlu0 %7082
    %7090 = vrot.lane.b32.xlu0 %v7002, 28
    %v7091 = vpop.permute.xlu0 %7090
    %7092 = vrot.lane.b32.xlu0 %v7007, 28
    %v7093 = vpop.permute.xlu0 %7092
    %7094 = vrot.lane.b32.xlu0 %v7012, 28
    %v7095 = vpop.permute.xlu0 %7094
    %v7099 = vsel %vm402, %v5329, %v7019
    %v7100 = vsel %vm402, %v5334, %v7021
    %v7101 = vsel %vm402, %v5339, %v7023
    %v7102 = vsel %vm2392, %v7099, %v7031
    %v7103 = vsel %vm2392, %v7100, %v7033
    %v7104 = vsel %vm2392, %v7101, %v7035
    %v7105 = vsel %vm2396, %v7102, %v7043
    %v7106 = vsel %vm2396, %v7103, %v7045
    %v7107 = vsel %vm2396, %v7104, %v7047
    %v7108 = vsel %vm2400, %v7105, %v7055
    %v7109 = vsel %vm2400, %v7106, %v7057
    %v7110 = vsel %vm2400, %v7107, %v7059
    %v7111 = vsel %vm2404, %v7108, %v7067
    %v7112 = vsel %vm2404, %v7109, %v7069
    %v7113 = vsel %vm2404, %v7110, %v7071
    %v7114 = vsel %vm2408, %v7111, %v7079
    %v7115 = vsel %vm2408, %v7112, %v7081
    %v7116 = vsel %vm2408, %v7113, %v7083
    %v7117 = vsel %vm2412, %v7114, %v7091
    %v7118 = vsel %vm2412, %v7115, %v7093
    %v7119 = vsel %vm2412, %v7116, %v7095
    %v7122 = vrot.slane %v5093, 1
    %v7123 = vrot.slane %v5098, 1
    %v7124 = vsel %vm2418, %v7122, %v7123
    %v7125 = vrot.slane %v5103, 1
    %v7126 = vsel %vm2418, %v7123, %v7125
    %7127 = vrot.lane.b32.xlu0 %v7124, 96
    %v7128 = vpop.permute.xlu0 %7127
    %7129 = vrot.lane.b32.xlu0 %v7126, 96
    %v7130 = vpop.permute.xlu0 %7129
    %7131 = vrot.lane.b32.xlu0 %v7125, 96
    %v7132 = vpop.permute.xlu0 %7131
    %v7133 = vsel %vm402, %v7124, 0
    %v7135 = vsel %vm402, %v7126, 0
    %v7137 = vsel %vm402, %v7125, 0
    %v7139 = vsel %vm402, %v7128, 0
    %v7141 = vsel %vm402, %v7130, 0
    %v7143 = vsel %vm402, %v7132, 0
    %7145 = vmatprep.subr.mxu0 0.0
    %7146 = vmatpush1.xpose.msra.mxu0 0.0
    %7147 = vmatprep.subr.mxu0 0.0
    %7148 = vmatpush1.xpose.msra.mxu0 0.0
    %7149 = vmatprep.subr.mxu0 0.0
    %7150 = vmatpush1.xpose.msra.mxu0 0.0
    %7151 = vmatprep.subr.mxu0 0.0
    %7152 = vmatpush1.xpose.msra.mxu0 0.0
    %7153 = vmatprep.subr.mxu0 0.0
    %7154 = vmatpush1.xpose.msra.mxu0 0.0
    %7155 = vmatprep.subr.mxu0 0.0
    %7156 = vmatpush1.xpose.msra.mxu0 0.0
    %7157 = vmatprep.subr.mxu0 0.0
    %7158 = vmatpush1.xpose.msra.mxu0 0.0
    %7159 = vmatprep.subr.mxu0 0.0
    %7160 = vmatpush1.xpose.msra.mxu0 0.0
    %7161 = vmatprep.subr.mxu0 0.0
    %7162 = vmatpush1.xpose.msra.mxu0 0.0
    %7163 = vmatprep.subr.mxu0 0.0
    %7164 = vmatpush1.xpose.msra.mxu0 0.0
    %7165 = vmatprep.subr.mxu0 0.0
    %7166 = vmatpush1.xpose.msra.mxu0 0.0
    %7167 = vmatprep.subr.mxu0 0.0
    %7168 = vmatpush1.xpose.msra.mxu0 0.0
    %7169 = vmatprep.subr.mxu0 0.0
    %7170 = vmatpush1.xpose.msra.mxu0 0.0
    %7171 = vmatprep.subr.mxu0 0.0
    %7172 = vmatpush1.xpose.msra.mxu0 %v7143
    %7173 = vmatprep.subr.mxu0 0.0
    %7174 = vmatpush1.xpose.msra.mxu0 %v7141
    %7175 = vmatprep.subr.mxu0 0.0
    %7176 = vmatpush1.xpose.msra.mxu0 %v7139
    %7177 = vmatprep.subr.mxu0 0.0
    %7178 = vmatpush2.xpose.msra.mxu0 0.0
    %7179 = vmatprep.subr.mxu0 0.0
    %7180 = vmatpush2.xpose.msra.mxu0 0.0
    %7181 = vmatprep.subr.mxu0 0.0
    %7182 = vmatpush2.xpose.msra.mxu0 0.0
    %7183 = vmatprep.subr.mxu0 0.0
    %7184 = vmatpush2.xpose.msra.mxu0 0.0
    %7185 = vmatprep.subr.mxu0 0.0
    %7186 = vmatpush2.xpose.msra.mxu0 0.0
    %7187 = vmatprep.subr.mxu0 0.0
    %7188 = vmatpush2.xpose.msra.mxu0 0.0
    %7189 = vmatprep.subr.mxu0 0.0
    %7190 = vmatpush2.xpose.msra.mxu0 0.0
    %7191 = vmatprep.subr.mxu0 0.0
    %7192 = vmatpush2.xpose.msra.mxu0 0.0
    %7193 = vmatprep.subr.mxu0 0.0
    %7194 = vmatpush2.xpose.msra.mxu0 0.0
    %7195 = vmatprep.subr.mxu0 0.0
    %7196 = vmatpush2.xpose.msra.mxu0 0.0
    %7197 = vmatprep.subr.mxu0 0.0
    %7198 = vmatpush2.xpose.msra.mxu0 0.0
    %7199 = vmatprep.subr.mxu0 0.0
    %7200 = vmatpush2.xpose.msra.mxu0 0.0
    %7201 = vmatprep.subr.mxu0 0.0
    %7202 = vmatpush2.xpose.msra.mxu0 0.0
    %7203 = vmatprep.subr.mxu0 0.0
    %7204 = vmatpush2.xpose.msra.mxu0 0.0
    %7205 = vmatprep.subr.mxu0 0.0
    %7206 = vmatpush2.xpose.msra.mxu0 0.0
    %7207 = vmatprep.subr.mxu0 0.0
    %7208 = vmatpush2.xpose.msra.mxu0 0.0
    %7209 = vmatprep.mubr.f32.mxu0 0.0
    %7210 = vmatmul.mubr.f32.gmra.mxu0 %v7133
    %v7211 = vpop.f32.mrf.mxu0
    %v7212 = vadd.f32 0.0, %v7211
    %v7213 = vpop.f32.mrf.mxu0
    %7214 = vmatprep.mubr.f32.mxu0 0.0
    %7215 = vmatmul.mubr.f32.gmra.mxu0 %v7135
    %v7216 = vpop.f32.mrf.mxu0
    %v7217 = vadd.f32 0.0, %v7216
    %v7218 = vpop.f32.mrf.mxu0
    %7219 = vmatprep.mubr.f32.mxu0 0.0
    %7220 = vmatmul.mubr.f32.gmra.mxu0 %v7137
    %v7221 = vpop.f32.mrf.mxu0
    %v7222 = vadd.f32 0.0, %v7221
    %v7223 = vpop.f32.mrf.mxu0
    %7224 = vdwg.mxu0
    %v7225 = vmul.f32 %v7212, 0.5
    %v7226 = vmul.f32 %v7217, 0.5
    %v7227 = vmul.f32 %v7222, 0.5
    %v7228 = vsel %vm498, %v7225, -inf
    %7229 = vmax.xlane.f32.xlu0 %v7228
    %v7230 = vpop.xlane.xlu0 %7229
    %v7231 = vsel %vm498, %v7226, -inf
    %7232 = vmax.xlane.f32.xlu0 %v7231
    %v7233 = vpop.xlane.xlu0 %7232
    %v7234 = vsel %vm505, %v7227, -inf
    %7235 = vmax.xlane.f32.xlu0 %v7234
    %v7236 = vpop.xlane.xlu0 %7235
    %v7237 = vsub.f32 %v7225, %v7230
    %v7238 = vsub.f32 %v7226, %v7233
    %v7239 = vsub.f32 %v7227, %v7236
    %v7240 = vmul.f32 %v7237, 1.442695
    %v7241 = vpow.pop %v7240
    %v7242 = vmul.f32 %v7238, 1.442695
    %v7243 = vpow.pop %v7242
    %v7244 = vmul.f32 %v7239, 1.442695
    %v7245 = vpow.pop %v7244
    %v7246 = vsel %vm498, %v7241, 0.0
    %7247 = vadd.xlane.f32.xlu0 %v7246
    %v7248 = vpop.xlane.xlu0 %7247
    %v7249 = vsel %vm498, %v7243, 0.0
    %7250 = vadd.xlane.f32.xlu0 %v7249
    %v7251 = vpop.xlane.xlu0 %7250
    %v7252 = vsel %vm505, %v7245, 0.0
    %7253 = vadd.xlane.f32.xlu0 %v7252
    %v7254 = vpop.xlane.xlu0 %7253
    %v7255 = vrcp.pop %v7248
    %v7256 = vmul.f32 %v7241, %v7255
    %v7257 = vrcp.pop %v7251
    %v7258 = vmul.f32 %v7243, %v7257
    %v7259 = vrcp.pop %v7254
    %v7260 = vmul.f32 %v7245, %v7259
    %7261 = vrot.lane.b32.xlu0 %v7124, 64
    %v7262 = vpop.permute.xlu0 %7261
    %7263 = vrot.lane.b32.xlu0 %v7126, 64
    %v7264 = vpop.permute.xlu0 %7263
    %7265 = vrot.lane.b32.xlu0 %v7125, 64
    %v7266 = vpop.permute.xlu0 %7265
    %v7270 = vsel %vm498, %v7256, 0
    %v7273 = vsel %vm498, %v7258, 0
    %v7276 = vsel %vm498, %v7260, 0
    %v7278 = vsel %vm68, %v7266, 0
    %7280 = vmatprep.subr.mxu0 0.0
    %7281 = vmatpush1.msra.mxu0 0.0
    %7282 = vmatprep.subr.mxu0 0.0
    %7283 = vmatpush1.msra.mxu0 0.0
    %7284 = vmatprep.subr.mxu0 0.0
    %7285 = vmatpush1.msra.mxu0 0.0
    %7286 = vmatprep.subr.mxu0 0.0
    %7287 = vmatpush1.msra.mxu0 0.0
    %7288 = vmatprep.subr.mxu0 0.0
    %7289 = vmatpush1.msra.mxu0 0.0
    %7290 = vmatprep.subr.mxu0 0.0
    %7291 = vmatpush1.msra.mxu0 0.0
    %7292 = vmatprep.subr.mxu0 0.0
    %7293 = vmatpush1.msra.mxu0 0.0
    %7294 = vmatprep.subr.mxu0 0.0
    %7295 = vmatpush1.msra.mxu0 0.0
    %7296 = vmatprep.subr.mxu0 0.0
    %7297 = vmatpush1.msra.mxu0 0.0
    %7298 = vmatprep.subr.mxu0 0.0
    %7299 = vmatpush1.msra.mxu0 0.0
    %7300 = vmatprep.subr.mxu0 0.0
    %7301 = vmatpush1.msra.mxu0 0.0
    %7302 = vmatprep.subr.mxu0 0.0
    %7303 = vmatpush1.msra.mxu0 0.0
    %7304 = vmatprep.subr.mxu0 0.0
    %7305 = vmatpush1.msra.mxu0 0.0
    %7306 = vmatprep.subr.mxu0 0.0
    %7307 = vmatpush1.msra.mxu0 %v7278
    %7308 = vmatprep.subr.mxu0 0.0
    %7309 = vmatpush1.msra.mxu0 %v7264
    %7310 = vmatprep.subr.mxu0 0.0
    %7311 = vmatpush1.msra.mxu0 %v7262
    %7312 = vmatprep.subr.mxu0 0.0
    %7313 = vmatpush2.msra.mxu0 0.0
    %7314 = vmatprep.subr.mxu0 0.0
    %7315 = vmatpush2.msra.mxu0 0.0
    %7316 = vmatprep.subr.mxu0 0.0
    %7317 = vmatpush2.msra.mxu0 0.0
    %7318 = vmatprep.subr.mxu0 0.0
    %7319 = vmatpush2.msra.mxu0 0.0
    %7320 = vmatprep.subr.mxu0 0.0
    %7321 = vmatpush2.msra.mxu0 0.0
    %7322 = vmatprep.subr.mxu0 0.0
    %7323 = vmatpush2.msra.mxu0 0.0
    %7324 = vmatprep.subr.mxu0 0.0
    %7325 = vmatpush2.msra.mxu0 0.0
    %7326 = vmatprep.subr.mxu0 0.0
    %7327 = vmatpush2.msra.mxu0 0.0
    %7328 = vmatprep.subr.mxu0 0.0
    %7329 = vmatpush2.msra.mxu0 0.0
    %7330 = vmatprep.subr.mxu0 0.0
    %7331 = vmatpush2.msra.mxu0 0.0
    %7332 = vmatprep.subr.mxu0 0.0
    %7333 = vmatpush2.msra.mxu0 0.0
    %7334 = vmatprep.subr.mxu0 0.0
    %7335 = vmatpush2.msra.mxu0 0.0
    %7336 = vmatprep.subr.mxu0 0.0
    %7337 = vmatpush2.msra.mxu0 0.0
    %7338 = vmatprep.subr.mxu0 0.0
    %7339 = vmatpush2.msra.mxu0 0.0
    %7340 = vmatprep.subr.mxu0 0.0
    %7341 = vmatpush2.msra.mxu0 0.0
    %7342 = vmatprep.subr.mxu0 0.0
    %7343 = vmatpush2.msra.mxu0 0.0
    %7344 = vmatprep.mubr.f32.mxu0 0.0
    %7345 = vmatmul.mubr.f32.gmra.mxu0 %v7270
    %v7346 = vpop.f32.mrf.mxu0
    %v7347 = vadd.f32 0.0, %v7346
    %v7348 = vpop.f32.mrf.mxu0
    %7349 = vmatprep.mubr.f32.mxu0 0.0
    %7350 = vmatmul.mubr.f32.gmra.mxu0 %v7273
    %v7351 = vpop.f32.mrf.mxu0
    %v7352 = vadd.f32 0.0, %v7351
    %v7353 = vpop.f32.mrf.mxu0
    %7354 = vmatprep.mubr.f32.mxu0 0.0
    %7355 = vmatmul.mubr.f32.gmra.mxu0 %v7276
    %v7356 = vpop.f32.mrf.mxu0
    %v7357 = vadd.f32 0.0, %v7356
    %v7358 = vpop.f32.mrf.mxu0
    %7359 = vdwg.mxu0
    %7360 = vrot.lane.b32.xlu0 %v7124, 124
    %v7361 = vpop.permute.xlu0 %7360
    %7362 = vrot.lane.b32.xlu0 %v7126, 124
    %v7363 = vpop.permute.xlu0 %7362
    %7364 = vrot.lane.b32.xlu0 %v7125, 124
    %v7365 = vpop.permute.xlu0 %7364
    %7366 = vrot.lane.b32.xlu0 %v7124, 92
    %v7367 = vpop.permute.xlu0 %7366
    %7368 = vrot.lane.b32.xlu0 %v7126, 92
    %v7369 = vpop.permute.xlu0 %7368
    %7370 = vrot.lane.b32.xlu0 %v7125, 92
    %v7371 = vpop.permute.xlu0 %7370
    %v7372 = vsel %vm402, %v7361, 0
    %v7374 = vsel %vm402, %v7363, 0
    %v7376 = vsel %vm402, %v7365, 0
    %v7378 = vsel %vm402, %v7367, 0
    %v7380 = vsel %vm402, %v7369, 0
    %v7382 = vsel %vm402, %v7371, 0
    %7384 = vmatprep.subr.mxu0 0.0
    %7385 = vmatpush1.xpose.msra.mxu0 0.0
    %7386 = vmatprep.subr.mxu0 0.0
    %7387 = vmatpush1.xpose.msra.mxu0 0.0
    %7388 = vmatprep.subr.mxu0 0.0
    %7389 = vmatpush1.xpose.msra.mxu0 0.0
    %7390 = vmatprep.subr.mxu0 0.0
    %7391 = vmatpush1.xpose.msra.mxu0 0.0
    %7392 = vmatprep.subr.mxu0 0.0
    %7393 = vmatpush1.xpose.msra.mxu0 0.0
    %7394 = vmatprep.subr.mxu0 0.0
    %7395 = vmatpush1.xpose.msra.mxu0 0.0
    %7396 = vmatprep.subr.mxu0 0.0
    %7397 = vmatpush1.xpose.msra.mxu0 0.0
    %7398 = vmatprep.subr.mxu0 0.0
    %7399 = vmatpush1.xpose.msra.mxu0 0.0
    %7400 = vmatprep.subr.mxu0 0.0
    %7401 = vmatpush1.xpose.msra.mxu0 0.0
    %7402 = vmatprep.subr.mxu0 0.0
    %7403 = vmatpush1.xpose.msra.mxu0 0.0
    %7404 = vmatprep.subr.mxu0 0.0
    %7405 = vmatpush1.xpose.msra.mxu0 0.0
    %7406 = vmatprep.subr.mxu0 0.0
    %7407 = vmatpush1.xpose.msra.mxu0 0.0
    %7408 = vmatprep.subr.mxu0 0.0
    %7409 = vmatpush1.xpose.msra.mxu0 0.0
    %7410 = vmatprep.subr.mxu0 0.0
    %7411 = vmatpush1.xpose.msra.mxu0 %v7382
    %7412 = vmatprep.subr.mxu0 0.0
    %7413 = vmatpush1.xpose.msra.mxu0 %v7380
    %7414 = vmatprep.subr.mxu0 0.0
    %7415 = vmatpush1.xpose.msra.mxu0 %v7378
    %7416 = vmatprep.subr.mxu0 0.0
    %7417 = vmatpush2.xpose.msra.mxu0 0.0
    %7418 = vmatprep.subr.mxu0 0.0
    %7419 = vmatpush2.xpose.msra.mxu0 0.0
    %7420 = vmatprep.subr.mxu0 0.0
    %7421 = vmatpush2.xpose.msra.mxu0 0.0
    %7422 = vmatprep.subr.mxu0 0.0
    %7423 = vmatpush2.xpose.msra.mxu0 0.0
    %7424 = vmatprep.subr.mxu0 0.0
    %7425 = vmatpush2.xpose.msra.mxu0 0.0
    %7426 = vmatprep.subr.mxu0 0.0
    %7427 = vmatpush2.xpose.msra.mxu0 0.0
    %7428 = vmatprep.subr.mxu0 0.0
    %7429 = vmatpush2.xpose.msra.mxu0 0.0
    %7430 = vmatprep.subr.mxu0 0.0
    %7431 = vmatpush2.xpose.msra.mxu0 0.0
    %7432 = vmatprep.subr.mxu0 0.0
    %7433 = vmatpush2.xpose.msra.mxu0 0.0
    %7434 = vmatprep.subr.mxu0 0.0
    %7435 = vmatpush2.xpose.msra.mxu0 0.0
    %7436 = vmatprep.subr.mxu0 0.0
    %7437 = vmatpush2.xpose.msra.mxu0 0.0
    %7438 = vmatprep.subr.mxu0 0.0
    %7439 = vmatpush2.xpose.msra.mxu0 0.0
    %7440 = vmatprep.subr.mxu0 0.0
    %7441 = vmatpush2.xpose.msra.mxu0 0.0
    %7442 = vmatprep.subr.mxu0 0.0
    %7443 = vmatpush2.xpose.msra.mxu0 0.0
    %7444 = vmatprep.subr.mxu0 0.0
    %7445 = vmatpush2.xpose.msra.mxu0 0.0
    %7446 = vmatprep.subr.mxu0 0.0
    %7447 = vmatpush2.xpose.msra.mxu0 0.0
    %7448 = vmatprep.mubr.f32.mxu0 0.0
    %7449 = vmatmul.mubr.f32.gmra.mxu0 %v7372
    %v7450 = vpop.f32.mrf.mxu0
    %v7451 = vadd.f32 0.0, %v7450
    %v7452 = vpop.f32.mrf.mxu0
    %7453 = vmatprep.mubr.f32.mxu0 0.0
    %7454 = vmatmul.mubr.f32.gmra.mxu0 %v7374
    %v7455 = vpop.f32.mrf.mxu0
    %v7456 = vadd.f32 0.0, %v7455
    %v7457 = vpop.f32.mrf.mxu0
    %7458 = vmatprep.mubr.f32.mxu0 0.0
    %7459 = vmatmul.mubr.f32.gmra.mxu0 %v7376
    %v7460 = vpop.f32.mrf.mxu0
    %v7461 = vadd.f32 0.0, %v7460
    %v7462 = vpop.f32.mrf.mxu0
    %7463 = vdwg.mxu0
    %v7464 = vmul.f32 %v7451, 0.5
    %v7465 = vmul.f32 %v7456, 0.5
    %v7466 = vmul.f32 %v7461, 0.5
    %v7467 = vsel %vm498, %v7464, -inf
    %7468 = vmax.xlane.f32.xlu0 %v7467
    %v7469 = vpop.xlane.xlu0 %7468
    %v7470 = vsel %vm498, %v7465, -inf
    %7471 = vmax.xlane.f32.xlu0 %v7470
    %v7472 = vpop.xlane.xlu0 %7471
    %v7473 = vsel %vm505, %v7466, -inf
    %7474 = vmax.xlane.f32.xlu0 %v7473
    %v7475 = vpop.xlane.xlu0 %7474
    %v7476 = vsub.f32 %v7464, %v7469
    %v7477 = vsub.f32 %v7465, %v7472
    %v7478 = vsub.f32 %v7466, %v7475
    %v7479 = vmul.f32 %v7476, 1.442695
    %v7480 = vpow.pop %v7479
    %v7481 = vmul.f32 %v7477, 1.442695
    %v7482 = vpow.pop %v7481
    %v7483 = vmul.f32 %v7478, 1.442695
    %v7484 = vpow.pop %v7483
    %v7485 = vsel %vm498, %v7480, 0.0
    %7486 = vadd.xlane.f32.xlu0 %v7485
    %v7487 = vpop.xlane.xlu0 %7486
    %v7488 = vsel %vm498, %v7482, 0.0
    %7489 = vadd.xlane.f32.xlu0 %v7488
    %v7490 = vpop.xlane.xlu0 %7489
    %v7491 = vsel %vm505, %v7484, 0.0
    %7492 = vadd.xlane.f32.xlu0 %v7491
    %v7493 = vpop.xlane.xlu0 %7492
    %v7494 = vrcp.pop %v7487
    %v7495 = vmul.f32 %v7480, %v7494
    %v7496 = vrcp.pop %v7490
    %v7497 = vmul.f32 %v7482, %v7496
    %v7498 = vrcp.pop %v7493
    %v7499 = vmul.f32 %v7484, %v7498
    %7500 = vrot.lane.b32.xlu0 %v7124, 60
    %v7501 = vpop.permute.xlu0 %7500
    %7502 = vrot.lane.b32.xlu0 %v7126, 60
    %v7503 = vpop.permute.xlu0 %7502
    %7504 = vrot.lane.b32.xlu0 %v7125, 60
    %v7505 = vpop.permute.xlu0 %7504
    %v7509 = vsel %vm498, %v7495, 0
    %v7512 = vsel %vm498, %v7497, 0
    %v7515 = vsel %vm498, %v7499, 0
    %v7517 = vsel %vm68, %v7505, 0
    %7519 = vmatprep.subr.mxu0 0.0
    %7520 = vmatpush1.msra.mxu0 0.0
    %7521 = vmatprep.subr.mxu0 0.0
    %7522 = vmatpush1.msra.mxu0 0.0
    %7523 = vmatprep.subr.mxu0 0.0
    %7524 = vmatpush1.msra.mxu0 0.0
    %7525 = vmatprep.subr.mxu0 0.0
    %7526 = vmatpush1.msra.mxu0 0.0
    %7527 = vmatprep.subr.mxu0 0.0
    %7528 = vmatpush1.msra.mxu0 0.0
    %7529 = vmatprep.subr.mxu0 0.0
    %7530 = vmatpush1.msra.mxu0 0.0
    %7531 = vmatprep.subr.mxu0 0.0
    %7532 = vmatpush1.msra.mxu0 0.0
    %7533 = vmatprep.subr.mxu0 0.0
    %7534 = vmatpush1.msra.mxu0 0.0
    %7535 = vmatprep.subr.mxu0 0.0
    %7536 = vmatpush1.msra.mxu0 0.0
    %7537 = vmatprep.subr.mxu0 0.0
    %7538 = vmatpush1.msra.mxu0 0.0
    %7539 = vmatprep.subr.mxu0 0.0
    %7540 = vmatpush1.msra.mxu0 0.0
    %7541 = vmatprep.subr.mxu0 0.0
    %7542 = vmatpush1.msra.mxu0 0.0
    %7543 = vmatprep.subr.mxu0 0.0
    %7544 = vmatpush1.msra.mxu0 0.0
    %7545 = vmatprep.subr.mxu0 0.0
    %7546 = vmatpush1.msra.mxu0 %v7517
    %7547 = vmatprep.subr.mxu0 0.0
    %7548 = vmatpush1.msra.mxu0 %v7503
    %7549 = vmatprep.subr.mxu0 0.0
    %7550 = vmatpush1.msra.mxu0 %v7501
    %7551 = vmatprep.subr.mxu0 0.0
    %7552 = vmatpush2.msra.mxu0 0.0
    %7553 = vmatprep.subr.mxu0 0.0
    %7554 = vmatpush2.msra.mxu0 0.0
    %7555 = vmatprep.subr.mxu0 0.0
    %7556 = vmatpush2.msra.mxu0 0.0
    %7557 = vmatprep.subr.mxu0 0.0
    %7558 = vmatpush2.msra.mxu0 0.0
    %7559 = vmatprep.subr.mxu0 0.0
    %7560 = vmatpush2.msra.mxu0 0.0
    %7561 = vmatprep.subr.mxu0 0.0
    %7562 = vmatpush2.msra.mxu0 0.0
    %7563 = vmatprep.subr.mxu0 0.0
    %7564 = vmatpush2.msra.mxu0 0.0
    %7565 = vmatprep.subr.mxu0 0.0
    %7566 = vmatpush2.msra.mxu0 0.0
    %7567 = vmatprep.subr.mxu0 0.0
    %7568 = vmatpush2.msra.mxu0 0.0
    %7569 = vmatprep.subr.mxu0 0.0
    %7570 = vmatpush2.msra.mxu0 0.0
    %7571 = vmatprep.subr.mxu0 0.0
    %7572 = vmatpush2.msra.mxu0 0.0
    %7573 = vmatprep.subr.mxu0 0.0
    %7574 = vmatpush2.msra.mxu0 0.0
    %7575 = vmatprep.subr.mxu0 0.0
    %7576 = vmatpush2.msra.mxu0 0.0
    %7577 = vmatprep.subr.mxu0 0.0
    %7578 = vmatpush2.msra.mxu0 0.0
    %7579 = vmatprep.subr.mxu0 0.0
    %7580 = vmatpush2.msra.mxu0 0.0
    %7581 = vmatprep.subr.mxu0 0.0
    %7582 = vmatpush2.msra.mxu0 0.0
    %7583 = vmatprep.mubr.f32.mxu0 0.0
    %7584 = vmatmul.mubr.f32.gmra.mxu0 %v7509
    %v7585 = vpop.f32.mrf.mxu0
    %v7586 = vadd.f32 0.0, %v7585
    %v7587 = vpop.f32.mrf.mxu0
    %7588 = vmatprep.mubr.f32.mxu0 0.0
    %7589 = vmatmul.mubr.f32.gmra.mxu0 %v7512
    %v7590 = vpop.f32.mrf.mxu0
    %v7591 = vadd.f32 0.0, %v7590
    %v7592 = vpop.f32.mrf.mxu0
    %7593 = vmatprep.mubr.f32.mxu0 0.0
    %7594 = vmatmul.mubr.f32.gmra.mxu0 %v7515
    %v7595 = vpop.f32.mrf.mxu0
    %v7596 = vadd.f32 0.0, %v7595
    %v7597 = vpop.f32.mrf.mxu0
    %7598 = vdwg.mxu0
    %7599 = vrot.lane.b32.xlu0 %v7124, 120
    %v7600 = vpop.permute.xlu0 %7599
    %7601 = vrot.lane.b32.xlu0 %v7126, 120
    %v7602 = vpop.permute.xlu0 %7601
    %7603 = vrot.lane.b32.xlu0 %v7125, 120
    %v7604 = vpop.permute.xlu0 %7603
    %7605 = vrot.lane.b32.xlu0 %v7124, 88
    %v7606 = vpop.permute.xlu0 %7605
    %7607 = vrot.lane.b32.xlu0 %v7126, 88
    %v7608 = vpop.permute.xlu0 %7607
    %7609 = vrot.lane.b32.xlu0 %v7125, 88
    %v7610 = vpop.permute.xlu0 %7609
    %v7611 = vsel %vm402, %v7600, 0
    %v7613 = vsel %vm402, %v7602, 0
    %v7615 = vsel %vm402, %v7604, 0
    %v7617 = vsel %vm402, %v7606, 0
    %v7619 = vsel %vm402, %v7608, 0
    %v7621 = vsel %vm402, %v7610, 0
    %7623 = vmatprep.subr.mxu0 0.0
    %7624 = vmatpush1.xpose.msra.mxu0 0.0
    %7625 = vmatprep.subr.mxu0 0.0
    %7626 = vmatpush1.xpose.msra.mxu0 0.0
    %7627 = vmatprep.subr.mxu0 0.0
    %7628 = vmatpush1.xpose.msra.mxu0 0.0
    %7629 = vmatprep.subr.mxu0 0.0
    %7630 = vmatpush1.xpose.msra.mxu0 0.0
    %7631 = vmatprep.subr.mxu0 0.0
    %7632 = vmatpush1.xpose.msra.mxu0 0.0
    %7633 = vmatprep.subr.mxu0 0.0
    %7634 = vmatpush1.xpose.msra.mxu0 0.0
    %7635 = vmatprep.subr.mxu0 0.0
    %7636 = vmatpush1.xpose.msra.mxu0 0.0
    %7637 = vmatprep.subr.mxu0 0.0
    %7638 = vmatpush1.xpose.msra.mxu0 0.0
    %7639 = vmatprep.subr.mxu0 0.0
    %7640 = vmatpush1.xpose.msra.mxu0 0.0
    %7641 = vmatprep.subr.mxu0 0.0
    %7642 = vmatpush1.xpose.msra.mxu0 0.0
    %7643 = vmatprep.subr.mxu0 0.0
    %7644 = vmatpush1.xpose.msra.mxu0 0.0
    %7645 = vmatprep.subr.mxu0 0.0
    %7646 = vmatpush1.xpose.msra.mxu0 0.0
    %7647 = vmatprep.subr.mxu0 0.0
    %7648 = vmatpush1.xpose.msra.mxu0 0.0
    %7649 = vmatprep.subr.mxu0 0.0
    %7650 = vmatpush1.xpose.msra.mxu0 %v7621
    %7651 = vmatprep.subr.mxu0 0.0
    %7652 = vmatpush1.xpose.msra.mxu0 %v7619
    %7653 = vmatprep.subr.mxu0 0.0
    %7654 = vmatpush1.xpose.msra.mxu0 %v7617
    %7655 = vmatprep.subr.mxu0 0.0
    %7656 = vmatpush2.xpose.msra.mxu0 0.0
    %7657 = vmatprep.subr.mxu0 0.0
    %7658 = vmatpush2.xpose.msra.mxu0 0.0
    %7659 = vmatprep.subr.mxu0 0.0
    %7660 = vmatpush2.xpose.msra.mxu0 0.0
    %7661 = vmatprep.subr.mxu0 0.0
    %7662 = vmatpush2.xpose.msra.mxu0 0.0
    %7663 = vmatprep.subr.mxu0 0.0
    %7664 = vmatpush2.xpose.msra.mxu0 0.0
    %7665 = vmatprep.subr.mxu0 0.0
    %7666 = vmatpush2.xpose.msra.mxu0 0.0
    %7667 = vmatprep.subr.mxu0 0.0
    %7668 = vmatpush2.xpose.msra.mxu0 0.0
    %7669 = vmatprep.subr.mxu0 0.0
    %7670 = vmatpush2.xpose.msra.mxu0 0.0
    %7671 = vmatprep.subr.mxu0 0.0
    %7672 = vmatpush2.xpose.msra.mxu0 0.0
    %7673 = vmatprep.subr.mxu0 0.0
    %7674 = vmatpush2.xpose.msra.mxu0 0.0
    %7675 = vmatprep.subr.mxu0 0.0
    %7676 = vmatpush2.xpose.msra.mxu0 0.0
    %7677 = vmatprep.subr.mxu0 0.0
    %7678 = vmatpush2.xpose.msra.mxu0 0.0
    %7679 = vmatprep.subr.mxu0 0.0
    %7680 = vmatpush2.xpose.msra.mxu0 0.0
    %7681 = vmatprep.subr.mxu0 0.0
    %7682 = vmatpush2.xpose.msra.mxu0 0.0
    %7683 = vmatprep.subr.mxu0 0.0
    %7684 = vmatpush2.xpose.msra.mxu0 0.0
    %7685 = vmatprep.subr.mxu0 0.0
    %7686 = vmatpush2.xpose.msra.mxu0 0.0
    %7687 = vmatprep.mubr.f32.mxu0 0.0
    %7688 = vmatmul.mubr.f32.gmra.mxu0 %v7611
    %v7689 = vpop.f32.mrf.mxu0
    %v7690 = vadd.f32 0.0, %v7689
    %v7691 = vpop.f32.mrf.mxu0
    %7692 = vmatprep.mubr.f32.mxu0 0.0
    %7693 = vmatmul.mubr.f32.gmra.mxu0 %v7613
    %v7694 = vpop.f32.mrf.mxu0
    %v7695 = vadd.f32 0.0, %v7694
    %v7696 = vpop.f32.mrf.mxu0
    %7697 = vmatprep.mubr.f32.mxu0 0.0
    %7698 = vmatmul.mubr.f32.gmra.mxu0 %v7615
    %v7699 = vpop.f32.mrf.mxu0
    %v7700 = vadd.f32 0.0, %v7699
    %v7701 = vpop.f32.mrf.mxu0
    %7702 = vdwg.mxu0
    %v7703 = vmul.f32 %v7690, 0.5
    %v7704 = vmul.f32 %v7695, 0.5
    %v7705 = vmul.f32 %v7700, 0.5
    %v7706 = vsel %vm498, %v7703, -inf
    %7707 = vmax.xlane.f32.xlu0 %v7706
    %v7708 = vpop.xlane.xlu0 %7707
    %v7709 = vsel %vm498, %v7704, -inf
    %7710 = vmax.xlane.f32.xlu0 %v7709
    %v7711 = vpop.xlane.xlu0 %7710
    %v7712 = vsel %vm505, %v7705, -inf
    %7713 = vmax.xlane.f32.xlu0 %v7712
    %v7714 = vpop.xlane.xlu0 %7713
    %v7715 = vsub.f32 %v7703, %v7708
    %v7716 = vsub.f32 %v7704, %v7711
    %v7717 = vsub.f32 %v7705, %v7714
    %v7718 = vmul.f32 %v7715, 1.442695
    %v7719 = vpow.pop %v7718
    %v7720 = vmul.f32 %v7716, 1.442695
    %v7721 = vpow.pop %v7720
    %v7722 = vmul.f32 %v7717, 1.442695
    %v7723 = vpow.pop %v7722
    %v7724 = vsel %vm498, %v7719, 0.0
    %7725 = vadd.xlane.f32.xlu0 %v7724
    %v7726 = vpop.xlane.xlu0 %7725
    %v7727 = vsel %vm498, %v7721, 0.0
    %7728 = vadd.xlane.f32.xlu0 %v7727
    %v7729 = vpop.xlane.xlu0 %7728
    %v7730 = vsel %vm505, %v7723, 0.0
    %7731 = vadd.xlane.f32.xlu0 %v7730
    %v7732 = vpop.xlane.xlu0 %7731
    %v7733 = vrcp.pop %v7726
    %v7734 = vmul.f32 %v7719, %v7733
    %v7735 = vrcp.pop %v7729
    %v7736 = vmul.f32 %v7721, %v7735
    %v7737 = vrcp.pop %v7732
    %v7738 = vmul.f32 %v7723, %v7737
    %7739 = vrot.lane.b32.xlu0 %v7124, 56
    %v7740 = vpop.permute.xlu0 %7739
    %7741 = vrot.lane.b32.xlu0 %v7126, 56
    %v7742 = vpop.permute.xlu0 %7741
    %7743 = vrot.lane.b32.xlu0 %v7125, 56
    %v7744 = vpop.permute.xlu0 %7743
    %v7748 = vsel %vm498, %v7734, 0
    %v7751 = vsel %vm498, %v7736, 0
    %v7754 = vsel %vm498, %v7738, 0
    %v7756 = vsel %vm68, %v7744, 0
    %7758 = vmatprep.subr.mxu0 0.0
    %7759 = vmatpush1.msra.mxu0 0.0
    %7760 = vmatprep.subr.mxu0 0.0
    %7761 = vmatpush1.msra.mxu0 0.0
    %7762 = vmatprep.subr.mxu0 0.0
    %7763 = vmatpush1.msra.mxu0 0.0
    %7764 = vmatprep.subr.mxu0 0.0
    %7765 = vmatpush1.msra.mxu0 0.0
    %7766 = vmatprep.subr.mxu0 0.0
    %7767 = vmatpush1.msra.mxu0 0.0
    %7768 = vmatprep.subr.mxu0 0.0
    %7769 = vmatpush1.msra.mxu0 0.0
    %7770 = vmatprep.subr.mxu0 0.0
    %7771 = vmatpush1.msra.mxu0 0.0
    %7772 = vmatprep.subr.mxu0 0.0
    %7773 = vmatpush1.msra.mxu0 0.0
    %7774 = vmatprep.subr.mxu0 0.0
    %7775 = vmatpush1.msra.mxu0 0.0
    %7776 = vmatprep.subr.mxu0 0.0
    %7777 = vmatpush1.msra.mxu0 0.0
    %7778 = vmatprep.subr.mxu0 0.0
    %7779 = vmatpush1.msra.mxu0 0.0
    %7780 = vmatprep.subr.mxu0 0.0
    %7781 = vmatpush1.msra.mxu0 0.0
    %7782 = vmatprep.subr.mxu0 0.0
    %7783 = vmatpush1.msra.mxu0 0.0
    %7784 = vmatprep.subr.mxu0 0.0
    %7785 = vmatpush1.msra.mxu0 %v7756
    %7786 = vmatprep.subr.mxu0 0.0
    %7787 = vmatpush1.msra.mxu0 %v7742
    %7788 = vmatprep.subr.mxu0 0.0
    %7789 = vmatpush1.msra.mxu0 %v7740
    %7790 = vmatprep.subr.mxu0 0.0
    %7791 = vmatpush2.msra.mxu0 0.0
    %7792 = vmatprep.subr.mxu0 0.0
    %7793 = vmatpush2.msra.mxu0 0.0
    %7794 = vmatprep.subr.mxu0 0.0
    %7795 = vmatpush2.msra.mxu0 0.0
    %7796 = vmatprep.subr.mxu0 0.0
    %7797 = vmatpush2.msra.mxu0 0.0
    %7798 = vmatprep.subr.mxu0 0.0
    %7799 = vmatpush2.msra.mxu0 0.0
    %7800 = vmatprep.subr.mxu0 0.0
    %7801 = vmatpush2.msra.mxu0 0.0
    %7802 = vmatprep.subr.mxu0 0.0
    %7803 = vmatpush2.msra.mxu0 0.0
    %7804 = vmatprep.subr.mxu0 0.0
    %7805 = vmatpush2.msra.mxu0 0.0
    %7806 = vmatprep.subr.mxu0 0.0
    %7807 = vmatpush2.msra.mxu0 0.0
    %7808 = vmatprep.subr.mxu0 0.0
    %7809 = vmatpush2.msra.mxu0 0.0
    %7810 = vmatprep.subr.mxu0 0.0
    %7811 = vmatpush2.msra.mxu0 0.0
    %7812 = vmatprep.subr.mxu0 0.0
    %7813 = vmatpush2.msra.mxu0 0.0
    %7814 = vmatprep.subr.mxu0 0.0
    %7815 = vmatpush2.msra.mxu0 0.0
    %7816 = vmatprep.subr.mxu0 0.0
    %7817 = vmatpush2.msra.mxu0 0.0
    %7818 = vmatprep.subr.mxu0 0.0
    %7819 = vmatpush2.msra.mxu0 0.0
    %7820 = vmatprep.subr.mxu0 0.0
    %7821 = vmatpush2.msra.mxu0 0.0
    %7822 = vmatprep.mubr.f32.mxu0 0.0
    %7823 = vmatmul.mubr.f32.gmra.mxu0 %v7748
    %v7824 = vpop.f32.mrf.mxu0
    %v7825 = vadd.f32 0.0, %v7824
    %v7826 = vpop.f32.mrf.mxu0
    %7827 = vmatprep.mubr.f32.mxu0 0.0
    %7828 = vmatmul.mubr.f32.gmra.mxu0 %v7751
    %v7829 = vpop.f32.mrf.mxu0
    %v7830 = vadd.f32 0.0, %v7829
    %v7831 = vpop.f32.mrf.mxu0
    %7832 = vmatprep.mubr.f32.mxu0 0.0
    %7833 = vmatmul.mubr.f32.gmra.mxu0 %v7754
    %v7834 = vpop.f32.mrf.mxu0
    %v7835 = vadd.f32 0.0, %v7834
    %v7836 = vpop.f32.mrf.mxu0
    %7837 = vdwg.mxu0
    %7838 = vrot.lane.b32.xlu0 %v7124, 116
    %v7839 = vpop.permute.xlu0 %7838
    %7840 = vrot.lane.b32.xlu0 %v7126, 116
    %v7841 = vpop.permute.xlu0 %7840
    %7842 = vrot.lane.b32.xlu0 %v7125, 116
    %v7843 = vpop.permute.xlu0 %7842
    %7844 = vrot.lane.b32.xlu0 %v7124, 84
    %v7845 = vpop.permute.xlu0 %7844
    %7846 = vrot.lane.b32.xlu0 %v7126, 84
    %v7847 = vpop.permute.xlu0 %7846
    %7848 = vrot.lane.b32.xlu0 %v7125, 84
    %v7849 = vpop.permute.xlu0 %7848
    %v7850 = vsel %vm402, %v7839, 0
    %v7852 = vsel %vm402, %v7841, 0
    %v7854 = vsel %vm402, %v7843, 0
    %v7856 = vsel %vm402, %v7845, 0
    %v7858 = vsel %vm402, %v7847, 0
    %v7860 = vsel %vm402, %v7849, 0
    %7862 = vmatprep.subr.mxu0 0.0
    %7863 = vmatpush1.xpose.msra.mxu0 0.0
    %7864 = vmatprep.subr.mxu0 0.0
    %7865 = vmatpush1.xpose.msra.mxu0 0.0
    %7866 = vmatprep.subr.mxu0 0.0
    %7867 = vmatpush1.xpose.msra.mxu0 0.0
    %7868 = vmatprep.subr.mxu0 0.0
    %7869 = vmatpush1.xpose.msra.mxu0 0.0
    %7870 = vmatprep.subr.mxu0 0.0
    %7871 = vmatpush1.xpose.msra.mxu0 0.0
    %7872 = vmatprep.subr.mxu0 0.0
    %7873 = vmatpush1.xpose.msra.mxu0 0.0
    %7874 = vmatprep.subr.mxu0 0.0
    %7875 = vmatpush1.xpose.msra.mxu0 0.0
    %7876 = vmatprep.subr.mxu0 0.0
    %7877 = vmatpush1.xpose.msra.mxu0 0.0
    %7878 = vmatprep.subr.mxu0 0.0
    %7879 = vmatpush1.xpose.msra.mxu0 0.0
    %7880 = vmatprep.subr.mxu0 0.0
    %7881 = vmatpush1.xpose.msra.mxu0 0.0
    %7882 = vmatprep.subr.mxu0 0.0
    %7883 = vmatpush1.xpose.msra.mxu0 0.0
    %7884 = vmatprep.subr.mxu0 0.0
    %7885 = vmatpush1.xpose.msra.mxu0 0.0
    %7886 = vmatprep.subr.mxu0 0.0
    %7887 = vmatpush1.xpose.msra.mxu0 0.0
    %7888 = vmatprep.subr.mxu0 0.0
    %7889 = vmatpush1.xpose.msra.mxu0 %v7860
    %7890 = vmatprep.subr.mxu0 0.0
    %7891 = vmatpush1.xpose.msra.mxu0 %v7858
    %7892 = vmatprep.subr.mxu0 0.0
    %7893 = vmatpush1.xpose.msra.mxu0 %v7856
    %7894 = vmatprep.subr.mxu0 0.0
    %7895 = vmatpush2.xpose.msra.mxu0 0.0
    %7896 = vmatprep.subr.mxu0 0.0
    %7897 = vmatpush2.xpose.msra.mxu0 0.0
    %7898 = vmatprep.subr.mxu0 0.0
    %7899 = vmatpush2.xpose.msra.mxu0 0.0
    %7900 = vmatprep.subr.mxu0 0.0
    %7901 = vmatpush2.xpose.msra.mxu0 0.0
    %7902 = vmatprep.subr.mxu0 0.0
    %7903 = vmatpush2.xpose.msra.mxu0 0.0
    %7904 = vmatprep.subr.mxu0 0.0
    %7905 = vmatpush2.xpose.msra.mxu0 0.0
    %7906 = vmatprep.subr.mxu0 0.0
    %7907 = vmatpush2.xpose.msra.mxu0 0.0
    %7908 = vmatprep.subr.mxu0 0.0
    %7909 = vmatpush2.xpose.msra.mxu0 0.0
    %7910 = vmatprep.subr.mxu0 0.0
    %7911 = vmatpush2.xpose.msra.mxu0 0.0
    %7912 = vmatprep.subr.mxu0 0.0
    %7913 = vmatpush2.xpose.msra.mxu0 0.0
    %7914 = vmatprep.subr.mxu0 0.0
    %7915 = vmatpush2.xpose.msra.mxu0 0.0
    %7916 = vmatprep.subr.mxu0 0.0
    %7917 = vmatpush2.xpose.msra.mxu0 0.0
    %7918 = vmatprep.subr.mxu0 0.0
    %7919 = vmatpush2.xpose.msra.mxu0 0.0
    %7920 = vmatprep.subr.mxu0 0.0
    %7921 = vmatpush2.xpose.msra.mxu0 0.0
    %7922 = vmatprep.subr.mxu0 0.0
    %7923 = vmatpush2.xpose.msra.mxu0 0.0
    %7924 = vmatprep.subr.mxu0 0.0
    %7925 = vmatpush2.xpose.msra.mxu0 0.0
    %7926 = vmatprep.mubr.f32.mxu0 0.0
    %7927 = vmatmul.mubr.f32.gmra.mxu0 %v7850
    %v7928 = vpop.f32.mrf.mxu0
    %v7929 = vadd.f32 0.0, %v7928
    %v7930 = vpop.f32.mrf.mxu0
    %7931 = vmatprep.mubr.f32.mxu0 0.0
    %7932 = vmatmul.mubr.f32.gmra.mxu0 %v7852
    %v7933 = vpop.f32.mrf.mxu0
    %v7934 = vadd.f32 0.0, %v7933
    %v7935 = vpop.f32.mrf.mxu0
    %7936 = vmatprep.mubr.f32.mxu0 0.0
    %7937 = vmatmul.mubr.f32.gmra.mxu0 %v7854
    %v7938 = vpop.f32.mrf.mxu0
    %v7939 = vadd.f32 0.0, %v7938
    %v7940 = vpop.f32.mrf.mxu0
    %7941 = vdwg.mxu0
    %v7942 = vmul.f32 %v7929, 0.5
    %v7943 = vmul.f32 %v7934, 0.5
    %v7944 = vmul.f32 %v7939, 0.5
    %v7945 = vsel %vm498, %v7942, -inf
    %7946 = vmax.xlane.f32.xlu0 %v7945
    %v7947 = vpop.xlane.xlu0 %7946
    %v7948 = vsel %vm498, %v7943, -inf
    %7949 = vmax.xlane.f32.xlu0 %v7948
    %v7950 = vpop.xlane.xlu0 %7949
    %v7951 = vsel %vm505, %v7944, -inf
    %7952 = vmax.xlane.f32.xlu0 %v7951
    %v7953 = vpop.xlane.xlu0 %7952
    %v7954 = vsub.f32 %v7942, %v7947
    %v7955 = vsub.f32 %v7943, %v7950
    %v7956 = vsub.f32 %v7944, %v7953
    %v7957 = vmul.f32 %v7954, 1.442695
    %v7958 = vpow.pop %v7957
    %v7959 = vmul.f32 %v7955, 1.442695
    %v7960 = vpow.pop %v7959
    %v7961 = vmul.f32 %v7956, 1.442695
    %v7962 = vpow.pop %v7961
    %v7963 = vsel %vm498, %v7958, 0.0
    %7964 = vadd.xlane.f32.xlu0 %v7963
    %v7965 = vpop.xlane.xlu0 %7964
    %v7966 = vsel %vm498, %v7960, 0.0
    %7967 = vadd.xlane.f32.xlu0 %v7966
    %v7968 = vpop.xlane.xlu0 %7967
    %v7969 = vsel %vm505, %v7962, 0.0
    %7970 = vadd.xlane.f32.xlu0 %v7969
    %v7971 = vpop.xlane.xlu0 %7970
    %v7972 = vrcp.pop %v7965
    %v7973 = vmul.f32 %v7958, %v7972
    %v7974 = vrcp.pop %v7968
    %v7975 = vmul.f32 %v7960, %v7974
    %v7976 = vrcp.pop %v7971
    %v7977 = vmul.f32 %v7962, %v7976
    %7978 = vrot.lane.b32.xlu0 %v7124, 52
    %v7979 = vpop.permute.xlu0 %7978
    %7980 = vrot.lane.b32.xlu0 %v7126, 52
    %v7981 = vpop.permute.xlu0 %7980
    %7982 = vrot.lane.b32.xlu0 %v7125, 52
    %v7983 = vpop.permute.xlu0 %7982
    %v7987 = vsel %vm498, %v7973, 0
    %v7990 = vsel %vm498, %v7975, 0
    %v7993 = vsel %vm498, %v7977, 0
    %v7995 = vsel %vm68, %v7983, 0
    %7997 = vmatprep.subr.mxu0 0.0
    %7998 = vmatpush1.msra.mxu0 0.0
    %7999 = vmatprep.subr.mxu0 0.0
    %8000 = vmatpush1.msra.mxu0 0.0
    %8001 = vmatprep.subr.mxu0 0.0
    %8002 = vmatpush1.msra.mxu0 0.0
    %8003 = vmatprep.subr.mxu0 0.0
    %8004 = vmatpush1.msra.mxu0 0.0
    %8005 = vmatprep.subr.mxu0 0.0
    %8006 = vmatpush1.msra.mxu0 0.0
    %8007 = vmatprep.subr.mxu0 0.0
    %8008 = vmatpush1.msra.mxu0 0.0
    %8009 = vmatprep.subr.mxu0 0.0
    %8010 = vmatpush1.msra.mxu0 0.0
    %8011 = vmatprep.subr.mxu0 0.0
    %8012 = vmatpush1.msra.mxu0 0.0
    %8013 = vmatprep.subr.mxu0 0.0
    %8014 = vmatpush1.msra.mxu0 0.0
    %8015 = vmatprep.subr.mxu0 0.0
    %8016 = vmatpush1.msra.mxu0 0.0
    %8017 = vmatprep.subr.mxu0 0.0
    %8018 = vmatpush1.msra.mxu0 0.0
    %8019 = vmatprep.subr.mxu0 0.0
    %8020 = vmatpush1.msra.mxu0 0.0
    %8021 = vmatprep.subr.mxu0 0.0
    %8022 = vmatpush1.msra.mxu0 0.0
    %8023 = vmatprep.subr.mxu0 0.0
    %8024 = vmatpush1.msra.mxu0 %v7995
    %8025 = vmatprep.subr.mxu0 0.0
    %8026 = vmatpush1.msra.mxu0 %v7981
    %8027 = vmatprep.subr.mxu0 0.0
    %8028 = vmatpush1.msra.mxu0 %v7979
    %8029 = vmatprep.subr.mxu0 0.0
    %8030 = vmatpush2.msra.mxu0 0.0
    %8031 = vmatprep.subr.mxu0 0.0
    %8032 = vmatpush2.msra.mxu0 0.0
    %8033 = vmatprep.subr.mxu0 0.0
    %8034 = vmatpush2.msra.mxu0 0.0
    %8035 = vmatprep.subr.mxu0 0.0
    %8036 = vmatpush2.msra.mxu0 0.0
    %8037 = vmatprep.subr.mxu0 0.0
    %8038 = vmatpush2.msra.mxu0 0.0
    %8039 = vmatprep.subr.mxu0 0.0
    %8040 = vmatpush2.msra.mxu0 0.0
    %8041 = vmatprep.subr.mxu0 0.0
    %8042 = vmatpush2.msra.mxu0 0.0
    %8043 = vmatprep.subr.mxu0 0.0
    %8044 = vmatpush2.msra.mxu0 0.0
    %8045 = vmatprep.subr.mxu0 0.0
    %8046 = vmatpush2.msra.mxu0 0.0
    %8047 = vmatprep.subr.mxu0 0.0
    %8048 = vmatpush2.msra.mxu0 0.0
    %8049 = vmatprep.subr.mxu0 0.0
    %8050 = vmatpush2.msra.mxu0 0.0
    %8051 = vmatprep.subr.mxu0 0.0
    %8052 = vmatpush2.msra.mxu0 0.0
    %8053 = vmatprep.subr.mxu0 0.0
    %8054 = vmatpush2.msra.mxu0 0.0
    %8055 = vmatprep.subr.mxu0 0.0
    %8056 = vmatpush2.msra.mxu0 0.0
    %8057 = vmatprep.subr.mxu0 0.0
    %8058 = vmatpush2.msra.mxu0 0.0
    %8059 = vmatprep.subr.mxu0 0.0
    %8060 = vmatpush2.msra.mxu0 0.0
    %8061 = vmatprep.mubr.f32.mxu0 0.0
    %8062 = vmatmul.mubr.f32.gmra.mxu0 %v7987
    %v8063 = vpop.f32.mrf.mxu0
    %v8064 = vadd.f32 0.0, %v8063
    %v8065 = vpop.f32.mrf.mxu0
    %8066 = vmatprep.mubr.f32.mxu0 0.0
    %8067 = vmatmul.mubr.f32.gmra.mxu0 %v7990
    %v8068 = vpop.f32.mrf.mxu0
    %v8069 = vadd.f32 0.0, %v8068
    %v8070 = vpop.f32.mrf.mxu0
    %8071 = vmatprep.mubr.f32.mxu0 0.0
    %8072 = vmatmul.mubr.f32.gmra.mxu0 %v7993
    %v8073 = vpop.f32.mrf.mxu0
    %v8074 = vadd.f32 0.0, %v8073
    %v8075 = vpop.f32.mrf.mxu0
    %8076 = vdwg.mxu0
    %8077 = vrot.lane.b32.xlu0 %v7124, 112
    %v8078 = vpop.permute.xlu0 %8077
    %8079 = vrot.lane.b32.xlu0 %v7126, 112
    %v8080 = vpop.permute.xlu0 %8079
    %8081 = vrot.lane.b32.xlu0 %v7125, 112
    %v8082 = vpop.permute.xlu0 %8081
    %8083 = vrot.lane.b32.xlu0 %v7124, 80
    %v8084 = vpop.permute.xlu0 %8083
    %8085 = vrot.lane.b32.xlu0 %v7126, 80
    %v8086 = vpop.permute.xlu0 %8085
    %8087 = vrot.lane.b32.xlu0 %v7125, 80
    %v8088 = vpop.permute.xlu0 %8087
    %v8089 = vsel %vm402, %v8078, 0
    %v8091 = vsel %vm402, %v8080, 0
    %v8093 = vsel %vm402, %v8082, 0
    %v8095 = vsel %vm402, %v8084, 0
    %v8097 = vsel %vm402, %v8086, 0
    %v8099 = vsel %vm402, %v8088, 0
    %8101 = vmatprep.subr.mxu0 0.0
    %8102 = vmatpush1.xpose.msra.mxu0 0.0
    %8103 = vmatprep.subr.mxu0 0.0
    %8104 = vmatpush1.xpose.msra.mxu0 0.0
    %8105 = vmatprep.subr.mxu0 0.0
    %8106 = vmatpush1.xpose.msra.mxu0 0.0
    %8107 = vmatprep.subr.mxu0 0.0
    %8108 = vmatpush1.xpose.msra.mxu0 0.0
    %8109 = vmatprep.subr.mxu0 0.0
    %8110 = vmatpush1.xpose.msra.mxu0 0.0
    %8111 = vmatprep.subr.mxu0 0.0
    %8112 = vmatpush1.xpose.msra.mxu0 0.0
    %8113 = vmatprep.subr.mxu0 0.0
    %8114 = vmatpush1.xpose.msra.mxu0 0.0
    %8115 = vmatprep.subr.mxu0 0.0
    %8116 = vmatpush1.xpose.msra.mxu0 0.0
    %8117 = vmatprep.subr.mxu0 0.0
    %8118 = vmatpush1.xpose.msra.mxu0 0.0
    %8119 = vmatprep.subr.mxu0 0.0
    %8120 = vmatpush1.xpose.msra.mxu0 0.0
    %8121 = vmatprep.subr.mxu0 0.0
    %8122 = vmatpush1.xpose.msra.mxu0 0.0
    %8123 = vmatprep.subr.mxu0 0.0
    %8124 = vmatpush1.xpose.msra.mxu0 0.0
    %8125 = vmatprep.subr.mxu0 0.0
    %8126 = vmatpush1.xpose.msra.mxu0 0.0
    %8127 = vmatprep.subr.mxu0 0.0
    %8128 = vmatpush1.xpose.msra.mxu0 %v8099
    %8129 = vmatprep.subr.mxu0 0.0
    %8130 = vmatpush1.xpose.msra.mxu0 %v8097
    %8131 = vmatprep.subr.mxu0 0.0
    %8132 = vmatpush1.xpose.msra.mxu0 %v8095
    %8133 = vmatprep.subr.mxu0 0.0
    %8134 = vmatpush2.xpose.msra.mxu0 0.0
    %8135 = vmatprep.subr.mxu0 0.0
    %8136 = vmatpush2.xpose.msra.mxu0 0.0
    %8137 = vmatprep.subr.mxu0 0.0
    %8138 = vmatpush2.xpose.msra.mxu0 0.0
    %8139 = vmatprep.subr.mxu0 0.0
    %8140 = vmatpush2.xpose.msra.mxu0 0.0
    %8141 = vmatprep.subr.mxu0 0.0
    %8142 = vmatpush2.xpose.msra.mxu0 0.0
    %8143 = vmatprep.subr.mxu0 0.0
    %8144 = vmatpush2.xpose.msra.mxu0 0.0
    %8145 = vmatprep.subr.mxu0 0.0
    %8146 = vmatpush2.xpose.msra.mxu0 0.0
    %8147 = vmatprep.subr.mxu0 0.0
    %8148 = vmatpush2.xpose.msra.mxu0 0.0
    %8149 = vmatprep.subr.mxu0 0.0
    %8150 = vmatpush2.xpose.msra.mxu0 0.0
    %8151 = vmatprep.subr.mxu0 0.0
    %8152 = vmatpush2.xpose.msra.mxu0 0.0
    %8153 = vmatprep.subr.mxu0 0.0
    %8154 = vmatpush2.xpose.msra.mxu0 0.0
    %8155 = vmatprep.subr.mxu0 0.0
    %8156 = vmatpush2.xpose.msra.mxu0 0.0
    %8157 = vmatprep.subr.mxu0 0.0
    %8158 = vmatpush2.xpose.msra.mxu0 0.0
    %8159 = vmatprep.subr.mxu0 0.0
    %8160 = vmatpush2.xpose.msra.mxu0 0.0
    %8161 = vmatprep.subr.mxu0 0.0
    %8162 = vmatpush2.xpose.msra.mxu0 0.0
    %8163 = vmatprep.subr.mxu0 0.0
    %8164 = vmatpush2.xpose.msra.mxu0 0.0
    %8165 = vmatprep.mubr.f32.mxu0 0.0
    %8166 = vmatmul.mubr.f32.gmra.mxu0 %v8089
    %v8167 = vpop.f32.mrf.mxu0
    %v8168 = vadd.f32 0.0, %v8167
    %v8169 = vpop.f32.mrf.mxu0
    %8170 = vmatprep.mubr.f32.mxu0 0.0
    %8171 = vmatmul.mubr.f32.gmra.mxu0 %v8091
    %v8172 = vpop.f32.mrf.mxu0
    %v8173 = vadd.f32 0.0, %v8172
    %v8174 = vpop.f32.mrf.mxu0
    %8175 = vmatprep.mubr.f32.mxu0 0.0
    %8176 = vmatmul.mubr.f32.gmra.mxu0 %v8093
    %v8177 = vpop.f32.mrf.mxu0
    %v8178 = vadd.f32 0.0, %v8177
    %v8179 = vpop.f32.mrf.mxu0
    %8180 = vdwg.mxu0
    %v8181 = vmul.f32 %v8168, 0.5
    %v8182 = vmul.f32 %v8173, 0.5
    %v8183 = vmul.f32 %v8178, 0.5
    %v8184 = vsel %vm498, %v8181, -inf
    %8185 = vmax.xlane.f32.xlu0 %v8184
    %v8186 = vpop.xlane.xlu0 %8185
    %v8187 = vsel %vm498, %v8182, -inf
    %8188 = vmax.xlane.f32.xlu0 %v8187
    %v8189 = vpop.xlane.xlu0 %8188
    %v8190 = vsel %vm505, %v8183, -inf
    %8191 = vmax.xlane.f32.xlu0 %v8190
    %v8192 = vpop.xlane.xlu0 %8191
    %v8193 = vsub.f32 %v8181, %v8186
    %v8194 = vsub.f32 %v8182, %v8189
    %v8195 = vsub.f32 %v8183, %v8192
    %v8196 = vmul.f32 %v8193, 1.442695
    %v8197 = vpow.pop %v8196
    %v8198 = vmul.f32 %v8194, 1.442695
    %v8199 = vpow.pop %v8198
    %v8200 = vmul.f32 %v8195, 1.442695
    %v8201 = vpow.pop %v8200
    %v8202 = vsel %vm498, %v8197, 0.0
    %8203 = vadd.xlane.f32.xlu0 %v8202
    %v8204 = vpop.xlane.xlu0 %8203
    %v8205 = vsel %vm498, %v8199, 0.0
    %8206 = vadd.xlane.f32.xlu0 %v8205
    %v8207 = vpop.xlane.xlu0 %8206
    %v8208 = vsel %vm505, %v8201, 0.0
    %8209 = vadd.xlane.f32.xlu0 %v8208
    %v8210 = vpop.xlane.xlu0 %8209
    %v8211 = vrcp.pop %v8204
    %v8212 = vmul.f32 %v8197, %v8211
    %v8213 = vrcp.pop %v8207
    %v8214 = vmul.f32 %v8199, %v8213
    %v8215 = vrcp.pop %v8210
    %v8216 = vmul.f32 %v8201, %v8215
    %8217 = vrot.lane.b32.xlu0 %v7124, 48
    %v8218 = vpop.permute.xlu0 %8217
    %8219 = vrot.lane.b32.xlu0 %v7126, 48
    %v8220 = vpop.permute.xlu0 %8219
    %8221 = vrot.lane.b32.xlu0 %v7125, 48
    %v8222 = vpop.permute.xlu0 %8221
    %v8226 = vsel %vm498, %v8212, 0
    %v8229 = vsel %vm498, %v8214, 0
    %v8232 = vsel %vm498, %v8216, 0
    %v8234 = vsel %vm68, %v8222, 0
    %8236 = vmatprep.subr.mxu0 0.0
    %8237 = vmatpush1.msra.mxu0 0.0
    %8238 = vmatprep.subr.mxu0 0.0
    %8239 = vmatpush1.msra.mxu0 0.0
    %8240 = vmatprep.subr.mxu0 0.0
    %8241 = vmatpush1.msra.mxu0 0.0
    %8242 = vmatprep.subr.mxu0 0.0
    %8243 = vmatpush1.msra.mxu0 0.0
    %8244 = vmatprep.subr.mxu0 0.0
    %8245 = vmatpush1.msra.mxu0 0.0
    %8246 = vmatprep.subr.mxu0 0.0
    %8247 = vmatpush1.msra.mxu0 0.0
    %8248 = vmatprep.subr.mxu0 0.0
    %8249 = vmatpush1.msra.mxu0 0.0
    %8250 = vmatprep.subr.mxu0 0.0
    %8251 = vmatpush1.msra.mxu0 0.0
    %8252 = vmatprep.subr.mxu0 0.0
    %8253 = vmatpush1.msra.mxu0 0.0
    %8254 = vmatprep.subr.mxu0 0.0
    %8255 = vmatpush1.msra.mxu0 0.0
    %8256 = vmatprep.subr.mxu0 0.0
    %8257 = vmatpush1.msra.mxu0 0.0
    %8258 = vmatprep.subr.mxu0 0.0
    %8259 = vmatpush1.msra.mxu0 0.0
    %8260 = vmatprep.subr.mxu0 0.0
    %8261 = vmatpush1.msra.mxu0 0.0
    %8262 = vmatprep.subr.mxu0 0.0
    %8263 = vmatpush1.msra.mxu0 %v8234
    %8264 = vmatprep.subr.mxu0 0.0
    %8265 = vmatpush1.msra.mxu0 %v8220
    %8266 = vmatprep.subr.mxu0 0.0
    %8267 = vmatpush1.msra.mxu0 %v8218
    %8268 = vmatprep.subr.mxu0 0.0
    %8269 = vmatpush2.msra.mxu0 0.0
    %8270 = vmatprep.subr.mxu0 0.0
    %8271 = vmatpush2.msra.mxu0 0.0
    %8272 = vmatprep.subr.mxu0 0.0
    %8273 = vmatpush2.msra.mxu0 0.0
    %8274 = vmatprep.subr.mxu0 0.0
    %8275 = vmatpush2.msra.mxu0 0.0
    %8276 = vmatprep.subr.mxu0 0.0
    %8277 = vmatpush2.msra.mxu0 0.0
    %8278 = vmatprep.subr.mxu0 0.0
    %8279 = vmatpush2.msra.mxu0 0.0
    %8280 = vmatprep.subr.mxu0 0.0
    %8281 = vmatpush2.msra.mxu0 0.0
    %8282 = vmatprep.subr.mxu0 0.0
    %8283 = vmatpush2.msra.mxu0 0.0
    %8284 = vmatprep.subr.mxu0 0.0
    %8285 = vmatpush2.msra.mxu0 0.0
    %8286 = vmatprep.subr.mxu0 0.0
    %8287 = vmatpush2.msra.mxu0 0.0
    %8288 = vmatprep.subr.mxu0 0.0
    %8289 = vmatpush2.msra.mxu0 0.0
    %8290 = vmatprep.subr.mxu0 0.0
    %8291 = vmatpush2.msra.mxu0 0.0
    %8292 = vmatprep.subr.mxu0 0.0
    %8293 = vmatpush2.msra.mxu0 0.0
    %8294 = vmatprep.subr.mxu0 0.0
    %8295 = vmatpush2.msra.mxu0 0.0
    %8296 = vmatprep.subr.mxu0 0.0
    %8297 = vmatpush2.msra.mxu0 0.0
    %8298 = vmatprep.subr.mxu0 0.0
    %8299 = vmatpush2.msra.mxu0 0.0
    %8300 = vmatprep.mubr.f32.mxu0 0.0
    %8301 = vmatmul.mubr.f32.gmra.mxu0 %v8226
    %v8302 = vpop.f32.mrf.mxu0
    %v8303 = vadd.f32 0.0, %v8302
    %v8304 = vpop.f32.mrf.mxu0
    %8305 = vmatprep.mubr.f32.mxu0 0.0
    %8306 = vmatmul.mubr.f32.gmra.mxu0 %v8229
    %v8307 = vpop.f32.mrf.mxu0
    %v8308 = vadd.f32 0.0, %v8307
    %v8309 = vpop.f32.mrf.mxu0
    %8310 = vmatprep.mubr.f32.mxu0 0.0
    %8311 = vmatmul.mubr.f32.gmra.mxu0 %v8232
    %v8312 = vpop.f32.mrf.mxu0
    %v8313 = vadd.f32 0.0, %v8312
    %v8314 = vpop.f32.mrf.mxu0
    %8315 = vdwg.mxu0
    %8316 = vrot.lane.b32.xlu0 %v7124, 108
    %v8317 = vpop.permute.xlu0 %8316
    %8318 = vrot.lane.b32.xlu0 %v7126, 108
    %v8319 = vpop.permute.xlu0 %8318
    %8320 = vrot.lane.b32.xlu0 %v7125, 108
    %v8321 = vpop.permute.xlu0 %8320
    %8322 = vrot.lane.b32.xlu0 %v7124, 76
    %v8323 = vpop.permute.xlu0 %8322
    %8324 = vrot.lane.b32.xlu0 %v7126, 76
    %v8325 = vpop.permute.xlu0 %8324
    %8326 = vrot.lane.b32.xlu0 %v7125, 76
    %v8327 = vpop.permute.xlu0 %8326
    %v8328 = vsel %vm402, %v8317, 0
    %v8330 = vsel %vm402, %v8319, 0
    %v8332 = vsel %vm402, %v8321, 0
    %v8334 = vsel %vm402, %v8323, 0
    %v8336 = vsel %vm402, %v8325, 0
    %v8338 = vsel %vm402, %v8327, 0
    %8340 = vmatprep.subr.mxu0 0.0
    %8341 = vmatpush1.xpose.msra.mxu0 0.0
    %8342 = vmatprep.subr.mxu0 0.0
    %8343 = vmatpush1.xpose.msra.mxu0 0.0
    %8344 = vmatprep.subr.mxu0 0.0
    %8345 = vmatpush1.xpose.msra.mxu0 0.0
    %8346 = vmatprep.subr.mxu0 0.0
    %8347 = vmatpush1.xpose.msra.mxu0 0.0
    %8348 = vmatprep.subr.mxu0 0.0
    %8349 = vmatpush1.xpose.msra.mxu0 0.0
    %8350 = vmatprep.subr.mxu0 0.0
    %8351 = vmatpush1.xpose.msra.mxu0 0.0
    %8352 = vmatprep.subr.mxu0 0.0
    %8353 = vmatpush1.xpose.msra.mxu0 0.0
    %8354 = vmatprep.subr.mxu0 0.0
    %8355 = vmatpush1.xpose.msra.mxu0 0.0
    %8356 = vmatprep.subr.mxu0 0.0
    %8357 = vmatpush1.xpose.msra.mxu0 0.0
    %8358 = vmatprep.subr.mxu0 0.0
    %8359 = vmatpush1.xpose.msra.mxu0 0.0
    %8360 = vmatprep.subr.mxu0 0.0
    %8361 = vmatpush1.xpose.msra.mxu0 0.0
    %8362 = vmatprep.subr.mxu0 0.0
    %8363 = vmatpush1.xpose.msra.mxu0 0.0
    %8364 = vmatprep.subr.mxu0 0.0
    %8365 = vmatpush1.xpose.msra.mxu0 0.0
    %8366 = vmatprep.subr.mxu0 0.0
    %8367 = vmatpush1.xpose.msra.mxu0 %v8338
    %8368 = vmatprep.subr.mxu0 0.0
    %8369 = vmatpush1.xpose.msra.mxu0 %v8336
    %8370 = vmatprep.subr.mxu0 0.0
    %8371 = vmatpush1.xpose.msra.mxu0 %v8334
    %8372 = vmatprep.subr.mxu0 0.0
    %8373 = vmatpush2.xpose.msra.mxu0 0.0
    %8374 = vmatprep.subr.mxu0 0.0
    %8375 = vmatpush2.xpose.msra.mxu0 0.0
    %8376 = vmatprep.subr.mxu0 0.0
    %8377 = vmatpush2.xpose.msra.mxu0 0.0
    %8378 = vmatprep.subr.mxu0 0.0
    %8379 = vmatpush2.xpose.msra.mxu0 0.0
    %8380 = vmatprep.subr.mxu0 0.0
    %8381 = vmatpush2.xpose.msra.mxu0 0.0
    %8382 = vmatprep.subr.mxu0 0.0
    %8383 = vmatpush2.xpose.msra.mxu0 0.0
    %8384 = vmatprep.subr.mxu0 0.0
    %8385 = vmatpush2.xpose.msra.mxu0 0.0
    %8386 = vmatprep.subr.mxu0 0.0
    %8387 = vmatpush2.xpose.msra.mxu0 0.0
    %8388 = vmatprep.subr.mxu0 0.0
    %8389 = vmatpush2.xpose.msra.mxu0 0.0
    %8390 = vmatprep.subr.mxu0 0.0
    %8391 = vmatpush2.xpose.msra.mxu0 0.0
    %8392 = vmatprep.subr.mxu0 0.0
    %8393 = vmatpush2.xpose.msra.mxu0 0.0
    %8394 = vmatprep.subr.mxu0 0.0
    %8395 = vmatpush2.xpose.msra.mxu0 0.0
    %8396 = vmatprep.subr.mxu0 0.0
    %8397 = vmatpush2.xpose.msra.mxu0 0.0
    %8398 = vmatprep.subr.mxu0 0.0
    %8399 = vmatpush2.xpose.msra.mxu0 0.0
    %8400 = vmatprep.subr.mxu0 0.0
    %8401 = vmatpush2.xpose.msra.mxu0 0.0
    %8402 = vmatprep.subr.mxu0 0.0
    %8403 = vmatpush2.xpose.msra.mxu0 0.0
    %8404 = vmatprep.mubr.f32.mxu0 0.0
    %8405 = vmatmul.mubr.f32.gmra.mxu0 %v8328
    %v8406 = vpop.f32.mrf.mxu0
    %v8407 = vadd.f32 0.0, %v8406
    %v8408 = vpop.f32.mrf.mxu0
    %8409 = vmatprep.mubr.f32.mxu0 0.0
    %8410 = vmatmul.mubr.f32.gmra.mxu0 %v8330
    %v8411 = vpop.f32.mrf.mxu0
    %v8412 = vadd.f32 0.0, %v8411
    %v8413 = vpop.f32.mrf.mxu0
    %8414 = vmatprep.mubr.f32.mxu0 0.0
    %8415 = vmatmul.mubr.f32.gmra.mxu0 %v8332
    %v8416 = vpop.f32.mrf.mxu0
    %v8417 = vadd.f32 0.0, %v8416
    %v8418 = vpop.f32.mrf.mxu0
    %8419 = vdwg.mxu0
    %v8420 = vmul.f32 %v8407, 0.5
    %v8421 = vmul.f32 %v8412, 0.5
    %v8422 = vmul.f32 %v8417, 0.5
    %v8423 = vsel %vm498, %v8420, -inf
    %8424 = vmax.xlane.f32.xlu0 %v8423
    %v8425 = vpop.xlane.xlu0 %8424
    %v8426 = vsel %vm498, %v8421, -inf
    %8427 = vmax.xlane.f32.xlu0 %v8426
    %v8428 = vpop.xlane.xlu0 %8427
    %v8429 = vsel %vm505, %v8422, -inf
    %8430 = vmax.xlane.f32.xlu0 %v8429
    %v8431 = vpop.xlane.xlu0 %8430
    %v8432 = vsub.f32 %v8420, %v8425
    %v8433 = vsub.f32 %v8421, %v8428
    %v8434 = vsub.f32 %v8422, %v8431
    %v8435 = vmul.f32 %v8432, 1.442695
    %v8436 = vpow.pop %v8435
    %v8437 = vmul.f32 %v8433, 1.442695
    %v8438 = vpow.pop %v8437
    %v8439 = vmul.f32 %v8434, 1.442695
    %v8440 = vpow.pop %v8439
    %v8441 = vsel %vm498, %v8436, 0.0
    %8442 = vadd.xlane.f32.xlu0 %v8441
    %v8443 = vpop.xlane.xlu0 %8442
    %v8444 = vsel %vm498, %v8438, 0.0
    %8445 = vadd.xlane.f32.xlu0 %v8444
    %v8446 = vpop.xlane.xlu0 %8445
    %v8447 = vsel %vm505, %v8440, 0.0
    %8448 = vadd.xlane.f32.xlu0 %v8447
    %v8449 = vpop.xlane.xlu0 %8448
    %v8450 = vrcp.pop %v8443
    %v8451 = vmul.f32 %v8436, %v8450
    %v8452 = vrcp.pop %v8446
    %v8453 = vmul.f32 %v8438, %v8452
    %v8454 = vrcp.pop %v8449
    %v8455 = vmul.f32 %v8440, %v8454
    %8456 = vrot.lane.b32.xlu0 %v7124, 44
    %v8457 = vpop.permute.xlu0 %8456
    %8458 = vrot.lane.b32.xlu0 %v7126, 44
    %v8459 = vpop.permute.xlu0 %8458
    %8460 = vrot.lane.b32.xlu0 %v7125, 44
    %v8461 = vpop.permute.xlu0 %8460
    %v8465 = vsel %vm498, %v8451, 0
    %v8468 = vsel %vm498, %v8453, 0
    %v8471 = vsel %vm498, %v8455, 0
    %v8473 = vsel %vm68, %v8461, 0
    %8475 = vmatprep.subr.mxu0 0.0
    %8476 = vmatpush1.msra.mxu0 0.0
    %8477 = vmatprep.subr.mxu0 0.0
    %8478 = vmatpush1.msra.mxu0 0.0
    %8479 = vmatprep.subr.mxu0 0.0
    %8480 = vmatpush1.msra.mxu0 0.0
    %8481 = vmatprep.subr.mxu0 0.0
    %8482 = vmatpush1.msra.mxu0 0.0
    %8483 = vmatprep.subr.mxu0 0.0
    %8484 = vmatpush1.msra.mxu0 0.0
    %8485 = vmatprep.subr.mxu0 0.0
    %8486 = vmatpush1.msra.mxu0 0.0
    %8487 = vmatprep.subr.mxu0 0.0
    %8488 = vmatpush1.msra.mxu0 0.0
    %8489 = vmatprep.subr.mxu0 0.0
    %8490 = vmatpush1.msra.mxu0 0.0
    %8491 = vmatprep.subr.mxu0 0.0
    %8492 = vmatpush1.msra.mxu0 0.0
    %8493 = vmatprep.subr.mxu0 0.0
    %8494 = vmatpush1.msra.mxu0 0.0
    %8495 = vmatprep.subr.mxu0 0.0
    %8496 = vmatpush1.msra.mxu0 0.0
    %8497 = vmatprep.subr.mxu0 0.0
    %8498 = vmatpush1.msra.mxu0 0.0
    %8499 = vmatprep.subr.mxu0 0.0
    %8500 = vmatpush1.msra.mxu0 0.0
    %8501 = vmatprep.subr.mxu0 0.0
    %8502 = vmatpush1.msra.mxu0 %v8473
    %8503 = vmatprep.subr.mxu0 0.0
    %8504 = vmatpush1.msra.mxu0 %v8459
    %8505 = vmatprep.subr.mxu0 0.0
    %8506 = vmatpush1.msra.mxu0 %v8457
    %8507 = vmatprep.subr.mxu0 0.0
    %8508 = vmatpush2.msra.mxu0 0.0
    %8509 = vmatprep.subr.mxu0 0.0
    %8510 = vmatpush2.msra.mxu0 0.0
    %8511 = vmatprep.subr.mxu0 0.0
    %8512 = vmatpush2.msra.mxu0 0.0
    %8513 = vmatprep.subr.mxu0 0.0
    %8514 = vmatpush2.msra.mxu0 0.0
    %8515 = vmatprep.subr.mxu0 0.0
    %8516 = vmatpush2.msra.mxu0 0.0
    %8517 = vmatprep.subr.mxu0 0.0
    %8518 = vmatpush2.msra.mxu0 0.0
    %8519 = vmatprep.subr.mxu0 0.0
    %8520 = vmatpush2.msra.mxu0 0.0
    %8521 = vmatprep.subr.mxu0 0.0
    %8522 = vmatpush2.msra.mxu0 0.0
    %8523 = vmatprep.subr.mxu0 0.0
    %8524 = vmatpush2.msra.mxu0 0.0
    %8525 = vmatprep.subr.mxu0 0.0
    %8526 = vmatpush2.msra.mxu0 0.0
    %8527 = vmatprep.subr.mxu0 0.0
    %8528 = vmatpush2.msra.mxu0 0.0
    %8529 = vmatprep.subr.mxu0 0.0
    %8530 = vmatpush2.msra.mxu0 0.0
    %8531 = vmatprep.subr.mxu0 0.0
    %8532 = vmatpush2.msra.mxu0 0.0
    %8533 = vmatprep.subr.mxu0 0.0
    %8534 = vmatpush2.msra.mxu0 0.0
    %8535 = vmatprep.subr.mxu0 0.0
    %8536 = vmatpush2.msra.mxu0 0.0
    %8537 = vmatprep.subr.mxu0 0.0
    %8538 = vmatpush2.msra.mxu0 0.0
    %8539 = vmatprep.mubr.f32.mxu0 0.0
    %8540 = vmatmul.mubr.f32.gmra.mxu0 %v8465
    %v8541 = vpop.f32.mrf.mxu0
    %v8542 = vadd.f32 0.0, %v8541
    %v8543 = vpop.f32.mrf.mxu0
    %8544 = vmatprep.mubr.f32.mxu0 0.0
    %8545 = vmatmul.mubr.f32.gmra.mxu0 %v8468
    %v8546 = vpop.f32.mrf.mxu0
    %v8547 = vadd.f32 0.0, %v8546
    %v8548 = vpop.f32.mrf.mxu0
    %8549 = vmatprep.mubr.f32.mxu0 0.0
    %8550 = vmatmul.mubr.f32.gmra.mxu0 %v8471
    %v8551 = vpop.f32.mrf.mxu0
    %v8552 = vadd.f32 0.0, %v8551
    %v8553 = vpop.f32.mrf.mxu0
    %8554 = vdwg.mxu0
    %8555 = vrot.lane.b32.xlu0 %v7124, 104
    %v8556 = vpop.permute.xlu0 %8555
    %8557 = vrot.lane.b32.xlu0 %v7126, 104
    %v8558 = vpop.permute.xlu0 %8557
    %8559 = vrot.lane.b32.xlu0 %v7125, 104
    %v8560 = vpop.permute.xlu0 %8559
    %8561 = vrot.lane.b32.xlu0 %v7124, 72
    %v8562 = vpop.permute.xlu0 %8561
    %8563 = vrot.lane.b32.xlu0 %v7126, 72
    %v8564 = vpop.permute.xlu0 %8563
    %8565 = vrot.lane.b32.xlu0 %v7125, 72
    %v8566 = vpop.permute.xlu0 %8565
    %v8567 = vsel %vm402, %v8556, 0
    %v8569 = vsel %vm402, %v8558, 0
    %v8571 = vsel %vm402, %v8560, 0
    %v8573 = vsel %vm402, %v8562, 0
    %v8575 = vsel %vm402, %v8564, 0
    %v8577 = vsel %vm402, %v8566, 0
    %8579 = vmatprep.subr.mxu0 0.0
    %8580 = vmatpush1.xpose.msra.mxu0 0.0
    %8581 = vmatprep.subr.mxu0 0.0
    %8582 = vmatpush1.xpose.msra.mxu0 0.0
    %8583 = vmatprep.subr.mxu0 0.0
    %8584 = vmatpush1.xpose.msra.mxu0 0.0
    %8585 = vmatprep.subr.mxu0 0.0
    %8586 = vmatpush1.xpose.msra.mxu0 0.0
    %8587 = vmatprep.subr.mxu0 0.0
    %8588 = vmatpush1.xpose.msra.mxu0 0.0
    %8589 = vmatprep.subr.mxu0 0.0
    %8590 = vmatpush1.xpose.msra.mxu0 0.0
    %8591 = vmatprep.subr.mxu0 0.0
    %8592 = vmatpush1.xpose.msra.mxu0 0.0
    %8593 = vmatprep.subr.mxu0 0.0
    %8594 = vmatpush1.xpose.msra.mxu0 0.0
    %8595 = vmatprep.subr.mxu0 0.0
    %8596 = vmatpush1.xpose.msra.mxu0 0.0
    %8597 = vmatprep.subr.mxu0 0.0
    %8598 = vmatpush1.xpose.msra.mxu0 0.0
    %8599 = vmatprep.subr.mxu0 0.0
    %8600 = vmatpush1.xpose.msra.mxu0 0.0
    %8601 = vmatprep.subr.mxu0 0.0
    %8602 = vmatpush1.xpose.msra.mxu0 0.0
    %8603 = vmatprep.subr.mxu0 0.0
    %8604 = vmatpush1.xpose.msra.mxu0 0.0
    %8605 = vmatprep.subr.mxu0 0.0
    %8606 = vmatpush1.xpose.msra.mxu0 %v8577
    %8607 = vmatprep.subr.mxu0 0.0
    %8608 = vmatpush1.xpose.msra.mxu0 %v8575
    %8609 = vmatprep.subr.mxu0 0.0
    %8610 = vmatpush1.xpose.msra.mxu0 %v8573
    %8611 = vmatprep.subr.mxu0 0.0
    %8612 = vmatpush2.xpose.msra.mxu0 0.0
    %8613 = vmatprep.subr.mxu0 0.0
    %8614 = vmatpush2.xpose.msra.mxu0 0.0
    %8615 = vmatprep.subr.mxu0 0.0
    %8616 = vmatpush2.xpose.msra.mxu0 0.0
    %8617 = vmatprep.subr.mxu0 0.0
    %8618 = vmatpush2.xpose.msra.mxu0 0.0
    %8619 = vmatprep.subr.mxu0 0.0
    %8620 = vmatpush2.xpose.msra.mxu0 0.0
    %8621 = vmatprep.subr.mxu0 0.0
    %8622 = vmatpush2.xpose.msra.mxu0 0.0
    %8623 = vmatprep.subr.mxu0 0.0
    %8624 = vmatpush2.xpose.msra.mxu0 0.0
    %8625 = vmatprep.subr.mxu0 0.0
    %8626 = vmatpush2.xpose.msra.mxu0 0.0
    %8627 = vmatprep.subr.mxu0 0.0
    %8628 = vmatpush2.xpose.msra.mxu0 0.0
    %8629 = vmatprep.subr.mxu0 0.0
    %8630 = vmatpush2.xpose.msra.mxu0 0.0
    %8631 = vmatprep.subr.mxu0 0.0
    %8632 = vmatpush2.xpose.msra.mxu0 0.0
    %8633 = vmatprep.subr.mxu0 0.0
    %8634 = vmatpush2.xpose.msra.mxu0 0.0
    %8635 = vmatprep.subr.mxu0 0.0
    %8636 = vmatpush2.xpose.msra.mxu0 0.0
    %8637 = vmatprep.subr.mxu0 0.0
    %8638 = vmatpush2.xpose.msra.mxu0 0.0
    %8639 = vmatprep.subr.mxu0 0.0
    %8640 = vmatpush2.xpose.msra.mxu0 0.0
    %8641 = vmatprep.subr.mxu0 0.0
    %8642 = vmatpush2.xpose.msra.mxu0 0.0
    %8643 = vmatprep.mubr.f32.mxu0 0.0
    %8644 = vmatmul.mubr.f32.gmra.mxu0 %v8567
    %v8645 = vpop.f32.mrf.mxu0
    %v8646 = vadd.f32 0.0, %v8645
    %v8647 = vpop.f32.mrf.mxu0
    %8648 = vmatprep.mubr.f32.mxu0 0.0
    %8649 = vmatmul.mubr.f32.gmra.mxu0 %v8569
    %v8650 = vpop.f32.mrf.mxu0
    %v8651 = vadd.f32 0.0, %v8650
    %v8652 = vpop.f32.mrf.mxu0
    %8653 = vmatprep.mubr.f32.mxu0 0.0
    %8654 = vmatmul.mubr.f32.gmra.mxu0 %v8571
    %v8655 = vpop.f32.mrf.mxu0
    %v8656 = vadd.f32 0.0, %v8655
    %v8657 = vpop.f32.mrf.mxu0
    %8658 = vdwg.mxu0
    %v8659 = vmul.f32 %v8646, 0.5
    %v8660 = vmul.f32 %v8651, 0.5
    %v8661 = vmul.f32 %v8656, 0.5
    %v8662 = vsel %vm498, %v8659, -inf
    %8663 = vmax.xlane.f32.xlu0 %v8662
    %v8664 = vpop.xlane.xlu0 %8663
    %v8665 = vsel %vm498, %v8660, -inf
    %8666 = vmax.xlane.f32.xlu0 %v8665
    %v8667 = vpop.xlane.xlu0 %8666
    %v8668 = vsel %vm505, %v8661, -inf
    %8669 = vmax.xlane.f32.xlu0 %v8668
    %v8670 = vpop.xlane.xlu0 %8669
    %v8671 = vsub.f32 %v8659, %v8664
    %v8672 = vsub.f32 %v8660, %v8667
    %v8673 = vsub.f32 %v8661, %v8670
    %v8674 = vmul.f32 %v8671, 1.442695
    %v8675 = vpow.pop %v8674
    %v8676 = vmul.f32 %v8672, 1.442695
    %v8677 = vpow.pop %v8676
    %v8678 = vmul.f32 %v8673, 1.442695
    %v8679 = vpow.pop %v8678
    %v8680 = vsel %vm498, %v8675, 0.0
    %8681 = vadd.xlane.f32.xlu0 %v8680
    %v8682 = vpop.xlane.xlu0 %8681
    %v8683 = vsel %vm498, %v8677, 0.0
    %8684 = vadd.xlane.f32.xlu0 %v8683
    %v8685 = vpop.xlane.xlu0 %8684
    %v8686 = vsel %vm505, %v8679, 0.0
    %8687 = vadd.xlane.f32.xlu0 %v8686
    %v8688 = vpop.xlane.xlu0 %8687
    %v8689 = vrcp.pop %v8682
    %v8690 = vmul.f32 %v8675, %v8689
    %v8691 = vrcp.pop %v8685
    %v8692 = vmul.f32 %v8677, %v8691
    %v8693 = vrcp.pop %v8688
    %v8694 = vmul.f32 %v8679, %v8693
    %8695 = vrot.lane.b32.xlu0 %v7124, 40
    %v8696 = vpop.permute.xlu0 %8695
    %8697 = vrot.lane.b32.xlu0 %v7126, 40
    %v8698 = vpop.permute.xlu0 %8697
    %8699 = vrot.lane.b32.xlu0 %v7125, 40
    %v8700 = vpop.permute.xlu0 %8699
    %v8704 = vsel %vm498, %v8690, 0
    %v8707 = vsel %vm498, %v8692, 0
    %v8710 = vsel %vm498, %v8694, 0
    %v8712 = vsel %vm68, %v8700, 0
    %8714 = vmatprep.subr.mxu0 0.0
    %8715 = vmatpush1.msra.mxu0 0.0
    %8716 = vmatprep.subr.mxu0 0.0
    %8717 = vmatpush1.msra.mxu0 0.0
    %8718 = vmatprep.subr.mxu0 0.0
    %8719 = vmatpush1.msra.mxu0 0.0
    %8720 = vmatprep.subr.mxu0 0.0
    %8721 = vmatpush1.msra.mxu0 0.0
    %8722 = vmatprep.subr.mxu0 0.0
    %8723 = vmatpush1.msra.mxu0 0.0
    %8724 = vmatprep.subr.mxu0 0.0
    %8725 = vmatpush1.msra.mxu0 0.0
    %8726 = vmatprep.subr.mxu0 0.0
    %8727 = vmatpush1.msra.mxu0 0.0
    %8728 = vmatprep.subr.mxu0 0.0
    %8729 = vmatpush1.msra.mxu0 0.0
    %8730 = vmatprep.subr.mxu0 0.0
    %8731 = vmatpush1.msra.mxu0 0.0
    %8732 = vmatprep.subr.mxu0 0.0
    %8733 = vmatpush1.msra.mxu0 0.0
    %8734 = vmatprep.subr.mxu0 0.0
    %8735 = vmatpush1.msra.mxu0 0.0
    %8736 = vmatprep.subr.mxu0 0.0
    %8737 = vmatpush1.msra.mxu0 0.0
    %8738 = vmatprep.subr.mxu0 0.0
    %8739 = vmatpush1.msra.mxu0 0.0
    %8740 = vmatprep.subr.mxu0 0.0
    %8741 = vmatpush1.msra.mxu0 %v8712
    %8742 = vmatprep.subr.mxu0 0.0
    %8743 = vmatpush1.msra.mxu0 %v8698
    %8744 = vmatprep.subr.mxu0 0.0
    %8745 = vmatpush1.msra.mxu0 %v8696
    %8746 = vmatprep.subr.mxu0 0.0
    %8747 = vmatpush2.msra.mxu0 0.0
    %8748 = vmatprep.subr.mxu0 0.0
    %8749 = vmatpush2.msra.mxu0 0.0
    %8750 = vmatprep.subr.mxu0 0.0
    %8751 = vmatpush2.msra.mxu0 0.0
    %8752 = vmatprep.subr.mxu0 0.0
    %8753 = vmatpush2.msra.mxu0 0.0
    %8754 = vmatprep.subr.mxu0 0.0
    %8755 = vmatpush2.msra.mxu0 0.0
    %8756 = vmatprep.subr.mxu0 0.0
    %8757 = vmatpush2.msra.mxu0 0.0
    %8758 = vmatprep.subr.mxu0 0.0
    %8759 = vmatpush2.msra.mxu0 0.0
    %8760 = vmatprep.subr.mxu0 0.0
    %8761 = vmatpush2.msra.mxu0 0.0
    %8762 = vmatprep.subr.mxu0 0.0
    %8763 = vmatpush2.msra.mxu0 0.0
    %8764 = vmatprep.subr.mxu0 0.0
    %8765 = vmatpush2.msra.mxu0 0.0
    %8766 = vmatprep.subr.mxu0 0.0
    %8767 = vmatpush2.msra.mxu0 0.0
    %8768 = vmatprep.subr.mxu0 0.0
    %8769 = vmatpush2.msra.mxu0 0.0
    %8770 = vmatprep.subr.mxu0 0.0
    %8771 = vmatpush2.msra.mxu0 0.0
    %8772 = vmatprep.subr.mxu0 0.0
    %8773 = vmatpush2.msra.mxu0 0.0
    %8774 = vmatprep.subr.mxu0 0.0
    %8775 = vmatpush2.msra.mxu0 0.0
    %8776 = vmatprep.subr.mxu0 0.0
    %8777 = vmatpush2.msra.mxu0 0.0
    %8778 = vmatprep.mubr.f32.mxu0 0.0
    %8779 = vmatmul.mubr.f32.gmra.mxu0 %v8704
    %v8780 = vpop.f32.mrf.mxu0
    %v8781 = vadd.f32 0.0, %v8780
    %v8782 = vpop.f32.mrf.mxu0
    %8783 = vmatprep.mubr.f32.mxu0 0.0
    %8784 = vmatmul.mubr.f32.gmra.mxu0 %v8707
    %v8785 = vpop.f32.mrf.mxu0
    %v8786 = vadd.f32 0.0, %v8785
    %v8787 = vpop.f32.mrf.mxu0
    %8788 = vmatprep.mubr.f32.mxu0 0.0
    %8789 = vmatmul.mubr.f32.gmra.mxu0 %v8710
    %v8790 = vpop.f32.mrf.mxu0
    %v8791 = vadd.f32 0.0, %v8790
    %v8792 = vpop.f32.mrf.mxu0
    %8793 = vdwg.mxu0
    %8794 = vrot.lane.b32.xlu0 %v7124, 100
    %v8795 = vpop.permute.xlu0 %8794
    %8796 = vrot.lane.b32.xlu0 %v7126, 100
    %v8797 = vpop.permute.xlu0 %8796
    %8798 = vrot.lane.b32.xlu0 %v7125, 100
    %v8799 = vpop.permute.xlu0 %8798
    %8800 = vrot.lane.b32.xlu0 %v7124, 68
    %v8801 = vpop.permute.xlu0 %8800
    %8802 = vrot.lane.b32.xlu0 %v7126, 68
    %v8803 = vpop.permute.xlu0 %8802
    %8804 = vrot.lane.b32.xlu0 %v7125, 68
    %v8805 = vpop.permute.xlu0 %8804
    %v8806 = vsel %vm402, %v8795, 0
    %v8808 = vsel %vm402, %v8797, 0
    %v8810 = vsel %vm402, %v8799, 0
    %v8812 = vsel %vm402, %v8801, 0
    %v8814 = vsel %vm402, %v8803, 0
    %v8816 = vsel %vm402, %v8805, 0
    %8818 = vmatprep.subr.mxu0 0.0
    %8819 = vmatpush1.xpose.msra.mxu0 0.0
    %8820 = vmatprep.subr.mxu0 0.0
    %8821 = vmatpush1.xpose.msra.mxu0 0.0
    %8822 = vmatprep.subr.mxu0 0.0
    %8823 = vmatpush1.xpose.msra.mxu0 0.0
    %8824 = vmatprep.subr.mxu0 0.0
    %8825 = vmatpush1.xpose.msra.mxu0 0.0
    %8826 = vmatprep.subr.mxu0 0.0
    %8827 = vmatpush1.xpose.msra.mxu0 0.0
    %8828 = vmatprep.subr.mxu0 0.0
    %8829 = vmatpush1.xpose.msra.mxu0 0.0
    %8830 = vmatprep.subr.mxu0 0.0
    %8831 = vmatpush1.xpose.msra.mxu0 0.0
    %8832 = vmatprep.subr.mxu0 0.0
    %8833 = vmatpush1.xpose.msra.mxu0 0.0
    %8834 = vmatprep.subr.mxu0 0.0
    %8835 = vmatpush1.xpose.msra.mxu0 0.0
    %8836 = vmatprep.subr.mxu0 0.0
    %8837 = vmatpush1.xpose.msra.mxu0 0.0
    %8838 = vmatprep.subr.mxu0 0.0
    %8839 = vmatpush1.xpose.msra.mxu0 0.0
    %8840 = vmatprep.subr.mxu0 0.0
    %8841 = vmatpush1.xpose.msra.mxu0 0.0
    %8842 = vmatprep.subr.mxu0 0.0
    %8843 = vmatpush1.xpose.msra.mxu0 0.0
    %8844 = vmatprep.subr.mxu0 0.0
    %8845 = vmatpush1.xpose.msra.mxu0 %v8816
    %8846 = vmatprep.subr.mxu0 0.0
    %8847 = vmatpush1.xpose.msra.mxu0 %v8814
    %8848 = vmatprep.subr.mxu0 0.0
    %8849 = vmatpush1.xpose.msra.mxu0 %v8812
    %8850 = vmatprep.subr.mxu0 0.0
    %8851 = vmatpush2.xpose.msra.mxu0 0.0
    %8852 = vmatprep.subr.mxu0 0.0
    %8853 = vmatpush2.xpose.msra.mxu0 0.0
    %8854 = vmatprep.subr.mxu0 0.0
    %8855 = vmatpush2.xpose.msra.mxu0 0.0
    %8856 = vmatprep.subr.mxu0 0.0
    %8857 = vmatpush2.xpose.msra.mxu0 0.0
    %8858 = vmatprep.subr.mxu0 0.0
    %8859 = vmatpush2.xpose.msra.mxu0 0.0
    %8860 = vmatprep.subr.mxu0 0.0
    %8861 = vmatpush2.xpose.msra.mxu0 0.0
    %8862 = vmatprep.subr.mxu0 0.0
    %8863 = vmatpush2.xpose.msra.mxu0 0.0
    %8864 = vmatprep.subr.mxu0 0.0
    %8865 = vmatpush2.xpose.msra.mxu0 0.0
    %8866 = vmatprep.subr.mxu0 0.0
    %8867 = vmatpush2.xpose.msra.mxu0 0.0
    %8868 = vmatprep.subr.mxu0 0.0
    %8869 = vmatpush2.xpose.msra.mxu0 0.0
    %8870 = vmatprep.subr.mxu0 0.0
    %8871 = vmatpush2.xpose.msra.mxu0 0.0
    %8872 = vmatprep.subr.mxu0 0.0
    %8873 = vmatpush2.xpose.msra.mxu0 0.0
    %8874 = vmatprep.subr.mxu0 0.0
    %8875 = vmatpush2.xpose.msra.mxu0 0.0
    %8876 = vmatprep.subr.mxu0 0.0
    %8877 = vmatpush2.xpose.msra.mxu0 0.0
    %8878 = vmatprep.subr.mxu0 0.0
    %8879 = vmatpush2.xpose.msra.mxu0 0.0
    %8880 = vmatprep.subr.mxu0 0.0
    %8881 = vmatpush2.xpose.msra.mxu0 0.0
    %8882 = vmatprep.mubr.f32.mxu0 0.0
    %8883 = vmatmul.mubr.f32.gmra.mxu0 %v8806
    %v8884 = vpop.f32.mrf.mxu0
    %v8885 = vadd.f32 0.0, %v8884
    %v8886 = vpop.f32.mrf.mxu0
    %8887 = vmatprep.mubr.f32.mxu0 0.0
    %8888 = vmatmul.mubr.f32.gmra.mxu0 %v8808
    %v8889 = vpop.f32.mrf.mxu0
    %v8890 = vadd.f32 0.0, %v8889
    %v8891 = vpop.f32.mrf.mxu0
    %8892 = vmatprep.mubr.f32.mxu0 0.0
    %8893 = vmatmul.mubr.f32.gmra.mxu0 %v8810
    %v8894 = vpop.f32.mrf.mxu0
    %v8895 = vadd.f32 0.0, %v8894
    %v8896 = vpop.f32.mrf.mxu0
    %8897 = vdwg.mxu0
    %v8898 = vmul.f32 %v8885, 0.5
    %v8899 = vmul.f32 %v8890, 0.5
    %v8900 = vmul.f32 %v8895, 0.5
    %v8901 = vsel %vm498, %v8898, -inf
    %8902 = vmax.xlane.f32.xlu0 %v8901
    %v8903 = vpop.xlane.xlu0 %8902
    %v8904 = vsel %vm498, %v8899, -inf
    %8905 = vmax.xlane.f32.xlu0 %v8904
    %v8906 = vpop.xlane.xlu0 %8905
    %v8907 = vsel %vm505, %v8900, -inf
    %8908 = vmax.xlane.f32.xlu0 %v8907
    %v8909 = vpop.xlane.xlu0 %8908
    %v8910 = vsub.f32 %v8898, %v8903
    %v8911 = vsub.f32 %v8899, %v8906
    %v8912 = vsub.f32 %v8900, %v8909
    %v8913 = vmul.f32 %v8910, 1.442695
    %v8914 = vpow.pop %v8913
    %v8915 = vmul.f32 %v8911, 1.442695
    %v8916 = vpow.pop %v8915
    %v8917 = vmul.f32 %v8912, 1.442695
    %v8918 = vpow.pop %v8917
    %v8919 = vsel %vm498, %v8914, 0.0
    %8920 = vadd.xlane.f32.xlu0 %v8919
    %v8921 = vpop.xlane.xlu0 %8920
    %v8922 = vsel %vm498, %v8916, 0.0
    %8923 = vadd.xlane.f32.xlu0 %v8922
    %v8924 = vpop.xlane.xlu0 %8923
    %v8925 = vsel %vm505, %v8918, 0.0
    %8926 = vadd.xlane.f32.xlu0 %v8925
    %v8927 = vpop.xlane.xlu0 %8926
    %v8928 = vrcp.pop %v8921
    %v8929 = vmul.f32 %v8914, %v8928
    %v8930 = vrcp.pop %v8924
    %v8931 = vmul.f32 %v8916, %v8930
    %v8932 = vrcp.pop %v8927
    %v8933 = vmul.f32 %v8918, %v8932
    %8934 = vrot.lane.b32.xlu0 %v7124, 36
    %v8935 = vpop.permute.xlu0 %8934
    %8936 = vrot.lane.b32.xlu0 %v7126, 36
    %v8937 = vpop.permute.xlu0 %8936
    %8938 = vrot.lane.b32.xlu0 %v7125, 36
    %v8939 = vpop.permute.xlu0 %8938
    %v8943 = vsel %vm498, %v8929, 0
    %v8946 = vsel %vm498, %v8931, 0
    %v8949 = vsel %vm498, %v8933, 0
    %v8951 = vsel %vm68, %v8939, 0
    %8953 = vmatprep.subr.mxu0 0.0
    %8954 = vmatpush1.msra.mxu0 0.0
    %8955 = vmatprep.subr.mxu0 0.0
    %8956 = vmatpush1.msra.mxu0 0.0
    %8957 = vmatprep.subr.mxu0 0.0
    %8958 = vmatpush1.msra.mxu0 0.0
    %8959 = vmatprep.subr.mxu0 0.0
    %8960 = vmatpush1.msra.mxu0 0.0
    %8961 = vmatprep.subr.mxu0 0.0
    %8962 = vmatpush1.msra.mxu0 0.0
    %8963 = vmatprep.subr.mxu0 0.0
    %8964 = vmatpush1.msra.mxu0 0.0
    %8965 = vmatprep.subr.mxu0 0.0
    %8966 = vmatpush1.msra.mxu0 0.0
    %8967 = vmatprep.subr.mxu0 0.0
    %8968 = vmatpush1.msra.mxu0 0.0
    %8969 = vmatprep.subr.mxu0 0.0
    %8970 = vmatpush1.msra.mxu0 0.0
    %8971 = vmatprep.subr.mxu0 0.0
    %8972 = vmatpush1.msra.mxu0 0.0
    %8973 = vmatprep.subr.mxu0 0.0
    %8974 = vmatpush1.msra.mxu0 0.0
    %8975 = vmatprep.subr.mxu0 0.0
    %8976 = vmatpush1.msra.mxu0 0.0
    %8977 = vmatprep.subr.mxu0 0.0
    %8978 = vmatpush1.msra.mxu0 0.0
    %8979 = vmatprep.subr.mxu0 0.0
    %8980 = vmatpush1.msra.mxu0 %v8951
    %8981 = vmatprep.subr.mxu0 0.0
    %8982 = vmatpush1.msra.mxu0 %v8937
    %8983 = vmatprep.subr.mxu0 0.0
    %8984 = vmatpush1.msra.mxu0 %v8935
    %8985 = vmatprep.subr.mxu0 0.0
    %8986 = vmatpush2.msra.mxu0 0.0
    %8987 = vmatprep.subr.mxu0 0.0
    %8988 = vmatpush2.msra.mxu0 0.0
    %8989 = vmatprep.subr.mxu0 0.0
    %8990 = vmatpush2.msra.mxu0 0.0
    %8991 = vmatprep.subr.mxu0 0.0
    %8992 = vmatpush2.msra.mxu0 0.0
    %8993 = vmatprep.subr.mxu0 0.0
    %8994 = vmatpush2.msra.mxu0 0.0
    %8995 = vmatprep.subr.mxu0 0.0
    %8996 = vmatpush2.msra.mxu0 0.0
    %8997 = vmatprep.subr.mxu0 0.0
    %8998 = vmatpush2.msra.mxu0 0.0
    %8999 = vmatprep.subr.mxu0 0.0
    %9000 = vmatpush2.msra.mxu0 0.0
    %9001 = vmatprep.subr.mxu0 0.0
    %9002 = vmatpush2.msra.mxu0 0.0
    %9003 = vmatprep.subr.mxu0 0.0
    %9004 = vmatpush2.msra.mxu0 0.0
    %9005 = vmatprep.subr.mxu0 0.0
    %9006 = vmatpush2.msra.mxu0 0.0
    %9007 = vmatprep.subr.mxu0 0.0
    %9008 = vmatpush2.msra.mxu0 0.0
    %9009 = vmatprep.subr.mxu0 0.0
    %9010 = vmatpush2.msra.mxu0 0.0
    %9011 = vmatprep.subr.mxu0 0.0
    %9012 = vmatpush2.msra.mxu0 0.0
    %9013 = vmatprep.subr.mxu0 0.0
    %9014 = vmatpush2.msra.mxu0 0.0
    %9015 = vmatprep.subr.mxu0 0.0
    %9016 = vmatpush2.msra.mxu0 0.0
    %9017 = vmatprep.mubr.f32.mxu0 0.0
    %9018 = vmatmul.mubr.f32.gmra.mxu0 %v8943
    %v9019 = vpop.f32.mrf.mxu0
    %v9020 = vadd.f32 0.0, %v9019
    %v9021 = vpop.f32.mrf.mxu0
    %9022 = vmatprep.mubr.f32.mxu0 0.0
    %9023 = vmatmul.mubr.f32.gmra.mxu0 %v8946
    %v9024 = vpop.f32.mrf.mxu0
    %v9025 = vadd.f32 0.0, %v9024
    %v9026 = vpop.f32.mrf.mxu0
    %9027 = vmatprep.mubr.f32.mxu0 0.0
    %9028 = vmatmul.mubr.f32.gmra.mxu0 %v8949
    %v9029 = vpop.f32.mrf.mxu0
    %v9030 = vadd.f32 0.0, %v9029
    %v9031 = vpop.f32.mrf.mxu0
    %9032 = vdwg.mxu0
    %9036 = vrot.lane.b32.xlu0 %v7586, 4
    %v9037 = vpop.permute.xlu0 %9036
    %9038 = vrot.lane.b32.xlu0 %v7591, 4
    %v9039 = vpop.permute.xlu0 %9038
    %9040 = vrot.lane.b32.xlu0 %v7596, 4
    %v9041 = vpop.permute.xlu0 %9040
    %9048 = vrot.lane.b32.xlu0 %v7825, 8
    %v9049 = vpop.permute.xlu0 %9048
    %9050 = vrot.lane.b32.xlu0 %v7830, 8
    %v9051 = vpop.permute.xlu0 %9050
    %9052 = vrot.lane.b32.xlu0 %v7835, 8
    %v9053 = vpop.permute.xlu0 %9052
    %9060 = vrot.lane.b32.xlu0 %v8064, 12
    %v9061 = vpop.permute.xlu0 %9060
    %9062 = vrot.lane.b32.xlu0 %v8069, 12
    %v9063 = vpop.permute.xlu0 %9062
    %9064 = vrot.lane.b32.xlu0 %v8074, 12
    %v9065 = vpop.permute.xlu0 %9064
    %9072 = vrot.lane.b32.xlu0 %v8303, 16
    %v9073 = vpop.permute.xlu0 %9072
    %9074 = vrot.lane.b32.xlu0 %v8308, 16
    %v9075 = vpop.permute.xlu0 %9074
    %9076 = vrot.lane.b32.xlu0 %v8313, 16
    %v9077 = vpop.permute.xlu0 %9076
    %9084 = vrot.lane.b32.xlu0 %v8542, 20
    %v9085 = vpop.permute.xlu0 %9084
    %9086 = vrot.lane.b32.xlu0 %v8547, 20
    %v9087 = vpop.permute.xlu0 %9086
    %9088 = vrot.lane.b32.xlu0 %v8552, 20
    %v9089 = vpop.permute.xlu0 %9088
    %9096 = vrot.lane.b32.xlu0 %v8781, 24
    %v9097 = vpop.permute.xlu0 %9096
    %9098 = vrot.lane.b32.xlu0 %v8786, 24
    %v9099 = vpop.permute.xlu0 %9098
    %9100 = vrot.lane.b32.xlu0 %v8791, 24
    %v9101 = vpop.permute.xlu0 %9100
    %9108 = vrot.lane.b32.xlu0 %v9020, 28
    %v9109 = vpop.permute.xlu0 %9108
    %9110 = vrot.lane.b32.xlu0 %v9025, 28
    %v9111 = vpop.permute.xlu0 %9110
    %9112 = vrot.lane.b32.xlu0 %v9030, 28
    %v9113 = vpop.permute.xlu0 %9112
    %v9117 = vsel %vm402, %v7347, %v9037
    %v9118 = vsel %vm402, %v7352, %v9039
    %v9119 = vsel %vm402, %v7357, %v9041
    %v9120 = vsel %vm2392, %v9117, %v9049
    %v9121 = vsel %vm2392, %v9118, %v9051
    %v9122 = vsel %vm2392, %v9119, %v9053
    %v9123 = vsel %vm2396, %v9120, %v9061
    %v9124 = vsel %vm2396, %v9121, %v9063
    %v9125 = vsel %vm2396, %v9122, %v9065
    %v9126 = vsel %vm2400, %v9123, %v9073
    %v9127 = vsel %vm2400, %v9124, %v9075
    %v9128 = vsel %vm2400, %v9125, %v9077
    %v9129 = vsel %vm2404, %v9126, %v9085
    %v9130 = vsel %vm2404, %v9127, %v9087
    %v9131 = vsel %vm2404, %v9128, %v9089
    %v9132 = vsel %vm2408, %v9129, %v9097
    %v9133 = vsel %vm2408, %v9130, %v9099
    %v9134 = vsel %vm2408, %v9131, %v9101
    %v9135 = vsel %vm2412, %v9132, %v9109
    %v9136 = vsel %vm2412, %v9133, %v9111
    %v9137 = vsel %vm2412, %v9134, %v9113
    %v9141 = vrot.slane %v9135, 7
    %v9142 = vrot.slane %v9136, 7
    %v9143 = vsel %vm68, %v9141, %v9142
    %v9144 = vrot.slane %v9137, 7
    %v9145 = vsel %vm68, %v9142, %v9144
    %v9147 = vsel %vm68, %v7119, %v9141
    %s9148 = scalar_lea.vmem %s6, 32
    %v9149 = vld [vmem:[%s9148] sm:$0xff]
    %v9150 = vld [vmem:[%s9148 + $0x8] sm:$0xff]
    %v9151 = vld [vmem:[%s9148 + $0x10] sm:$0xff]
    %v9152 = vld [vmem:[%s9148 + $0x18] sm:$0xff]
    %v9154 = vsel %vm194, %v7117, 0
    %v9157 = vsel %vm194, %v7118, 0
    %v9160 = vsel %vm194, %v9147, 0
    %v9162 = vsel %vm194, %v9143, 0
    %v9164 = vsel %vm194, %v9145, 0
    %9166 = vmatprep.subr.mxu0 0.0
    %9167 = vmatpush1.msra.mxu0 0.0
    %9168 = vmatprep.subr.mxu0 0.0
    %9169 = vmatpush1.msra.mxu0 0.0
    %9170 = vmatprep.subr.mxu0 0.0
    %9171 = vmatpush1.msra.mxu0 0.0
    %9172 = vmatprep.subr.mxu0 0.0
    %9173 = vmatpush1.msra.mxu0 0.0
    %9174 = vmatprep.subr.mxu0 0.0
    %9175 = vmatpush1.msra.mxu0 0.0
    %9176 = vmatprep.subr.mxu0 0.0
    %9177 = vmatpush1.msra.mxu0 0.0
    %9178 = vmatprep.subr.mxu0 0.0
    %9179 = vmatpush1.msra.mxu0 0.0
    %9180 = vmatprep.subr.mxu0 0.0
    %9181 = vmatpush1.msra.mxu0 0.0
    %9182 = vmatprep.subr.mxu0 0.0
    %9183 = vmatpush1.msra.mxu0 0.0
    %9184 = vmatprep.subr.mxu0 0.0
    %9185 = vmatpush1.msra.mxu0 0.0
    %9186 = vmatprep.subr.mxu0 0.0
    %9187 = vmatpush1.msra.mxu0 0.0
    %9188 = vmatprep.subr.mxu0 0.0
    %9189 = vmatpush1.msra.mxu0 0.0
    %9190 = vmatprep.subr.mxu0 0.0
    %9191 = vmatpush1.msra.mxu0 %v9152
    %9192 = vmatprep.subr.mxu0 0.0
    %9193 = vmatpush1.msra.mxu0 %v9151
    %9194 = vmatprep.subr.mxu0 0.0
    %9195 = vmatpush1.msra.mxu0 %v9150
    %9196 = vmatprep.subr.mxu0 0.0
    %9197 = vmatpush1.msra.mxu0 %v9149
    %9198 = vmatprep.subr.mxu0 0.0
    %9199 = vmatpush2.msra.mxu0 0.0
    %9200 = vmatprep.subr.mxu0 0.0
    %9201 = vmatpush2.msra.mxu0 0.0
    %9202 = vmatprep.subr.mxu0 0.0
    %9203 = vmatpush2.msra.mxu0 0.0
    %9204 = vmatprep.subr.mxu0 0.0
    %9205 = vmatpush2.msra.mxu0 0.0
    %9206 = vmatprep.subr.mxu0 0.0
    %9207 = vmatpush2.msra.mxu0 0.0
    %9208 = vmatprep.subr.mxu0 0.0
    %9209 = vmatpush2.msra.mxu0 0.0
    %9210 = vmatprep.subr.mxu0 0.0
    %9211 = vmatpush2.msra.mxu0 0.0
    %9212 = vmatprep.subr.mxu0 0.0
    %9213 = vmatpush2.msra.mxu0 0.0
    %9214 = vmatprep.subr.mxu0 0.0
    %9215 = vmatpush2.msra.mxu0 0.0
    %9216 = vmatprep.subr.mxu0 0.0
    %9217 = vmatpush2.msra.mxu0 0.0
    %9218 = vmatprep.subr.mxu0 0.0
    %9219 = vmatpush2.msra.mxu0 0.0
    %9220 = vmatprep.subr.mxu0 0.0
    %9221 = vmatpush2.msra.mxu0 0.0
    %9222 = vmatprep.subr.mxu0 0.0
    %9223 = vmatpush2.msra.mxu0 0.0
    %9224 = vmatprep.subr.mxu0 0.0
    %9225 = vmatpush2.msra.mxu0 0.0
    %9226 = vmatprep.subr.mxu0 0.0
    %9227 = vmatpush2.msra.mxu0 0.0
    %9228 = vmatprep.subr.mxu0 0.0
    %9229 = vmatpush2.msra.mxu0 0.0
    %9230 = vmatprep.mubr.f32.mxu0 0.0
    %9231 = vmatmul.mubr.f32.gmra.mxu0 %v9154
    %v9232 = vpop.f32.mrf.mxu0
    %v9233 = vadd.f32 0.0, %v9232
    %v9234 = vpop.f32.mrf.mxu0
    %9235 = vmatprep.mubr.f32.mxu0 0.0
    %9236 = vmatmul.mubr.f32.gmra.mxu0 %v9157
    %v9237 = vpop.f32.mrf.mxu0
    %v9238 = vadd.f32 0.0, %v9237
    %v9239 = vpop.f32.mrf.mxu0
    %9240 = vmatprep.mubr.f32.mxu0 0.0
    %9241 = vmatmul.mubr.f32.gmra.mxu0 %v9160
    %v9242 = vpop.f32.mrf.mxu0
    %v9243 = vadd.f32 0.0, %v9242
    %v9244 = vpop.f32.mrf.mxu0
    %9245 = vmatprep.mubr.f32.mxu0 0.0
    %9246 = vmatmul.mubr.f32.gmra.mxu0 %v9162
    %v9247 = vpop.f32.mrf.mxu0
    %v9248 = vadd.f32 0.0, %v9247
    %v9249 = vpop.f32.mrf.mxu0
    %9250 = vmatprep.mubr.f32.mxu0 0.0
    %9251 = vmatmul.mubr.f32.gmra.mxu0 %v9164
    %v9252 = vpop.f32.mrf.mxu0
    %v9253 = vadd.f32 0.0, %v9252
    %v9254 = vpop.f32.mrf.mxu0
    %9255 = vdwg.mxu0
    %v9256 = vadd.f32 %v4900, %v9233
    %v9257 = vadd.f32 %v4901, %v9238
    %v9258 = vadd.f32 %v4902, %v9243
    %v9259 = vadd.f32 %v4903, %v9248
    %v9260 = vadd.f32 %v4904, %v9253
    %s9261 = scalar_lea.vmem %s7, 1
    %v9262 = vld [vmem:[%s9261] sm:$0x1]
    %s9263 = scalar_lea.vmem %s8, 1
    %v9264 = vld [vmem:[%s9263] sm:$0x1]
    %v9265 = vsel %vm194, %v9256, 0.0
    %9266 = vadd.xlane.f32.xlu0 %v9265
    %v9267 = vpop.xlane.xlu0 %9266
    %v9268 = vsel %vm194, %v9257, 0.0
    %9269 = vadd.xlane.f32.xlu0 %v9268
    %v9270 = vpop.xlane.xlu0 %9269
    %v9271 = vsel %vm194, %v9258, 0.0
    %9272 = vadd.xlane.f32.xlu0 %v9271
    %v9273 = vpop.xlane.xlu0 %9272
    %v9274 = vsel %vm194, %v9259, 0.0
    %9275 = vadd.xlane.f32.xlu0 %v9274
    %v9276 = vpop.xlane.xlu0 %9275
    %v9277 = vsel %vm207, %v9260, 0.0
    %9278 = vadd.xlane.f32.xlu0 %v9277
    %v9279 = vpop.xlane.xlu0 %9278
    %v9280 = vmul.f32 %v9267, %v211
    %v9281 = vmul.f32 %v9270, %v211
    %v9282 = vmul.f32 %v9273, %v211
    %v9283 = vmul.f32 %v9276, %v211
    %v9284 = vmul.f32 %v9279, %v211
    %v9285 = vsub.f32 %v9256, %v9280
    %v9286 = vsub.f32 %v9257, %v9281
    %v9287 = vsub.f32 %v9258, %v9282
    %v9288 = vsub.f32 %v9259, %v9283
    %v9289 = vsub.f32 %v9260, %v9284
    %v9290 = vmul.f32 %v9285, %v9285
    %v9291 = vmul.f32 %v9286, %v9286
    %v9292 = vmul.f32 %v9287, %v9287
    %v9293 = vmul.f32 %v9288, %v9288
    %v9294 = vmul.f32 %v9289, %v9289
    %v9295 = vsel %vm194, %v9290, 0.0
    %9296 = vadd.xlane.f32.xlu0 %v9295
    %v9297 = vpop.xlane.xlu0 %9296
    %v9298 = vsel %vm194, %v9291, 0.0
    %9299 = vadd.xlane.f32.xlu0 %v9298
    %v9300 = vpop.xlane.xlu0 %9299
    %v9301 = vsel %vm194, %v9292, 0.0
    %9302 = vadd.xlane.f32.xlu0 %v9301
    %v9303 = vpop.xlane.xlu0 %9302
    %v9304 = vsel %vm194, %v9293, 0.0
    %9305 = vadd.xlane.f32.xlu0 %v9304
    %v9306 = vpop.xlane.xlu0 %9305
    %v9307 = vsel %vm207, %v9294, 0.0
    %9308 = vadd.xlane.f32.xlu0 %v9307
    %v9309 = vpop.xlane.xlu0 %9308
    %v9310 = vmul.f32 %v9297, %v211
    %v9311 = vmul.f32 %v9300, %v211
    %v9312 = vmul.f32 %v9303, %v211
    %v9313 = vmul.f32 %v9306, %v211
    %v9314 = vmul.f32 %v9309, %v211
    %v9315 = vadd.f32 %v9310, 1e-05
    %v9316 = vadd.f32 %v9311, 1e-05
    %v9317 = vadd.f32 %v9312, 1e-05
    %v9318 = vadd.f32 %v9313, 1e-05
    %v9319 = vadd.f32 %v9314, 1e-05
    %v9320 = vrsqrt.pop %v9315
    %v9321 = vrsqrt.pop %v9316
    %v9322 = vrsqrt.pop %v9317
    %v9323 = vrsqrt.pop %v9318
    %v9324 = vrsqrt.pop %v9319
    %v9325 = vmul.f32 %v9285, %v9320
    %v9326 = vmul.f32 %v9286, %v9321
    %v9327 = vmul.f32 %v9287, %v9322
    %v9328 = vmul.f32 %v9288, %v9323
    %v9329 = vmul.f32 %v9289, %v9324
    %v9331 = vlaneseq
    %v9332 = vshrl.u32 %v9331, 7
    %v9333 = vsub.s32 0, %v9332
    %v9334 = vrot.slane %v9262, %v9333
    %v9336 = vmul.f32 %v9325, %v9334
    %v9337 = vmul.f32 %v9326, %v9334
    %v9338 = vmul.f32 %v9327, %v9334
    %v9339 = vmul.f32 %v9328, %v9334
    %v9340 = vmul.f32 %v9329, %v9334
    %v9342 = vlaneseq
    %v9343 = vshrl.u32 %v9342, 7
    %v9344 = vsub.s32 0, %v9343
    %v9345 = vrot.slane %v9264, %v9344
    %v9347 = vadd.f32 %v9336, %v9345
    %v9348 = vadd.f32 %v9337, %v9345
    %v9349 = vadd.f32 %v9338, %v9345
    %v9350 = vadd.f32 %v9339, %v9345
    %v9351 = vadd.f32 %v9340, %v9345
    %s9352 = scalar_lea.vmem %s9, 32
    %v9353 = vld [vmem:[%s9352] sm:$0xff]
    %v9354 = vld [vmem:[%s9352 + $0x8] sm:$0xff]
    %v9355 = vld [vmem:[%s9352 + $0x10] sm:$0xff]
    %v9356 = vld [vmem:[%s9352 + $0x18] sm:$0xff]
    %s9357 = scalar_lea.vmem %s10, 1
    %v9358 = vld [vmem:[%s9357] sm:$0x1]
    %v9360 = vlaneseq
    %v9361 = vshrl.u32 %v9360, 7
    %v9362 = vsub.s32 0, %v9361
    %v9363 = vrot.slane %v9358, %v9362
    %v9366 = vsel %vm194, %v9347, 0
    %v9369 = vsel %vm194, %v9348, 0
    %v9372 = vsel %vm194, %v9349, 0
    %v9375 = vsel %vm194, %v9350, 0
    %v9378 = vsel %vm194, %v9351, 0
    %9380 = vmatprep.subr.mxu0 0.0
    %9381 = vmatpush1.msra.mxu0 0.0
    %9382 = vmatprep.subr.mxu0 0.0
    %9383 = vmatpush1.msra.mxu0 0.0
    %9384 = vmatprep.subr.mxu0 0.0
    %9385 = vmatpush1.msra.mxu0 0.0
    %9386 = vmatprep.subr.mxu0 0.0
    %9387 = vmatpush1.msra.mxu0 0.0
    %9388 = vmatprep.subr.mxu0 0.0
    %9389 = vmatpush1.msra.mxu0 0.0
    %9390 = vmatprep.subr.mxu0 0.0
    %9391 = vmatpush1.msra.mxu0 0.0
    %9392 = vmatprep.subr.mxu0 0.0
    %9393 = vmatpush1.msra.mxu0 0.0
    %9394 = vmatprep.subr.mxu0 0.0
    %9395 = vmatpush1.msra.mxu0 0.0
    %9396 = vmatprep.subr.mxu0 0.0
    %9397 = vmatpush1.msra.mxu0 0.0
    %9398 = vmatprep.subr.mxu0 0.0
    %9399 = vmatpush1.msra.mxu0 0.0
    %9400 = vmatprep.subr.mxu0 0.0
    %9401 = vmatpush1.msra.mxu0 0.0
    %9402 = vmatprep.subr.mxu0 0.0
    %9403 = vmatpush1.msra.mxu0 0.0
    %9404 = vmatprep.subr.mxu0 0.0
    %9405 = vmatpush1.msra.mxu0 %v9356
    %9406 = vmatprep.subr.mxu0 0.0
    %9407 = vmatpush1.msra.mxu0 %v9355
    %9408 = vmatprep.subr.mxu0 0.0
    %9409 = vmatpush1.msra.mxu0 %v9354
    %9410 = vmatprep.subr.mxu0 0.0
    %9411 = vmatpush1.msra.mxu0 %v9353
    %9412 = vmatprep.subr.mxu0 0.0
    %9413 = vmatpush2.msra.mxu0 0.0
    %9414 = vmatprep.subr.mxu0 0.0
    %9415 = vmatpush2.msra.mxu0 0.0
    %9416 = vmatprep.subr.mxu0 0.0
    %9417 = vmatpush2.msra.mxu0 0.0
    %9418 = vmatprep.subr.mxu0 0.0
    %9419 = vmatpush2.msra.mxu0 0.0
    %9420 = vmatprep.subr.mxu0 0.0
    %9421 = vmatpush2.msra.mxu0 0.0
    %9422 = vmatprep.subr.mxu0 0.0
    %9423 = vmatpush2.msra.mxu0 0.0
    %9424 = vmatprep.subr.mxu0 0.0
    %9425 = vmatpush2.msra.mxu0 0.0
    %9426 = vmatprep.subr.mxu0 0.0
    %9427 = vmatpush2.msra.mxu0 0.0
    %9428 = vmatprep.subr.mxu0 0.0
    %9429 = vmatpush2.msra.mxu0 0.0
    %9430 = vmatprep.subr.mxu0 0.0
    %9431 = vmatpush2.msra.mxu0 0.0
    %9432 = vmatprep.subr.mxu0 0.0
    %9433 = vmatpush2.msra.mxu0 0.0
    %9434 = vmatprep.subr.mxu0 0.0
    %9435 = vmatpush2.msra.mxu0 0.0
    %9436 = vmatprep.subr.mxu0 0.0
    %9437 = vmatpush2.msra.mxu0 0.0
    %9438 = vmatprep.subr.mxu0 0.0
    %9439 = vmatpush2.msra.mxu0 0.0
    %9440 = vmatprep.subr.mxu0 0.0
    %9441 = vmatpush2.msra.mxu0 0.0
    %9442 = vmatprep.subr.mxu0 0.0
    %9443 = vmatpush2.msra.mxu0 0.0
    %9444 = vmatprep.mubr.f32.mxu0 0.0
    %9445 = vmatmul.mubr.f32.gmra.mxu0 %v9366
    %v9446 = vpop.f32.mrf.mxu0
    %v9447 = vadd.f32 %v9363, %v9446
    %v9448 = vpop.f32.mrf.mxu0
    %9449 = vmatprep.mubr.f32.mxu0 0.0
    %9450 = vmatmul.mubr.f32.gmra.mxu0 %v9369
    %v9451 = vpop.f32.mrf.mxu0
    %v9452 = vadd.f32 %v9363, %v9451
    %v9453 = vpop.f32.mrf.mxu0
    %9454 = vmatprep.mubr.f32.mxu0 0.0
    %9455 = vmatmul.mubr.f32.gmra.mxu0 %v9372
    %v9456 = vpop.f32.mrf.mxu0
    %v9457 = vadd.f32 %v9363, %v9456
    %v9458 = vpop.f32.mrf.mxu0
    %9459 = vmatprep.mubr.f32.mxu0 0.0
    %9460 = vmatmul.mubr.f32.gmra.mxu0 %v9375
    %v9461 = vpop.f32.mrf.mxu0
    %v9462 = vadd.f32 %v9363, %v9461
    %v9463 = vpop.f32.mrf.mxu0
    %9464 = vmatprep.mubr.f32.mxu0 0.0
    %9465 = vmatmul.mubr.f32.gmra.mxu0 %v9378
    %v9466 = vpop.f32.mrf.mxu0
    %v9467 = vadd.f32 %v9363, %v9466
    %v9468 = vpop.f32.mrf.mxu0
    %9469 = vdwg.mxu0
    %v9470 = vmul.f32 %v9447, 0.5
    %v9471 = vmul.f32 %v9452, 0.5
    %v9472 = vmul.f32 %v9457, 0.5
    %v9473 = vmul.f32 %v9462, 0.5
    %v9474 = vmul.f32 %v9467, 0.5
    %v9475 = vmul.f32 %v9447, 0.70710677
    %v9476 = vmul.f32 %v9452, 0.70710677
    %v9477 = vmul.f32 %v9457, 0.70710677
    %v9478 = vmul.f32 %v9462, 0.70710677
    %v9479 = vmul.f32 %v9467, 0.70710677
    %v9480 = verf.f32.pop %v9475
    %v9481 = verf.f32.pop %v9476
    %v9482 = verf.f32.pop %v9477
    %v9483 = verf.f32.pop %v9478
    %v9484 = verf.f32.pop %v9479
    %v9485 = vadd.f32 %v9480, 1.0
    %v9486 = vadd.f32 %v9481, 1.0
    %v9487 = vadd.f32 %v9482, 1.0
    %v9488 = vadd.f32 %v9483, 1.0
    %v9489 = vadd.f32 %v9484, 1.0
    %v9490 = vmul.f32 %v9470, %v9485
    %v9491 = vmul.f32 %v9471, %v9486
    %v9492 = vmul.f32 %v9472, %v9487
    %v9493 = vmul.f32 %v9473, %v9488
    %v9494 = vmul.f32 %v9474, %v9489
    %s9495 = scalar_lea.vmem %s11, 128
    %v9496 = vld [vmem:[%s9495] sm:$0xff]
    %v9497 = vld [vmem:[%s9495 + $0x8] sm:$0xff]
    %v9498 = vld [vmem:[%s9495 + $0x10] sm:$0xff]
    %v9499 = vld [vmem:[%s9495 + $0x18] sm:$0xff]
    %v9500 = vld [vmem:[%s9495 + $0x20] sm:$0xff]
    %v9501 = vld [vmem:[%s9495 + $0x28] sm:$0xff]
    %v9502 = vld [vmem:[%s9495 + $0x30] sm:$0xff]
    %v9503 = vld [vmem:[%s9495 + $0x38] sm:$0xff]
    %v9504 = vld [vmem:[%s9495 + $0x40] sm:$0xff]
    %v9505 = vld [vmem:[%s9495 + $0x48] sm:$0xff]
    %v9506 = vld [vmem:[%s9495 + $0x50] sm:$0xff]
    %v9507 = vld [vmem:[%s9495 + $0x58] sm:$0xff]
    %v9508 = vld [vmem:[%s9495 + $0x60] sm:$0xff]
    %v9509 = vld [vmem:[%s9495 + $0x68] sm:$0xff]
    %v9510 = vld [vmem:[%s9495 + $0x70] sm:$0xff]
    %v9511 = vld [vmem:[%s9495 + $0x78] sm:$0xff]
    %s9512 = scalar_lea.vmem %s12, 1
    %v9513 = vld [vmem:[%s9512] sm:$0x1]
    %v9515 = vlaneseq
    %v9516 = vshrl.u32 %v9515, 7
    %v9517 = vsub.s32 0, %v9516
    %v9518 = vrot.slane %v9513, %v9517
    %9520 = vmatprep.subr.mxu0 0.0
    %9521 = vmatpush1.msra.mxu0 %v9511
    %9522 = vmatprep.subr.mxu0 0.0
    %9523 = vmatpush1.msra.mxu0 %v9510
    %9524 = vmatprep.subr.mxu0 0.0
    %9525 = vmatpush1.msra.mxu0 %v9509
    %9526 = vmatprep.subr.mxu0 0.0
    %9527 = vmatpush1.msra.mxu0 %v9508
    %9528 = vmatprep.subr.mxu0 0.0
    %9529 = vmatpush1.msra.mxu0 %v9507
    %9530 = vmatprep.subr.mxu0 0.0
    %9531 = vmatpush1.msra.mxu0 %v9506
    %9532 = vmatprep.subr.mxu0 0.0
    %9533 = vmatpush1.msra.mxu0 %v9505
    %9534 = vmatprep.subr.mxu0 0.0
    %9535 = vmatpush1.msra.mxu0 %v9504
    %9536 = vmatprep.subr.mxu0 0.0
    %9537 = vmatpush1.msra.mxu0 %v9503
    %9538 = vmatprep.subr.mxu0 0.0
    %9539 = vmatpush1.msra.mxu0 %v9502
    %9540 = vmatprep.subr.mxu0 0.0
    %9541 = vmatpush1.msra.mxu0 %v9501
    %9542 = vmatprep.subr.mxu0 0.0
    %9543 = vmatpush1.msra.mxu0 %v9500
    %9544 = vmatprep.subr.mxu0 0.0
    %9545 = vmatpush1.msra.mxu0 %v9499
    %9546 = vmatprep.subr.mxu0 0.0
    %9547 = vmatpush1.msra.mxu0 %v9498
    %9548 = vmatprep.subr.mxu0 0.0
    %9549 = vmatpush1.msra.mxu0 %v9497
    %9550 = vmatprep.subr.mxu0 0.0
    %9551 = vmatpush1.msra.mxu0 %v9496
    %9552 = vmatprep.subr.mxu0 0.0
    %9553 = vmatpush2.msra.mxu0 0.0
    %9554 = vmatprep.subr.mxu0 0.0
    %9555 = vmatpush2.msra.mxu0 0.0
    %9556 = vmatprep.subr.mxu0 0.0
    %9557 = vmatpush2.msra.mxu0 0.0
    %9558 = vmatprep.subr.mxu0 0.0
    %9559 = vmatpush2.msra.mxu0 0.0
    %9560 = vmatprep.subr.mxu0 0.0
    %9561 = vmatpush2.msra.mxu0 0.0
    %9562 = vmatprep.subr.mxu0 0.0
    %9563 = vmatpush2.msra.mxu0 0.0
    %9564 = vmatprep.subr.mxu0 0.0
    %9565 = vmatpush2.msra.mxu0 0.0
    %9566 = vmatprep.subr.mxu0 0.0
    %9567 = vmatpush2.msra.mxu0 0.0
    %9568 = vmatprep.subr.mxu0 0.0
    %9569 = vmatpush2.msra.mxu0 0.0
    %9570 = vmatprep.subr.mxu0 0.0
    %9571 = vmatpush2.msra.mxu0 0.0
    %9572 = vmatprep.subr.mxu0 0.0
    %9573 = vmatpush2.msra.mxu0 0.0
    %9574 = vmatprep.subr.mxu0 0.0
    %9575 = vmatpush2.msra.mxu0 0.0
    %9576 = vmatprep.subr.mxu0 0.0
    %9577 = vmatpush2.msra.mxu0 0.0
    %9578 = vmatprep.subr.mxu0 0.0
    %9579 = vmatpush2.msra.mxu0 0.0
    %9580 = vmatprep.subr.mxu0 0.0
    %9581 = vmatpush2.msra.mxu0 0.0
    %9582 = vmatprep.subr.mxu0 0.0
    %9583 = vmatpush2.msra.mxu0 0.0
    %9584 = vmatprep.mubr.f32.mxu0 0.0
    %9585 = vmatmul.mubr.f32.gmra.mxu0 %v9490
    %v9586 = vpop.f32.mrf.mxu0
    %v9587 = vadd.f32 %v9518, %v9586
    %v9588 = vpop.f32.mrf.mxu0
    %9589 = vmatprep.mubr.f32.mxu0 0.0
    %9590 = vmatmul.mubr.f32.gmra.mxu0 %v9491
    %v9591 = vpop.f32.mrf.mxu0
    %v9592 = vpop.f32.mrf.mxu0
    %9593 = vmatprep.mubr.f32.mxu0 0.0
    %9594 = vmatmul.mubr.f32.gmra.mxu0 %v9492
    %v9595 = vpop.f32.mrf.mxu0
    %v9596 = vadd.f32 %v9518, %v9595
    %v9597 = vpop.f32.mrf.mxu0
    %9598 = vmatprep.mubr.f32.mxu0 0.0
    %9599 = vmatmul.mubr.f32.gmra.mxu0 %v9493
    %v9600 = vpop.f32.mrf.mxu0
    %v9601 = vpop.f32.mrf.mxu0
    %9602 = vmatprep.mubr.f32.mxu0 0.0
    %9603 = vmatmul.mubr.f32.gmra.mxu0 %v9494
    %v9604 = vpop.f32.mrf.mxu0
    %v9605 = vpop.f32.mrf.mxu0
    %9606 = vdwg.mxu0
    %v9607 = vadd.f32 %v9256, %v9587
    %v9608 = vadd.f32 %v9258, %v9596
    %v9609 = vsel %vm68, %v9607, %v9608
    %v9610 = vld [vmem:[%s13] sm:$0x1]
    %v9611 = vld [vmem:[%s14] sm:$0x1]
    %v9612 = vsel %vm207, %v9609, 0.0
    %9613 = vadd.xlane.f32.xlu0 %v9612
    %v9614 = vpop.xlane.xlu0 %9613
    %v9615 = vmul.f32 %v9614, %v211
    %v9616 = vsub.f32 %v9609, %v9615
    %v9617 = vmul.f32 %v9616, %v9616
    %v9618 = vsel %vm207, %v9617, 0.0
    %9619 = vadd.xlane.f32.xlu0 %v9618
    %v9620 = vpop.xlane.xlu0 %9619
    %v9621 = vmul.f32 %v9620, %v211
    %v9622 = vadd.f32 %v9621, 1e-05
    %v9623 = vrsqrt.pop %v9622
    %v9624 = vmul.f32 %v9616, %v9623
    %v9626 = vlaneseq
    %v9627 = vshrl.u32 %v9626, 7
    %v9628 = vsub.s32 0, %v9627
    %v9629 = vrot.slane %v9610, %v9628
    %v9631 = vmul.f32 %v9624, %v9629
    %v9633 = vlaneseq
    %v9634 = vshrl.u32 %v9633, 7
    %v9635 = vsub.s32 0, %v9634
    %v9636 = vrot.slane %v9611, %v9635
    %v9638 = vadd.f32 %v9631, %v9636
    %v9639 = vld [vmem:[%s15] sm:$0xff]
    %v9640 = vld [vmem:[%s15 + $0x8] sm:$0xff]
    %v9641 = vld [vmem:[%s15 + $0x10] sm:$0xff]
    %v9642 = vld [vmem:[%s15 + $0x18] sm:$0xff]
    %v9643 = vld [vmem:[%s16] sm:$0x1]
    %v9645 = vlaneseq
    %v9646 = vshrl.u32 %v9645, 7
    %v9647 = vsub.s32 0, %v9646
    %v9648 = vrot.slane %v9643, %v9647
    %v9651 = vsel %vm194, %v9638, 0
    %9653 = vmatprep.subr.mxu0 0.0
    %9654 = vmatpush1.msra.mxu0 0.0
    %9655 = vmatprep.subr.mxu0 0.0
    %9656 = vmatpush1.msra.mxu0 0.0
    %9657 = vmatprep.subr.mxu0 0.0
    %9658 = vmatpush1.msra.mxu0 0.0
    %9659 = vmatprep.subr.mxu0 0.0
    %9660 = vmatpush1.msra.mxu0 0.0
    %9661 = vmatprep.subr.mxu0 0.0
    %9662 = vmatpush1.msra.mxu0 0.0
    %9663 = vmatprep.subr.mxu0 0.0
    %9664 = vmatpush1.msra.mxu0 0.0
    %9665 = vmatprep.subr.mxu0 0.0
    %9666 = vmatpush1.msra.mxu0 0.0
    %9667 = vmatprep.subr.mxu0 0.0
    %9668 = vmatpush1.msra.mxu0 0.0
    %9669 = vmatprep.subr.mxu0 0.0
    %9670 = vmatpush1.msra.mxu0 0.0
    %9671 = vmatprep.subr.mxu0 0.0
    %9672 = vmatpush1.msra.mxu0 0.0
    %9673 = vmatprep.subr.mxu0 0.0
    %9674 = vmatpush1.msra.mxu0 0.0
    %9675 = vmatprep.subr.mxu0 0.0
    %9676 = vmatpush1.msra.mxu0 0.0
    %9677 = vmatprep.subr.mxu0 0.0
    %9678 = vmatpush1.msra.mxu0 %v9642
    %9679 = vmatprep.subr.mxu0 0.0
    %9680 = vmatpush1.msra.mxu0 %v9641
    %9681 = vmatprep.subr.mxu0 0.0
    %9682 = vmatpush1.msra.mxu0 %v9640
    %9683 = vmatprep.subr.mxu0 0.0
    %9684 = vmatpush1.msra.mxu0 %v9639
    %9685 = vmatprep.subr.mxu0 0.0
    %9686 = vmatpush2.msra.mxu0 0.0
    %9687 = vmatprep.subr.mxu0 0.0
    %9688 = vmatpush2.msra.mxu0 0.0
    %9689 = vmatprep.subr.mxu0 0.0
    %9690 = vmatpush2.msra.mxu0 0.0
    %9691 = vmatprep.subr.mxu0 0.0
    %9692 = vmatpush2.msra.mxu0 0.0
    %9693 = vmatprep.subr.mxu0 0.0
    %9694 = vmatpush2.msra.mxu0 0.0
    %9695 = vmatprep.subr.mxu0 0.0
    %9696 = vmatpush2.msra.mxu0 0.0
    %9697 = vmatprep.subr.mxu0 0.0
    %9698 = vmatpush2.msra.mxu0 0.0
    %9699 = vmatprep.subr.mxu0 0.0
    %9700 = vmatpush2.msra.mxu0 0.0
    %9701 = vmatprep.subr.mxu0 0.0
    %9702 = vmatpush2.msra.mxu0 0.0
    %9703 = vmatprep.subr.mxu0 0.0
    %9704 = vmatpush2.msra.mxu0 0.0
    %9705 = vmatprep.subr.mxu0 0.0
    %9706 = vmatpush2.msra.mxu0 0.0
    %9707 = vmatprep.subr.mxu0 0.0
    %9708 = vmatpush2.msra.mxu0 0.0
    %9709 = vmatprep.subr.mxu0 0.0
    %9710 = vmatpush2.msra.mxu0 0.0
    %9711 = vmatprep.subr.mxu0 0.0
    %9712 = vmatpush2.msra.mxu0 0.0
    %9713 = vmatprep.subr.mxu0 0.0
    %9714 = vmatpush2.msra.mxu0 0.0
    %9715 = vmatprep.subr.mxu0 0.0
    %9716 = vmatpush2.msra.mxu0 0.0
    %9717 = vmatprep.mubr.f32.mxu0 0.0
    %9718 = vmatmul.mubr.f32.gmra.mxu0 %v9651
    %v9719 = vpop.f32.mrf.mxu0
    %v9720 = vadd.f32 %v9648, %v9719
    %v9721 = vpop.f32.mrf.mxu0
    %9722 = vdwg.mxu0
    %vm9723 = vcmask 9216
    %9724 = vst.msk [vmem:[#allocation2] sm:$0x3] %vm9723, %v9720
    // Predicated region
    $region70: #{vit_forward.1} parent=1 // pred_check
      _
    $region71: #{vit_forward.1} parent=1 // pred_check_branch
      %9726 = sbr.rel (0) target = $region73
    $region72: #{vit_forward.1} parent=1 // pred_region
      %s9728 = ssub.s32 32, 32
      %9729 = vsyncadd [#allocation3], %s9728
      %s9731 = sshll.u32 [#allocation2], 4
      %s9732 = int_to_ptr.vmem [resolvable:$true] %s9731
      %9734 = dma.vmem_to_hbm [thread:$0]  %s9732, 32, %s17, [#allocation3]
    $region73: #{vit_forward.1} parent=1 // pred_fallthru
      _
    // Predicated region
    $region74: #{vit_forward.1} parent=1 // pred_check
      _
    $region75: #{vit_forward.1} parent=1 // pred_check_branch
      %9736 = sbr.rel (0) target = $region77
    $region76: #{vit_forward.1} parent=1 // pred_region
      %9737 = dma.done [#allocation3], 32
    $region77: #{vit_forward.1} parent=1 // pred_fallthru
      _
    %9738 = vsyncpa [#allocation3], 1

</llo_original>
